<compile_context>
chip_gen: v5e
topology: v5e:2x2
jax: 0.10.0
libtpu: 0.0.40
codegen_flags: <defaults>
</compile_context>

<pallas_src>
import functools
import math

import jax
import jax.numpy as jnp
from jax.experimental import pallas as pl
from jax.experimental.pallas import tpu as pltpu


_W_PER_LAYER = 14  # weight tensors handed to the kernel per encoder layer


def _ln(x, g, b, eps=1e-5):
    # PyTorch nn.LayerNorm: biased variance, eps inside rsqrt.
    mean = jnp.mean(x, axis=-1, keepdims=True)
    var = jnp.mean(jnp.square(x - mean), axis=-1, keepdims=True)
    return (x - mean) * jax.lax.rsqrt(var + eps) * g + b


# ------------------------------ fused stack kernel ------------------------------

def _encoder_stack_kernel(x_ref, *refs, heads, num_layers, T, C, ffn_chunk):
    o_ref = refs[-1]
    wrefs = refs[:-1]

    bt = x_ref.shape[0]
    M = bt * T
    dh = C // heads
    scale = 1.0 / math.sqrt(dh)

    # ---- lane-dense load: [bt, T*C] -> [bt, T, C] via static lane slices ----
    x_tc = x_ref[...]
    x3 = jnp.concatenate(
        [x_tc[:, t * C:(t + 1) * C].reshape(bt, 1, C) for t in range(T)], axis=1)
    cur = x3.reshape(M, C)                       # layer activation, f32 [M, C]

    for l in range(num_layers):
        (emb, wqkv, fcw, fcb, n1g, n1b, f1w, f1b, f2w, f2b,
         n2g, n2b, lng, lnb) = wrefs[l * _W_PER_LAYER:(l + 1) * _W_PER_LAYER]

        # Transformer_EncoderBlock: query = x + D_T; the reference feeds this
        # same tensor to Q, K and V.
        q3 = cur.reshape(bt, T, C) + emb[...][None, :, :]
        qf = q3.reshape(M, C)

        # Fused Q/K/V projection (bias-free): one [M,C] @ [C,3C] MXU matmul.
        qkv = jnp.dot(qf, wqkv[...], preferred_element_type=jnp.float32)
        qkv3 = qkv.reshape(bt, T, 3 * C)

        # Per-head scaled-dot-product attention over T.  Contexts are packed
        # into one [M, C] buffer, then a single full-K fc_out matmul
        # (== fc_out(concat_h ctx_h)), instead of H shallow-K matmuls.
        ctxs = []
        for h in range(heads):
            lo = h * dh
            qh = qkv3[:, :, lo:lo + dh]
            kh = qkv3[:, :, C + lo:C + lo + dh]
            vh = qkv3[:, :, 2 * C + lo:2 * C + lo + dh]
            s = jnp.einsum('btd,bsd->bts', qh, kh,
                           preferred_element_type=jnp.float32) * scale
            s = s - jnp.max(s, axis=-1, keepdims=True)
            e = jnp.exp(s)
            p = e * pl.reciprocal(jnp.sum(e, axis=-1, keepdims=True), approx=True)
            ctxs.append(jnp.einsum('bts,bsd->btd', p, vh,
                                   preferred_element_type=jnp.float32))
        ctx = jnp.concatenate(ctxs, axis=-1).reshape(M, C)
        attn = jnp.dot(ctx, fcw[...], preferred_element_type=jnp.float32) + fcb[...]

        # x1 = norm1(attention + query)
        x1 = _ln(attn + qf, n1g[...], n1b[...])

        # Feed-forward; hidden dim chunked to bound the [M, FC] live temp.
        FCdim = f1w.shape[1]
        f1b_full = f1b[...]
        ff = None
        for c0 in range(0, FCdim, ffn_chunk):
            c1 = min(c0 + ffn_chunk, FCdim)
            h1 = jnp.maximum(
                jnp.dot(x1, f1w[:, c0:c1], preferred_element_type=jnp.float32)
                + f1b_full[:, c0:c1], 0.0)
            part = jnp.dot(h1, f2w[c0:c1, :], preferred_element_type=jnp.float32)
            ff = part if ff is None else ff + part
        ff = ff + f2b[...]
        x2 = _ln(ff + x1, n2g[...], n2b[...])

        # TTransformer_EncoderLayer: norm1(block_out + original layer input);
        # dropout = identity.
        cur = _ln(x2 + cur, lng[...], lnb[...])

    # ---- lane-dense store: [M, C] -> [bt, T*C] ----
    out3 = cur.reshape(bt, T, C)
    out_tc = jnp.concatenate([out3[:, t, :] for t in range(T)], axis=-1)
    o_ref[...] = out_tc.astype(o_ref.dtype)


# ------------------------------ sizing helpers ------------------------------

def _round_up(a, m):
    return ((a + m - 1) // m) * m


def _tile_act_bytes(bn_tile, T, C, FC, heads, ffn_chunk):
    M = bn_tile * T
    io = 4 * bn_tile * T * C * 4                       # in + out, double-buffered
    temps = 4 * M * (12 * C + min(FC, ffn_chunk)) + 4 * heads * bn_tile * T * T
    return io + temps


def _layer_weight_bytes(T, C, FC):
    return 4 * (T * C + 4 * C * C + 2 * C * FC + FC + 8 * C)


def _num_tensorcores():
    # v7x has 2 TensorCores per chip; v5e/v6e have 1.
    try:
        kind = jax.devices()[0].device_kind.lower()
        return 2 if "7" in kind else 1
    except Exception:
        return 1


def _choose_bn_tile(BN, T, C, FC, heads, ffn_chunk,
                    max_rows=1024, act_budget=40 << 20):
    """Target 512-1024 rows per tile, shrink only if the VMEM estimate says so."""
    target = max(1, min(BN, max(1, max_rows // max(T, 1))))
    while target > 1 and _tile_act_bytes(target, T, C, FC, heads, ffn_chunk) > act_budget:
        target = max(1, target // 2)
    if target >= BN:
        bn_tile = BN                           # single tile: block dim == array dim
    else:
        bn_tile = max(8, (target // 8) * 8)    # 8-row alignment for the block
    # On v7x, give both TensorCores work when an 8-row-aligned split exists.
    if _num_tensorcores() >= 2 and BN >= 16 and _round_up(BN, bn_tile) // bn_tile < 2:
        bn_tile = max(8, ((BN // 2) // 8) * 8)
    return bn_tile


# ------------------------------ wrappers ------------------------------

def encoder_forward(x, params, heads):
    B, N, T, C = x.shape
    assert C % heads == 0
    BN = B * N
    layers = params["layers"]
    L = len(layers)
    FC = layers[0]["ff1_w"].shape[1]
    ffn_chunk = min(FC, 512)

    bn_tile = _choose_bn_tile(BN, T, C, FC, heads, ffn_chunk)
    BN_pad = _round_up(BN, bn_tile)
    grid = (BN_pad // bn_tile,)

    # Lane-dense activation layout: the lane axis is T*C (not C).
    x2d = x.reshape(BN, T * C)
    if BN_pad != BN:
        x2d = jnp.pad(x2d, ((0, BN_pad - BN), (0, 0)))

    wbytes = _layer_weight_bytes(T, C, FC)
    # Fuse as many layers per pallas_call as fit a weight budget (weights are
    # double-buffered by the pipeline, hence the 2x); cap unroll depth at 8.
    layers_per_call = max(1, min(L, 8, (16 << 20) // max(1, 2 * wbytes)))
    vmem_limit = int(min(64 << 20,             # portable cap (v7x physical VMEM)
                         max(32 << 20,
                             2 * (_tile_act_bytes(bn_tile, T, C, FC, heads, ffn_chunk)
                                  + 2 * layers_per_call * wbytes))))

    def prep(lp):
        v = lambda a: a.reshape(1, -1)
        assert lp["emb"].shape[0] >= T
        return (lp["emb"][:T],                                       # [T, C]
                jnp.concatenate([lp["wq"], lp["wk"], lp["wv"]], axis=1),  # [C, 3C]
                lp["fc_w"], v(lp["fc_b"]), v(lp["n1_g"]), v(lp["n1_b"]),
                lp["ff1_w"], v(lp["ff1_b"]), lp["ff2_w"], v(lp["ff2_b"]),
                v(lp["n2_g"]), v(lp["n2_b"]), v(lp["ln_g"]), v(lp["ln_b"]))

    def wspec(a):
        # Full-array block, same block index every grid step -> fetched once.
        return pl.BlockSpec(a.shape, lambda i, _nd=a.ndim: (0,) * _nd)

    act_spec = pl.BlockSpec((bn_tile, T * C), lambda i: (i, 0))

    out2d = x2d                                 # Encoder.dropout -> identity (eval)
    for g0 in range(0, L, layers_per_call):
        group = layers[g0:g0 + layers_per_call]
        flat_w = []
        for lp in group:
            flat_w.extend(prep(lp))
        kernel = functools.partial(
            _encoder_stack_kernel, heads=heads, num_layers=len(group),
            T=T, C=C, ffn_chunk=ffn_chunk)
        out2d = pl.pallas_call(
            kernel,
            out_shape=jax.ShapeDtypeStruct((BN_pad, T * C), jnp.float32),
            grid=grid,
            in_specs=[act_spec] + [wspec(a) for a in flat_w],
            out_specs=act_spec,
            compiler_params=pltpu.CompilerParams(
                dimension_semantics=("parallel",),
                vmem_limit_bytes=vmem_limit),
        )(out2d, *flat_w)

    return out2d[:BN].reshape(B, N, T, C)


def _reference_forward(x, params, heads):
    """Pure-JAX transcription of the PyTorch Encoder (eval mode), for checking."""
    B, N, T, C = x.shape
    H = heads
    dh = C // H
    out = x
    for lp in params["layers"]:
        q = out + lp["emb"][:T][None, None, :, :]
        Q, K, V = q @ lp["wq"], q @ lp["wk"], q @ lp["wv"]
        split = lambda z: z.reshape(B, N, T, H, dh)
        s = jnp.einsum('bnthd,bnshd->bnhts', split(Q), split(K)) / math.sqrt(dh)
        p = jax.nn.softmax(s, axis=-1)
        ctx = jnp.einsum('bnhts,bnshd->bnthd', p, split(V)).reshape(B, N, T, C)
        attn = ctx @ lp["fc_w"] + lp["fc_b"]
        x1 = _ln(attn + q, lp["n1_g"], lp["n1_b"])
        ff = jnp.maximum(x1 @ lp["ff1_w"] + lp["ff1_b"], 0.0) @ lp["ff2_w"] + lp["ff2_b"]
        x2 = _ln(ff + x1, lp["n2_g"], lp["n2_b"])
        out = _ln(x2 + out, lp["ln_g"], lp["ln_b"])
    return out


def init_params(key, cfg):
    C = cfg["embed_size"]
    FC = cfg["forward_expansion"] * C
    P = cfg["pe_length"]
    keys = iter(jax.random.split(key, 16 * cfg["num_layers"] + 2))

    def rnd(shape, scale=0.1):
        return (scale * jax.random.normal(next(keys), shape)).astype(jnp.float32)

    layers = []
    for _ in range(cfg["num_layers"]):
        layers.append({
            "emb": rnd((P, C)),                       # nn.Embedding(pe_length, C)
            # linear weights stored pre-transposed as [in, out]: y = x @ W (+ b)
            "wq": rnd((C, C)), "wk": rnd((C, C)), "wv": rnd((C, C)),   # no bias
            "fc_w": rnd((C, C)), "fc_b": rnd((C,)),
            "n1_g": jnp.ones((C,), jnp.float32), "n1_b": jnp.zeros((C,), jnp.float32),
            "ff1_w": rnd((C, FC)), "ff1_b": rnd((FC,)),
            "ff2_w": rnd((FC, C)), "ff2_b": rnd((C,)),
            "n2_g": jnp.ones((C,), jnp.float32), "n2_b": jnp.zeros((C,), jnp.float32),
            "ln_g": jnp.ones((C,), jnp.float32), "ln_b": jnp.zeros((C,), jnp.float32),
        })
    return {"layers": layers}


if __name__ == "__main__":
    cfg = dict(embed_size=32, num_layers=2, pe_length=8, heads=4,
               forward_expansion=4, dropout=0.0)
    B, N, T = 2, 4, 8
    key = jax.random.PRNGKey(0)
    kx, kp = jax.random.split(key)
    x = jax.random.normal(kx, (B, N, T, cfg["embed_size"]), jnp.float32)
    params = init_params(kp, cfg)

    fwd = jax.jit(lambda x_, p_: encoder_forward(x_, p_, cfg["heads"]))
    out = jax.block_until_ready(fwd(x, params))
    assert out.shape == (B, N, T, cfg["embed_size"]), out.shape
    assert bool(jnp.all(jnp.isfinite(out)))

    # Cross-check against a pure-JAX transcription of the PyTorch module.
    with jax.default_matmul_precision("highest"):
        ref = jax.block_until_ready(_reference_forward(x, params, cfg["heads"]))
    err = float(jnp.max(jnp.abs(out - ref)))
    assert err < 3e-2, f"max abs err vs reference: {err}"
    print("KERNEL_OK")
</pallas_src>

<mosaic_0001>
module attributes {stable_mosaic.version = 11 : i64} {
  func.func @_encoder_stack_kernel(%arg0: i32, %arg1: memref<8x256xf32, #tpu.memory_space<vmem>>, %arg2: memref<8x32xf32, #tpu.memory_space<vmem>>, %arg3: memref<32x96xf32, #tpu.memory_space<vmem>>, %arg4: memref<32x32xf32, #tpu.memory_space<vmem>>, %arg5: memref<1x32xf32, #tpu.memory_space<vmem>>, %arg6: memref<1x32xf32, #tpu.memory_space<vmem>>, %arg7: memref<1x32xf32, #tpu.memory_space<vmem>>, %arg8: memref<32x128xf32, #tpu.memory_space<vmem>>, %arg9: memref<1x128xf32, #tpu.memory_space<vmem>>, %arg10: memref<128x32xf32, #tpu.memory_space<vmem>>, %arg11: memref<1x32xf32, #tpu.memory_space<vmem>>, %arg12: memref<1x32xf32, #tpu.memory_space<vmem>>, %arg13: memref<1x32xf32, #tpu.memory_space<vmem>>, %arg14: memref<1x32xf32, #tpu.memory_space<vmem>>, %arg15: memref<1x32xf32, #tpu.memory_space<vmem>>, %arg16: memref<8x32xf32, #tpu.memory_space<vmem>>, %arg17: memref<32x96xf32, #tpu.memory_space<vmem>>, %arg18: memref<32x32xf32, #tpu.memory_space<vmem>>, %arg19: memref<1x32xf32, #tpu.memory_space<vmem>>, %arg20: memref<1x32xf32, #tpu.memory_space<vmem>>, %arg21: memref<1x32xf32, #tpu.memory_space<vmem>>, %arg22: memref<32x128xf32, #tpu.memory_space<vmem>>, %arg23: memref<1x128xf32, #tpu.memory_space<vmem>>, %arg24: memref<128x32xf32, #tpu.memory_space<vmem>>, %arg25: memref<1x32xf32, #tpu.memory_space<vmem>>, %arg26: memref<1x32xf32, #tpu.memory_space<vmem>>, %arg27: memref<1x32xf32, #tpu.memory_space<vmem>>, %arg28: memref<1x32xf32, #tpu.memory_space<vmem>>, %arg29: memref<1x32xf32, #tpu.memory_space<vmem>>, %arg30: memref<8x256xf32, #tpu.memory_space<vmem>>) attributes {dimension_semantics = [#tpu.dimension_semantics<parallel>], iteration_bounds = array<i64: 1>, scalar_prefetch = 0 : i64, scratch_operands = 0 : i64, tpu.core_type = #tpu.core_type<tc>, window_params = [{transform_indices = @transform_0, window_bounds = array<i64: 8, 256>}, {pipeline_mode = #tpu.pipeline_mode<synchronous>, transform_indices = @transform_1, window_bounds = array<i64: 8, 32>}, {pipeline_mode = #tpu.pipeline_mode<synchronous>, transform_indices = @transform_2, window_bounds = array<i64: 32, 96>}, {pipeline_mode = #tpu.pipeline_mode<synchronous>, transform_indices = @transform_3, window_bounds = array<i64: 32, 32>}, {pipeline_mode = #tpu.pipeline_mode<synchronous>, transform_indices = @transform_4, window_bounds = array<i64: 1, 32>}, {pipeline_mode = #tpu.pipeline_mode<synchronous>, transform_indices = @transform_5, window_bounds = array<i64: 1, 32>}, {pipeline_mode = #tpu.pipeline_mode<synchronous>, transform_indices = @transform_6, window_bounds = array<i64: 1, 32>}, {pipeline_mode = #tpu.pipeline_mode<synchronous>, transform_indices = @transform_7, window_bounds = array<i64: 32, 128>}, {pipeline_mode = #tpu.pipeline_mode<synchronous>, transform_indices = @transform_8, window_bounds = array<i64: 1, 128>}, {pipeline_mode = #tpu.pipeline_mode<synchronous>, transform_indices = @transform_9, window_bounds = array<i64: 128, 32>}, {pipeline_mode = #tpu.pipeline_mode<synchronous>, transform_indices = @transform_10, window_bounds = array<i64: 1, 32>}, {pipeline_mode = #tpu.pipeline_mode<synchronous>, transform_indices = @transform_11, window_bounds = array<i64: 1, 32>}, {pipeline_mode = #tpu.pipeline_mode<synchronous>, transform_indices = @transform_12, window_bounds = array<i64: 1, 32>}, {pipeline_mode = #tpu.pipeline_mode<synchronous>, transform_indices = @transform_13, window_bounds = array<i64: 1, 32>}, {pipeline_mode = #tpu.pipeline_mode<synchronous>, transform_indices = @transform_14, window_bounds = array<i64: 1, 32>}, {pipeline_mode = #tpu.pipeline_mode<synchronous>, transform_indices = @transform_15, window_bounds = array<i64: 8, 32>}, {pipeline_mode = #tpu.pipeline_mode<synchronous>, transform_indices = @transform_16, window_bounds = array<i64: 32, 96>}, {pipeline_mode = #tpu.pipeline_mode<synchronous>, transform_indices = @transform_17, window_bounds = array<i64: 32, 32>}, {pipeline_mode = #tpu.pipeline_mode<synchronous>, transform_indices = @transform_18, window_bounds = array<i64: 1, 32>}, {pipeline_mode = #tpu.pipeline_mode<synchronous>, transform_indices = @transform_19, window_bounds = array<i64: 1, 32>}, {pipeline_mode = #tpu.pipeline_mode<synchronous>, transform_indices = @transform_20, window_bounds = array<i64: 1, 32>}, {pipeline_mode = #tpu.pipeline_mode<synchronous>, transform_indices = @transform_21, window_bounds = array<i64: 32, 128>}, {pipeline_mode = #tpu.pipeline_mode<synchronous>, transform_indices = @transform_22, window_bounds = array<i64: 1, 128>}, {pipeline_mode = #tpu.pipeline_mode<synchronous>, transform_indices = @transform_23, window_bounds = array<i64: 128, 32>}, {pipeline_mode = #tpu.pipeline_mode<synchronous>, transform_indices = @transform_24, window_bounds = array<i64: 1, 32>}, {pipeline_mode = #tpu.pipeline_mode<synchronous>, transform_indices = @transform_25, window_bounds = array<i64: 1, 32>}, {pipeline_mode = #tpu.pipeline_mode<synchronous>, transform_indices = @transform_26, window_bounds = array<i64: 1, 32>}, {pipeline_mode = #tpu.pipeline_mode<synchronous>, transform_indices = @transform_27, window_bounds = array<i64: 1, 32>}, {pipeline_mode = #tpu.pipeline_mode<synchronous>, transform_indices = @transform_28, window_bounds = array<i64: 1, 32>}, {transform_indices = @transform_29, window_bounds = array<i64: 8, 256>}]} {
    %c0 = arith.constant 0 : index
    %c0_0 = arith.constant 0 : index
    %0 = vector.load %arg1[%c0, %c0_0] : memref<8x256xf32, #tpu.memory_space<vmem>>, vector<8x256xf32>
    %1 = vector.extract_strided_slice %0 {offsets = [0, 0], sizes = [8, 32], strides = [1, 1]} : vector<8x256xf32> to vector<8x32xf32>
    %2 = vector.shape_cast %1 : vector<8x32xf32> to vector<8x1x32xf32>
    %3 = vector.extract_strided_slice %0 {offsets = [0, 32], sizes = [8, 32], strides = [1, 1]} : vector<8x256xf32> to vector<8x32xf32>
    %4 = vector.shape_cast %3 : vector<8x32xf32> to vector<8x1x32xf32>
    %5 = vector.extract_strided_slice %0 {offsets = [0, 64], sizes = [8, 32], strides = [1, 1]} : vector<8x256xf32> to vector<8x32xf32>
    %6 = vector.shape_cast %5 : vector<8x32xf32> to vector<8x1x32xf32>
    %7 = vector.extract_strided_slice %0 {offsets = [0, 96], sizes = [8, 32], strides = [1, 1]} : vector<8x256xf32> to vector<8x32xf32>
    %8 = vector.shape_cast %7 : vector<8x32xf32> to vector<8x1x32xf32>
    %9 = vector.extract_strided_slice %0 {offsets = [0, 128], sizes = [8, 32], strides = [1, 1]} : vector<8x256xf32> to vector<8x32xf32>
    %10 = vector.shape_cast %9 : vector<8x32xf32> to vector<8x1x32xf32>
    %11 = vector.extract_strided_slice %0 {offsets = [0, 160], sizes = [8, 32], strides = [1, 1]} : vector<8x256xf32> to vector<8x32xf32>
    %12 = vector.shape_cast %11 : vector<8x32xf32> to vector<8x1x32xf32>
    %13 = vector.extract_strided_slice %0 {offsets = [0, 192], sizes = [8, 32], strides = [1, 1]} : vector<8x256xf32> to vector<8x32xf32>
    %14 = vector.shape_cast %13 : vector<8x32xf32> to vector<8x1x32xf32>
    %15 = vector.extract_strided_slice %0 {offsets = [0, 224], sizes = [8, 32], strides = [1, 1]} : vector<8x256xf32> to vector<8x32xf32>
    %16 = vector.shape_cast %15 : vector<8x32xf32> to vector<8x1x32xf32>
    %17 = tpu.concatenate %2, %4, %6, %8, %10, %12, %14, %16 in 1 : vector<8x1x32xf32>, vector<8x1x32xf32>, vector<8x1x32xf32>, vector<8x1x32xf32>, vector<8x1x32xf32>, vector<8x1x32xf32>, vector<8x1x32xf32>, vector<8x1x32xf32> -> vector<8x8x32xf32>
    %18 = vector.shape_cast %17 : vector<8x8x32xf32> to vector<64x32xf32>
    %19 = vector.shape_cast %18 : vector<64x32xf32> to vector<8x8x32xf32>
    %c0_1 = arith.constant 0 : index
    %c0_2 = arith.constant 0 : index
    %20 = vector.load %arg2[%c0_1, %c0_2] : memref<8x32xf32, #tpu.memory_space<vmem>>, vector<8x32xf32>
    %21 = vector.shape_cast %20 : vector<8x32xf32> to vector<1x8x32xf32>
    %22 = vector.broadcast %21 : vector<1x8x32xf32> to vector<8x8x32xf32>
    %23 = arith.addf %19, %22 : vector<8x8x32xf32>
    %24 = vector.shape_cast %23 : vector<8x8x32xf32> to vector<64x32xf32>
    %c0_3 = arith.constant 0 : index
    %c0_4 = arith.constant 0 : index
    %25 = vector.load %arg3[%c0_3, %c0_4] : memref<32x96xf32, #tpu.memory_space<vmem>>, vector<32x96xf32>
    %cst = arith.constant dense<0.000000e+00> : vector<64x96xf32>
    %26 = tpu.matmul %24, %25, %cst {dimension_numbers = #tpu.dot_dimension_numbers<[1], [0], [0], [1], [0, 0, 1, 1], [], []>} : vector<64x32xf32>, vector<32x96xf32>, vector<64x96xf32> -> vector<64x96xf32>
    %27 = vector.shape_cast %26 : vector<64x96xf32> to vector<8x8x96xf32>
    %28 = vector.extract_strided_slice %27 {offsets = [0, 0, 0], sizes = [8, 8, 8], strides = [1, 1, 1]} : vector<8x8x96xf32> to vector<8x8x8xf32>
    %29 = vector.extract_strided_slice %27 {offsets = [0, 0, 32], sizes = [8, 8, 8], strides = [1, 1, 1]} : vector<8x8x96xf32> to vector<8x8x8xf32>
    %30 = vector.extract_strided_slice %27 {offsets = [0, 0, 64], sizes = [8, 8, 8], strides = [1, 1, 1]} : vector<8x8x96xf32> to vector<8x8x8xf32>
    "tpu.trace_start"() <{level = 10 : i32, message = "btd,bsd->bts"}> : () -> ()
    %cst_5 = arith.constant dense<0.000000e+00> : vector<8x8x8xf32>
    %31 = tpu.matmul %28, %29, %cst_5 {dimension_numbers = #tpu.dot_dimension_numbers<[2], [2], [1], [1], [0, 0, 0, 1, 1, 1], [0], [0]>} : vector<8x8x8xf32>, vector<8x8x8xf32>, vector<8x8x8xf32> -> vector<8x8x8xf32>
    "tpu.trace_stop"() : () -> ()
    %cst_6 = arith.constant 0.353553385 : f32
    %32 = vector.broadcast %cst_6 : f32 to vector<8x8x8xf32>
    %33 = arith.mulf %31, %32 : vector<8x8x8xf32>
    %cst_7 = arith.constant dense<0xFF800000> : vector<8x8xf32>
    %34 = vector.multi_reduction <maximumf>, %33, %cst_7 [2] : vector<8x8x8xf32> to vector<8x8xf32>
    %35 = vector.shape_cast %34 : vector<8x8xf32> to vector<8x8x1xf32>
    %36 = vector.broadcast %35 : vector<8x8x1xf32> to vector<8x8x8xf32>
    %37 = arith.subf %33, %36 : vector<8x8x8xf32>
    %38 = math.exp %37 : vector<8x8x8xf32>
    %cst_8 = arith.constant dense<0.000000e+00> : vector<8x8xf32>
    %39 = vector.multi_reduction <add>, %38, %cst_8 [2] : vector<8x8x8xf32> to vector<8x8xf32>
    %40 = vector.shape_cast %39 : vector<8x8xf32> to vector<8x8x1xf32>
    %41 = tpu.reciprocal %40 {approx = true} : vector<8x8x1xf32> -> vector<8x8x1xf32>
    %42 = vector.broadcast %41 : vector<8x8x1xf32> to vector<8x8x8xf32>
    %43 = arith.mulf %38, %42 : vector<8x8x8xf32>
    "tpu.trace_start"() <{level = 10 : i32, message = "bts,bsd->btd"}> : () -> ()
    %cst_9 = arith.constant dense<0.000000e+00> : vector<8x8x8xf32>
    %44 = tpu.matmul %43, %30, %cst_9 {dimension_numbers = #tpu.dot_dimension_numbers<[2], [1], [1], [2], [0, 0, 0, 1, 1, 2], [0], [0]>} : vector<8x8x8xf32>, vector<8x8x8xf32>, vector<8x8x8xf32> -> vector<8x8x8xf32>
    "tpu.trace_stop"() : () -> ()
    %45 = vector.extract_strided_slice %27 {offsets = [0, 0, 8], sizes = [8, 8, 8], strides = [1, 1, 1]} : vector<8x8x96xf32> to vector<8x8x8xf32>
    %46 = vector.extract_strided_slice %27 {offsets = [0, 0, 40], sizes = [8, 8, 8], strides = [1, 1, 1]} : vector<8x8x96xf32> to vector<8x8x8xf32>
    %47 = vector.extract_strided_slice %27 {offsets = [0, 0, 72], sizes = [8, 8, 8], strides = [1, 1, 1]} : vector<8x8x96xf32> to vector<8x8x8xf32>
    "tpu.trace_start"() <{level = 10 : i32, message = "btd,bsd->bts"}> : () -> ()
    %cst_10 = arith.constant dense<0.000000e+00> : vector<8x8x8xf32>
    %48 = tpu.matmul %45, %46, %cst_10 {dimension_numbers = #tpu.dot_dimension_numbers<[2], [2], [1], [1], [0, 0, 0, 1, 1, 1], [0], [0]>} : vector<8x8x8xf32>, vector<8x8x8xf32>, vector<8x8x8xf32> -> vector<8x8x8xf32>
    "tpu.trace_stop"() : () -> ()
    %cst_11 = arith.constant 0.353553385 : f32
    %49 = vector.broadcast %cst_11 : f32 to vector<8x8x8xf32>
    %50 = arith.mulf %48, %49 : vector<8x8x8xf32>
    %cst_12 = arith.constant dense<0xFF800000> : vector<8x8xf32>
    %51 = vector.multi_reduction <maximumf>, %50, %cst_12 [2] : vector<8x8x8xf32> to vector<8x8xf32>
    %52 = vector.shape_cast %51 : vector<8x8xf32> to vector<8x8x1xf32>
    %53 = vector.broadcast %52 : vector<8x8x1xf32> to vector<8x8x8xf32>
    %54 = arith.subf %50, %53 : vector<8x8x8xf32>
    %55 = math.exp %54 : vector<8x8x8xf32>
    %cst_13 = arith.constant dense<0.000000e+00> : vector<8x8xf32>
    %56 = vector.multi_reduction <add>, %55, %cst_13 [2] : vector<8x8x8xf32> to vector<8x8xf32>
    %57 = vector.shape_cast %56 : vector<8x8xf32> to vector<8x8x1xf32>
    %58 = tpu.reciprocal %57 {approx = true} : vector<8x8x1xf32> -> vector<8x8x1xf32>
    %59 = vector.broadcast %58 : vector<8x8x1xf32> to vector<8x8x8xf32>
    %60 = arith.mulf %55, %59 : vector<8x8x8xf32>
    "tpu.trace_start"() <{level = 10 : i32, message = "bts,bsd->btd"}> : () -> ()
    %cst_14 = arith.constant dense<0.000000e+00> : vector<8x8x8xf32>
    %61 = tpu.matmul %60, %47, %cst_14 {dimension_numbers = #tpu.dot_dimension_numbers<[2], [1], [1], [2], [0, 0, 0, 1, 1, 2], [0], [0]>} : vector<8x8x8xf32>, vector<8x8x8xf32>, vector<8x8x8xf32> -> vector<8x8x8xf32>
    "tpu.trace_stop"() : () -> ()
    %62 = vector.extract_strided_slice %27 {offsets = [0, 0, 16], sizes = [8, 8, 8], strides = [1, 1, 1]} : vector<8x8x96xf32> to vector<8x8x8xf32>
    %63 = vector.extract_strided_slice %27 {offsets = [0, 0, 48], sizes = [8, 8, 8], strides = [1, 1, 1]} : vector<8x8x96xf32> to vector<8x8x8xf32>
    %64 = vector.extract_strided_slice %27 {offsets = [0, 0, 80], sizes = [8, 8, 8], strides = [1, 1, 1]} : vector<8x8x96xf32> to vector<8x8x8xf32>
    "tpu.trace_start"() <{level = 10 : i32, message = "btd,bsd->bts"}> : () -> ()
    %cst_15 = arith.constant dense<0.000000e+00> : vector<8x8x8xf32>
    %65 = tpu.matmul %62, %63, %cst_15 {dimension_numbers = #tpu.dot_dimension_numbers<[2], [2], [1], [1], [0, 0, 0, 1, 1, 1], [0], [0]>} : vector<8x8x8xf32>, vector<8x8x8xf32>, vector<8x8x8xf32> -> vector<8x8x8xf32>
    "tpu.trace_stop"() : () -> ()
    %cst_16 = arith.constant 0.353553385 : f32
    %66 = vector.broadcast %cst_16 : f32 to vector<8x8x8xf32>
    %67 = arith.mulf %65, %66 : vector<8x8x8xf32>
    %cst_17 = arith.constant dense<0xFF800000> : vector<8x8xf32>
    %68 = vector.multi_reduction <maximumf>, %67, %cst_17 [2] : vector<8x8x8xf32> to vector<8x8xf32>
    %69 = vector.shape_cast %68 : vector<8x8xf32> to vector<8x8x1xf32>
    %70 = vector.broadcast %69 : vector<8x8x1xf32> to vector<8x8x8xf32>
    %71 = arith.subf %67, %70 : vector<8x8x8xf32>
    %72 = math.exp %71 : vector<8x8x8xf32>
    %cst_18 = arith.constant dense<0.000000e+00> : vector<8x8xf32>
    %73 = vector.multi_reduction <add>, %72, %cst_18 [2] : vector<8x8x8xf32> to vector<8x8xf32>
    %74 = vector.shape_cast %73 : vector<8x8xf32> to vector<8x8x1xf32>
    %75 = tpu.reciprocal %74 {approx = true} : vector<8x8x1xf32> -> vector<8x8x1xf32>
    %76 = vector.broadcast %75 : vector<8x8x1xf32> to vector<8x8x8xf32>
    %77 = arith.mulf %72, %76 : vector<8x8x8xf32>
    "tpu.trace_start"() <{level = 10 : i32, message = "bts,bsd->btd"}> : () -> ()
    %cst_19 = arith.constant dense<0.000000e+00> : vector<8x8x8xf32>
    %78 = tpu.matmul %77, %64, %cst_19 {dimension_numbers = #tpu.dot_dimension_numbers<[2], [1], [1], [2], [0, 0, 0, 1, 1, 2], [0], [0]>} : vector<8x8x8xf32>, vector<8x8x8xf32>, vector<8x8x8xf32> -> vector<8x8x8xf32>
    "tpu.trace_stop"() : () -> ()
    %79 = vector.extract_strided_slice %27 {offsets = [0, 0, 24], sizes = [8, 8, 8], strides = [1, 1, 1]} : vector<8x8x96xf32> to vector<8x8x8xf32>
    %80 = vector.extract_strided_slice %27 {offsets = [0, 0, 56], sizes = [8, 8, 8], strides = [1, 1, 1]} : vector<8x8x96xf32> to vector<8x8x8xf32>
    %81 = vector.extract_strided_slice %27 {offsets = [0, 0, 88], sizes = [8, 8, 8], strides = [1, 1, 1]} : vector<8x8x96xf32> to vector<8x8x8xf32>
    "tpu.trace_start"() <{level = 10 : i32, message = "btd,bsd->bts"}> : () -> ()
    %cst_20 = arith.constant dense<0.000000e+00> : vector<8x8x8xf32>
    %82 = tpu.matmul %79, %80, %cst_20 {dimension_numbers = #tpu.dot_dimension_numbers<[2], [2], [1], [1], [0, 0, 0, 1, 1, 1], [0], [0]>} : vector<8x8x8xf32>, vector<8x8x8xf32>, vector<8x8x8xf32> -> vector<8x8x8xf32>
    "tpu.trace_stop"() : () -> ()
    %cst_21 = arith.constant 0.353553385 : f32
    %83 = vector.broadcast %cst_21 : f32 to vector<8x8x8xf32>
    %84 = arith.mulf %82, %83 : vector<8x8x8xf32>
    %cst_22 = arith.constant dense<0xFF800000> : vector<8x8xf32>
    %85 = vector.multi_reduction <maximumf>, %84, %cst_22 [2] : vector<8x8x8xf32> to vector<8x8xf32>
    %86 = vector.shape_cast %85 : vector<8x8xf32> to vector<8x8x1xf32>
    %87 = vector.broadcast %86 : vector<8x8x1xf32> to vector<8x8x8xf32>
    %88 = arith.subf %84, %87 : vector<8x8x8xf32>
    %89 = math.exp %88 : vector<8x8x8xf32>
    %cst_23 = arith.constant dense<0.000000e+00> : vector<8x8xf32>
    %90 = vector.multi_reduction <add>, %89, %cst_23 [2] : vector<8x8x8xf32> to vector<8x8xf32>
    %91 = vector.shape_cast %90 : vector<8x8xf32> to vector<8x8x1xf32>
    %92 = tpu.reciprocal %91 {approx = true} : vector<8x8x1xf32> -> vector<8x8x1xf32>
    %93 = vector.broadcast %92 : vector<8x8x1xf32> to vector<8x8x8xf32>
    %94 = arith.mulf %89, %93 : vector<8x8x8xf32>
    "tpu.trace_start"() <{level = 10 : i32, message = "bts,bsd->btd"}> : () -> ()
    %cst_24 = arith.constant dense<0.000000e+00> : vector<8x8x8xf32>
    %95 = tpu.matmul %94, %81, %cst_24 {dimension_numbers = #tpu.dot_dimension_numbers<[2], [1], [1], [2], [0, 0, 0, 1, 1, 2], [0], [0]>} : vector<8x8x8xf32>, vector<8x8x8xf32>, vector<8x8x8xf32> -> vector<8x8x8xf32>
    "tpu.trace_stop"() : () -> ()
    %96 = tpu.concatenate %44, %61, %78, %95 in 2 : vector<8x8x8xf32>, vector<8x8x8xf32>, vector<8x8x8xf32>, vector<8x8x8xf32> -> vector<8x8x32xf32>
    %97 = vector.shape_cast %96 : vector<8x8x32xf32> to vector<64x32xf32>
    %c0_25 = arith.constant 0 : index
    %c0_26 = arith.constant 0 : index
    %98 = vector.load %arg4[%c0_25, %c0_26] : memref<32x32xf32, #tpu.memory_space<vmem>>, vector<32x32xf32>
    %cst_27 = arith.constant dense<0.000000e+00> : vector<64x32xf32>
    %99 = tpu.matmul %97, %98, %cst_27 {dimension_numbers = #tpu.dot_dimension_numbers<[1], [0], [0], [1], [0, 0, 1, 1], [], []>} : vector<64x32xf32>, vector<32x32xf32>, vector<64x32xf32> -> vector<64x32xf32>
    %c0_28 = arith.constant 0 : index
    %c0_29 = arith.constant 0 : index
    %100 = vector.load %arg5[%c0_28, %c0_29] : memref<1x32xf32, #tpu.memory_space<vmem>>, vector<1x32xf32>
    %101 = vector.broadcast %100 : vector<1x32xf32> to vector<64x32xf32>
    %102 = arith.addf %99, %101 : vector<64x32xf32>
    %103 = arith.addf %102, %24 : vector<64x32xf32>
    %c0_30 = arith.constant 0 : index
    %c0_31 = arith.constant 0 : index
    %104 = vector.load %arg6[%c0_30, %c0_31] : memref<1x32xf32, #tpu.memory_space<vmem>>, vector<1x32xf32>
    %c0_32 = arith.constant 0 : index
    %c0_33 = arith.constant 0 : index
    %105 = vector.load %arg7[%c0_32, %c0_33] : memref<1x32xf32, #tpu.memory_space<vmem>>, vector<1x32xf32>
    %cst_34 = arith.constant dense<0.000000e+00> : vector<64xf32>
    %106 = vector.multi_reduction <add>, %103, %cst_34 [1] : vector<64x32xf32> to vector<64xf32>
    %107 = vector.shape_cast %106 : vector<64xf32> to vector<64x1xf32>
    %cst_35 = arith.constant 3.200000e+01 : f32
    %108 = vector.broadcast %cst_35 : f32 to vector<64x1xf32>
    %109 = arith.divf %107, %108 : vector<64x1xf32>
    %110 = vector.broadcast %109 : vector<64x1xf32> to vector<64x32xf32>
    %111 = arith.subf %103, %110 : vector<64x32xf32>
    %112 = arith.mulf %111, %111 : vector<64x32xf32>
    %cst_36 = arith.constant dense<0.000000e+00> : vector<64xf32>
    %113 = vector.multi_reduction <add>, %112, %cst_36 [1] : vector<64x32xf32> to vector<64xf32>
    %114 = vector.shape_cast %113 : vector<64xf32> to vector<64x1xf32>
    %cst_37 = arith.constant 3.200000e+01 : f32
    %115 = vector.broadcast %cst_37 : f32 to vector<64x1xf32>
    %116 = arith.divf %114, %115 : vector<64x1xf32>
    %117 = vector.broadcast %109 : vector<64x1xf32> to vector<64x32xf32>
    %118 = arith.subf %103, %117 : vector<64x32xf32>
    %cst_38 = arith.constant 9.99999974E-6 : f32
    %119 = vector.broadcast %cst_38 : f32 to vector<64x1xf32>
    %120 = arith.addf %116, %119 : vector<64x1xf32>
    %121 = math.rsqrt %120 : vector<64x1xf32>
    %122 = vector.broadcast %121 : vector<64x1xf32> to vector<64x32xf32>
    %123 = arith.mulf %118, %122 : vector<64x32xf32>
    %124 = vector.broadcast %104 : vector<1x32xf32> to vector<64x32xf32>
    %125 = arith.mulf %123, %124 : vector<64x32xf32>
    %126 = vector.broadcast %105 : vector<1x32xf32> to vector<64x32xf32>
    %127 = arith.addf %125, %126 : vector<64x32xf32>
    %c0_39 = arith.constant 0 : index
    %c0_40 = arith.constant 0 : index
    %128 = vector.load %arg9[%c0_39, %c0_40] : memref<1x128xf32, #tpu.memory_space<vmem>>, vector<1x128xf32>
    %c0_41 = arith.constant 0 : index
    %c0_42 = arith.constant 0 : index
    %129 = vector.load %arg8[%c0_41, %c0_42] : memref<32x128xf32, #tpu.memory_space<vmem>>, vector<32x128xf32>
    %cst_43 = arith.constant dense<0.000000e+00> : vector<64x128xf32>
    %130 = tpu.matmul %127, %129, %cst_43 {dimension_numbers = #tpu.dot_dimension_numbers<[1], [0], [0], [1], [0, 0, 1, 1], [], []>} : vector<64x32xf32>, vector<32x128xf32>, vector<64x128xf32> -> vector<64x128xf32>
    %131 = vector.broadcast %128 : vector<1x128xf32> to vector<64x128xf32>
    %132 = arith.addf %130, %131 : vector<64x128xf32>
    %cst_44 = arith.constant 0.000000e+00 : f32
    %133 = vector.broadcast %cst_44 : f32 to vector<64x128xf32>
    %134 = arith.maximumf %132, %133 : vector<64x128xf32>
    %c0_45 = arith.constant 0 : index
    %c0_46 = arith.constant 0 : index
    %135 = vector.load %arg10[%c0_45, %c0_46] : memref<128x32xf32, #tpu.memory_space<vmem>>, vector<128x32xf32>
    %cst_47 = arith.constant dense<0.000000e+00> : vector<64x32xf32>
    %136 = tpu.matmul %134, %135, %cst_47 {dimension_numbers = #tpu.dot_dimension_numbers<[1], [0], [0], [1], [0, 0, 1, 1], [], []>} : vector<64x128xf32>, vector<128x32xf32>, vector<64x32xf32> -> vector<64x32xf32>
    %c0_48 = arith.constant 0 : index
    %c0_49 = arith.constant 0 : index
    %137 = vector.load %arg11[%c0_48, %c0_49] : memref<1x32xf32, #tpu.memory_space<vmem>>, vector<1x32xf32>
    %138 = vector.broadcast %137 : vector<1x32xf32> to vector<64x32xf32>
    %139 = arith.addf %136, %138 : vector<64x32xf32>
    %140 = arith.addf %139, %127 : vector<64x32xf32>
    %c0_50 = arith.constant 0 : index
    %c0_51 = arith.constant 0 : index
    %141 = vector.load %arg12[%c0_50, %c0_51] : memref<1x32xf32, #tpu.memory_space<vmem>>, vector<1x32xf32>
    %c0_52 = arith.constant 0 : index
    %c0_53 = arith.constant 0 : index
    %142 = vector.load %arg13[%c0_52, %c0_53] : memref<1x32xf32, #tpu.memory_space<vmem>>, vector<1x32xf32>
    %cst_54 = arith.constant dense<0.000000e+00> : vector<64xf32>
    %143 = vector.multi_reduction <add>, %140, %cst_54 [1] : vector<64x32xf32> to vector<64xf32>
    %144 = vector.shape_cast %143 : vector<64xf32> to vector<64x1xf32>
    %cst_55 = arith.constant 3.200000e+01 : f32
    %145 = vector.broadcast %cst_55 : f32 to vector<64x1xf32>
    %146 = arith.divf %144, %145 : vector<64x1xf32>
    %147 = vector.broadcast %146 : vector<64x1xf32> to vector<64x32xf32>
    %148 = arith.subf %140, %147 : vector<64x32xf32>
    %149 = arith.mulf %148, %148 : vector<64x32xf32>
    %cst_56 = arith.constant dense<0.000000e+00> : vector<64xf32>
    %150 = vector.multi_reduction <add>, %149, %cst_56 [1] : vector<64x32xf32> to vector<64xf32>
    %151 = vector.shape_cast %150 : vector<64xf32> to vector<64x1xf32>
    %cst_57 = arith.constant 3.200000e+01 : f32
    %152 = vector.broadcast %cst_57 : f32 to vector<64x1xf32>
    %153 = arith.divf %151, %152 : vector<64x1xf32>
    %154 = vector.broadcast %146 : vector<64x1xf32> to vector<64x32xf32>
    %155 = arith.subf %140, %154 : vector<64x32xf32>
    %cst_58 = arith.constant 9.99999974E-6 : f32
    %156 = vector.broadcast %cst_58 : f32 to vector<64x1xf32>
    %157 = arith.addf %153, %156 : vector<64x1xf32>
    %158 = math.rsqrt %157 : vector<64x1xf32>
    %159 = vector.broadcast %158 : vector<64x1xf32> to vector<64x32xf32>
    %160 = arith.mulf %155, %159 : vector<64x32xf32>
    %161 = vector.broadcast %141 : vector<1x32xf32> to vector<64x32xf32>
    %162 = arith.mulf %160, %161 : vector<64x32xf32>
    %163 = vector.broadcast %142 : vector<1x32xf32> to vector<64x32xf32>
    %164 = arith.addf %162, %163 : vector<64x32xf32>
    %165 = arith.addf %164, %18 : vector<64x32xf32>
    %c0_59 = arith.constant 0 : index
    %c0_60 = arith.constant 0 : index
    %166 = vector.load %arg14[%c0_59, %c0_60] : memref<1x32xf32, #tpu.memory_space<vmem>>, vector<1x32xf32>
    %c0_61 = arith.constant 0 : index
    %c0_62 = arith.constant 0 : index
    %167 = vector.load %arg15[%c0_61, %c0_62] : memref<1x32xf32, #tpu.memory_space<vmem>>, vector<1x32xf32>
    %cst_63 = arith.constant dense<0.000000e+00> : vector<64xf32>
    %168 = vector.multi_reduction <add>, %165, %cst_63 [1] : vector<64x32xf32> to vector<64xf32>
    %169 = vector.shape_cast %168 : vector<64xf32> to vector<64x1xf32>
    %cst_64 = arith.constant 3.200000e+01 : f32
    %170 = vector.broadcast %cst_64 : f32 to vector<64x1xf32>
    %171 = arith.divf %169, %170 : vector<64x1xf32>
    %172 = vector.broadcast %171 : vector<64x1xf32> to vector<64x32xf32>
    %173 = arith.subf %165, %172 : vector<64x32xf32>
    %174 = arith.mulf %173, %173 : vector<64x32xf32>
    %cst_65 = arith.constant dense<0.000000e+00> : vector<64xf32>
    %175 = vector.multi_reduction <add>, %174, %cst_65 [1] : vector<64x32xf32> to vector<64xf32>
    %176 = vector.shape_cast %175 : vector<64xf32> to vector<64x1xf32>
    %cst_66 = arith.constant 3.200000e+01 : f32
    %177 = vector.broadcast %cst_66 : f32 to vector<64x1xf32>
    %178 = arith.divf %176, %177 : vector<64x1xf32>
    %179 = vector.broadcast %171 : vector<64x1xf32> to vector<64x32xf32>
    %180 = arith.subf %165, %179 : vector<64x32xf32>
    %cst_67 = arith.constant 9.99999974E-6 : f32
    %181 = vector.broadcast %cst_67 : f32 to vector<64x1xf32>
    %182 = arith.addf %178, %181 : vector<64x1xf32>
    %183 = math.rsqrt %182 : vector<64x1xf32>
    %184 = vector.broadcast %183 : vector<64x1xf32> to vector<64x32xf32>
    %185 = arith.mulf %180, %184 : vector<64x32xf32>
    %186 = vector.broadcast %166 : vector<1x32xf32> to vector<64x32xf32>
    %187 = arith.mulf %185, %186 : vector<64x32xf32>
    %188 = vector.broadcast %167 : vector<1x32xf32> to vector<64x32xf32>
    %189 = arith.addf %187, %188 : vector<64x32xf32>
    %190 = vector.shape_cast %189 : vector<64x32xf32> to vector<8x8x32xf32>
    %c0_68 = arith.constant 0 : index
    %c0_69 = arith.constant 0 : index
    %191 = vector.load %arg16[%c0_68, %c0_69] : memref<8x32xf32, #tpu.memory_space<vmem>>, vector<8x32xf32>
    %192 = vector.shape_cast %191 : vector<8x32xf32> to vector<1x8x32xf32>
    %193 = vector.broadcast %192 : vector<1x8x32xf32> to vector<8x8x32xf32>
    %194 = arith.addf %190, %193 : vector<8x8x32xf32>
    %195 = vector.shape_cast %194 : vector<8x8x32xf32> to vector<64x32xf32>
    %c0_70 = arith.constant 0 : index
    %c0_71 = arith.constant 0 : index
    %196 = vector.load %arg17[%c0_70, %c0_71] : memref<32x96xf32, #tpu.memory_space<vmem>>, vector<32x96xf32>
    %cst_72 = arith.constant dense<0.000000e+00> : vector<64x96xf32>
    %197 = tpu.matmul %195, %196, %cst_72 {dimension_numbers = #tpu.dot_dimension_numbers<[1], [0], [0], [1], [0, 0, 1, 1], [], []>} : vector<64x32xf32>, vector<32x96xf32>, vector<64x96xf32> -> vector<64x96xf32>
    %198 = vector.shape_cast %197 : vector<64x96xf32> to vector<8x8x96xf32>
    %199 = vector.extract_strided_slice %198 {offsets = [0, 0, 0], sizes = [8, 8, 8], strides = [1, 1, 1]} : vector<8x8x96xf32> to vector<8x8x8xf32>
    %200 = vector.extract_strided_slice %198 {offsets = [0, 0, 32], sizes = [8, 8, 8], strides = [1, 1, 1]} : vector<8x8x96xf32> to vector<8x8x8xf32>
    %201 = vector.extract_strided_slice %198 {offsets = [0, 0, 64], sizes = [8, 8, 8], strides = [1, 1, 1]} : vector<8x8x96xf32> to vector<8x8x8xf32>
    "tpu.trace_start"() <{level = 10 : i32, message = "btd,bsd->bts"}> : () -> ()
    %cst_73 = arith.constant dense<0.000000e+00> : vector<8x8x8xf32>
    %202 = tpu.matmul %199, %200, %cst_73 {dimension_numbers = #tpu.dot_dimension_numbers<[2], [2], [1], [1], [0, 0, 0, 1, 1, 1], [0], [0]>} : vector<8x8x8xf32>, vector<8x8x8xf32>, vector<8x8x8xf32> -> vector<8x8x8xf32>
    "tpu.trace_stop"() : () -> ()
    %cst_74 = arith.constant 0.353553385 : f32
    %203 = vector.broadcast %cst_74 : f32 to vector<8x8x8xf32>
    %204 = arith.mulf %202, %203 : vector<8x8x8xf32>
    %cst_75 = arith.constant dense<0xFF800000> : vector<8x8xf32>
    %205 = vector.multi_reduction <maximumf>, %204, %cst_75 [2] : vector<8x8x8xf32> to vector<8x8xf32>
    %206 = vector.shape_cast %205 : vector<8x8xf32> to vector<8x8x1xf32>
    %207 = vector.broadcast %206 : vector<8x8x1xf32> to vector<8x8x8xf32>
    %208 = arith.subf %204, %207 : vector<8x8x8xf32>
    %209 = math.exp %208 : vector<8x8x8xf32>
    %cst_76 = arith.constant dense<0.000000e+00> : vector<8x8xf32>
    %210 = vector.multi_reduction <add>, %209, %cst_76 [2] : vector<8x8x8xf32> to vector<8x8xf32>
    %211 = vector.shape_cast %210 : vector<8x8xf32> to vector<8x8x1xf32>
    %212 = tpu.reciprocal %211 {approx = true} : vector<8x8x1xf32> -> vector<8x8x1xf32>
    %213 = vector.broadcast %212 : vector<8x8x1xf32> to vector<8x8x8xf32>
    %214 = arith.mulf %209, %213 : vector<8x8x8xf32>
    "tpu.trace_start"() <{level = 10 : i32, message = "bts,bsd->btd"}> : () -> ()
    %cst_77 = arith.constant dense<0.000000e+00> : vector<8x8x8xf32>
    %215 = tpu.matmul %214, %201, %cst_77 {dimension_numbers = #tpu.dot_dimension_numbers<[2], [1], [1], [2], [0, 0, 0, 1, 1, 2], [0], [0]>} : vector<8x8x8xf32>, vector<8x8x8xf32>, vector<8x8x8xf32> -> vector<8x8x8xf32>
    "tpu.trace_stop"() : () -> ()
    %216 = vector.extract_strided_slice %198 {offsets = [0, 0, 8], sizes = [8, 8, 8], strides = [1, 1, 1]} : vector<8x8x96xf32> to vector<8x8x8xf32>
    %217 = vector.extract_strided_slice %198 {offsets = [0, 0, 40], sizes = [8, 8, 8], strides = [1, 1, 1]} : vector<8x8x96xf32> to vector<8x8x8xf32>
    %218 = vector.extract_strided_slice %198 {offsets = [0, 0, 72], sizes = [8, 8, 8], strides = [1, 1, 1]} : vector<8x8x96xf32> to vector<8x8x8xf32>
    "tpu.trace_start"() <{level = 10 : i32, message = "btd,bsd->bts"}> : () -> ()
    %cst_78 = arith.constant dense<0.000000e+00> : vector<8x8x8xf32>
    %219 = tpu.matmul %216, %217, %cst_78 {dimension_numbers = #tpu.dot_dimension_numbers<[2], [2], [1], [1], [0, 0, 0, 1, 1, 1], [0], [0]>} : vector<8x8x8xf32>, vector<8x8x8xf32>, vector<8x8x8xf32> -> vector<8x8x8xf32>
    "tpu.trace_stop"() : () -> ()
    %cst_79 = arith.constant 0.353553385 : f32
    %220 = vector.broadcast %cst_79 : f32 to vector<8x8x8xf32>
    %221 = arith.mulf %219, %220 : vector<8x8x8xf32>
    %cst_80 = arith.constant dense<0xFF800000> : vector<8x8xf32>
    %222 = vector.multi_reduction <maximumf>, %221, %cst_80 [2] : vector<8x8x8xf32> to vector<8x8xf32>
    %223 = vector.shape_cast %222 : vector<8x8xf32> to vector<8x8x1xf32>
    %224 = vector.broadcast %223 : vector<8x8x1xf32> to vector<8x8x8xf32>
    %225 = arith.subf %221, %224 : vector<8x8x8xf32>
    %226 = math.exp %225 : vector<8x8x8xf32>
    %cst_81 = arith.constant dense<0.000000e+00> : vector<8x8xf32>
    %227 = vector.multi_reduction <add>, %226, %cst_81 [2] : vector<8x8x8xf32> to vector<8x8xf32>
    %228 = vector.shape_cast %227 : vector<8x8xf32> to vector<8x8x1xf32>
    %229 = tpu.reciprocal %228 {approx = true} : vector<8x8x1xf32> -> vector<8x8x1xf32>
    %230 = vector.broadcast %229 : vector<8x8x1xf32> to vector<8x8x8xf32>
    %231 = arith.mulf %226, %230 : vector<8x8x8xf32>
    "tpu.trace_start"() <{level = 10 : i32, message = "bts,bsd->btd"}> : () -> ()
    %cst_82 = arith.constant dense<0.000000e+00> : vector<8x8x8xf32>
    %232 = tpu.matmul %231, %218, %cst_82 {dimension_numbers = #tpu.dot_dimension_numbers<[2], [1], [1], [2], [0, 0, 0, 1, 1, 2], [0], [0]>} : vector<8x8x8xf32>, vector<8x8x8xf32>, vector<8x8x8xf32> -> vector<8x8x8xf32>
    "tpu.trace_stop"() : () -> ()
    %233 = vector.extract_strided_slice %198 {offsets = [0, 0, 16], sizes = [8, 8, 8], strides = [1, 1, 1]} : vector<8x8x96xf32> to vector<8x8x8xf32>
    %234 = vector.extract_strided_slice %198 {offsets = [0, 0, 48], sizes = [8, 8, 8], strides = [1, 1, 1]} : vector<8x8x96xf32> to vector<8x8x8xf32>
    %235 = vector.extract_strided_slice %198 {offsets = [0, 0, 80], sizes = [8, 8, 8], strides = [1, 1, 1]} : vector<8x8x96xf32> to vector<8x8x8xf32>
    "tpu.trace_start"() <{level = 10 : i32, message = "btd,bsd->bts"}> : () -> ()
    %cst_83 = arith.constant dense<0.000000e+00> : vector<8x8x8xf32>
    %236 = tpu.matmul %233, %234, %cst_83 {dimension_numbers = #tpu.dot_dimension_numbers<[2], [2], [1], [1], [0, 0, 0, 1, 1, 1], [0], [0]>} : vector<8x8x8xf32>, vector<8x8x8xf32>, vector<8x8x8xf32> -> vector<8x8x8xf32>
    "tpu.trace_stop"() : () -> ()
    %cst_84 = arith.constant 0.353553385 : f32
    %237 = vector.broadcast %cst_84 : f32 to vector<8x8x8xf32>
    %238 = arith.mulf %236, %237 : vector<8x8x8xf32>
    %cst_85 = arith.constant dense<0xFF800000> : vector<8x8xf32>
    %239 = vector.multi_reduction <maximumf>, %238, %cst_85 [2] : vector<8x8x8xf32> to vector<8x8xf32>
    %240 = vector.shape_cast %239 : vector<8x8xf32> to vector<8x8x1xf32>
    %241 = vector.broadcast %240 : vector<8x8x1xf32> to vector<8x8x8xf32>
    %242 = arith.subf %238, %241 : vector<8x8x8xf32>
    %243 = math.exp %242 : vector<8x8x8xf32>
    %cst_86 = arith.constant dense<0.000000e+00> : vector<8x8xf32>
    %244 = vector.multi_reduction <add>, %243, %cst_86 [2] : vector<8x8x8xf32> to vector<8x8xf32>
    %245 = vector.shape_cast %244 : vector<8x8xf32> to vector<8x8x1xf32>
    %246 = tpu.reciprocal %245 {approx = true} : vector<8x8x1xf32> -> vector<8x8x1xf32>
    %247 = vector.broadcast %246 : vector<8x8x1xf32> to vector<8x8x8xf32>
    %248 = arith.mulf %243, %247 : vector<8x8x8xf32>
    "tpu.trace_start"() <{level = 10 : i32, message = "bts,bsd->btd"}> : () -> ()
    %cst_87 = arith.constant dense<0.000000e+00> : vector<8x8x8xf32>
    %249 = tpu.matmul %248, %235, %cst_87 {dimension_numbers = #tpu.dot_dimension_numbers<[2], [1], [1], [2], [0, 0, 0, 1, 1, 2], [0], [0]>} : vector<8x8x8xf32>, vector<8x8x8xf32>, vector<8x8x8xf32> -> vector<8x8x8xf32>
    "tpu.trace_stop"() : () -> ()
    %250 = vector.extract_strided_slice %198 {offsets = [0, 0, 24], sizes = [8, 8, 8], strides = [1, 1, 1]} : vector<8x8x96xf32> to vector<8x8x8xf32>
    %251 = vector.extract_strided_slice %198 {offsets = [0, 0, 56], sizes = [8, 8, 8], strides = [1, 1, 1]} : vector<8x8x96xf32> to vector<8x8x8xf32>
    %252 = vector.extract_strided_slice %198 {offsets = [0, 0, 88], sizes = [8, 8, 8], strides = [1, 1, 1]} : vector<8x8x96xf32> to vector<8x8x8xf32>
    "tpu.trace_start"() <{level = 10 : i32, message = "btd,bsd->bts"}> : () -> ()
    %cst_88 = arith.constant dense<0.000000e+00> : vector<8x8x8xf32>
    %253 = tpu.matmul %250, %251, %cst_88 {dimension_numbers = #tpu.dot_dimension_numbers<[2], [2], [1], [1], [0, 0, 0, 1, 1, 1], [0], [0]>} : vector<8x8x8xf32>, vector<8x8x8xf32>, vector<8x8x8xf32> -> vector<8x8x8xf32>
    "tpu.trace_stop"() : () -> ()
    %cst_89 = arith.constant 0.353553385 : f32
    %254 = vector.broadcast %cst_89 : f32 to vector<8x8x8xf32>
    %255 = arith.mulf %253, %254 : vector<8x8x8xf32>
    %cst_90 = arith.constant dense<0xFF800000> : vector<8x8xf32>
    %256 = vector.multi_reduction <maximumf>, %255, %cst_90 [2] : vector<8x8x8xf32> to vector<8x8xf32>
    %257 = vector.shape_cast %256 : vector<8x8xf32> to vector<8x8x1xf32>
    %258 = vector.broadcast %257 : vector<8x8x1xf32> to vector<8x8x8xf32>
    %259 = arith.subf %255, %258 : vector<8x8x8xf32>
    %260 = math.exp %259 : vector<8x8x8xf32>
    %cst_91 = arith.constant dense<0.000000e+00> : vector<8x8xf32>
    %261 = vector.multi_reduction <add>, %260, %cst_91 [2] : vector<8x8x8xf32> to vector<8x8xf32>
    %262 = vector.shape_cast %261 : vector<8x8xf32> to vector<8x8x1xf32>
    %263 = tpu.reciprocal %262 {approx = true} : vector<8x8x1xf32> -> vector<8x8x1xf32>
    %264 = vector.broadcast %263 : vector<8x8x1xf32> to vector<8x8x8xf32>
    %265 = arith.mulf %260, %264 : vector<8x8x8xf32>
    "tpu.trace_start"() <{level = 10 : i32, message = "bts,bsd->btd"}> : () -> ()
    %cst_92 = arith.constant dense<0.000000e+00> : vector<8x8x8xf32>
    %266 = tpu.matmul %265, %252, %cst_92 {dimension_numbers = #tpu.dot_dimension_numbers<[2], [1], [1], [2], [0, 0, 0, 1, 1, 2], [0], [0]>} : vector<8x8x8xf32>, vector<8x8x8xf32>, vector<8x8x8xf32> -> vector<8x8x8xf32>
    "tpu.trace_stop"() : () -> ()
    %267 = tpu.concatenate %215, %232, %249, %266 in 2 : vector<8x8x8xf32>, vector<8x8x8xf32>, vector<8x8x8xf32>, vector<8x8x8xf32> -> vector<8x8x32xf32>
    %268 = vector.shape_cast %267 : vector<8x8x32xf32> to vector<64x32xf32>
    %c0_93 = arith.constant 0 : index
    %c0_94 = arith.constant 0 : index
    %269 = vector.load %arg18[%c0_93, %c0_94] : memref<32x32xf32, #tpu.memory_space<vmem>>, vector<32x32xf32>
    %cst_95 = arith.constant dense<0.000000e+00> : vector<64x32xf32>
    %270 = tpu.matmul %268, %269, %cst_95 {dimension_numbers = #tpu.dot_dimension_numbers<[1], [0], [0], [1], [0, 0, 1, 1], [], []>} : vector<64x32xf32>, vector<32x32xf32>, vector<64x32xf32> -> vector<64x32xf32>
    %c0_96 = arith.constant 0 : index
    %c0_97 = arith.constant 0 : index
    %271 = vector.load %arg19[%c0_96, %c0_97] : memref<1x32xf32, #tpu.memory_space<vmem>>, vector<1x32xf32>
    %272 = vector.broadcast %271 : vector<1x32xf32> to vector<64x32xf32>
    %273 = arith.addf %270, %272 : vector<64x32xf32>
    %274 = arith.addf %273, %195 : vector<64x32xf32>
    %c0_98 = arith.constant 0 : index
    %c0_99 = arith.constant 0 : index
    %275 = vector.load %arg20[%c0_98, %c0_99] : memref<1x32xf32, #tpu.memory_space<vmem>>, vector<1x32xf32>
    %c0_100 = arith.constant 0 : index
    %c0_101 = arith.constant 0 : index
    %276 = vector.load %arg21[%c0_100, %c0_101] : memref<1x32xf32, #tpu.memory_space<vmem>>, vector<1x32xf32>
    %cst_102 = arith.constant dense<0.000000e+00> : vector<64xf32>
    %277 = vector.multi_reduction <add>, %274, %cst_102 [1] : vector<64x32xf32> to vector<64xf32>
    %278 = vector.shape_cast %277 : vector<64xf32> to vector<64x1xf32>
    %cst_103 = arith.constant 3.200000e+01 : f32
    %279 = vector.broadcast %cst_103 : f32 to vector<64x1xf32>
    %280 = arith.divf %278, %279 : vector<64x1xf32>
    %281 = vector.broadcast %280 : vector<64x1xf32> to vector<64x32xf32>
    %282 = arith.subf %274, %281 : vector<64x32xf32>
    %283 = arith.mulf %282, %282 : vector<64x32xf32>
    %cst_104 = arith.constant dense<0.000000e+00> : vector<64xf32>
    %284 = vector.multi_reduction <add>, %283, %cst_104 [1] : vector<64x32xf32> to vector<64xf32>
    %285 = vector.shape_cast %284 : vector<64xf32> to vector<64x1xf32>
    %cst_105 = arith.constant 3.200000e+01 : f32
    %286 = vector.broadcast %cst_105 : f32 to vector<64x1xf32>
    %287 = arith.divf %285, %286 : vector<64x1xf32>
    %288 = vector.broadcast %280 : vector<64x1xf32> to vector<64x32xf32>
    %289 = arith.subf %274, %288 : vector<64x32xf32>
    %cst_106 = arith.constant 9.99999974E-6 : f32
    %290 = vector.broadcast %cst_106 : f32 to vector<64x1xf32>
    %291 = arith.addf %287, %290 : vector<64x1xf32>
    %292 = math.rsqrt %291 : vector<64x1xf32>
    %293 = vector.broadcast %292 : vector<64x1xf32> to vector<64x32xf32>
    %294 = arith.mulf %289, %293 : vector<64x32xf32>
    %295 = vector.broadcast %275 : vector<1x32xf32> to vector<64x32xf32>
    %296 = arith.mulf %294, %295 : vector<64x32xf32>
    %297 = vector.broadcast %276 : vector<1x32xf32> to vector<64x32xf32>
    %298 = arith.addf %296, %297 : vector<64x32xf32>
    %c0_107 = arith.constant 0 : index
    %c0_108 = arith.constant 0 : index
    %299 = vector.load %arg23[%c0_107, %c0_108] : memref<1x128xf32, #tpu.memory_space<vmem>>, vector<1x128xf32>
    %c0_109 = arith.constant 0 : index
    %c0_110 = arith.constant 0 : index
    %300 = vector.load %arg22[%c0_109, %c0_110] : memref<32x128xf32, #tpu.memory_space<vmem>>, vector<32x128xf32>
    %cst_111 = arith.constant dense<0.000000e+00> : vector<64x128xf32>
    %301 = tpu.matmul %298, %300, %cst_111 {dimension_numbers = #tpu.dot_dimension_numbers<[1], [0], [0], [1], [0, 0, 1, 1], [], []>} : vector<64x32xf32>, vector<32x128xf32>, vector<64x128xf32> -> vector<64x128xf32>
    %302 = vector.broadcast %299 : vector<1x128xf32> to vector<64x128xf32>
    %303 = arith.addf %301, %302 : vector<64x128xf32>
    %cst_112 = arith.constant 0.000000e+00 : f32
    %304 = vector.broadcast %cst_112 : f32 to vector<64x128xf32>
    %305 = arith.maximumf %303, %304 : vector<64x128xf32>
    %c0_113 = arith.constant 0 : index
    %c0_114 = arith.constant 0 : index
    %306 = vector.load %arg24[%c0_113, %c0_114] : memref<128x32xf32, #tpu.memory_space<vmem>>, vector<128x32xf32>
    %cst_115 = arith.constant dense<0.000000e+00> : vector<64x32xf32>
    %307 = tpu.matmul %305, %306, %cst_115 {dimension_numbers = #tpu.dot_dimension_numbers<[1], [0], [0], [1], [0, 0, 1, 1], [], []>} : vector<64x128xf32>, vector<128x32xf32>, vector<64x32xf32> -> vector<64x32xf32>
    %c0_116 = arith.constant 0 : index
    %c0_117 = arith.constant 0 : index
    %308 = vector.load %arg25[%c0_116, %c0_117] : memref<1x32xf32, #tpu.memory_space<vmem>>, vector<1x32xf32>
    %309 = vector.broadcast %308 : vector<1x32xf32> to vector<64x32xf32>
    %310 = arith.addf %307, %309 : vector<64x32xf32>
    %311 = arith.addf %310, %298 : vector<64x32xf32>
    %c0_118 = arith.constant 0 : index
    %c0_119 = arith.constant 0 : index
    %312 = vector.load %arg26[%c0_118, %c0_119] : memref<1x32xf32, #tpu.memory_space<vmem>>, vector<1x32xf32>
    %c0_120 = arith.constant 0 : index
    %c0_121 = arith.constant 0 : index
    %313 = vector.load %arg27[%c0_120, %c0_121] : memref<1x32xf32, #tpu.memory_space<vmem>>, vector<1x32xf32>
    %cst_122 = arith.constant dense<0.000000e+00> : vector<64xf32>
    %314 = vector.multi_reduction <add>, %311, %cst_122 [1] : vector<64x32xf32> to vector<64xf32>
    %315 = vector.shape_cast %314 : vector<64xf32> to vector<64x1xf32>
    %cst_123 = arith.constant 3.200000e+01 : f32
    %316 = vector.broadcast %cst_123 : f32 to vector<64x1xf32>
    %317 = arith.divf %315, %316 : vector<64x1xf32>
    %318 = vector.broadcast %317 : vector<64x1xf32> to vector<64x32xf32>
    %319 = arith.subf %311, %318 : vector<64x32xf32>
    %320 = arith.mulf %319, %319 : vector<64x32xf32>
    %cst_124 = arith.constant dense<0.000000e+00> : vector<64xf32>
    %321 = vector.multi_reduction <add>, %320, %cst_124 [1] : vector<64x32xf32> to vector<64xf32>
    %322 = vector.shape_cast %321 : vector<64xf32> to vector<64x1xf32>
    %cst_125 = arith.constant 3.200000e+01 : f32
    %323 = vector.broadcast %cst_125 : f32 to vector<64x1xf32>
    %324 = arith.divf %322, %323 : vector<64x1xf32>
    %325 = vector.broadcast %317 : vector<64x1xf32> to vector<64x32xf32>
    %326 = arith.subf %311, %325 : vector<64x32xf32>
    %cst_126 = arith.constant 9.99999974E-6 : f32
    %327 = vector.broadcast %cst_126 : f32 to vector<64x1xf32>
    %328 = arith.addf %324, %327 : vector<64x1xf32>
    %329 = math.rsqrt %328 : vector<64x1xf32>
    %330 = vector.broadcast %329 : vector<64x1xf32> to vector<64x32xf32>
    %331 = arith.mulf %326, %330 : vector<64x32xf32>
    %332 = vector.broadcast %312 : vector<1x32xf32> to vector<64x32xf32>
    %333 = arith.mulf %331, %332 : vector<64x32xf32>
    %334 = vector.broadcast %313 : vector<1x32xf32> to vector<64x32xf32>
    %335 = arith.addf %333, %334 : vector<64x32xf32>
    %336 = arith.addf %335, %189 : vector<64x32xf32>
    %c0_127 = arith.constant 0 : index
    %c0_128 = arith.constant 0 : index
    %337 = vector.load %arg28[%c0_127, %c0_128] : memref<1x32xf32, #tpu.memory_space<vmem>>, vector<1x32xf32>
    %c0_129 = arith.constant 0 : index
    %c0_130 = arith.constant 0 : index
    %338 = vector.load %arg29[%c0_129, %c0_130] : memref<1x32xf32, #tpu.memory_space<vmem>>, vector<1x32xf32>
    %cst_131 = arith.constant dense<0.000000e+00> : vector<64xf32>
    %339 = vector.multi_reduction <add>, %336, %cst_131 [1] : vector<64x32xf32> to vector<64xf32>
    %340 = vector.shape_cast %339 : vector<64xf32> to vector<64x1xf32>
    %cst_132 = arith.constant 3.200000e+01 : f32
    %341 = vector.broadcast %cst_132 : f32 to vector<64x1xf32>
    %342 = arith.divf %340, %341 : vector<64x1xf32>
    %343 = vector.broadcast %342 : vector<64x1xf32> to vector<64x32xf32>
    %344 = arith.subf %336, %343 : vector<64x32xf32>
    %345 = arith.mulf %344, %344 : vector<64x32xf32>
    %cst_133 = arith.constant dense<0.000000e+00> : vector<64xf32>
    %346 = vector.multi_reduction <add>, %345, %cst_133 [1] : vector<64x32xf32> to vector<64xf32>
    %347 = vector.shape_cast %346 : vector<64xf32> to vector<64x1xf32>
    %cst_134 = arith.constant 3.200000e+01 : f32
    %348 = vector.broadcast %cst_134 : f32 to vector<64x1xf32>
    %349 = arith.divf %347, %348 : vector<64x1xf32>
    %350 = vector.broadcast %342 : vector<64x1xf32> to vector<64x32xf32>
    %351 = arith.subf %336, %350 : vector<64x32xf32>
    %cst_135 = arith.constant 9.99999974E-6 : f32
    %352 = vector.broadcast %cst_135 : f32 to vector<64x1xf32>
    %353 = arith.addf %349, %352 : vector<64x1xf32>
    %354 = math.rsqrt %353 : vector<64x1xf32>
    %355 = vector.broadcast %354 : vector<64x1xf32> to vector<64x32xf32>
    %356 = arith.mulf %351, %355 : vector<64x32xf32>
    %357 = vector.broadcast %337 : vector<1x32xf32> to vector<64x32xf32>
    %358 = arith.mulf %356, %357 : vector<64x32xf32>
    %359 = vector.broadcast %338 : vector<1x32xf32> to vector<64x32xf32>
    %360 = arith.addf %358, %359 : vector<64x32xf32>
    %361 = vector.shape_cast %360 : vector<64x32xf32> to vector<8x8x32xf32>
    %362 = vector.extract_strided_slice %361 {offsets = [0, 0, 0], sizes = [8, 1, 32], strides = [1, 1, 1]} : vector<8x8x32xf32> to vector<8x1x32xf32>
    %363 = vector.shape_cast %362 : vector<8x1x32xf32> to vector<8x32xf32>
    %364 = vector.extract_strided_slice %361 {offsets = [0, 1, 0], sizes = [8, 1, 32], strides = [1, 1, 1]} : vector<8x8x32xf32> to vector<8x1x32xf32>
    %365 = vector.shape_cast %364 : vector<8x1x32xf32> to vector<8x32xf32>
    %366 = vector.extract_strided_slice %361 {offsets = [0, 2, 0], sizes = [8, 1, 32], strides = [1, 1, 1]} : vector<8x8x32xf32> to vector<8x1x32xf32>
    %367 = vector.shape_cast %366 : vector<8x1x32xf32> to vector<8x32xf32>
    %368 = vector.extract_strided_slice %361 {offsets = [0, 3, 0], sizes = [8, 1, 32], strides = [1, 1, 1]} : vector<8x8x32xf32> to vector<8x1x32xf32>
    %369 = vector.shape_cast %368 : vector<8x1x32xf32> to vector<8x32xf32>
    %370 = vector.extract_strided_slice %361 {offsets = [0, 4, 0], sizes = [8, 1, 32], strides = [1, 1, 1]} : vector<8x8x32xf32> to vector<8x1x32xf32>
    %371 = vector.shape_cast %370 : vector<8x1x32xf32> to vector<8x32xf32>
    %372 = vector.extract_strided_slice %361 {offsets = [0, 5, 0], sizes = [8, 1, 32], strides = [1, 1, 1]} : vector<8x8x32xf32> to vector<8x1x32xf32>
    %373 = vector.shape_cast %372 : vector<8x1x32xf32> to vector<8x32xf32>
    %374 = vector.extract_strided_slice %361 {offsets = [0, 6, 0], sizes = [8, 1, 32], strides = [1, 1, 1]} : vector<8x8x32xf32> to vector<8x1x32xf32>
    %375 = vector.shape_cast %374 : vector<8x1x32xf32> to vector<8x32xf32>
    %376 = vector.extract_strided_slice %361 {offsets = [0, 7, 0], sizes = [8, 1, 32], strides = [1, 1, 1]} : vector<8x8x32xf32> to vector<8x1x32xf32>
    %377 = vector.shape_cast %376 : vector<8x1x32xf32> to vector<8x32xf32>
    %378 = tpu.concatenate %363, %365, %367, %369, %371, %373, %375, %377 in 1 : vector<8x32xf32>, vector<8x32xf32>, vector<8x32xf32>, vector<8x32xf32>, vector<8x32xf32>, vector<8x32xf32>, vector<8x32xf32>, vector<8x32xf32> -> vector<8x256xf32>
    %c0_136 = arith.constant 0 : index
    %c0_137 = arith.constant 0 : index
    %379 = vector.load %arg30[%c0_136, %c0_137] : memref<8x256xf32, #tpu.memory_space<vmem>>, vector<8x256xf32>
    tpu.vector_store %arg30[%c0_136, %c0_137], %378 {strides = array<i32>} : memref<8x256xf32, #tpu.memory_space<vmem>>, vector<8x256xf32>,
    return
  }
  func.func @transform_0(%arg0: i32) -> (i32, i32) {
    %c0_i32 = arith.constant 0 : i32
    %c0_i32_0 = arith.constant 0 : i32
    return %arg0, %c0_i32 : i32, i32
  }
  func.func @transform_1(%arg0: i32) -> (i32, i32) {
    %c0_i32 = arith.constant 0 : i32
    %c0_i32_0 = arith.constant 0 : i32
    %c0_i32_1 = arith.constant 0 : i32
    return %c0_i32, %c0_i32_0 : i32, i32
  }
  func.func @transform_2(%arg0: i32) -> (i32, i32) {
    %c0_i32 = arith.constant 0 : i32
    %c0_i32_0 = arith.constant 0 : i32
    %c0_i32_1 = arith.constant 0 : i32
    return %c0_i32, %c0_i32_0 : i32, i32
  }
  func.func @transform_3(%arg0: i32) -> (i32, i32) {
    %c0_i32 = arith.constant 0 : i32
    %c0_i32_0 = arith.constant 0 : i32
    %c0_i32_1 = arith.constant 0 : i32
    return %c0_i32, %c0_i32_0 : i32, i32
  }
  func.func @transform_4(%arg0: i32) -> (i32, i32) {
    %c0_i32 = arith.constant 0 : i32
    %c0_i32_0 = arith.constant 0 : i32
    %c0_i32_1 = arith.constant 0 : i32
    return %c0_i32, %c0_i32_0 : i32, i32
  }
  func.func @transform_5(%arg0: i32) -> (i32, i32) {
    %c0_i32 = arith.constant 0 : i32
    %c0_i32_0 = arith.constant 0 : i32
    %c0_i32_1 = arith.constant 0 : i32
    return %c0_i32, %c0_i32_0 : i32, i32
  }
  func.func @transform_6(%arg0: i32) -> (i32, i32) {
    %c0_i32 = arith.constant 0 : i32
    %c0_i32_0 = arith.constant 0 : i32
    %c0_i32_1 = arith.constant 0 : i32
    return %c0_i32, %c0_i32_0 : i32, i32
  }
  func.func @transform_7(%arg0: i32) -> (i32, i32) {
    %c0_i32 = arith.constant 0 : i32
    %c0_i32_0 = arith.constant 0 : i32
    %c0_i32_1 = arith.constant 0 : i32
    return %c0_i32, %c0_i32_0 : i32, i32
  }
  func.func @transform_8(%arg0: i32) -> (i32, i32) {
    %c0_i32 = arith.constant 0 : i32
    %c0_i32_0 = arith.constant 0 : i32
    %c0_i32_1 = arith.constant 0 : i32
    return %c0_i32, %c0_i32_0 : i32, i32
  }
  func.func @transform_9(%arg0: i32) -> (i32, i32) {
    %c0_i32 = arith.constant 0 : i32
    %c0_i32_0 = arith.constant 0 : i32
    %c0_i32_1 = arith.constant 0 : i32
    return %c0_i32, %c0_i32_0 : i32, i32
  }
  func.func @transform_10(%arg0: i32) -> (i32, i32) {
    %c0_i32 = arith.constant 0 : i32
    %c0_i32_0 = arith.constant 0 : i32
    %c0_i32_1 = arith.constant 0 : i32
    return %c0_i32, %c0_i32_0 : i32, i32
  }
  func.func @transform_11(%arg0: i32) -> (i32, i32) {
    %c0_i32 = arith.constant 0 : i32
    %c0_i32_0 = arith.constant 0 : i32
    %c0_i32_1 = arith.constant 0 : i32
    return %c0_i32, %c0_i32_0 : i32, i32
  }
  func.func @transform_12(%arg0: i32) -> (i32, i32) {
    %c0_i32 = arith.constant 0 : i32
    %c0_i32_0 = arith.constant 0 : i32
    %c0_i32_1 = arith.constant 0 : i32
    return %c0_i32, %c0_i32_0 : i32, i32
  }
  func.func @transform_13(%arg0: i32) -> (i32, i32) {
    %c0_i32 = arith.constant 0 : i32
    %c0_i32_0 = arith.constant 0 : i32
    %c0_i32_1 = arith.constant 0 : i32
    return %c0_i32, %c0_i32_0 : i32, i32
  }
  func.func @transform_14(%arg0: i32) -> (i32, i32) {
    %c0_i32 = arith.constant 0 : i32
    %c0_i32_0 = arith.constant 0 : i32
    %c0_i32_1 = arith.constant 0 : i32
    return %c0_i32, %c0_i32_0 : i32, i32
  }
  func.func @transform_15(%arg0: i32) -> (i32, i32) {
    %c0_i32 = arith.constant 0 : i32
    %c0_i32_0 = arith.constant 0 : i32
    %c0_i32_1 = arith.constant 0 : i32
    return %c0_i32, %c0_i32_0 : i32, i32
  }
  func.func @transform_16(%arg0: i32) -> (i32, i32) {
    %c0_i32 = arith.constant 0 : i32
    %c0_i32_0 = arith.constant 0 : i32
    %c0_i32_1 = arith.constant 0 : i32
    return %c0_i32, %c0_i32_0 : i32, i32
  }
  func.func @transform_17(%arg0: i32) -> (i32, i32) {
    %c0_i32 = arith.constant 0 : i32
    %c0_i32_0 = arith.constant 0 : i32
    %c0_i32_1 = arith.constant 0 : i32
    return %c0_i32, %c0_i32_0 : i32, i32
  }
  func.func @transform_18(%arg0: i32) -> (i32, i32) {
    %c0_i32 = arith.constant 0 : i32
    %c0_i32_0 = arith.constant 0 : i32
    %c0_i32_1 = arith.constant 0 : i32
    return %c0_i32, %c0_i32_0 : i32, i32
  }
  func.func @transform_19(%arg0: i32) -> (i32, i32) {
    %c0_i32 = arith.constant 0 : i32
    %c0_i32_0 = arith.constant 0 : i32
    %c0_i32_1 = arith.constant 0 : i32
    return %c0_i32, %c0_i32_0 : i32, i32
  }
  func.func @transform_20(%arg0: i32) -> (i32, i32) {
    %c0_i32 = arith.constant 0 : i32
    %c0_i32_0 = arith.constant 0 : i32
    %c0_i32_1 = arith.constant 0 : i32
    return %c0_i32, %c0_i32_0 : i32, i32
  }
  func.func @transform_21(%arg0: i32) -> (i32, i32) {
    %c0_i32 = arith.constant 0 : i32
    %c0_i32_0 = arith.constant 0 : i32
    %c0_i32_1 = arith.constant 0 : i32
    return %c0_i32, %c0_i32_0 : i32, i32
  }
  func.func @transform_22(%arg0: i32) -> (i32, i32) {
    %c0_i32 = arith.constant 0 : i32
    %c0_i32_0 = arith.constant 0 : i32
    %c0_i32_1 = arith.constant 0 : i32
    return %c0_i32, %c0_i32_0 : i32, i32
  }
  func.func @transform_23(%arg0: i32) -> (i32, i32) {
    %c0_i32 = arith.constant 0 : i32
    %c0_i32_0 = arith.constant 0 : i32
    %c0_i32_1 = arith.constant 0 : i32
    return %c0_i32, %c0_i32_0 : i32, i32
  }
  func.func @transform_24(%arg0: i32) -> (i32, i32) {
    %c0_i32 = arith.constant 0 : i32
    %c0_i32_0 = arith.constant 0 : i32
    %c0_i32_1 = arith.constant 0 : i32
    return %c0_i32, %c0_i32_0 : i32, i32
  }
  func.func @transform_25(%arg0: i32) -> (i32, i32) {
    %c0_i32 = arith.constant 0 : i32
    %c0_i32_0 = arith.constant 0 : i32
    %c0_i32_1 = arith.constant 0 : i32
    return %c0_i32, %c0_i32_0 : i32, i32
  }
  func.func @transform_26(%arg0: i32) -> (i32, i32) {
    %c0_i32 = arith.constant 0 : i32
    %c0_i32_0 = arith.constant 0 : i32
    %c0_i32_1 = arith.constant 0 : i32
    return %c0_i32, %c0_i32_0 : i32, i32
  }
  func.func @transform_27(%arg0: i32) -> (i32, i32) {
    %c0_i32 = arith.constant 0 : i32
    %c0_i32_0 = arith.constant 0 : i32
    %c0_i32_1 = arith.constant 0 : i32
    return %c0_i32, %c0_i32_0 : i32, i32
  }
  func.func @transform_28(%arg0: i32) -> (i32, i32) {
    %c0_i32 = arith.constant 0 : i32
    %c0_i32_0 = arith.constant 0 : i32
    %c0_i32_1 = arith.constant 0 : i32
    return %c0_i32, %c0_i32_0 : i32, i32
  }
  func.func @transform_29(%arg0: i32) -> (i32, i32) {
    %c0_i32 = arith.constant 0 : i32
    %c0_i32_0 = arith.constant 0 : i32
    return %arg0, %c0_i32 : i32, i32
  }
}

</mosaic_0001>

<llo_original>
// kernel: _lambda_.1
$region0: #{_lambda_.1}
  #allocation0 [shape = 'u32[]', space=smem, size = 0x4, offset = 0x4, fixed_abs, tag = 'smem constant byte address 0x4 - core index']
  #allocation1 [shape = 'u32[72,128]{1,0:T(1,128)}', space=vmem, size = 0x9000, scoped, tag = 'internal scratch']
  %s0 = inlined_call_operand.smem [shape: u32[30], index: -1, kind: input, shape index: {}]
  %s1 = sld [smem:[%s0]]
  %s2 = scalar_lea.smem %s0, 1
  %s3 = sld [smem:[%s2]]
  %s4 = scalar_lea.smem %s0, 2
  %s5 = sld [smem:[%s4]]
  %s6 = scalar_lea.smem %s0, 3
  %s7 = sld [smem:[%s6]]
  %s8 = scalar_lea.smem %s0, 4
  %s9 = sld [smem:[%s8]]
  %s10 = scalar_lea.smem %s0, 5
  %s11 = sld [smem:[%s10]]
  %s12 = scalar_lea.smem %s0, 6
  %s13 = sld [smem:[%s12]]
  %s14 = scalar_lea.smem %s0, 7
  %s15 = sld [smem:[%s14]]
  %s16 = scalar_lea.smem %s0, 8
  %s17 = sld [smem:[%s16]]
  %s18 = scalar_lea.smem %s0, 9
  %s19 = sld [smem:[%s18]]
  %s20 = scalar_lea.smem %s0, 10
  %s21 = sld [smem:[%s20]]
  %s22 = scalar_lea.smem %s0, 11
  %s23 = sld [smem:[%s22]]
  %s24 = scalar_lea.smem %s0, 12
  %s25 = sld [smem:[%s24]]
  %s26 = scalar_lea.smem %s0, 13
  %s27 = sld [smem:[%s26]]
  %s28 = scalar_lea.smem %s0, 14
  %s29 = sld [smem:[%s28]]
  %s30 = scalar_lea.smem %s0, 15
  %s31 = sld [smem:[%s30]]
  %s32 = scalar_lea.smem %s0, 16
  %s33 = sld [smem:[%s32]]
  %s34 = scalar_lea.smem %s0, 17
  %s35 = sld [smem:[%s34]]
  %s36 = scalar_lea.smem %s0, 18
  %s37 = sld [smem:[%s36]]
  %s38 = scalar_lea.smem %s0, 19
  %s39 = sld [smem:[%s38]]
  %s40 = scalar_lea.smem %s0, 20
  %s41 = sld [smem:[%s40]]
  %s42 = scalar_lea.smem %s0, 21
  %s43 = sld [smem:[%s42]]
  %s44 = scalar_lea.smem %s0, 22
  %s45 = sld [smem:[%s44]]
  %s46 = scalar_lea.smem %s0, 23
  %s47 = sld [smem:[%s46]]
  %s48 = scalar_lea.smem %s0, 24
  %s49 = sld [smem:[%s48]]
  %s50 = scalar_lea.smem %s0, 25
  %s51 = sld [smem:[%s50]]
  %s52 = scalar_lea.smem %s0, 26
  %s53 = sld [smem:[%s52]]
  %s54 = scalar_lea.smem %s0, 27
  %s55 = sld [smem:[%s54]]
  %s56 = scalar_lea.smem %s0, 28
  %s57 = sld [smem:[%s56]]
  %s58 = scalar_lea.smem %s0, 29
  %s59 = sld [smem:[%s58]]
  %s60 = sld [smem:[#allocation0]]
  $region126: #{_lambda_.1} parent=0
    _
  %s62 = ssub.s32 1, %s60
  %s63 = scalar_select 0, %s62, %s60
  // Predicated region
  $region2: #{_lambda_.1} parent=0 // pred_check
    _
  $region3: #{_lambda_.1} parent=0 // pred_check_branch
    %65 = sbr.rel (0) target = $region5
  $region4: #{_lambda_.1} parent=0 // pred_region
    _
  $region5: #{_lambda_.1} parent=0 // pred_fallthru
    _
  // Predicated region
  $region6: #{_lambda_.1} parent=0 // pred_check
    _
  $region7: #{_lambda_.1} parent=0 // pred_check_branch
    %67 = sbr.rel (0) target = $region9
  $region8: #{_lambda_.1} parent=0 // pred_region
    _
  $region9: #{_lambda_.1} parent=0 // pred_fallthru
    _
  // Predicated region
  $region10: #{_lambda_.1} parent=0 // pred_check
    _
  $region11: #{_lambda_.1} parent=0 // pred_check_branch
    %69 = sbr.rel (0) target = $region13
  $region12: #{_lambda_.1} parent=0 // pred_region
    _
  $region13: #{_lambda_.1} parent=0 // pred_fallthru
    _
  // Predicated region
  $region14: #{_lambda_.1} parent=0 // pred_check
    _
  $region15: #{_lambda_.1} parent=0 // pred_check_branch
    %71 = sbr.rel (0) target = $region17
  $region16: #{_lambda_.1} parent=0 // pred_region
    _
  $region17: #{_lambda_.1} parent=0 // pred_fallthru
    _
  // Predicated region
  $region18: #{_lambda_.1} parent=0 // pred_check
    _
  $region19: #{_lambda_.1} parent=0 // pred_check_branch
    %73 = sbr.rel (0) target = $region21
  $region20: #{_lambda_.1} parent=0 // pred_region
    _
  $region21: #{_lambda_.1} parent=0 // pred_fallthru
    _
  // Predicated region
  $region22: #{_lambda_.1} parent=0 // pred_check
    _
  $region23: #{_lambda_.1} parent=0 // pred_check_branch
    %75 = sbr.rel (0) target = $region25
  $region24: #{_lambda_.1} parent=0 // pred_region
    _
  $region25: #{_lambda_.1} parent=0 // pred_fallthru
    _
  // Predicated region
  $region26: #{_lambda_.1} parent=0 // pred_check
    _
  $region27: #{_lambda_.1} parent=0 // pred_check_branch
    %77 = sbr.rel (0) target = $region29
  $region28: #{_lambda_.1} parent=0 // pred_region
    _
  $region29: #{_lambda_.1} parent=0 // pred_fallthru
    _
  // Predicated region
  $region30: #{_lambda_.1} parent=0 // pred_check
    _
  $region31: #{_lambda_.1} parent=0 // pred_check_branch
    %79 = sbr.rel (0) target = $region33
  $region32: #{_lambda_.1} parent=0 // pred_region
    _
  $region33: #{_lambda_.1} parent=0 // pred_fallthru
    _
  // Predicated region
  $region34: #{_lambda_.1} parent=0 // pred_check
    _
  $region35: #{_lambda_.1} parent=0 // pred_check_branch
    %81 = sbr.rel (0) target = $region37
  $region36: #{_lambda_.1} parent=0 // pred_region
    _
  $region37: #{_lambda_.1} parent=0 // pred_fallthru
    _
  // Predicated region
  $region38: #{_lambda_.1} parent=0 // pred_check
    _
  $region39: #{_lambda_.1} parent=0 // pred_check_branch
    %83 = sbr.rel (0) target = $region41
  $region40: #{_lambda_.1} parent=0 // pred_region
    _
  $region41: #{_lambda_.1} parent=0 // pred_fallthru
    _
  // Predicated region
  $region42: #{_lambda_.1} parent=0 // pred_check
    _
  $region43: #{_lambda_.1} parent=0 // pred_check_branch
    %85 = sbr.rel (0) target = $region45
  $region44: #{_lambda_.1} parent=0 // pred_region
    _
  $region45: #{_lambda_.1} parent=0 // pred_fallthru
    _
  // Predicated region
  $region46: #{_lambda_.1} parent=0 // pred_check
    _
  $region47: #{_lambda_.1} parent=0 // pred_check_branch
    %87 = sbr.rel (0) target = $region49
  $region48: #{_lambda_.1} parent=0 // pred_region
    _
  $region49: #{_lambda_.1} parent=0 // pred_fallthru
    _
  // Predicated region
  $region50: #{_lambda_.1} parent=0 // pred_check
    _
  $region51: #{_lambda_.1} parent=0 // pred_check_branch
    %89 = sbr.rel (0) target = $region53
  $region52: #{_lambda_.1} parent=0 // pred_region
    _
  $region53: #{_lambda_.1} parent=0 // pred_fallthru
    _
  // Predicated region
  $region54: #{_lambda_.1} parent=0 // pred_check
    _
  $region55: #{_lambda_.1} parent=0 // pred_check_branch
    %91 = sbr.rel (0) target = $region57
  $region56: #{_lambda_.1} parent=0 // pred_region
    _
  $region57: #{_lambda_.1} parent=0 // pred_fallthru
    _
  // Predicated region
  $region58: #{_lambda_.1} parent=0 // pred_check
    _
  $region59: #{_lambda_.1} parent=0 // pred_check_branch
    %93 = sbr.rel (0) target = $region61
  $region60: #{_lambda_.1} parent=0 // pred_region
    _
  $region61: #{_lambda_.1} parent=0 // pred_fallthru
    _
  // Predicated region
  $region62: #{_lambda_.1} parent=0 // pred_check
    _
  $region63: #{_lambda_.1} parent=0 // pred_check_branch
    %95 = sbr.rel (0) target = $region65
  $region64: #{_lambda_.1} parent=0 // pred_region
    _
  $region65: #{_lambda_.1} parent=0 // pred_fallthru
    _
  // Predicated region
  $region66: #{_lambda_.1} parent=0 // pred_check
    _
  $region67: #{_lambda_.1} parent=0 // pred_check_branch
    %97 = sbr.rel (0) target = $region69
  $region68: #{_lambda_.1} parent=0 // pred_region
    _
  $region69: #{_lambda_.1} parent=0 // pred_fallthru
    _
  // Predicated region
  $region70: #{_lambda_.1} parent=0 // pred_check
    _
  $region71: #{_lambda_.1} parent=0 // pred_check_branch
    %99 = sbr.rel (0) target = $region73
  $region72: #{_lambda_.1} parent=0 // pred_region
    _
  $region73: #{_lambda_.1} parent=0 // pred_fallthru
    _
  // Predicated region
  $region74: #{_lambda_.1} parent=0 // pred_check
    _
  $region75: #{_lambda_.1} parent=0 // pred_check_branch
    %101 = sbr.rel (0) target = $region77
  $region76: #{_lambda_.1} parent=0 // pred_region
    _
  $region77: #{_lambda_.1} parent=0 // pred_fallthru
    _
  // Predicated region
  $region78: #{_lambda_.1} parent=0 // pred_check
    _
  $region79: #{_lambda_.1} parent=0 // pred_check_branch
    %103 = sbr.rel (0) target = $region81
  $region80: #{_lambda_.1} parent=0 // pred_region
    _
  $region81: #{_lambda_.1} parent=0 // pred_fallthru
    _
  // Predicated region
  $region82: #{_lambda_.1} parent=0 // pred_check
    _
  $region83: #{_lambda_.1} parent=0 // pred_check_branch
    %105 = sbr.rel (0) target = $region85
  $region84: #{_lambda_.1} parent=0 // pred_region
    _
  $region85: #{_lambda_.1} parent=0 // pred_fallthru
    _
  // Predicated region
  $region86: #{_lambda_.1} parent=0 // pred_check
    _
  $region87: #{_lambda_.1} parent=0 // pred_check_branch
    %107 = sbr.rel (0) target = $region89
  $region88: #{_lambda_.1} parent=0 // pred_region
    _
  $region89: #{_lambda_.1} parent=0 // pred_fallthru
    _
  // Predicated region
  $region90: #{_lambda_.1} parent=0 // pred_check
    _
  $region91: #{_lambda_.1} parent=0 // pred_check_branch
    %109 = sbr.rel (0) target = $region93
  $region92: #{_lambda_.1} parent=0 // pred_region
    _
  $region93: #{_lambda_.1} parent=0 // pred_fallthru
    _
  // Predicated region
  $region94: #{_lambda_.1} parent=0 // pred_check
    _
  $region95: #{_lambda_.1} parent=0 // pred_check_branch
    %111 = sbr.rel (0) target = $region97
  $region96: #{_lambda_.1} parent=0 // pred_region
    _
  $region97: #{_lambda_.1} parent=0 // pred_fallthru
    _
  // Predicated region
  $region98: #{_lambda_.1} parent=0 // pred_check
    _
  $region99: #{_lambda_.1} parent=0 // pred_check_branch
    %113 = sbr.rel (0) target = $region101
  $region100: #{_lambda_.1} parent=0 // pred_region
    _
  $region101: #{_lambda_.1} parent=0 // pred_fallthru
    _
  // Predicated region
  $region102: #{_lambda_.1} parent=0 // pred_check
    _
  $region103: #{_lambda_.1} parent=0 // pred_check_branch
    %115 = sbr.rel (0) target = $region105
  $region104: #{_lambda_.1} parent=0 // pred_region
    _
  $region105: #{_lambda_.1} parent=0 // pred_fallthru
    _
  // Predicated region
  $region106: #{_lambda_.1} parent=0 // pred_check
    _
  $region107: #{_lambda_.1} parent=0 // pred_check_branch
    %117 = sbr.rel (0) target = $region109
  $region108: #{_lambda_.1} parent=0 // pred_region
    _
  $region109: #{_lambda_.1} parent=0 // pred_fallthru
    _
  // Predicated region
  $region110: #{_lambda_.1} parent=0 // pred_check
    _
  $region111: #{_lambda_.1} parent=0 // pred_check_branch
    %119 = sbr.rel (0) target = $region113
  $region112: #{_lambda_.1} parent=0 // pred_region
    _
  $region113: #{_lambda_.1} parent=0 // pred_fallthru
    _
  // Predicated region
  $region114: #{_lambda_.1} parent=0 // pred_check
    _
  $region115: #{_lambda_.1} parent=0 // pred_check_branch
    %121 = sbr.rel (0) target = $region117
  $region116: #{_lambda_.1} parent=0 // pred_region
    _
  $region117: #{_lambda_.1} parent=0 // pred_fallthru
    _
  %v122 = vld [vmem:[%s1] sm:$0xff]
  %v123 = vld [vmem:[%s1 + $0x8] sm:$0xff]
  %v125 = vrot.slane %v122, 1
  %v126 = vrot.slane %v122, 2
  %v127 = vrot.slane %v122, 3
  %v128 = vrot.slane %v122, 4
  %v129 = vrot.slane %v122, 5
  %v130 = vrot.slane %v122, 6
  %v131 = vrot.slane %v122, 7
  %v140 = vrot.slane %v123, 1
  %v141 = vrot.slane %v123, 2
  %v142 = vrot.slane %v123, 3
  %v143 = vrot.slane %v123, 4
  %v144 = vrot.slane %v123, 5
  %v145 = vrot.slane %v123, 6
  %v146 = vrot.slane %v123, 7
  %v147 = vperm.slane %v122, 0
  %v148 = vperm.slane %v125, 0
  %v149 = vperm.slane %v126, 0
  %v150 = vperm.slane %v127, 0
  %v151 = vperm.slane %v128, 0
  %v152 = vperm.slane %v129, 0
  %v153 = vperm.slane %v130, 0
  %v154 = vperm.slane %v131, 0
  %155 = vrot.lane.b32.xlu0 %v147, 96
  %v156 = vpop.permute.xlu0 %155
  %157 = vrot.lane.b32.xlu0 %v148, 96
  %v158 = vpop.permute.xlu0 %157
  %159 = vrot.lane.b32.xlu0 %v149, 96
  %v160 = vpop.permute.xlu0 %159
  %161 = vrot.lane.b32.xlu0 %v150, 96
  %v162 = vpop.permute.xlu0 %161
  %163 = vrot.lane.b32.xlu0 %v151, 96
  %v164 = vpop.permute.xlu0 %163
  %165 = vrot.lane.b32.xlu0 %v152, 96
  %v166 = vpop.permute.xlu0 %165
  %167 = vrot.lane.b32.xlu0 %v153, 96
  %v168 = vpop.permute.xlu0 %167
  %169 = vrot.lane.b32.xlu0 %v154, 96
  %v170 = vpop.permute.xlu0 %169
  %179 = vrot.lane.b32.xlu0 %v147, 64
  %v180 = vpop.permute.xlu0 %179
  %181 = vrot.lane.b32.xlu0 %v148, 64
  %v182 = vpop.permute.xlu0 %181
  %183 = vrot.lane.b32.xlu0 %v149, 64
  %v184 = vpop.permute.xlu0 %183
  %185 = vrot.lane.b32.xlu0 %v150, 64
  %v186 = vpop.permute.xlu0 %185
  %187 = vrot.lane.b32.xlu0 %v151, 64
  %v188 = vpop.permute.xlu0 %187
  %189 = vrot.lane.b32.xlu0 %v152, 64
  %v190 = vpop.permute.xlu0 %189
  %191 = vrot.lane.b32.xlu0 %v153, 64
  %v192 = vpop.permute.xlu0 %191
  %193 = vrot.lane.b32.xlu0 %v154, 64
  %v194 = vpop.permute.xlu0 %193
  %203 = vrot.lane.b32.xlu0 %v147, 32
  %v204 = vpop.permute.xlu0 %203
  %205 = vrot.lane.b32.xlu0 %v148, 32
  %v206 = vpop.permute.xlu0 %205
  %207 = vrot.lane.b32.xlu0 %v149, 32
  %v208 = vpop.permute.xlu0 %207
  %209 = vrot.lane.b32.xlu0 %v150, 32
  %v210 = vpop.permute.xlu0 %209
  %211 = vrot.lane.b32.xlu0 %v151, 32
  %v212 = vpop.permute.xlu0 %211
  %213 = vrot.lane.b32.xlu0 %v152, 32
  %v214 = vpop.permute.xlu0 %213
  %215 = vrot.lane.b32.xlu0 %v153, 32
  %v216 = vpop.permute.xlu0 %215
  %217 = vrot.lane.b32.xlu0 %v154, 32
  %v218 = vpop.permute.xlu0 %217
  %v227 = vperm.slane %v123, 0
  %v228 = vperm.slane %v140, 0
  %v229 = vperm.slane %v141, 0
  %v230 = vperm.slane %v142, 0
  %v231 = vperm.slane %v143, 0
  %v232 = vperm.slane %v144, 0
  %v233 = vperm.slane %v145, 0
  %v234 = vperm.slane %v146, 0
  %243 = vrot.lane.b32.xlu0 %v227, 96
  %v244 = vpop.permute.xlu0 %243
  %245 = vrot.lane.b32.xlu0 %v228, 96
  %v246 = vpop.permute.xlu0 %245
  %247 = vrot.lane.b32.xlu0 %v229, 96
  %v248 = vpop.permute.xlu0 %247
  %249 = vrot.lane.b32.xlu0 %v230, 96
  %v250 = vpop.permute.xlu0 %249
  %251 = vrot.lane.b32.xlu0 %v231, 96
  %v252 = vpop.permute.xlu0 %251
  %253 = vrot.lane.b32.xlu0 %v232, 96
  %v254 = vpop.permute.xlu0 %253
  %255 = vrot.lane.b32.xlu0 %v233, 96
  %v256 = vpop.permute.xlu0 %255
  %257 = vrot.lane.b32.xlu0 %v234, 96
  %v258 = vpop.permute.xlu0 %257
  %267 = vrot.lane.b32.xlu0 %v227, 64
  %v268 = vpop.permute.xlu0 %267
  %269 = vrot.lane.b32.xlu0 %v228, 64
  %v270 = vpop.permute.xlu0 %269
  %271 = vrot.lane.b32.xlu0 %v229, 64
  %v272 = vpop.permute.xlu0 %271
  %273 = vrot.lane.b32.xlu0 %v230, 64
  %v274 = vpop.permute.xlu0 %273
  %275 = vrot.lane.b32.xlu0 %v231, 64
  %v276 = vpop.permute.xlu0 %275
  %277 = vrot.lane.b32.xlu0 %v232, 64
  %v278 = vpop.permute.xlu0 %277
  %279 = vrot.lane.b32.xlu0 %v233, 64
  %v280 = vpop.permute.xlu0 %279
  %281 = vrot.lane.b32.xlu0 %v234, 64
  %v282 = vpop.permute.xlu0 %281
  %291 = vrot.lane.b32.xlu0 %v227, 32
  %v292 = vpop.permute.xlu0 %291
  %293 = vrot.lane.b32.xlu0 %v228, 32
  %v294 = vpop.permute.xlu0 %293
  %295 = vrot.lane.b32.xlu0 %v229, 32
  %v296 = vpop.permute.xlu0 %295
  %297 = vrot.lane.b32.xlu0 %v230, 32
  %v298 = vpop.permute.xlu0 %297
  %299 = vrot.lane.b32.xlu0 %v231, 32
  %v300 = vpop.permute.xlu0 %299
  %301 = vrot.lane.b32.xlu0 %v232, 32
  %v302 = vpop.permute.xlu0 %301
  %303 = vrot.lane.b32.xlu0 %v233, 32
  %v304 = vpop.permute.xlu0 %303
  %305 = vrot.lane.b32.xlu0 %v234, 32
  %v306 = vpop.permute.xlu0 %305
  %vm315 = vcmask 1040384
  %v316 = vsel %vm315, %v122, %v156
  %v317 = vsel %vm315, %v125, %v158
  %v318 = vsel %vm315, %v126, %v160
  %v319 = vsel %vm315, %v127, %v162
  %v320 = vsel %vm315, %v128, %v164
  %v321 = vsel %vm315, %v129, %v166
  %v322 = vsel %vm315, %v130, %v168
  %v323 = vsel %vm315, %v131, %v170
  %vm324 = vcmask 1041408
  %v325 = vsel %vm324, %v316, %v180
  %v326 = vsel %vm324, %v317, %v182
  %v327 = vsel %vm324, %v318, %v184
  %v328 = vsel %vm324, %v319, %v186
  %v329 = vsel %vm324, %v320, %v188
  %v330 = vsel %vm324, %v321, %v190
  %v331 = vsel %vm324, %v322, %v192
  %v332 = vsel %vm324, %v323, %v194
  %vm333 = vcmask 1042432
  %v334 = vsel %vm333, %v325, %v204
  %v335 = vsel %vm333, %v326, %v206
  %v336 = vsel %vm333, %v327, %v208
  %v337 = vsel %vm333, %v328, %v210
  %v338 = vsel %vm333, %v329, %v212
  %v339 = vsel %vm333, %v330, %v214
  %v340 = vsel %vm333, %v331, %v216
  %v341 = vsel %vm333, %v332, %v218
  %vm342 = vcmask 1043456
  %v343 = vsel %vm342, %v334, %v227
  %v344 = vsel %vm342, %v335, %v228
  %v345 = vsel %vm342, %v336, %v229
  %v346 = vsel %vm342, %v337, %v230
  %v347 = vsel %vm342, %v338, %v231
  %v348 = vsel %vm342, %v339, %v232
  %v349 = vsel %vm342, %v340, %v233
  %v350 = vsel %vm342, %v341, %v234
  %vm351 = vcmask 1044480
  %v352 = vsel %vm351, %v343, %v244
  %v353 = vsel %vm351, %v344, %v246
  %v354 = vsel %vm351, %v345, %v248
  %v355 = vsel %vm351, %v346, %v250
  %v356 = vsel %vm351, %v347, %v252
  %v357 = vsel %vm351, %v348, %v254
  %v358 = vsel %vm351, %v349, %v256
  %v359 = vsel %vm351, %v350, %v258
  %vm360 = vcmask 1045504
  %v361 = vsel %vm360, %v352, %v268
  %v362 = vsel %vm360, %v353, %v270
  %v363 = vsel %vm360, %v354, %v272
  %v364 = vsel %vm360, %v355, %v274
  %v365 = vsel %vm360, %v356, %v276
  %v366 = vsel %vm360, %v357, %v278
  %v367 = vsel %vm360, %v358, %v280
  %v368 = vsel %vm360, %v359, %v282
  %vm369 = vcmask 1046528
  %v370 = vsel %vm369, %v361, %v292
  %v371 = vsel %vm369, %v362, %v294
  %v372 = vsel %vm369, %v363, %v296
  %v373 = vsel %vm369, %v364, %v298
  %v374 = vsel %vm369, %v365, %v300
  %v375 = vsel %vm369, %v366, %v302
  %v376 = vsel %vm369, %v367, %v304
  %v377 = vsel %vm369, %v368, %v306
  %v378 = vld [vmem:[%s3] sm:$0xff]
  %v379 = vadd.f32 %v370, %v378
  %v380 = vadd.f32 %v371, %v378
  %v381 = vadd.f32 %v372, %v378
  %v382 = vadd.f32 %v373, %v378
  %v383 = vadd.f32 %v374, %v378
  %v384 = vadd.f32 %v375, %v378
  %v385 = vadd.f32 %v376, %v378
  %v386 = vadd.f32 %v377, %v378
  %v387 = vld [vmem:[%s5] sm:$0xff]
  %v388 = vld [vmem:[%s5 + $0x8] sm:$0xff]
  %v389 = vld [vmem:[%s5 + $0x10] sm:$0xff]
  %v390 = vld [vmem:[%s5 + $0x18] sm:$0xff]
  %vm391 = vcmask 261120
  %v393 = vsel %vm391, %v379, 0
  %v396 = vsel %vm391, %v380, 0
  %v399 = vsel %vm391, %v381, 0
  %v402 = vsel %vm391, %v382, 0
  %v405 = vsel %vm391, %v383, 0
  %v408 = vsel %vm391, %v384, 0
  %v411 = vsel %vm391, %v385, 0
  %v414 = vsel %vm391, %v386, 0
  %416 = vmatpush.msra.mxu0 0.0
  %417 = vmatpush.msra.mxu0 0.0
  %418 = vmatpush.msra.mxu0 0.0
  %419 = vmatpush.msra.mxu0 0.0
  %420 = vmatpush.msra.mxu0 0.0
  %421 = vmatpush.msra.mxu0 0.0
  %422 = vmatpush.msra.mxu0 0.0
  %423 = vmatpush.msra.mxu0 0.0
  %424 = vmatpush.msra.mxu0 0.0
  %425 = vmatpush.msra.mxu0 0.0
  %426 = vmatpush.msra.mxu0 0.0
  %427 = vmatpush.msra.mxu0 0.0
  %428 = vmatpush.msra.mxu0 %v390
  %429 = vmatpush.msra.mxu0 %v389
  %430 = vmatpush.msra.mxu0 %v388
  %431 = vmatpush.msra.mxu0 %v387
  %432 = vmatmul.f32.gmra.mxu0 %v393
  %v433 = vpop.f32.mrf.mxu0
  %v434 = vadd.f32 0.0, %v433
  %435 = vmatmul.f32.gmra.mxu0 %v396
  %v436 = vpop.f32.mrf.mxu0
  %v437 = vadd.f32 0.0, %v436
  %438 = vmatmul.f32.gmra.mxu0 %v399
  %v439 = vpop.f32.mrf.mxu0
  %v440 = vadd.f32 0.0, %v439
  %441 = vmatmul.f32.gmra.mxu0 %v402
  %v442 = vpop.f32.mrf.mxu0
  %v443 = vadd.f32 0.0, %v442
  %444 = vmatmul.f32.gmra.mxu0 %v405
  %v445 = vpop.f32.mrf.mxu0
  %v446 = vadd.f32 0.0, %v445
  %447 = vmatmul.f32.gmra.mxu0 %v408
  %v448 = vpop.f32.mrf.mxu0
  %v449 = vadd.f32 0.0, %v448
  %450 = vmatmul.f32.gmra.mxu0 %v411
  %v451 = vpop.f32.mrf.mxu0
  %v452 = vadd.f32 0.0, %v451
  %453 = vmatmul.f32.gmra.mxu0 %v414
  %v454 = vpop.f32.mrf.mxu0
  %v455 = vadd.f32 0.0, %v454
  %456 = vdwg.mxu0
  %458 = vrot.lane.b32.xlu0 %v434, 96
  %v459 = vpop.permute.xlu0 %458
  %vm460 = vcmask 64512
  %v461 = vsel %vm460, %v434, 0
  %v463 = vsel %vm460, %v459, 0
  %465 = vmatpush.xpose.msra.mxu0 0.0
  %466 = vmatpush.xpose.msra.mxu0 0.0
  %467 = vmatpush.xpose.msra.mxu0 0.0
  %468 = vmatpush.xpose.msra.mxu0 0.0
  %469 = vmatpush.xpose.msra.mxu0 0.0
  %470 = vmatpush.xpose.msra.mxu0 0.0
  %471 = vmatpush.xpose.msra.mxu0 0.0
  %472 = vmatpush.xpose.msra.mxu0 0.0
  %473 = vmatpush.xpose.msra.mxu0 0.0
  %474 = vmatpush.xpose.msra.mxu0 0.0
  %475 = vmatpush.xpose.msra.mxu0 0.0
  %476 = vmatpush.xpose.msra.mxu0 0.0
  %477 = vmatpush.xpose.msra.mxu0 0.0
  %478 = vmatpush.xpose.msra.mxu0 0.0
  %479 = vmatpush.xpose.msra.mxu0 0.0
  %480 = vmatpush.xpose.msra.mxu0 %v463
  %481 = vmatmul.f32.gmra.mxu0 %v461
  %v482 = vpop.f32.mrf.mxu0
  %v483 = vadd.f32 0.0, %v482
  %484 = vdwg.mxu0
  %486 = vrot.lane.b32.xlu0 %v437, 96
  %v487 = vpop.permute.xlu0 %486
  %v488 = vsel %vm460, %v437, 0
  %v490 = vsel %vm460, %v487, 0
  %492 = vmatpush.xpose.msra.mxu0 0.0
  %493 = vmatpush.xpose.msra.mxu0 0.0
  %494 = vmatpush.xpose.msra.mxu0 0.0
  %495 = vmatpush.xpose.msra.mxu0 0.0
  %496 = vmatpush.xpose.msra.mxu0 0.0
  %497 = vmatpush.xpose.msra.mxu0 0.0
  %498 = vmatpush.xpose.msra.mxu0 0.0
  %499 = vmatpush.xpose.msra.mxu0 0.0
  %500 = vmatpush.xpose.msra.mxu0 0.0
  %501 = vmatpush.xpose.msra.mxu0 0.0
  %502 = vmatpush.xpose.msra.mxu0 0.0
  %503 = vmatpush.xpose.msra.mxu0 0.0
  %504 = vmatpush.xpose.msra.mxu0 0.0
  %505 = vmatpush.xpose.msra.mxu0 0.0
  %506 = vmatpush.xpose.msra.mxu0 0.0
  %507 = vmatpush.xpose.msra.mxu0 %v490
  %508 = vmatmul.f32.gmra.mxu0 %v488
  %v509 = vpop.f32.mrf.mxu0
  %v510 = vadd.f32 0.0, %v509
  %511 = vdwg.mxu0
  %513 = vrot.lane.b32.xlu0 %v440, 96
  %v514 = vpop.permute.xlu0 %513
  %v515 = vsel %vm460, %v440, 0
  %v517 = vsel %vm460, %v514, 0
  %519 = vmatpush.xpose.msra.mxu0 0.0
  %520 = vmatpush.xpose.msra.mxu0 0.0
  %521 = vmatpush.xpose.msra.mxu0 0.0
  %522 = vmatpush.xpose.msra.mxu0 0.0
  %523 = vmatpush.xpose.msra.mxu0 0.0
  %524 = vmatpush.xpose.msra.mxu0 0.0
  %525 = vmatpush.xpose.msra.mxu0 0.0
  %526 = vmatpush.xpose.msra.mxu0 0.0
  %527 = vmatpush.xpose.msra.mxu0 0.0
  %528 = vmatpush.xpose.msra.mxu0 0.0
  %529 = vmatpush.xpose.msra.mxu0 0.0
  %530 = vmatpush.xpose.msra.mxu0 0.0
  %531 = vmatpush.xpose.msra.mxu0 0.0
  %532 = vmatpush.xpose.msra.mxu0 0.0
  %533 = vmatpush.xpose.msra.mxu0 0.0
  %534 = vmatpush.xpose.msra.mxu0 %v517
  %535 = vmatmul.f32.gmra.mxu0 %v515
  %v536 = vpop.f32.mrf.mxu0
  %v537 = vadd.f32 0.0, %v536
  %538 = vdwg.mxu0
  %540 = vrot.lane.b32.xlu0 %v443, 96
  %v541 = vpop.permute.xlu0 %540
  %v542 = vsel %vm460, %v443, 0
  %v544 = vsel %vm460, %v541, 0
  %546 = vmatpush.xpose.msra.mxu0 0.0
  %547 = vmatpush.xpose.msra.mxu0 0.0
  %548 = vmatpush.xpose.msra.mxu0 0.0
  %549 = vmatpush.xpose.msra.mxu0 0.0
  %550 = vmatpush.xpose.msra.mxu0 0.0
  %551 = vmatpush.xpose.msra.mxu0 0.0
  %552 = vmatpush.xpose.msra.mxu0 0.0
  %553 = vmatpush.xpose.msra.mxu0 0.0
  %554 = vmatpush.xpose.msra.mxu0 0.0
  %555 = vmatpush.xpose.msra.mxu0 0.0
  %556 = vmatpush.xpose.msra.mxu0 0.0
  %557 = vmatpush.xpose.msra.mxu0 0.0
  %558 = vmatpush.xpose.msra.mxu0 0.0
  %559 = vmatpush.xpose.msra.mxu0 0.0
  %560 = vmatpush.xpose.msra.mxu0 0.0
  %561 = vmatpush.xpose.msra.mxu0 %v544
  %562 = vmatmul.f32.gmra.mxu0 %v542
  %v563 = vpop.f32.mrf.mxu0
  %v564 = vadd.f32 0.0, %v563
  %565 = vdwg.mxu0
  %567 = vrot.lane.b32.xlu0 %v446, 96
  %v568 = vpop.permute.xlu0 %567
  %v569 = vsel %vm460, %v446, 0
  %v571 = vsel %vm460, %v568, 0
  %573 = vmatpush.xpose.msra.mxu0 0.0
  %574 = vmatpush.xpose.msra.mxu0 0.0
  %575 = vmatpush.xpose.msra.mxu0 0.0
  %576 = vmatpush.xpose.msra.mxu0 0.0
  %577 = vmatpush.xpose.msra.mxu0 0.0
  %578 = vmatpush.xpose.msra.mxu0 0.0
  %579 = vmatpush.xpose.msra.mxu0 0.0
  %580 = vmatpush.xpose.msra.mxu0 0.0
  %581 = vmatpush.xpose.msra.mxu0 0.0
  %582 = vmatpush.xpose.msra.mxu0 0.0
  %583 = vmatpush.xpose.msra.mxu0 0.0
  %584 = vmatpush.xpose.msra.mxu0 0.0
  %585 = vmatpush.xpose.msra.mxu0 0.0
  %586 = vmatpush.xpose.msra.mxu0 0.0
  %587 = vmatpush.xpose.msra.mxu0 0.0
  %588 = vmatpush.xpose.msra.mxu0 %v571
  %589 = vmatmul.f32.gmra.mxu0 %v569
  %v590 = vpop.f32.mrf.mxu0
  %v591 = vadd.f32 0.0, %v590
  %592 = vdwg.mxu0
  %594 = vrot.lane.b32.xlu0 %v449, 96
  %v595 = vpop.permute.xlu0 %594
  %v596 = vsel %vm460, %v449, 0
  %v598 = vsel %vm460, %v595, 0
  %600 = vmatpush.xpose.msra.mxu0 0.0
  %601 = vmatpush.xpose.msra.mxu0 0.0
  %602 = vmatpush.xpose.msra.mxu0 0.0
  %603 = vmatpush.xpose.msra.mxu0 0.0
  %604 = vmatpush.xpose.msra.mxu0 0.0
  %605 = vmatpush.xpose.msra.mxu0 0.0
  %606 = vmatpush.xpose.msra.mxu0 0.0
  %607 = vmatpush.xpose.msra.mxu0 0.0
  %608 = vmatpush.xpose.msra.mxu0 0.0
  %609 = vmatpush.xpose.msra.mxu0 0.0
  %610 = vmatpush.xpose.msra.mxu0 0.0
  %611 = vmatpush.xpose.msra.mxu0 0.0
  %612 = vmatpush.xpose.msra.mxu0 0.0
  %613 = vmatpush.xpose.msra.mxu0 0.0
  %614 = vmatpush.xpose.msra.mxu0 0.0
  %615 = vmatpush.xpose.msra.mxu0 %v598
  %616 = vmatmul.f32.gmra.mxu0 %v596
  %v617 = vpop.f32.mrf.mxu0
  %v618 = vadd.f32 0.0, %v617
  %619 = vdwg.mxu0
  %621 = vrot.lane.b32.xlu0 %v452, 96
  %v622 = vpop.permute.xlu0 %621
  %v623 = vsel %vm460, %v452, 0
  %v625 = vsel %vm460, %v622, 0
  %627 = vmatpush.xpose.msra.mxu0 0.0
  %628 = vmatpush.xpose.msra.mxu0 0.0
  %629 = vmatpush.xpose.msra.mxu0 0.0
  %630 = vmatpush.xpose.msra.mxu0 0.0
  %631 = vmatpush.xpose.msra.mxu0 0.0
  %632 = vmatpush.xpose.msra.mxu0 0.0
  %633 = vmatpush.xpose.msra.mxu0 0.0
  %634 = vmatpush.xpose.msra.mxu0 0.0
  %635 = vmatpush.xpose.msra.mxu0 0.0
  %636 = vmatpush.xpose.msra.mxu0 0.0
  %637 = vmatpush.xpose.msra.mxu0 0.0
  %638 = vmatpush.xpose.msra.mxu0 0.0
  %639 = vmatpush.xpose.msra.mxu0 0.0
  %640 = vmatpush.xpose.msra.mxu0 0.0
  %641 = vmatpush.xpose.msra.mxu0 0.0
  %642 = vmatpush.xpose.msra.mxu0 %v625
  %643 = vmatmul.f32.gmra.mxu0 %v623
  %v644 = vpop.f32.mrf.mxu0
  %v645 = vadd.f32 0.0, %v644
  %646 = vdwg.mxu0
  %648 = vrot.lane.b32.xlu0 %v455, 96
  %v649 = vpop.permute.xlu0 %648
  %v650 = vsel %vm460, %v455, 0
  %v652 = vsel %vm460, %v649, 0
  %654 = vmatpush.xpose.msra.mxu0 0.0
  %655 = vmatpush.xpose.msra.mxu0 0.0
  %656 = vmatpush.xpose.msra.mxu0 0.0
  %657 = vmatpush.xpose.msra.mxu0 0.0
  %658 = vmatpush.xpose.msra.mxu0 0.0
  %659 = vmatpush.xpose.msra.mxu0 0.0
  %660 = vmatpush.xpose.msra.mxu0 0.0
  %661 = vmatpush.xpose.msra.mxu0 0.0
  %662 = vmatpush.xpose.msra.mxu0 0.0
  %663 = vmatpush.xpose.msra.mxu0 0.0
  %664 = vmatpush.xpose.msra.mxu0 0.0
  %665 = vmatpush.xpose.msra.mxu0 0.0
  %666 = vmatpush.xpose.msra.mxu0 0.0
  %667 = vmatpush.xpose.msra.mxu0 0.0
  %668 = vmatpush.xpose.msra.mxu0 0.0
  %669 = vmatpush.xpose.msra.mxu0 %v652
  %670 = vmatmul.f32.gmra.mxu0 %v650
  %v671 = vpop.f32.mrf.mxu0
  %v672 = vadd.f32 0.0, %v671
  %673 = vdwg.mxu0
  %v674 = vmul.f32 %v483, 0.35355338
  %v675 = vmul.f32 %v510, 0.35355338
  %v676 = vmul.f32 %v537, 0.35355338
  %v677 = vmul.f32 %v564, 0.35355338
  %v678 = vmul.f32 %v591, 0.35355338
  %v679 = vmul.f32 %v618, 0.35355338
  %v680 = vmul.f32 %v645, 0.35355338
  %v681 = vmul.f32 %v672, 0.35355338
  %v682 = vsel %vm460, %v674, -inf
  %683 = vmax.xlane.f32.xlu0 %v682
  %v684 = vpop.xlane.xlu0 %683
  %v685 = vsel %vm460, %v675, -inf
  %686 = vmax.xlane.f32.xlu0 %v685
  %v687 = vpop.xlane.xlu0 %686
  %v688 = vsel %vm460, %v676, -inf
  %689 = vmax.xlane.f32.xlu0 %v688
  %v690 = vpop.xlane.xlu0 %689
  %v691 = vsel %vm460, %v677, -inf
  %692 = vmax.xlane.f32.xlu0 %v691
  %v693 = vpop.xlane.xlu0 %692
  %v694 = vsel %vm460, %v678, -inf
  %695 = vmax.xlane.f32.xlu0 %v694
  %v696 = vpop.xlane.xlu0 %695
  %v697 = vsel %vm460, %v679, -inf
  %698 = vmax.xlane.f32.xlu0 %v697
  %v699 = vpop.xlane.xlu0 %698
  %v700 = vsel %vm460, %v680, -inf
  %701 = vmax.xlane.f32.xlu0 %v700
  %v702 = vpop.xlane.xlu0 %701
  %v703 = vsel %vm460, %v681, -inf
  %704 = vmax.xlane.f32.xlu0 %v703
  %v705 = vpop.xlane.xlu0 %704
  %v706 = vsub.f32 %v674, %v684
  %v707 = vsub.f32 %v675, %v687
  %v708 = vsub.f32 %v676, %v690
  %v709 = vsub.f32 %v677, %v693
  %v710 = vsub.f32 %v678, %v696
  %v711 = vsub.f32 %v679, %v699
  %v712 = vsub.f32 %v680, %v702
  %v713 = vsub.f32 %v681, %v705
  %v714 = vmul.f32 %v706, 1.442695
  %v715 = vpow.pop %v714
  %v716 = vmul.f32 %v707, 1.442695
  %v717 = vpow.pop %v716
  %v718 = vmul.f32 %v708, 1.442695
  %v719 = vpow.pop %v718
  %v720 = vmul.f32 %v709, 1.442695
  %v721 = vpow.pop %v720
  %v722 = vmul.f32 %v710, 1.442695
  %v723 = vpow.pop %v722
  %v724 = vmul.f32 %v711, 1.442695
  %v725 = vpow.pop %v724
  %v726 = vmul.f32 %v712, 1.442695
  %v727 = vpow.pop %v726
  %v728 = vmul.f32 %v713, 1.442695
  %v729 = vpow.pop %v728
  %v730 = vsel %vm460, %v715, 0.0
  %731 = vadd.xlane.f32.xlu0 %v730
  %v732 = vpop.xlane.xlu0 %731
  %v733 = vsel %vm460, %v717, 0.0
  %734 = vadd.xlane.f32.xlu0 %v733
  %v735 = vpop.xlane.xlu0 %734
  %v736 = vsel %vm460, %v719, 0.0
  %737 = vadd.xlane.f32.xlu0 %v736
  %v738 = vpop.xlane.xlu0 %737
  %v739 = vsel %vm460, %v721, 0.0
  %740 = vadd.xlane.f32.xlu0 %v739
  %v741 = vpop.xlane.xlu0 %740
  %v742 = vsel %vm460, %v723, 0.0
  %743 = vadd.xlane.f32.xlu0 %v742
  %v744 = vpop.xlane.xlu0 %743
  %v745 = vsel %vm460, %v725, 0.0
  %746 = vadd.xlane.f32.xlu0 %v745
  %v747 = vpop.xlane.xlu0 %746
  %v748 = vsel %vm460, %v727, 0.0
  %749 = vadd.xlane.f32.xlu0 %v748
  %v750 = vpop.xlane.xlu0 %749
  %v751 = vsel %vm460, %v729, 0.0
  %752 = vadd.xlane.f32.xlu0 %v751
  %v753 = vpop.xlane.xlu0 %752
  %v754 = vrcp.pop %v732
  %v755 = vrcp.pop %v735
  %v756 = vrcp.pop %v738
  %v757 = vrcp.pop %v741
  %v758 = vrcp.pop %v744
  %v759 = vrcp.pop %v747
  %v760 = vrcp.pop %v750
  %v761 = vrcp.pop %v753
  %v762 = vmul.f32 %v715, %v754
  %v763 = vmul.f32 %v717, %v755
  %v764 = vmul.f32 %v719, %v756
  %v765 = vmul.f32 %v721, %v757
  %v766 = vmul.f32 %v723, %v758
  %v767 = vmul.f32 %v725, %v759
  %v768 = vmul.f32 %v727, %v760
  %v769 = vmul.f32 %v729, %v761
  %770 = vrot.lane.b32.xlu0 %v434, 64
  %v771 = vpop.permute.xlu0 %770
  %v774 = vsel %vm460, %v762, 0
  %776 = vmatpush.msra.mxu0 0.0
  %777 = vmatpush.msra.mxu0 0.0
  %778 = vmatpush.msra.mxu0 0.0
  %779 = vmatpush.msra.mxu0 0.0
  %780 = vmatpush.msra.mxu0 0.0
  %781 = vmatpush.msra.mxu0 0.0
  %782 = vmatpush.msra.mxu0 0.0
  %783 = vmatpush.msra.mxu0 0.0
  %784 = vmatpush.msra.mxu0 0.0
  %785 = vmatpush.msra.mxu0 0.0
  %786 = vmatpush.msra.mxu0 0.0
  %787 = vmatpush.msra.mxu0 0.0
  %788 = vmatpush.msra.mxu0 0.0
  %789 = vmatpush.msra.mxu0 0.0
  %790 = vmatpush.msra.mxu0 0.0
  %791 = vmatpush.msra.mxu0 %v771
  %792 = vmatmul.f32.gmra.mxu0 %v774
  %v793 = vpop.f32.mrf.mxu0
  %v794 = vadd.f32 0.0, %v793
  %795 = vdwg.mxu0
  %796 = vrot.lane.b32.xlu0 %v437, 64
  %v797 = vpop.permute.xlu0 %796
  %v800 = vsel %vm460, %v763, 0
  %802 = vmatpush.msra.mxu0 0.0
  %803 = vmatpush.msra.mxu0 0.0
  %804 = vmatpush.msra.mxu0 0.0
  %805 = vmatpush.msra.mxu0 0.0
  %806 = vmatpush.msra.mxu0 0.0
  %807 = vmatpush.msra.mxu0 0.0
  %808 = vmatpush.msra.mxu0 0.0
  %809 = vmatpush.msra.mxu0 0.0
  %810 = vmatpush.msra.mxu0 0.0
  %811 = vmatpush.msra.mxu0 0.0
  %812 = vmatpush.msra.mxu0 0.0
  %813 = vmatpush.msra.mxu0 0.0
  %814 = vmatpush.msra.mxu0 0.0
  %815 = vmatpush.msra.mxu0 0.0
  %816 = vmatpush.msra.mxu0 0.0
  %817 = vmatpush.msra.mxu0 %v797
  %818 = vmatmul.f32.gmra.mxu0 %v800
  %v819 = vpop.f32.mrf.mxu0
  %v820 = vadd.f32 0.0, %v819
  %821 = vdwg.mxu0
  %822 = vrot.lane.b32.xlu0 %v440, 64
  %v823 = vpop.permute.xlu0 %822
  %v826 = vsel %vm460, %v764, 0
  %828 = vmatpush.msra.mxu0 0.0
  %829 = vmatpush.msra.mxu0 0.0
  %830 = vmatpush.msra.mxu0 0.0
  %831 = vmatpush.msra.mxu0 0.0
  %832 = vmatpush.msra.mxu0 0.0
  %833 = vmatpush.msra.mxu0 0.0
  %834 = vmatpush.msra.mxu0 0.0
  %835 = vmatpush.msra.mxu0 0.0
  %836 = vmatpush.msra.mxu0 0.0
  %837 = vmatpush.msra.mxu0 0.0
  %838 = vmatpush.msra.mxu0 0.0
  %839 = vmatpush.msra.mxu0 0.0
  %840 = vmatpush.msra.mxu0 0.0
  %841 = vmatpush.msra.mxu0 0.0
  %842 = vmatpush.msra.mxu0 0.0
  %843 = vmatpush.msra.mxu0 %v823
  %844 = vmatmul.f32.gmra.mxu0 %v826
  %v845 = vpop.f32.mrf.mxu0
  %v846 = vadd.f32 0.0, %v845
  %847 = vdwg.mxu0
  %848 = vrot.lane.b32.xlu0 %v443, 64
  %v849 = vpop.permute.xlu0 %848
  %v852 = vsel %vm460, %v765, 0
  %854 = vmatpush.msra.mxu0 0.0
  %855 = vmatpush.msra.mxu0 0.0
  %856 = vmatpush.msra.mxu0 0.0
  %857 = vmatpush.msra.mxu0 0.0
  %858 = vmatpush.msra.mxu0 0.0
  %859 = vmatpush.msra.mxu0 0.0
  %860 = vmatpush.msra.mxu0 0.0
  %861 = vmatpush.msra.mxu0 0.0
  %862 = vmatpush.msra.mxu0 0.0
  %863 = vmatpush.msra.mxu0 0.0
  %864 = vmatpush.msra.mxu0 0.0
  %865 = vmatpush.msra.mxu0 0.0
  %866 = vmatpush.msra.mxu0 0.0
  %867 = vmatpush.msra.mxu0 0.0
  %868 = vmatpush.msra.mxu0 0.0
  %869 = vmatpush.msra.mxu0 %v849
  %870 = vmatmul.f32.gmra.mxu0 %v852
  %v871 = vpop.f32.mrf.mxu0
  %v872 = vadd.f32 0.0, %v871
  %873 = vdwg.mxu0
  %874 = vrot.lane.b32.xlu0 %v446, 64
  %v875 = vpop.permute.xlu0 %874
  %v878 = vsel %vm460, %v766, 0
  %880 = vmatpush.msra.mxu0 0.0
  %881 = vmatpush.msra.mxu0 0.0
  %882 = vmatpush.msra.mxu0 0.0
  %883 = vmatpush.msra.mxu0 0.0
  %884 = vmatpush.msra.mxu0 0.0
  %885 = vmatpush.msra.mxu0 0.0
  %886 = vmatpush.msra.mxu0 0.0
  %887 = vmatpush.msra.mxu0 0.0
  %888 = vmatpush.msra.mxu0 0.0
  %889 = vmatpush.msra.mxu0 0.0
  %890 = vmatpush.msra.mxu0 0.0
  %891 = vmatpush.msra.mxu0 0.0
  %892 = vmatpush.msra.mxu0 0.0
  %893 = vmatpush.msra.mxu0 0.0
  %894 = vmatpush.msra.mxu0 0.0
  %895 = vmatpush.msra.mxu0 %v875
  %896 = vmatmul.f32.gmra.mxu0 %v878
  %v897 = vpop.f32.mrf.mxu0
  %v898 = vadd.f32 0.0, %v897
  %899 = vdwg.mxu0
  %900 = vrot.lane.b32.xlu0 %v449, 64
  %v901 = vpop.permute.xlu0 %900
  %v904 = vsel %vm460, %v767, 0
  %906 = vmatpush.msra.mxu0 0.0
  %907 = vmatpush.msra.mxu0 0.0
  %908 = vmatpush.msra.mxu0 0.0
  %909 = vmatpush.msra.mxu0 0.0
  %910 = vmatpush.msra.mxu0 0.0
  %911 = vmatpush.msra.mxu0 0.0
  %912 = vmatpush.msra.mxu0 0.0
  %913 = vmatpush.msra.mxu0 0.0
  %914 = vmatpush.msra.mxu0 0.0
  %915 = vmatpush.msra.mxu0 0.0
  %916 = vmatpush.msra.mxu0 0.0
  %917 = vmatpush.msra.mxu0 0.0
  %918 = vmatpush.msra.mxu0 0.0
  %919 = vmatpush.msra.mxu0 0.0
  %920 = vmatpush.msra.mxu0 0.0
  %921 = vmatpush.msra.mxu0 %v901
  %922 = vmatmul.f32.gmra.mxu0 %v904
  %v923 = vpop.f32.mrf.mxu0
  %v924 = vadd.f32 0.0, %v923
  %925 = vdwg.mxu0
  %926 = vrot.lane.b32.xlu0 %v452, 64
  %v927 = vpop.permute.xlu0 %926
  %v930 = vsel %vm460, %v768, 0
  %932 = vmatpush.msra.mxu0 0.0
  %933 = vmatpush.msra.mxu0 0.0
  %934 = vmatpush.msra.mxu0 0.0
  %935 = vmatpush.msra.mxu0 0.0
  %936 = vmatpush.msra.mxu0 0.0
  %937 = vmatpush.msra.mxu0 0.0
  %938 = vmatpush.msra.mxu0 0.0
  %939 = vmatpush.msra.mxu0 0.0
  %940 = vmatpush.msra.mxu0 0.0
  %941 = vmatpush.msra.mxu0 0.0
  %942 = vmatpush.msra.mxu0 0.0
  %943 = vmatpush.msra.mxu0 0.0
  %944 = vmatpush.msra.mxu0 0.0
  %945 = vmatpush.msra.mxu0 0.0
  %946 = vmatpush.msra.mxu0 0.0
  %947 = vmatpush.msra.mxu0 %v927
  %948 = vmatmul.f32.gmra.mxu0 %v930
  %v949 = vpop.f32.mrf.mxu0
  %v950 = vadd.f32 0.0, %v949
  %951 = vdwg.mxu0
  %952 = vrot.lane.b32.xlu0 %v455, 64
  %v953 = vpop.permute.xlu0 %952
  %v956 = vsel %vm460, %v769, 0
  %958 = vmatpush.msra.mxu0 0.0
  %959 = vmatpush.msra.mxu0 0.0
  %960 = vmatpush.msra.mxu0 0.0
  %961 = vmatpush.msra.mxu0 0.0
  %962 = vmatpush.msra.mxu0 0.0
  %963 = vmatpush.msra.mxu0 0.0
  %964 = vmatpush.msra.mxu0 0.0
  %965 = vmatpush.msra.mxu0 0.0
  %966 = vmatpush.msra.mxu0 0.0
  %967 = vmatpush.msra.mxu0 0.0
  %968 = vmatpush.msra.mxu0 0.0
  %969 = vmatpush.msra.mxu0 0.0
  %970 = vmatpush.msra.mxu0 0.0
  %971 = vmatpush.msra.mxu0 0.0
  %972 = vmatpush.msra.mxu0 0.0
  %973 = vmatpush.msra.mxu0 %v953
  %974 = vmatmul.f32.gmra.mxu0 %v956
  %v975 = vpop.f32.mrf.mxu0
  %v976 = vadd.f32 0.0, %v975
  %977 = vdwg.mxu0
  %978 = vrot.lane.b32.xlu0 %v434, 120
  %v979 = vpop.permute.xlu0 %978
  %980 = vrot.lane.b32.xlu0 %v434, 88
  %v981 = vpop.permute.xlu0 %980
  %v982 = vsel %vm460, %v979, 0
  %v984 = vsel %vm460, %v981, 0
  %986 = vmatpush.xpose.msra.mxu0 0.0
  %987 = vmatpush.xpose.msra.mxu0 0.0
  %988 = vmatpush.xpose.msra.mxu0 0.0
  %989 = vmatpush.xpose.msra.mxu0 0.0
  %990 = vmatpush.xpose.msra.mxu0 0.0
  %991 = vmatpush.xpose.msra.mxu0 0.0
  %992 = vmatpush.xpose.msra.mxu0 0.0
  %993 = vmatpush.xpose.msra.mxu0 0.0
  %994 = vmatpush.xpose.msra.mxu0 0.0
  %995 = vmatpush.xpose.msra.mxu0 0.0
  %996 = vmatpush.xpose.msra.mxu0 0.0
  %997 = vmatpush.xpose.msra.mxu0 0.0
  %998 = vmatpush.xpose.msra.mxu0 0.0
  %999 = vmatpush.xpose.msra.mxu0 0.0
  %1000 = vmatpush.xpose.msra.mxu0 0.0
  %1001 = vmatpush.xpose.msra.mxu0 %v984
  %1002 = vmatmul.f32.gmra.mxu0 %v982
  %v1003 = vpop.f32.mrf.mxu0
  %v1004 = vadd.f32 0.0, %v1003
  %1005 = vdwg.mxu0
  %1006 = vrot.lane.b32.xlu0 %v437, 120
  %v1007 = vpop.permute.xlu0 %1006
  %1008 = vrot.lane.b32.xlu0 %v437, 88
  %v1009 = vpop.permute.xlu0 %1008
  %v1010 = vsel %vm460, %v1007, 0
  %v1012 = vsel %vm460, %v1009, 0
  %1014 = vmatpush.xpose.msra.mxu0 0.0
  %1015 = vmatpush.xpose.msra.mxu0 0.0
  %1016 = vmatpush.xpose.msra.mxu0 0.0
  %1017 = vmatpush.xpose.msra.mxu0 0.0
  %1018 = vmatpush.xpose.msra.mxu0 0.0
  %1019 = vmatpush.xpose.msra.mxu0 0.0
  %1020 = vmatpush.xpose.msra.mxu0 0.0
  %1021 = vmatpush.xpose.msra.mxu0 0.0
  %1022 = vmatpush.xpose.msra.mxu0 0.0
  %1023 = vmatpush.xpose.msra.mxu0 0.0
  %1024 = vmatpush.xpose.msra.mxu0 0.0
  %1025 = vmatpush.xpose.msra.mxu0 0.0
  %1026 = vmatpush.xpose.msra.mxu0 0.0
  %1027 = vmatpush.xpose.msra.mxu0 0.0
  %1028 = vmatpush.xpose.msra.mxu0 0.0
  %1029 = vmatpush.xpose.msra.mxu0 %v1012
  %1030 = vmatmul.f32.gmra.mxu0 %v1010
  %v1031 = vpop.f32.mrf.mxu0
  %v1032 = vadd.f32 0.0, %v1031
  %1033 = vdwg.mxu0
  %1034 = vrot.lane.b32.xlu0 %v440, 120
  %v1035 = vpop.permute.xlu0 %1034
  %1036 = vrot.lane.b32.xlu0 %v440, 88
  %v1037 = vpop.permute.xlu0 %1036
  %v1038 = vsel %vm460, %v1035, 0
  %v1040 = vsel %vm460, %v1037, 0
  %1042 = vmatpush.xpose.msra.mxu0 0.0
  %1043 = vmatpush.xpose.msra.mxu0 0.0
  %1044 = vmatpush.xpose.msra.mxu0 0.0
  %1045 = vmatpush.xpose.msra.mxu0 0.0
  %1046 = vmatpush.xpose.msra.mxu0 0.0
  %1047 = vmatpush.xpose.msra.mxu0 0.0
  %1048 = vmatpush.xpose.msra.mxu0 0.0
  %1049 = vmatpush.xpose.msra.mxu0 0.0
  %1050 = vmatpush.xpose.msra.mxu0 0.0
  %1051 = vmatpush.xpose.msra.mxu0 0.0
  %1052 = vmatpush.xpose.msra.mxu0 0.0
  %1053 = vmatpush.xpose.msra.mxu0 0.0
  %1054 = vmatpush.xpose.msra.mxu0 0.0
  %1055 = vmatpush.xpose.msra.mxu0 0.0
  %1056 = vmatpush.xpose.msra.mxu0 0.0
  %1057 = vmatpush.xpose.msra.mxu0 %v1040
  %1058 = vmatmul.f32.gmra.mxu0 %v1038
  %v1059 = vpop.f32.mrf.mxu0
  %v1060 = vadd.f32 0.0, %v1059
  %1061 = vdwg.mxu0
  %1062 = vrot.lane.b32.xlu0 %v443, 120
  %v1063 = vpop.permute.xlu0 %1062
  %1064 = vrot.lane.b32.xlu0 %v443, 88
  %v1065 = vpop.permute.xlu0 %1064
  %v1066 = vsel %vm460, %v1063, 0
  %v1068 = vsel %vm460, %v1065, 0
  %1070 = vmatpush.xpose.msra.mxu0 0.0
  %1071 = vmatpush.xpose.msra.mxu0 0.0
  %1072 = vmatpush.xpose.msra.mxu0 0.0
  %1073 = vmatpush.xpose.msra.mxu0 0.0
  %1074 = vmatpush.xpose.msra.mxu0 0.0
  %1075 = vmatpush.xpose.msra.mxu0 0.0
  %1076 = vmatpush.xpose.msra.mxu0 0.0
  %1077 = vmatpush.xpose.msra.mxu0 0.0
  %1078 = vmatpush.xpose.msra.mxu0 0.0
  %1079 = vmatpush.xpose.msra.mxu0 0.0
  %1080 = vmatpush.xpose.msra.mxu0 0.0
  %1081 = vmatpush.xpose.msra.mxu0 0.0
  %1082 = vmatpush.xpose.msra.mxu0 0.0
  %1083 = vmatpush.xpose.msra.mxu0 0.0
  %1084 = vmatpush.xpose.msra.mxu0 0.0
  %1085 = vmatpush.xpose.msra.mxu0 %v1068
  %1086 = vmatmul.f32.gmra.mxu0 %v1066
  %v1087 = vpop.f32.mrf.mxu0
  %v1088 = vadd.f32 0.0, %v1087
  %1089 = vdwg.mxu0
  %1090 = vrot.lane.b32.xlu0 %v446, 120
  %v1091 = vpop.permute.xlu0 %1090
  %1092 = vrot.lane.b32.xlu0 %v446, 88
  %v1093 = vpop.permute.xlu0 %1092
  %v1094 = vsel %vm460, %v1091, 0
  %v1096 = vsel %vm460, %v1093, 0
  %1098 = vmatpush.xpose.msra.mxu0 0.0
  %1099 = vmatpush.xpose.msra.mxu0 0.0
  %1100 = vmatpush.xpose.msra.mxu0 0.0
  %1101 = vmatpush.xpose.msra.mxu0 0.0
  %1102 = vmatpush.xpose.msra.mxu0 0.0
  %1103 = vmatpush.xpose.msra.mxu0 0.0
  %1104 = vmatpush.xpose.msra.mxu0 0.0
  %1105 = vmatpush.xpose.msra.mxu0 0.0
  %1106 = vmatpush.xpose.msra.mxu0 0.0
  %1107 = vmatpush.xpose.msra.mxu0 0.0
  %1108 = vmatpush.xpose.msra.mxu0 0.0
  %1109 = vmatpush.xpose.msra.mxu0 0.0
  %1110 = vmatpush.xpose.msra.mxu0 0.0
  %1111 = vmatpush.xpose.msra.mxu0 0.0
  %1112 = vmatpush.xpose.msra.mxu0 0.0
  %1113 = vmatpush.xpose.msra.mxu0 %v1096
  %1114 = vmatmul.f32.gmra.mxu0 %v1094
  %v1115 = vpop.f32.mrf.mxu0
  %v1116 = vadd.f32 0.0, %v1115
  %1117 = vdwg.mxu0
  %1118 = vrot.lane.b32.xlu0 %v449, 120
  %v1119 = vpop.permute.xlu0 %1118
  %1120 = vrot.lane.b32.xlu0 %v449, 88
  %v1121 = vpop.permute.xlu0 %1120
  %v1122 = vsel %vm460, %v1119, 0
  %v1124 = vsel %vm460, %v1121, 0
  %1126 = vmatpush.xpose.msra.mxu0 0.0
  %1127 = vmatpush.xpose.msra.mxu0 0.0
  %1128 = vmatpush.xpose.msra.mxu0 0.0
  %1129 = vmatpush.xpose.msra.mxu0 0.0
  %1130 = vmatpush.xpose.msra.mxu0 0.0
  %1131 = vmatpush.xpose.msra.mxu0 0.0
  %1132 = vmatpush.xpose.msra.mxu0 0.0
  %1133 = vmatpush.xpose.msra.mxu0 0.0
  %1134 = vmatpush.xpose.msra.mxu0 0.0
  %1135 = vmatpush.xpose.msra.mxu0 0.0
  %1136 = vmatpush.xpose.msra.mxu0 0.0
  %1137 = vmatpush.xpose.msra.mxu0 0.0
  %1138 = vmatpush.xpose.msra.mxu0 0.0
  %1139 = vmatpush.xpose.msra.mxu0 0.0
  %1140 = vmatpush.xpose.msra.mxu0 0.0
  %1141 = vmatpush.xpose.msra.mxu0 %v1124
  %1142 = vmatmul.f32.gmra.mxu0 %v1122
  %v1143 = vpop.f32.mrf.mxu0
  %v1144 = vadd.f32 0.0, %v1143
  %1145 = vdwg.mxu0
  %1146 = vrot.lane.b32.xlu0 %v452, 120
  %v1147 = vpop.permute.xlu0 %1146
  %1148 = vrot.lane.b32.xlu0 %v452, 88
  %v1149 = vpop.permute.xlu0 %1148
  %v1150 = vsel %vm460, %v1147, 0
  %v1152 = vsel %vm460, %v1149, 0
  %1154 = vmatpush.xpose.msra.mxu0 0.0
  %1155 = vmatpush.xpose.msra.mxu0 0.0
  %1156 = vmatpush.xpose.msra.mxu0 0.0
  %1157 = vmatpush.xpose.msra.mxu0 0.0
  %1158 = vmatpush.xpose.msra.mxu0 0.0
  %1159 = vmatpush.xpose.msra.mxu0 0.0
  %1160 = vmatpush.xpose.msra.mxu0 0.0
  %1161 = vmatpush.xpose.msra.mxu0 0.0
  %1162 = vmatpush.xpose.msra.mxu0 0.0
  %1163 = vmatpush.xpose.msra.mxu0 0.0
  %1164 = vmatpush.xpose.msra.mxu0 0.0
  %1165 = vmatpush.xpose.msra.mxu0 0.0
  %1166 = vmatpush.xpose.msra.mxu0 0.0
  %1167 = vmatpush.xpose.msra.mxu0 0.0
  %1168 = vmatpush.xpose.msra.mxu0 0.0
  %1169 = vmatpush.xpose.msra.mxu0 %v1152
  %1170 = vmatmul.f32.gmra.mxu0 %v1150
  %v1171 = vpop.f32.mrf.mxu0
  %v1172 = vadd.f32 0.0, %v1171
  %1173 = vdwg.mxu0
  %1174 = vrot.lane.b32.xlu0 %v455, 120
  %v1175 = vpop.permute.xlu0 %1174
  %1176 = vrot.lane.b32.xlu0 %v455, 88
  %v1177 = vpop.permute.xlu0 %1176
  %v1178 = vsel %vm460, %v1175, 0
  %v1180 = vsel %vm460, %v1177, 0
  %1182 = vmatpush.xpose.msra.mxu0 0.0
  %1183 = vmatpush.xpose.msra.mxu0 0.0
  %1184 = vmatpush.xpose.msra.mxu0 0.0
  %1185 = vmatpush.xpose.msra.mxu0 0.0
  %1186 = vmatpush.xpose.msra.mxu0 0.0
  %1187 = vmatpush.xpose.msra.mxu0 0.0
  %1188 = vmatpush.xpose.msra.mxu0 0.0
  %1189 = vmatpush.xpose.msra.mxu0 0.0
  %1190 = vmatpush.xpose.msra.mxu0 0.0
  %1191 = vmatpush.xpose.msra.mxu0 0.0
  %1192 = vmatpush.xpose.msra.mxu0 0.0
  %1193 = vmatpush.xpose.msra.mxu0 0.0
  %1194 = vmatpush.xpose.msra.mxu0 0.0
  %1195 = vmatpush.xpose.msra.mxu0 0.0
  %1196 = vmatpush.xpose.msra.mxu0 0.0
  %1197 = vmatpush.xpose.msra.mxu0 %v1180
  %1198 = vmatmul.f32.gmra.mxu0 %v1178
  %v1199 = vpop.f32.mrf.mxu0
  %v1200 = vadd.f32 0.0, %v1199
  %1201 = vdwg.mxu0
  %v1202 = vmul.f32 %v1004, 0.35355338
  %v1203 = vmul.f32 %v1032, 0.35355338
  %v1204 = vmul.f32 %v1060, 0.35355338
  %v1205 = vmul.f32 %v1088, 0.35355338
  %v1206 = vmul.f32 %v1116, 0.35355338
  %v1207 = vmul.f32 %v1144, 0.35355338
  %v1208 = vmul.f32 %v1172, 0.35355338
  %v1209 = vmul.f32 %v1200, 0.35355338
  %v1210 = vsel %vm460, %v1202, -inf
  %1211 = vmax.xlane.f32.xlu0 %v1210
  %v1212 = vpop.xlane.xlu0 %1211
  %v1213 = vsel %vm460, %v1203, -inf
  %1214 = vmax.xlane.f32.xlu0 %v1213
  %v1215 = vpop.xlane.xlu0 %1214
  %v1216 = vsel %vm460, %v1204, -inf
  %1217 = vmax.xlane.f32.xlu0 %v1216
  %v1218 = vpop.xlane.xlu0 %1217
  %v1219 = vsel %vm460, %v1205, -inf
  %1220 = vmax.xlane.f32.xlu0 %v1219
  %v1221 = vpop.xlane.xlu0 %1220
  %v1222 = vsel %vm460, %v1206, -inf
  %1223 = vmax.xlane.f32.xlu0 %v1222
  %v1224 = vpop.xlane.xlu0 %1223
  %v1225 = vsel %vm460, %v1207, -inf
  %1226 = vmax.xlane.f32.xlu0 %v1225
  %v1227 = vpop.xlane.xlu0 %1226
  %v1228 = vsel %vm460, %v1208, -inf
  %1229 = vmax.xlane.f32.xlu0 %v1228
  %v1230 = vpop.xlane.xlu0 %1229
  %v1231 = vsel %vm460, %v1209, -inf
  %1232 = vmax.xlane.f32.xlu0 %v1231
  %v1233 = vpop.xlane.xlu0 %1232
  %v1234 = vsub.f32 %v1202, %v1212
  %v1235 = vsub.f32 %v1203, %v1215
  %v1236 = vsub.f32 %v1204, %v1218
  %v1237 = vsub.f32 %v1205, %v1221
  %v1238 = vsub.f32 %v1206, %v1224
  %v1239 = vsub.f32 %v1207, %v1227
  %v1240 = vsub.f32 %v1208, %v1230
  %v1241 = vsub.f32 %v1209, %v1233
  %v1242 = vmul.f32 %v1234, 1.442695
  %v1243 = vpow.pop %v1242
  %v1244 = vmul.f32 %v1235, 1.442695
  %v1245 = vpow.pop %v1244
  %v1246 = vmul.f32 %v1236, 1.442695
  %v1247 = vpow.pop %v1246
  %v1248 = vmul.f32 %v1237, 1.442695
  %v1249 = vpow.pop %v1248
  %v1250 = vmul.f32 %v1238, 1.442695
  %v1251 = vpow.pop %v1250
  %v1252 = vmul.f32 %v1239, 1.442695
  %v1253 = vpow.pop %v1252
  %v1254 = vmul.f32 %v1240, 1.442695
  %v1255 = vpow.pop %v1254
  %v1256 = vmul.f32 %v1241, 1.442695
  %v1257 = vpow.pop %v1256
  %v1258 = vsel %vm460, %v1243, 0.0
  %1259 = vadd.xlane.f32.xlu0 %v1258
  %v1260 = vpop.xlane.xlu0 %1259
  %v1261 = vsel %vm460, %v1245, 0.0
  %1262 = vadd.xlane.f32.xlu0 %v1261
  %v1263 = vpop.xlane.xlu0 %1262
  %v1264 = vsel %vm460, %v1247, 0.0
  %1265 = vadd.xlane.f32.xlu0 %v1264
  %v1266 = vpop.xlane.xlu0 %1265
  %v1267 = vsel %vm460, %v1249, 0.0
  %1268 = vadd.xlane.f32.xlu0 %v1267
  %v1269 = vpop.xlane.xlu0 %1268
  %v1270 = vsel %vm460, %v1251, 0.0
  %1271 = vadd.xlane.f32.xlu0 %v1270
  %v1272 = vpop.xlane.xlu0 %1271
  %v1273 = vsel %vm460, %v1253, 0.0
  %1274 = vadd.xlane.f32.xlu0 %v1273
  %v1275 = vpop.xlane.xlu0 %1274
  %v1276 = vsel %vm460, %v1255, 0.0
  %1277 = vadd.xlane.f32.xlu0 %v1276
  %v1278 = vpop.xlane.xlu0 %1277
  %v1279 = vsel %vm460, %v1257, 0.0
  %1280 = vadd.xlane.f32.xlu0 %v1279
  %v1281 = vpop.xlane.xlu0 %1280
  %v1282 = vrcp.pop %v1260
  %v1283 = vrcp.pop %v1263
  %v1284 = vrcp.pop %v1266
  %v1285 = vrcp.pop %v1269
  %v1286 = vrcp.pop %v1272
  %v1287 = vrcp.pop %v1275
  %v1288 = vrcp.pop %v1278
  %v1289 = vrcp.pop %v1281
  %v1290 = vmul.f32 %v1243, %v1282
  %v1291 = vmul.f32 %v1245, %v1283
  %v1292 = vmul.f32 %v1247, %v1284
  %v1293 = vmul.f32 %v1249, %v1285
  %v1294 = vmul.f32 %v1251, %v1286
  %v1295 = vmul.f32 %v1253, %v1287
  %v1296 = vmul.f32 %v1255, %v1288
  %v1297 = vmul.f32 %v1257, %v1289
  %1298 = vrot.lane.b32.xlu0 %v434, 56
  %v1299 = vpop.permute.xlu0 %1298
  %v1302 = vsel %vm460, %v1290, 0
  %1304 = vmatpush.msra.mxu0 0.0
  %1305 = vmatpush.msra.mxu0 0.0
  %1306 = vmatpush.msra.mxu0 0.0
  %1307 = vmatpush.msra.mxu0 0.0
  %1308 = vmatpush.msra.mxu0 0.0
  %1309 = vmatpush.msra.mxu0 0.0
  %1310 = vmatpush.msra.mxu0 0.0
  %1311 = vmatpush.msra.mxu0 0.0
  %1312 = vmatpush.msra.mxu0 0.0
  %1313 = vmatpush.msra.mxu0 0.0
  %1314 = vmatpush.msra.mxu0 0.0
  %1315 = vmatpush.msra.mxu0 0.0
  %1316 = vmatpush.msra.mxu0 0.0
  %1317 = vmatpush.msra.mxu0 0.0
  %1318 = vmatpush.msra.mxu0 0.0
  %1319 = vmatpush.msra.mxu0 %v1299
  %1320 = vmatmul.f32.gmra.mxu0 %v1302
  %v1321 = vpop.f32.mrf.mxu0
  %v1322 = vadd.f32 0.0, %v1321
  %1323 = vdwg.mxu0
  %1324 = vrot.lane.b32.xlu0 %v437, 56
  %v1325 = vpop.permute.xlu0 %1324
  %v1328 = vsel %vm460, %v1291, 0
  %1330 = vmatpush.msra.mxu0 0.0
  %1331 = vmatpush.msra.mxu0 0.0
  %1332 = vmatpush.msra.mxu0 0.0
  %1333 = vmatpush.msra.mxu0 0.0
  %1334 = vmatpush.msra.mxu0 0.0
  %1335 = vmatpush.msra.mxu0 0.0
  %1336 = vmatpush.msra.mxu0 0.0
  %1337 = vmatpush.msra.mxu0 0.0
  %1338 = vmatpush.msra.mxu0 0.0
  %1339 = vmatpush.msra.mxu0 0.0
  %1340 = vmatpush.msra.mxu0 0.0
  %1341 = vmatpush.msra.mxu0 0.0
  %1342 = vmatpush.msra.mxu0 0.0
  %1343 = vmatpush.msra.mxu0 0.0
  %1344 = vmatpush.msra.mxu0 0.0
  %1345 = vmatpush.msra.mxu0 %v1325
  %1346 = vmatmul.f32.gmra.mxu0 %v1328
  %v1347 = vpop.f32.mrf.mxu0
  %v1348 = vadd.f32 0.0, %v1347
  %1349 = vdwg.mxu0
  %1350 = vrot.lane.b32.xlu0 %v440, 56
  %v1351 = vpop.permute.xlu0 %1350
  %v1354 = vsel %vm460, %v1292, 0
  %1356 = vmatpush.msra.mxu0 0.0
  %1357 = vmatpush.msra.mxu0 0.0
  %1358 = vmatpush.msra.mxu0 0.0
  %1359 = vmatpush.msra.mxu0 0.0
  %1360 = vmatpush.msra.mxu0 0.0
  %1361 = vmatpush.msra.mxu0 0.0
  %1362 = vmatpush.msra.mxu0 0.0
  %1363 = vmatpush.msra.mxu0 0.0
  %1364 = vmatpush.msra.mxu0 0.0
  %1365 = vmatpush.msra.mxu0 0.0
  %1366 = vmatpush.msra.mxu0 0.0
  %1367 = vmatpush.msra.mxu0 0.0
  %1368 = vmatpush.msra.mxu0 0.0
  %1369 = vmatpush.msra.mxu0 0.0
  %1370 = vmatpush.msra.mxu0 0.0
  %1371 = vmatpush.msra.mxu0 %v1351
  %1372 = vmatmul.f32.gmra.mxu0 %v1354
  %v1373 = vpop.f32.mrf.mxu0
  %v1374 = vadd.f32 0.0, %v1373
  %1375 = vdwg.mxu0
  %1376 = vrot.lane.b32.xlu0 %v443, 56
  %v1377 = vpop.permute.xlu0 %1376
  %v1380 = vsel %vm460, %v1293, 0
  %1382 = vmatpush.msra.mxu0 0.0
  %1383 = vmatpush.msra.mxu0 0.0
  %1384 = vmatpush.msra.mxu0 0.0
  %1385 = vmatpush.msra.mxu0 0.0
  %1386 = vmatpush.msra.mxu0 0.0
  %1387 = vmatpush.msra.mxu0 0.0
  %1388 = vmatpush.msra.mxu0 0.0
  %1389 = vmatpush.msra.mxu0 0.0
  %1390 = vmatpush.msra.mxu0 0.0
  %1391 = vmatpush.msra.mxu0 0.0
  %1392 = vmatpush.msra.mxu0 0.0
  %1393 = vmatpush.msra.mxu0 0.0
  %1394 = vmatpush.msra.mxu0 0.0
  %1395 = vmatpush.msra.mxu0 0.0
  %1396 = vmatpush.msra.mxu0 0.0
  %1397 = vmatpush.msra.mxu0 %v1377
  %1398 = vmatmul.f32.gmra.mxu0 %v1380
  %v1399 = vpop.f32.mrf.mxu0
  %v1400 = vadd.f32 0.0, %v1399
  %1401 = vdwg.mxu0
  %1402 = vrot.lane.b32.xlu0 %v446, 56
  %v1403 = vpop.permute.xlu0 %1402
  %v1406 = vsel %vm460, %v1294, 0
  %1408 = vmatpush.msra.mxu0 0.0
  %1409 = vmatpush.msra.mxu0 0.0
  %1410 = vmatpush.msra.mxu0 0.0
  %1411 = vmatpush.msra.mxu0 0.0
  %1412 = vmatpush.msra.mxu0 0.0
  %1413 = vmatpush.msra.mxu0 0.0
  %1414 = vmatpush.msra.mxu0 0.0
  %1415 = vmatpush.msra.mxu0 0.0
  %1416 = vmatpush.msra.mxu0 0.0
  %1417 = vmatpush.msra.mxu0 0.0
  %1418 = vmatpush.msra.mxu0 0.0
  %1419 = vmatpush.msra.mxu0 0.0
  %1420 = vmatpush.msra.mxu0 0.0
  %1421 = vmatpush.msra.mxu0 0.0
  %1422 = vmatpush.msra.mxu0 0.0
  %1423 = vmatpush.msra.mxu0 %v1403
  %1424 = vmatmul.f32.gmra.mxu0 %v1406
  %v1425 = vpop.f32.mrf.mxu0
  %v1426 = vadd.f32 0.0, %v1425
  %1427 = vdwg.mxu0
  %1428 = vrot.lane.b32.xlu0 %v449, 56
  %v1429 = vpop.permute.xlu0 %1428
  %v1432 = vsel %vm460, %v1295, 0
  %1434 = vmatpush.msra.mxu0 0.0
  %1435 = vmatpush.msra.mxu0 0.0
  %1436 = vmatpush.msra.mxu0 0.0
  %1437 = vmatpush.msra.mxu0 0.0
  %1438 = vmatpush.msra.mxu0 0.0
  %1439 = vmatpush.msra.mxu0 0.0
  %1440 = vmatpush.msra.mxu0 0.0
  %1441 = vmatpush.msra.mxu0 0.0
  %1442 = vmatpush.msra.mxu0 0.0
  %1443 = vmatpush.msra.mxu0 0.0
  %1444 = vmatpush.msra.mxu0 0.0
  %1445 = vmatpush.msra.mxu0 0.0
  %1446 = vmatpush.msra.mxu0 0.0
  %1447 = vmatpush.msra.mxu0 0.0
  %1448 = vmatpush.msra.mxu0 0.0
  %1449 = vmatpush.msra.mxu0 %v1429
  %1450 = vmatmul.f32.gmra.mxu0 %v1432
  %v1451 = vpop.f32.mrf.mxu0
  %v1452 = vadd.f32 0.0, %v1451
  %1453 = vdwg.mxu0
  %1454 = vrot.lane.b32.xlu0 %v452, 56
  %v1455 = vpop.permute.xlu0 %1454
  %v1458 = vsel %vm460, %v1296, 0
  %1460 = vmatpush.msra.mxu0 0.0
  %1461 = vmatpush.msra.mxu0 0.0
  %1462 = vmatpush.msra.mxu0 0.0
  %1463 = vmatpush.msra.mxu0 0.0
  %1464 = vmatpush.msra.mxu0 0.0
  %1465 = vmatpush.msra.mxu0 0.0
  %1466 = vmatpush.msra.mxu0 0.0
  %1467 = vmatpush.msra.mxu0 0.0
  %1468 = vmatpush.msra.mxu0 0.0
  %1469 = vmatpush.msra.mxu0 0.0
  %1470 = vmatpush.msra.mxu0 0.0
  %1471 = vmatpush.msra.mxu0 0.0
  %1472 = vmatpush.msra.mxu0 0.0
  %1473 = vmatpush.msra.mxu0 0.0
  %1474 = vmatpush.msra.mxu0 0.0
  %1475 = vmatpush.msra.mxu0 %v1455
  %1476 = vmatmul.f32.gmra.mxu0 %v1458
  %v1477 = vpop.f32.mrf.mxu0
  %v1478 = vadd.f32 0.0, %v1477
  %1479 = vdwg.mxu0
  %1480 = vrot.lane.b32.xlu0 %v455, 56
  %v1481 = vpop.permute.xlu0 %1480
  %v1484 = vsel %vm460, %v1297, 0
  %1486 = vmatpush.msra.mxu0 0.0
  %1487 = vmatpush.msra.mxu0 0.0
  %1488 = vmatpush.msra.mxu0 0.0
  %1489 = vmatpush.msra.mxu0 0.0
  %1490 = vmatpush.msra.mxu0 0.0
  %1491 = vmatpush.msra.mxu0 0.0
  %1492 = vmatpush.msra.mxu0 0.0
  %1493 = vmatpush.msra.mxu0 0.0
  %1494 = vmatpush.msra.mxu0 0.0
  %1495 = vmatpush.msra.mxu0 0.0
  %1496 = vmatpush.msra.mxu0 0.0
  %1497 = vmatpush.msra.mxu0 0.0
  %1498 = vmatpush.msra.mxu0 0.0
  %1499 = vmatpush.msra.mxu0 0.0
  %1500 = vmatpush.msra.mxu0 0.0
  %1501 = vmatpush.msra.mxu0 %v1481
  %1502 = vmatmul.f32.gmra.mxu0 %v1484
  %v1503 = vpop.f32.mrf.mxu0
  %v1504 = vadd.f32 0.0, %v1503
  %1505 = vdwg.mxu0
  %1506 = vrot.lane.b32.xlu0 %v434, 112
  %v1507 = vpop.permute.xlu0 %1506
  %1508 = vrot.lane.b32.xlu0 %v434, 80
  %v1509 = vpop.permute.xlu0 %1508
  %v1510 = vsel %vm460, %v1507, 0
  %v1512 = vsel %vm460, %v1509, 0
  %1514 = vmatpush.xpose.msra.mxu0 0.0
  %1515 = vmatpush.xpose.msra.mxu0 0.0
  %1516 = vmatpush.xpose.msra.mxu0 0.0
  %1517 = vmatpush.xpose.msra.mxu0 0.0
  %1518 = vmatpush.xpose.msra.mxu0 0.0
  %1519 = vmatpush.xpose.msra.mxu0 0.0
  %1520 = vmatpush.xpose.msra.mxu0 0.0
  %1521 = vmatpush.xpose.msra.mxu0 0.0
  %1522 = vmatpush.xpose.msra.mxu0 0.0
  %1523 = vmatpush.xpose.msra.mxu0 0.0
  %1524 = vmatpush.xpose.msra.mxu0 0.0
  %1525 = vmatpush.xpose.msra.mxu0 0.0
  %1526 = vmatpush.xpose.msra.mxu0 0.0
  %1527 = vmatpush.xpose.msra.mxu0 0.0
  %1528 = vmatpush.xpose.msra.mxu0 0.0
  %1529 = vmatpush.xpose.msra.mxu0 %v1512
  %1530 = vmatmul.f32.gmra.mxu0 %v1510
  %v1531 = vpop.f32.mrf.mxu0
  %v1532 = vadd.f32 0.0, %v1531
  %1533 = vdwg.mxu0
  %1534 = vrot.lane.b32.xlu0 %v437, 112
  %v1535 = vpop.permute.xlu0 %1534
  %1536 = vrot.lane.b32.xlu0 %v437, 80
  %v1537 = vpop.permute.xlu0 %1536
  %v1538 = vsel %vm460, %v1535, 0
  %v1540 = vsel %vm460, %v1537, 0
  %1542 = vmatpush.xpose.msra.mxu0 0.0
  %1543 = vmatpush.xpose.msra.mxu0 0.0
  %1544 = vmatpush.xpose.msra.mxu0 0.0
  %1545 = vmatpush.xpose.msra.mxu0 0.0
  %1546 = vmatpush.xpose.msra.mxu0 0.0
  %1547 = vmatpush.xpose.msra.mxu0 0.0
  %1548 = vmatpush.xpose.msra.mxu0 0.0
  %1549 = vmatpush.xpose.msra.mxu0 0.0
  %1550 = vmatpush.xpose.msra.mxu0 0.0
  %1551 = vmatpush.xpose.msra.mxu0 0.0
  %1552 = vmatpush.xpose.msra.mxu0 0.0
  %1553 = vmatpush.xpose.msra.mxu0 0.0
  %1554 = vmatpush.xpose.msra.mxu0 0.0
  %1555 = vmatpush.xpose.msra.mxu0 0.0
  %1556 = vmatpush.xpose.msra.mxu0 0.0
  %1557 = vmatpush.xpose.msra.mxu0 %v1540
  %1558 = vmatmul.f32.gmra.mxu0 %v1538
  %v1559 = vpop.f32.mrf.mxu0
  %v1560 = vadd.f32 0.0, %v1559
  %1561 = vdwg.mxu0
  %1562 = vrot.lane.b32.xlu0 %v440, 112
  %v1563 = vpop.permute.xlu0 %1562
  %1564 = vrot.lane.b32.xlu0 %v440, 80
  %v1565 = vpop.permute.xlu0 %1564
  %v1566 = vsel %vm460, %v1563, 0
  %v1568 = vsel %vm460, %v1565, 0
  %1570 = vmatpush.xpose.msra.mxu0 0.0
  %1571 = vmatpush.xpose.msra.mxu0 0.0
  %1572 = vmatpush.xpose.msra.mxu0 0.0
  %1573 = vmatpush.xpose.msra.mxu0 0.0
  %1574 = vmatpush.xpose.msra.mxu0 0.0
  %1575 = vmatpush.xpose.msra.mxu0 0.0
  %1576 = vmatpush.xpose.msra.mxu0 0.0
  %1577 = vmatpush.xpose.msra.mxu0 0.0
  %1578 = vmatpush.xpose.msra.mxu0 0.0
  %1579 = vmatpush.xpose.msra.mxu0 0.0
  %1580 = vmatpush.xpose.msra.mxu0 0.0
  %1581 = vmatpush.xpose.msra.mxu0 0.0
  %1582 = vmatpush.xpose.msra.mxu0 0.0
  %1583 = vmatpush.xpose.msra.mxu0 0.0
  %1584 = vmatpush.xpose.msra.mxu0 0.0
  %1585 = vmatpush.xpose.msra.mxu0 %v1568
  %1586 = vmatmul.f32.gmra.mxu0 %v1566
  %v1587 = vpop.f32.mrf.mxu0
  %v1588 = vadd.f32 0.0, %v1587
  %1589 = vdwg.mxu0
  %1590 = vrot.lane.b32.xlu0 %v443, 112
  %v1591 = vpop.permute.xlu0 %1590
  %1592 = vrot.lane.b32.xlu0 %v443, 80
  %v1593 = vpop.permute.xlu0 %1592
  %v1594 = vsel %vm460, %v1591, 0
  %v1596 = vsel %vm460, %v1593, 0
  %1598 = vmatpush.xpose.msra.mxu0 0.0
  %1599 = vmatpush.xpose.msra.mxu0 0.0
  %1600 = vmatpush.xpose.msra.mxu0 0.0
  %1601 = vmatpush.xpose.msra.mxu0 0.0
  %1602 = vmatpush.xpose.msra.mxu0 0.0
  %1603 = vmatpush.xpose.msra.mxu0 0.0
  %1604 = vmatpush.xpose.msra.mxu0 0.0
  %1605 = vmatpush.xpose.msra.mxu0 0.0
  %1606 = vmatpush.xpose.msra.mxu0 0.0
  %1607 = vmatpush.xpose.msra.mxu0 0.0
  %1608 = vmatpush.xpose.msra.mxu0 0.0
  %1609 = vmatpush.xpose.msra.mxu0 0.0
  %1610 = vmatpush.xpose.msra.mxu0 0.0
  %1611 = vmatpush.xpose.msra.mxu0 0.0
  %1612 = vmatpush.xpose.msra.mxu0 0.0
  %1613 = vmatpush.xpose.msra.mxu0 %v1596
  %1614 = vmatmul.f32.gmra.mxu0 %v1594
  %v1615 = vpop.f32.mrf.mxu0
  %v1616 = vadd.f32 0.0, %v1615
  %1617 = vdwg.mxu0
  %1618 = vrot.lane.b32.xlu0 %v446, 112
  %v1619 = vpop.permute.xlu0 %1618
  %1620 = vrot.lane.b32.xlu0 %v446, 80
  %v1621 = vpop.permute.xlu0 %1620
  %v1622 = vsel %vm460, %v1619, 0
  %v1624 = vsel %vm460, %v1621, 0
  %1626 = vmatpush.xpose.msra.mxu0 0.0
  %1627 = vmatpush.xpose.msra.mxu0 0.0
  %1628 = vmatpush.xpose.msra.mxu0 0.0
  %1629 = vmatpush.xpose.msra.mxu0 0.0
  %1630 = vmatpush.xpose.msra.mxu0 0.0
  %1631 = vmatpush.xpose.msra.mxu0 0.0
  %1632 = vmatpush.xpose.msra.mxu0 0.0
  %1633 = vmatpush.xpose.msra.mxu0 0.0
  %1634 = vmatpush.xpose.msra.mxu0 0.0
  %1635 = vmatpush.xpose.msra.mxu0 0.0
  %1636 = vmatpush.xpose.msra.mxu0 0.0
  %1637 = vmatpush.xpose.msra.mxu0 0.0
  %1638 = vmatpush.xpose.msra.mxu0 0.0
  %1639 = vmatpush.xpose.msra.mxu0 0.0
  %1640 = vmatpush.xpose.msra.mxu0 0.0
  %1641 = vmatpush.xpose.msra.mxu0 %v1624
  %1642 = vmatmul.f32.gmra.mxu0 %v1622
  %v1643 = vpop.f32.mrf.mxu0
  %v1644 = vadd.f32 0.0, %v1643
  %1645 = vdwg.mxu0
  %1646 = vrot.lane.b32.xlu0 %v449, 112
  %v1647 = vpop.permute.xlu0 %1646
  %1648 = vrot.lane.b32.xlu0 %v449, 80
  %v1649 = vpop.permute.xlu0 %1648
  %v1650 = vsel %vm460, %v1647, 0
  %v1652 = vsel %vm460, %v1649, 0
  %1654 = vmatpush.xpose.msra.mxu0 0.0
  %1655 = vmatpush.xpose.msra.mxu0 0.0
  %1656 = vmatpush.xpose.msra.mxu0 0.0
  %1657 = vmatpush.xpose.msra.mxu0 0.0
  %1658 = vmatpush.xpose.msra.mxu0 0.0
  %1659 = vmatpush.xpose.msra.mxu0 0.0
  %1660 = vmatpush.xpose.msra.mxu0 0.0
  %1661 = vmatpush.xpose.msra.mxu0 0.0
  %1662 = vmatpush.xpose.msra.mxu0 0.0
  %1663 = vmatpush.xpose.msra.mxu0 0.0
  %1664 = vmatpush.xpose.msra.mxu0 0.0
  %1665 = vmatpush.xpose.msra.mxu0 0.0
  %1666 = vmatpush.xpose.msra.mxu0 0.0
  %1667 = vmatpush.xpose.msra.mxu0 0.0
  %1668 = vmatpush.xpose.msra.mxu0 0.0
  %1669 = vmatpush.xpose.msra.mxu0 %v1652
  %1670 = vmatmul.f32.gmra.mxu0 %v1650
  %v1671 = vpop.f32.mrf.mxu0
  %v1672 = vadd.f32 0.0, %v1671
  %1673 = vdwg.mxu0
  %1674 = vrot.lane.b32.xlu0 %v452, 112
  %v1675 = vpop.permute.xlu0 %1674
  %1676 = vrot.lane.b32.xlu0 %v452, 80
  %v1677 = vpop.permute.xlu0 %1676
  %v1678 = vsel %vm460, %v1675, 0
  %v1680 = vsel %vm460, %v1677, 0
  %1682 = vmatpush.xpose.msra.mxu0 0.0
  %1683 = vmatpush.xpose.msra.mxu0 0.0
  %1684 = vmatpush.xpose.msra.mxu0 0.0
  %1685 = vmatpush.xpose.msra.mxu0 0.0
  %1686 = vmatpush.xpose.msra.mxu0 0.0
  %1687 = vmatpush.xpose.msra.mxu0 0.0
  %1688 = vmatpush.xpose.msra.mxu0 0.0
  %1689 = vmatpush.xpose.msra.mxu0 0.0
  %1690 = vmatpush.xpose.msra.mxu0 0.0
  %1691 = vmatpush.xpose.msra.mxu0 0.0
  %1692 = vmatpush.xpose.msra.mxu0 0.0
  %1693 = vmatpush.xpose.msra.mxu0 0.0
  %1694 = vmatpush.xpose.msra.mxu0 0.0
  %1695 = vmatpush.xpose.msra.mxu0 0.0
  %1696 = vmatpush.xpose.msra.mxu0 0.0
  %1697 = vmatpush.xpose.msra.mxu0 %v1680
  %1698 = vmatmul.f32.gmra.mxu0 %v1678
  %v1699 = vpop.f32.mrf.mxu0
  %v1700 = vadd.f32 0.0, %v1699
  %1701 = vdwg.mxu0
  %1702 = vrot.lane.b32.xlu0 %v455, 112
  %v1703 = vpop.permute.xlu0 %1702
  %1704 = vrot.lane.b32.xlu0 %v455, 80
  %v1705 = vpop.permute.xlu0 %1704
  %v1706 = vsel %vm460, %v1703, 0
  %v1708 = vsel %vm460, %v1705, 0
  %1710 = vmatpush.xpose.msra.mxu0 0.0
  %1711 = vmatpush.xpose.msra.mxu0 0.0
  %1712 = vmatpush.xpose.msra.mxu0 0.0
  %1713 = vmatpush.xpose.msra.mxu0 0.0
  %1714 = vmatpush.xpose.msra.mxu0 0.0
  %1715 = vmatpush.xpose.msra.mxu0 0.0
  %1716 = vmatpush.xpose.msra.mxu0 0.0
  %1717 = vmatpush.xpose.msra.mxu0 0.0
  %1718 = vmatpush.xpose.msra.mxu0 0.0
  %1719 = vmatpush.xpose.msra.mxu0 0.0
  %1720 = vmatpush.xpose.msra.mxu0 0.0
  %1721 = vmatpush.xpose.msra.mxu0 0.0
  %1722 = vmatpush.xpose.msra.mxu0 0.0
  %1723 = vmatpush.xpose.msra.mxu0 0.0
  %1724 = vmatpush.xpose.msra.mxu0 0.0
  %1725 = vmatpush.xpose.msra.mxu0 %v1708
  %1726 = vmatmul.f32.gmra.mxu0 %v1706
  %v1727 = vpop.f32.mrf.mxu0
  %v1728 = vadd.f32 0.0, %v1727
  %1729 = vdwg.mxu0
  %v1730 = vmul.f32 %v1532, 0.35355338
  %v1731 = vmul.f32 %v1560, 0.35355338
  %v1732 = vmul.f32 %v1588, 0.35355338
  %v1733 = vmul.f32 %v1616, 0.35355338
  %v1734 = vmul.f32 %v1644, 0.35355338
  %v1735 = vmul.f32 %v1672, 0.35355338
  %v1736 = vmul.f32 %v1700, 0.35355338
  %v1737 = vmul.f32 %v1728, 0.35355338
  %v1738 = vsel %vm460, %v1730, -inf
  %1739 = vmax.xlane.f32.xlu0 %v1738
  %v1740 = vpop.xlane.xlu0 %1739
  %v1741 = vsel %vm460, %v1731, -inf
  %1742 = vmax.xlane.f32.xlu0 %v1741
  %v1743 = vpop.xlane.xlu0 %1742
  %v1744 = vsel %vm460, %v1732, -inf
  %1745 = vmax.xlane.f32.xlu0 %v1744
  %v1746 = vpop.xlane.xlu0 %1745
  %v1747 = vsel %vm460, %v1733, -inf
  %1748 = vmax.xlane.f32.xlu0 %v1747
  %v1749 = vpop.xlane.xlu0 %1748
  %v1750 = vsel %vm460, %v1734, -inf
  %1751 = vmax.xlane.f32.xlu0 %v1750
  %v1752 = vpop.xlane.xlu0 %1751
  %v1753 = vsel %vm460, %v1735, -inf
  %1754 = vmax.xlane.f32.xlu0 %v1753
  %v1755 = vpop.xlane.xlu0 %1754
  %v1756 = vsel %vm460, %v1736, -inf
  %1757 = vmax.xlane.f32.xlu0 %v1756
  %v1758 = vpop.xlane.xlu0 %1757
  %v1759 = vsel %vm460, %v1737, -inf
  %1760 = vmax.xlane.f32.xlu0 %v1759
  %v1761 = vpop.xlane.xlu0 %1760
  %v1762 = vsub.f32 %v1730, %v1740
  %v1763 = vsub.f32 %v1731, %v1743
  %v1764 = vsub.f32 %v1732, %v1746
  %v1765 = vsub.f32 %v1733, %v1749
  %v1766 = vsub.f32 %v1734, %v1752
  %v1767 = vsub.f32 %v1735, %v1755
  %v1768 = vsub.f32 %v1736, %v1758
  %v1769 = vsub.f32 %v1737, %v1761
  %v1770 = vmul.f32 %v1762, 1.442695
  %v1771 = vpow.pop %v1770
  %v1772 = vmul.f32 %v1763, 1.442695
  %v1773 = vpow.pop %v1772
  %v1774 = vmul.f32 %v1764, 1.442695
  %v1775 = vpow.pop %v1774
  %v1776 = vmul.f32 %v1765, 1.442695
  %v1777 = vpow.pop %v1776
  %v1778 = vmul.f32 %v1766, 1.442695
  %v1779 = vpow.pop %v1778
  %v1780 = vmul.f32 %v1767, 1.442695
  %v1781 = vpow.pop %v1780
  %v1782 = vmul.f32 %v1768, 1.442695
  %v1783 = vpow.pop %v1782
  %v1784 = vmul.f32 %v1769, 1.442695
  %v1785 = vpow.pop %v1784
  %v1786 = vsel %vm460, %v1771, 0.0
  %1787 = vadd.xlane.f32.xlu0 %v1786
  %v1788 = vpop.xlane.xlu0 %1787
  %v1789 = vsel %vm460, %v1773, 0.0
  %1790 = vadd.xlane.f32.xlu0 %v1789
  %v1791 = vpop.xlane.xlu0 %1790
  %v1792 = vsel %vm460, %v1775, 0.0
  %1793 = vadd.xlane.f32.xlu0 %v1792
  %v1794 = vpop.xlane.xlu0 %1793
  %v1795 = vsel %vm460, %v1777, 0.0
  %1796 = vadd.xlane.f32.xlu0 %v1795
  %v1797 = vpop.xlane.xlu0 %1796
  %v1798 = vsel %vm460, %v1779, 0.0
  %1799 = vadd.xlane.f32.xlu0 %v1798
  %v1800 = vpop.xlane.xlu0 %1799
  %v1801 = vsel %vm460, %v1781, 0.0
  %1802 = vadd.xlane.f32.xlu0 %v1801
  %v1803 = vpop.xlane.xlu0 %1802
  %v1804 = vsel %vm460, %v1783, 0.0
  %1805 = vadd.xlane.f32.xlu0 %v1804
  %v1806 = vpop.xlane.xlu0 %1805
  %v1807 = vsel %vm460, %v1785, 0.0
  %1808 = vadd.xlane.f32.xlu0 %v1807
  %v1809 = vpop.xlane.xlu0 %1808
  %v1810 = vrcp.pop %v1788
  %v1811 = vrcp.pop %v1791
  %v1812 = vrcp.pop %v1794
  %v1813 = vrcp.pop %v1797
  %v1814 = vrcp.pop %v1800
  %v1815 = vrcp.pop %v1803
  %v1816 = vrcp.pop %v1806
  %v1817 = vrcp.pop %v1809
  %v1818 = vmul.f32 %v1771, %v1810
  %v1819 = vmul.f32 %v1773, %v1811
  %v1820 = vmul.f32 %v1775, %v1812
  %v1821 = vmul.f32 %v1777, %v1813
  %v1822 = vmul.f32 %v1779, %v1814
  %v1823 = vmul.f32 %v1781, %v1815
  %v1824 = vmul.f32 %v1783, %v1816
  %v1825 = vmul.f32 %v1785, %v1817
  %1826 = vrot.lane.b32.xlu0 %v434, 48
  %v1827 = vpop.permute.xlu0 %1826
  %v1830 = vsel %vm460, %v1818, 0
  %1832 = vmatpush.msra.mxu0 0.0
  %1833 = vmatpush.msra.mxu0 0.0
  %1834 = vmatpush.msra.mxu0 0.0
  %1835 = vmatpush.msra.mxu0 0.0
  %1836 = vmatpush.msra.mxu0 0.0
  %1837 = vmatpush.msra.mxu0 0.0
  %1838 = vmatpush.msra.mxu0 0.0
  %1839 = vmatpush.msra.mxu0 0.0
  %1840 = vmatpush.msra.mxu0 0.0
  %1841 = vmatpush.msra.mxu0 0.0
  %1842 = vmatpush.msra.mxu0 0.0
  %1843 = vmatpush.msra.mxu0 0.0
  %1844 = vmatpush.msra.mxu0 0.0
  %1845 = vmatpush.msra.mxu0 0.0
  %1846 = vmatpush.msra.mxu0 0.0
  %1847 = vmatpush.msra.mxu0 %v1827
  %1848 = vmatmul.f32.gmra.mxu0 %v1830
  %v1849 = vpop.f32.mrf.mxu0
  %v1850 = vadd.f32 0.0, %v1849
  %1851 = vdwg.mxu0
  %1852 = vrot.lane.b32.xlu0 %v437, 48
  %v1853 = vpop.permute.xlu0 %1852
  %v1856 = vsel %vm460, %v1819, 0
  %1858 = vmatpush.msra.mxu0 0.0
  %1859 = vmatpush.msra.mxu0 0.0
  %1860 = vmatpush.msra.mxu0 0.0
  %1861 = vmatpush.msra.mxu0 0.0
  %1862 = vmatpush.msra.mxu0 0.0
  %1863 = vmatpush.msra.mxu0 0.0
  %1864 = vmatpush.msra.mxu0 0.0
  %1865 = vmatpush.msra.mxu0 0.0
  %1866 = vmatpush.msra.mxu0 0.0
  %1867 = vmatpush.msra.mxu0 0.0
  %1868 = vmatpush.msra.mxu0 0.0
  %1869 = vmatpush.msra.mxu0 0.0
  %1870 = vmatpush.msra.mxu0 0.0
  %1871 = vmatpush.msra.mxu0 0.0
  %1872 = vmatpush.msra.mxu0 0.0
  %1873 = vmatpush.msra.mxu0 %v1853
  %1874 = vmatmul.f32.gmra.mxu0 %v1856
  %v1875 = vpop.f32.mrf.mxu0
  %v1876 = vadd.f32 0.0, %v1875
  %1877 = vdwg.mxu0
  %1878 = vrot.lane.b32.xlu0 %v440, 48
  %v1879 = vpop.permute.xlu0 %1878
  %v1882 = vsel %vm460, %v1820, 0
  %1884 = vmatpush.msra.mxu0 0.0
  %1885 = vmatpush.msra.mxu0 0.0
  %1886 = vmatpush.msra.mxu0 0.0
  %1887 = vmatpush.msra.mxu0 0.0
  %1888 = vmatpush.msra.mxu0 0.0
  %1889 = vmatpush.msra.mxu0 0.0
  %1890 = vmatpush.msra.mxu0 0.0
  %1891 = vmatpush.msra.mxu0 0.0
  %1892 = vmatpush.msra.mxu0 0.0
  %1893 = vmatpush.msra.mxu0 0.0
  %1894 = vmatpush.msra.mxu0 0.0
  %1895 = vmatpush.msra.mxu0 0.0
  %1896 = vmatpush.msra.mxu0 0.0
  %1897 = vmatpush.msra.mxu0 0.0
  %1898 = vmatpush.msra.mxu0 0.0
  %1899 = vmatpush.msra.mxu0 %v1879
  %1900 = vmatmul.f32.gmra.mxu0 %v1882
  %v1901 = vpop.f32.mrf.mxu0
  %v1902 = vadd.f32 0.0, %v1901
  %1903 = vdwg.mxu0
  %1904 = vrot.lane.b32.xlu0 %v443, 48
  %v1905 = vpop.permute.xlu0 %1904
  %v1908 = vsel %vm460, %v1821, 0
  %1910 = vmatpush.msra.mxu0 0.0
  %1911 = vmatpush.msra.mxu0 0.0
  %1912 = vmatpush.msra.mxu0 0.0
  %1913 = vmatpush.msra.mxu0 0.0
  %1914 = vmatpush.msra.mxu0 0.0
  %1915 = vmatpush.msra.mxu0 0.0
  %1916 = vmatpush.msra.mxu0 0.0
  %1917 = vmatpush.msra.mxu0 0.0
  %1918 = vmatpush.msra.mxu0 0.0
  %1919 = vmatpush.msra.mxu0 0.0
  %1920 = vmatpush.msra.mxu0 0.0
  %1921 = vmatpush.msra.mxu0 0.0
  %1922 = vmatpush.msra.mxu0 0.0
  %1923 = vmatpush.msra.mxu0 0.0
  %1924 = vmatpush.msra.mxu0 0.0
  %1925 = vmatpush.msra.mxu0 %v1905
  %1926 = vmatmul.f32.gmra.mxu0 %v1908
  %v1927 = vpop.f32.mrf.mxu0
  %v1928 = vadd.f32 0.0, %v1927
  %1929 = vdwg.mxu0
  %1930 = vrot.lane.b32.xlu0 %v446, 48
  %v1931 = vpop.permute.xlu0 %1930
  %v1934 = vsel %vm460, %v1822, 0
  %1936 = vmatpush.msra.mxu0 0.0
  %1937 = vmatpush.msra.mxu0 0.0
  %1938 = vmatpush.msra.mxu0 0.0
  %1939 = vmatpush.msra.mxu0 0.0
  %1940 = vmatpush.msra.mxu0 0.0
  %1941 = vmatpush.msra.mxu0 0.0
  %1942 = vmatpush.msra.mxu0 0.0
  %1943 = vmatpush.msra.mxu0 0.0
  %1944 = vmatpush.msra.mxu0 0.0
  %1945 = vmatpush.msra.mxu0 0.0
  %1946 = vmatpush.msra.mxu0 0.0
  %1947 = vmatpush.msra.mxu0 0.0
  %1948 = vmatpush.msra.mxu0 0.0
  %1949 = vmatpush.msra.mxu0 0.0
  %1950 = vmatpush.msra.mxu0 0.0
  %1951 = vmatpush.msra.mxu0 %v1931
  %1952 = vmatmul.f32.gmra.mxu0 %v1934
  %v1953 = vpop.f32.mrf.mxu0
  %v1954 = vadd.f32 0.0, %v1953
  %1955 = vdwg.mxu0
  %1956 = vrot.lane.b32.xlu0 %v449, 48
  %v1957 = vpop.permute.xlu0 %1956
  %v1960 = vsel %vm460, %v1823, 0
  %1962 = vmatpush.msra.mxu0 0.0
  %1963 = vmatpush.msra.mxu0 0.0
  %1964 = vmatpush.msra.mxu0 0.0
  %1965 = vmatpush.msra.mxu0 0.0
  %1966 = vmatpush.msra.mxu0 0.0
  %1967 = vmatpush.msra.mxu0 0.0
  %1968 = vmatpush.msra.mxu0 0.0
  %1969 = vmatpush.msra.mxu0 0.0
  %1970 = vmatpush.msra.mxu0 0.0
  %1971 = vmatpush.msra.mxu0 0.0
  %1972 = vmatpush.msra.mxu0 0.0
  %1973 = vmatpush.msra.mxu0 0.0
  %1974 = vmatpush.msra.mxu0 0.0
  %1975 = vmatpush.msra.mxu0 0.0
  %1976 = vmatpush.msra.mxu0 0.0
  %1977 = vmatpush.msra.mxu0 %v1957
  %1978 = vmatmul.f32.gmra.mxu0 %v1960
  %v1979 = vpop.f32.mrf.mxu0
  %v1980 = vadd.f32 0.0, %v1979
  %1981 = vdwg.mxu0
  %1982 = vrot.lane.b32.xlu0 %v452, 48
  %v1983 = vpop.permute.xlu0 %1982
  %v1986 = vsel %vm460, %v1824, 0
  %1988 = vmatpush.msra.mxu0 0.0
  %1989 = vmatpush.msra.mxu0 0.0
  %1990 = vmatpush.msra.mxu0 0.0
  %1991 = vmatpush.msra.mxu0 0.0
  %1992 = vmatpush.msra.mxu0 0.0
  %1993 = vmatpush.msra.mxu0 0.0
  %1994 = vmatpush.msra.mxu0 0.0
  %1995 = vmatpush.msra.mxu0 0.0
  %1996 = vmatpush.msra.mxu0 0.0
  %1997 = vmatpush.msra.mxu0 0.0
  %1998 = vmatpush.msra.mxu0 0.0
  %1999 = vmatpush.msra.mxu0 0.0
  %2000 = vmatpush.msra.mxu0 0.0
  %2001 = vmatpush.msra.mxu0 0.0
  %2002 = vmatpush.msra.mxu0 0.0
  %2003 = vmatpush.msra.mxu0 %v1983
  %2004 = vmatmul.f32.gmra.mxu0 %v1986
  %v2005 = vpop.f32.mrf.mxu0
  %v2006 = vadd.f32 0.0, %v2005
  %2007 = vdwg.mxu0
  %2008 = vrot.lane.b32.xlu0 %v455, 48
  %v2009 = vpop.permute.xlu0 %2008
  %v2012 = vsel %vm460, %v1825, 0
  %2014 = vmatpush.msra.mxu0 0.0
  %2015 = vmatpush.msra.mxu0 0.0
  %2016 = vmatpush.msra.mxu0 0.0
  %2017 = vmatpush.msra.mxu0 0.0
  %2018 = vmatpush.msra.mxu0 0.0
  %2019 = vmatpush.msra.mxu0 0.0
  %2020 = vmatpush.msra.mxu0 0.0
  %2021 = vmatpush.msra.mxu0 0.0
  %2022 = vmatpush.msra.mxu0 0.0
  %2023 = vmatpush.msra.mxu0 0.0
  %2024 = vmatpush.msra.mxu0 0.0
  %2025 = vmatpush.msra.mxu0 0.0
  %2026 = vmatpush.msra.mxu0 0.0
  %2027 = vmatpush.msra.mxu0 0.0
  %2028 = vmatpush.msra.mxu0 0.0
  %2029 = vmatpush.msra.mxu0 %v2009
  %2030 = vmatmul.f32.gmra.mxu0 %v2012
  %v2031 = vpop.f32.mrf.mxu0
  %v2032 = vadd.f32 0.0, %v2031
  %2033 = vdwg.mxu0
  %2034 = vrot.lane.b32.xlu0 %v434, 104
  %v2035 = vpop.permute.xlu0 %2034
  %2036 = vrot.lane.b32.xlu0 %v434, 72
  %v2037 = vpop.permute.xlu0 %2036
  %v2038 = vsel %vm460, %v2035, 0
  %v2040 = vsel %vm460, %v2037, 0
  %2042 = vmatpush.xpose.msra.mxu0 0.0
  %2043 = vmatpush.xpose.msra.mxu0 0.0
  %2044 = vmatpush.xpose.msra.mxu0 0.0
  %2045 = vmatpush.xpose.msra.mxu0 0.0
  %2046 = vmatpush.xpose.msra.mxu0 0.0
  %2047 = vmatpush.xpose.msra.mxu0 0.0
  %2048 = vmatpush.xpose.msra.mxu0 0.0
  %2049 = vmatpush.xpose.msra.mxu0 0.0
  %2050 = vmatpush.xpose.msra.mxu0 0.0
  %2051 = vmatpush.xpose.msra.mxu0 0.0
  %2052 = vmatpush.xpose.msra.mxu0 0.0
  %2053 = vmatpush.xpose.msra.mxu0 0.0
  %2054 = vmatpush.xpose.msra.mxu0 0.0
  %2055 = vmatpush.xpose.msra.mxu0 0.0
  %2056 = vmatpush.xpose.msra.mxu0 0.0
  %2057 = vmatpush.xpose.msra.mxu0 %v2040
  %2058 = vmatmul.f32.gmra.mxu0 %v2038
  %v2059 = vpop.f32.mrf.mxu0
  %v2060 = vadd.f32 0.0, %v2059
  %2061 = vdwg.mxu0
  %2062 = vrot.lane.b32.xlu0 %v437, 104
  %v2063 = vpop.permute.xlu0 %2062
  %2064 = vrot.lane.b32.xlu0 %v437, 72
  %v2065 = vpop.permute.xlu0 %2064
  %v2066 = vsel %vm460, %v2063, 0
  %v2068 = vsel %vm460, %v2065, 0
  %2070 = vmatpush.xpose.msra.mxu0 0.0
  %2071 = vmatpush.xpose.msra.mxu0 0.0
  %2072 = vmatpush.xpose.msra.mxu0 0.0
  %2073 = vmatpush.xpose.msra.mxu0 0.0
  %2074 = vmatpush.xpose.msra.mxu0 0.0
  %2075 = vmatpush.xpose.msra.mxu0 0.0
  %2076 = vmatpush.xpose.msra.mxu0 0.0
  %2077 = vmatpush.xpose.msra.mxu0 0.0
  %2078 = vmatpush.xpose.msra.mxu0 0.0
  %2079 = vmatpush.xpose.msra.mxu0 0.0
  %2080 = vmatpush.xpose.msra.mxu0 0.0
  %2081 = vmatpush.xpose.msra.mxu0 0.0
  %2082 = vmatpush.xpose.msra.mxu0 0.0
  %2083 = vmatpush.xpose.msra.mxu0 0.0
  %2084 = vmatpush.xpose.msra.mxu0 0.0
  %2085 = vmatpush.xpose.msra.mxu0 %v2068
  %2086 = vmatmul.f32.gmra.mxu0 %v2066
  %v2087 = vpop.f32.mrf.mxu0
  %v2088 = vadd.f32 0.0, %v2087
  %2089 = vdwg.mxu0
  %2090 = vrot.lane.b32.xlu0 %v440, 104
  %v2091 = vpop.permute.xlu0 %2090
  %2092 = vrot.lane.b32.xlu0 %v440, 72
  %v2093 = vpop.permute.xlu0 %2092
  %v2094 = vsel %vm460, %v2091, 0
  %v2096 = vsel %vm460, %v2093, 0
  %2098 = vmatpush.xpose.msra.mxu0 0.0
  %2099 = vmatpush.xpose.msra.mxu0 0.0
  %2100 = vmatpush.xpose.msra.mxu0 0.0
  %2101 = vmatpush.xpose.msra.mxu0 0.0
  %2102 = vmatpush.xpose.msra.mxu0 0.0
  %2103 = vmatpush.xpose.msra.mxu0 0.0
  %2104 = vmatpush.xpose.msra.mxu0 0.0
  %2105 = vmatpush.xpose.msra.mxu0 0.0
  %2106 = vmatpush.xpose.msra.mxu0 0.0
  %2107 = vmatpush.xpose.msra.mxu0 0.0
  %2108 = vmatpush.xpose.msra.mxu0 0.0
  %2109 = vmatpush.xpose.msra.mxu0 0.0
  %2110 = vmatpush.xpose.msra.mxu0 0.0
  %2111 = vmatpush.xpose.msra.mxu0 0.0
  %2112 = vmatpush.xpose.msra.mxu0 0.0
  %2113 = vmatpush.xpose.msra.mxu0 %v2096
  %2114 = vmatmul.f32.gmra.mxu0 %v2094
  %v2115 = vpop.f32.mrf.mxu0
  %v2116 = vadd.f32 0.0, %v2115
  %2117 = vdwg.mxu0
  %2118 = vrot.lane.b32.xlu0 %v443, 104
  %v2119 = vpop.permute.xlu0 %2118
  %2120 = vrot.lane.b32.xlu0 %v443, 72
  %v2121 = vpop.permute.xlu0 %2120
  %v2122 = vsel %vm460, %v2119, 0
  %v2124 = vsel %vm460, %v2121, 0
  %2126 = vmatpush.xpose.msra.mxu0 0.0
  %2127 = vmatpush.xpose.msra.mxu0 0.0
  %2128 = vmatpush.xpose.msra.mxu0 0.0
  %2129 = vmatpush.xpose.msra.mxu0 0.0
  %2130 = vmatpush.xpose.msra.mxu0 0.0
  %2131 = vmatpush.xpose.msra.mxu0 0.0
  %2132 = vmatpush.xpose.msra.mxu0 0.0
  %2133 = vmatpush.xpose.msra.mxu0 0.0
  %2134 = vmatpush.xpose.msra.mxu0 0.0
  %2135 = vmatpush.xpose.msra.mxu0 0.0
  %2136 = vmatpush.xpose.msra.mxu0 0.0
  %2137 = vmatpush.xpose.msra.mxu0 0.0
  %2138 = vmatpush.xpose.msra.mxu0 0.0
  %2139 = vmatpush.xpose.msra.mxu0 0.0
  %2140 = vmatpush.xpose.msra.mxu0 0.0
  %2141 = vmatpush.xpose.msra.mxu0 %v2124
  %2142 = vmatmul.f32.gmra.mxu0 %v2122
  %v2143 = vpop.f32.mrf.mxu0
  %v2144 = vadd.f32 0.0, %v2143
  %2145 = vdwg.mxu0
  %2146 = vrot.lane.b32.xlu0 %v446, 104
  %v2147 = vpop.permute.xlu0 %2146
  %2148 = vrot.lane.b32.xlu0 %v446, 72
  %v2149 = vpop.permute.xlu0 %2148
  %v2150 = vsel %vm460, %v2147, 0
  %v2152 = vsel %vm460, %v2149, 0
  %2154 = vmatpush.xpose.msra.mxu0 0.0
  %2155 = vmatpush.xpose.msra.mxu0 0.0
  %2156 = vmatpush.xpose.msra.mxu0 0.0
  %2157 = vmatpush.xpose.msra.mxu0 0.0
  %2158 = vmatpush.xpose.msra.mxu0 0.0
  %2159 = vmatpush.xpose.msra.mxu0 0.0
  %2160 = vmatpush.xpose.msra.mxu0 0.0
  %2161 = vmatpush.xpose.msra.mxu0 0.0
  %2162 = vmatpush.xpose.msra.mxu0 0.0
  %2163 = vmatpush.xpose.msra.mxu0 0.0
  %2164 = vmatpush.xpose.msra.mxu0 0.0
  %2165 = vmatpush.xpose.msra.mxu0 0.0
  %2166 = vmatpush.xpose.msra.mxu0 0.0
  %2167 = vmatpush.xpose.msra.mxu0 0.0
  %2168 = vmatpush.xpose.msra.mxu0 0.0
  %2169 = vmatpush.xpose.msra.mxu0 %v2152
  %2170 = vmatmul.f32.gmra.mxu0 %v2150
  %v2171 = vpop.f32.mrf.mxu0
  %v2172 = vadd.f32 0.0, %v2171
  %2173 = vdwg.mxu0
  %2174 = vrot.lane.b32.xlu0 %v449, 104
  %v2175 = vpop.permute.xlu0 %2174
  %2176 = vrot.lane.b32.xlu0 %v449, 72
  %v2177 = vpop.permute.xlu0 %2176
  %v2178 = vsel %vm460, %v2175, 0
  %v2180 = vsel %vm460, %v2177, 0
  %2182 = vmatpush.xpose.msra.mxu0 0.0
  %2183 = vmatpush.xpose.msra.mxu0 0.0
  %2184 = vmatpush.xpose.msra.mxu0 0.0
  %2185 = vmatpush.xpose.msra.mxu0 0.0
  %2186 = vmatpush.xpose.msra.mxu0 0.0
  %2187 = vmatpush.xpose.msra.mxu0 0.0
  %2188 = vmatpush.xpose.msra.mxu0 0.0
  %2189 = vmatpush.xpose.msra.mxu0 0.0
  %2190 = vmatpush.xpose.msra.mxu0 0.0
  %2191 = vmatpush.xpose.msra.mxu0 0.0
  %2192 = vmatpush.xpose.msra.mxu0 0.0
  %2193 = vmatpush.xpose.msra.mxu0 0.0
  %2194 = vmatpush.xpose.msra.mxu0 0.0
  %2195 = vmatpush.xpose.msra.mxu0 0.0
  %2196 = vmatpush.xpose.msra.mxu0 0.0
  %2197 = vmatpush.xpose.msra.mxu0 %v2180
  %2198 = vmatmul.f32.gmra.mxu0 %v2178
  %v2199 = vpop.f32.mrf.mxu0
  %v2200 = vadd.f32 0.0, %v2199
  %2201 = vdwg.mxu0
  %2202 = vrot.lane.b32.xlu0 %v452, 104
  %v2203 = vpop.permute.xlu0 %2202
  %2204 = vrot.lane.b32.xlu0 %v452, 72
  %v2205 = vpop.permute.xlu0 %2204
  %v2206 = vsel %vm460, %v2203, 0
  %v2208 = vsel %vm460, %v2205, 0
  %2210 = vmatpush.xpose.msra.mxu0 0.0
  %2211 = vmatpush.xpose.msra.mxu0 0.0
  %2212 = vmatpush.xpose.msra.mxu0 0.0
  %2213 = vmatpush.xpose.msra.mxu0 0.0
  %2214 = vmatpush.xpose.msra.mxu0 0.0
  %2215 = vmatpush.xpose.msra.mxu0 0.0
  %2216 = vmatpush.xpose.msra.mxu0 0.0
  %2217 = vmatpush.xpose.msra.mxu0 0.0
  %2218 = vmatpush.xpose.msra.mxu0 0.0
  %2219 = vmatpush.xpose.msra.mxu0 0.0
  %2220 = vmatpush.xpose.msra.mxu0 0.0
  %2221 = vmatpush.xpose.msra.mxu0 0.0
  %2222 = vmatpush.xpose.msra.mxu0 0.0
  %2223 = vmatpush.xpose.msra.mxu0 0.0
  %2224 = vmatpush.xpose.msra.mxu0 0.0
  %2225 = vmatpush.xpose.msra.mxu0 %v2208
  %2226 = vmatmul.f32.gmra.mxu0 %v2206
  %v2227 = vpop.f32.mrf.mxu0
  %v2228 = vadd.f32 0.0, %v2227
  %2229 = vdwg.mxu0
  %2230 = vrot.lane.b32.xlu0 %v455, 104
  %v2231 = vpop.permute.xlu0 %2230
  %2232 = vrot.lane.b32.xlu0 %v455, 72
  %v2233 = vpop.permute.xlu0 %2232
  %v2234 = vsel %vm460, %v2231, 0
  %v2236 = vsel %vm460, %v2233, 0
  %2238 = vmatpush.xpose.msra.mxu0 0.0
  %2239 = vmatpush.xpose.msra.mxu0 0.0
  %2240 = vmatpush.xpose.msra.mxu0 0.0
  %2241 = vmatpush.xpose.msra.mxu0 0.0
  %2242 = vmatpush.xpose.msra.mxu0 0.0
  %2243 = vmatpush.xpose.msra.mxu0 0.0
  %2244 = vmatpush.xpose.msra.mxu0 0.0
  %2245 = vmatpush.xpose.msra.mxu0 0.0
  %2246 = vmatpush.xpose.msra.mxu0 0.0
  %2247 = vmatpush.xpose.msra.mxu0 0.0
  %2248 = vmatpush.xpose.msra.mxu0 0.0
  %2249 = vmatpush.xpose.msra.mxu0 0.0
  %2250 = vmatpush.xpose.msra.mxu0 0.0
  %2251 = vmatpush.xpose.msra.mxu0 0.0
  %2252 = vmatpush.xpose.msra.mxu0 0.0
  %2253 = vmatpush.xpose.msra.mxu0 %v2236
  %2254 = vmatmul.f32.gmra.mxu0 %v2234
  %v2255 = vpop.f32.mrf.mxu0
  %v2256 = vadd.f32 0.0, %v2255
  %2257 = vdwg.mxu0
  %v2258 = vmul.f32 %v2060, 0.35355338
  %v2259 = vmul.f32 %v2088, 0.35355338
  %v2260 = vmul.f32 %v2116, 0.35355338
  %v2261 = vmul.f32 %v2144, 0.35355338
  %v2262 = vmul.f32 %v2172, 0.35355338
  %v2263 = vmul.f32 %v2200, 0.35355338
  %v2264 = vmul.f32 %v2228, 0.35355338
  %v2265 = vmul.f32 %v2256, 0.35355338
  %v2266 = vsel %vm460, %v2258, -inf
  %2267 = vmax.xlane.f32.xlu0 %v2266
  %v2268 = vpop.xlane.xlu0 %2267
  %v2269 = vsel %vm460, %v2259, -inf
  %2270 = vmax.xlane.f32.xlu0 %v2269
  %v2271 = vpop.xlane.xlu0 %2270
  %v2272 = vsel %vm460, %v2260, -inf
  %2273 = vmax.xlane.f32.xlu0 %v2272
  %v2274 = vpop.xlane.xlu0 %2273
  %v2275 = vsel %vm460, %v2261, -inf
  %2276 = vmax.xlane.f32.xlu0 %v2275
  %v2277 = vpop.xlane.xlu0 %2276
  %v2278 = vsel %vm460, %v2262, -inf
  %2279 = vmax.xlane.f32.xlu0 %v2278
  %v2280 = vpop.xlane.xlu0 %2279
  %v2281 = vsel %vm460, %v2263, -inf
  %2282 = vmax.xlane.f32.xlu0 %v2281
  %v2283 = vpop.xlane.xlu0 %2282
  %v2284 = vsel %vm460, %v2264, -inf
  %2285 = vmax.xlane.f32.xlu0 %v2284
  %v2286 = vpop.xlane.xlu0 %2285
  %v2287 = vsel %vm460, %v2265, -inf
  %2288 = vmax.xlane.f32.xlu0 %v2287
  %v2289 = vpop.xlane.xlu0 %2288
  %v2290 = vsub.f32 %v2258, %v2268
  %v2291 = vsub.f32 %v2259, %v2271
  %v2292 = vsub.f32 %v2260, %v2274
  %v2293 = vsub.f32 %v2261, %v2277
  %v2294 = vsub.f32 %v2262, %v2280
  %v2295 = vsub.f32 %v2263, %v2283
  %v2296 = vsub.f32 %v2264, %v2286
  %v2297 = vsub.f32 %v2265, %v2289
  %v2298 = vmul.f32 %v2290, 1.442695
  %v2299 = vpow.pop %v2298
  %v2300 = vmul.f32 %v2291, 1.442695
  %v2301 = vpow.pop %v2300
  %v2302 = vmul.f32 %v2292, 1.442695
  %v2303 = vpow.pop %v2302
  %v2304 = vmul.f32 %v2293, 1.442695
  %v2305 = vpow.pop %v2304
  %v2306 = vmul.f32 %v2294, 1.442695
  %v2307 = vpow.pop %v2306
  %v2308 = vmul.f32 %v2295, 1.442695
  %v2309 = vpow.pop %v2308
  %v2310 = vmul.f32 %v2296, 1.442695
  %v2311 = vpow.pop %v2310
  %v2312 = vmul.f32 %v2297, 1.442695
  %v2313 = vpow.pop %v2312
  %v2314 = vsel %vm460, %v2299, 0.0
  %2315 = vadd.xlane.f32.xlu0 %v2314
  %v2316 = vpop.xlane.xlu0 %2315
  %v2317 = vsel %vm460, %v2301, 0.0
  %2318 = vadd.xlane.f32.xlu0 %v2317
  %v2319 = vpop.xlane.xlu0 %2318
  %v2320 = vsel %vm460, %v2303, 0.0
  %2321 = vadd.xlane.f32.xlu0 %v2320
  %v2322 = vpop.xlane.xlu0 %2321
  %v2323 = vsel %vm460, %v2305, 0.0
  %2324 = vadd.xlane.f32.xlu0 %v2323
  %v2325 = vpop.xlane.xlu0 %2324
  %v2326 = vsel %vm460, %v2307, 0.0
  %2327 = vadd.xlane.f32.xlu0 %v2326
  %v2328 = vpop.xlane.xlu0 %2327
  %v2329 = vsel %vm460, %v2309, 0.0
  %2330 = vadd.xlane.f32.xlu0 %v2329
  %v2331 = vpop.xlane.xlu0 %2330
  %v2332 = vsel %vm460, %v2311, 0.0
  %2333 = vadd.xlane.f32.xlu0 %v2332
  %v2334 = vpop.xlane.xlu0 %2333
  %v2335 = vsel %vm460, %v2313, 0.0
  %2336 = vadd.xlane.f32.xlu0 %v2335
  %v2337 = vpop.xlane.xlu0 %2336
  %v2338 = vrcp.pop %v2316
  %v2339 = vrcp.pop %v2319
  %v2340 = vrcp.pop %v2322
  %v2341 = vrcp.pop %v2325
  %v2342 = vrcp.pop %v2328
  %v2343 = vrcp.pop %v2331
  %v2344 = vrcp.pop %v2334
  %v2345 = vrcp.pop %v2337
  %v2346 = vmul.f32 %v2299, %v2338
  %v2347 = vmul.f32 %v2301, %v2339
  %v2348 = vmul.f32 %v2303, %v2340
  %v2349 = vmul.f32 %v2305, %v2341
  %v2350 = vmul.f32 %v2307, %v2342
  %v2351 = vmul.f32 %v2309, %v2343
  %v2352 = vmul.f32 %v2311, %v2344
  %v2353 = vmul.f32 %v2313, %v2345
  %2354 = vrot.lane.b32.xlu0 %v434, 40
  %v2355 = vpop.permute.xlu0 %2354
  %v2358 = vsel %vm460, %v2346, 0
  %2360 = vmatpush.msra.mxu0 0.0
  %2361 = vmatpush.msra.mxu0 0.0
  %2362 = vmatpush.msra.mxu0 0.0
  %2363 = vmatpush.msra.mxu0 0.0
  %2364 = vmatpush.msra.mxu0 0.0
  %2365 = vmatpush.msra.mxu0 0.0
  %2366 = vmatpush.msra.mxu0 0.0
  %2367 = vmatpush.msra.mxu0 0.0
  %2368 = vmatpush.msra.mxu0 0.0
  %2369 = vmatpush.msra.mxu0 0.0
  %2370 = vmatpush.msra.mxu0 0.0
  %2371 = vmatpush.msra.mxu0 0.0
  %2372 = vmatpush.msra.mxu0 0.0
  %2373 = vmatpush.msra.mxu0 0.0
  %2374 = vmatpush.msra.mxu0 0.0
  %2375 = vmatpush.msra.mxu0 %v2355
  %2376 = vmatmul.f32.gmra.mxu0 %v2358
  %v2377 = vpop.f32.mrf.mxu0
  %v2378 = vadd.f32 0.0, %v2377
  %2379 = vdwg.mxu0
  %2380 = vrot.lane.b32.xlu0 %v437, 40
  %v2381 = vpop.permute.xlu0 %2380
  %v2384 = vsel %vm460, %v2347, 0
  %2386 = vmatpush.msra.mxu0 0.0
  %2387 = vmatpush.msra.mxu0 0.0
  %2388 = vmatpush.msra.mxu0 0.0
  %2389 = vmatpush.msra.mxu0 0.0
  %2390 = vmatpush.msra.mxu0 0.0
  %2391 = vmatpush.msra.mxu0 0.0
  %2392 = vmatpush.msra.mxu0 0.0
  %2393 = vmatpush.msra.mxu0 0.0
  %2394 = vmatpush.msra.mxu0 0.0
  %2395 = vmatpush.msra.mxu0 0.0
  %2396 = vmatpush.msra.mxu0 0.0
  %2397 = vmatpush.msra.mxu0 0.0
  %2398 = vmatpush.msra.mxu0 0.0
  %2399 = vmatpush.msra.mxu0 0.0
  %2400 = vmatpush.msra.mxu0 0.0
  %2401 = vmatpush.msra.mxu0 %v2381
  %2402 = vmatmul.f32.gmra.mxu0 %v2384
  %v2403 = vpop.f32.mrf.mxu0
  %v2404 = vadd.f32 0.0, %v2403
  %2405 = vdwg.mxu0
  %2406 = vrot.lane.b32.xlu0 %v440, 40
  %v2407 = vpop.permute.xlu0 %2406
  %v2410 = vsel %vm460, %v2348, 0
  %2412 = vmatpush.msra.mxu0 0.0
  %2413 = vmatpush.msra.mxu0 0.0
  %2414 = vmatpush.msra.mxu0 0.0
  %2415 = vmatpush.msra.mxu0 0.0
  %2416 = vmatpush.msra.mxu0 0.0
  %2417 = vmatpush.msra.mxu0 0.0
  %2418 = vmatpush.msra.mxu0 0.0
  %2419 = vmatpush.msra.mxu0 0.0
  %2420 = vmatpush.msra.mxu0 0.0
  %2421 = vmatpush.msra.mxu0 0.0
  %2422 = vmatpush.msra.mxu0 0.0
  %2423 = vmatpush.msra.mxu0 0.0
  %2424 = vmatpush.msra.mxu0 0.0
  %2425 = vmatpush.msra.mxu0 0.0
  %2426 = vmatpush.msra.mxu0 0.0
  %2427 = vmatpush.msra.mxu0 %v2407
  %2428 = vmatmul.f32.gmra.mxu0 %v2410
  %v2429 = vpop.f32.mrf.mxu0
  %v2430 = vadd.f32 0.0, %v2429
  %2431 = vdwg.mxu0
  %2432 = vrot.lane.b32.xlu0 %v443, 40
  %v2433 = vpop.permute.xlu0 %2432
  %v2436 = vsel %vm460, %v2349, 0
  %2438 = vmatpush.msra.mxu0 0.0
  %2439 = vmatpush.msra.mxu0 0.0
  %2440 = vmatpush.msra.mxu0 0.0
  %2441 = vmatpush.msra.mxu0 0.0
  %2442 = vmatpush.msra.mxu0 0.0
  %2443 = vmatpush.msra.mxu0 0.0
  %2444 = vmatpush.msra.mxu0 0.0
  %2445 = vmatpush.msra.mxu0 0.0
  %2446 = vmatpush.msra.mxu0 0.0
  %2447 = vmatpush.msra.mxu0 0.0
  %2448 = vmatpush.msra.mxu0 0.0
  %2449 = vmatpush.msra.mxu0 0.0
  %2450 = vmatpush.msra.mxu0 0.0
  %2451 = vmatpush.msra.mxu0 0.0
  %2452 = vmatpush.msra.mxu0 0.0
  %2453 = vmatpush.msra.mxu0 %v2433
  %2454 = vmatmul.f32.gmra.mxu0 %v2436
  %v2455 = vpop.f32.mrf.mxu0
  %v2456 = vadd.f32 0.0, %v2455
  %2457 = vdwg.mxu0
  %2458 = vrot.lane.b32.xlu0 %v446, 40
  %v2459 = vpop.permute.xlu0 %2458
  %v2462 = vsel %vm460, %v2350, 0
  %2464 = vmatpush.msra.mxu0 0.0
  %2465 = vmatpush.msra.mxu0 0.0
  %2466 = vmatpush.msra.mxu0 0.0
  %2467 = vmatpush.msra.mxu0 0.0
  %2468 = vmatpush.msra.mxu0 0.0
  %2469 = vmatpush.msra.mxu0 0.0
  %2470 = vmatpush.msra.mxu0 0.0
  %2471 = vmatpush.msra.mxu0 0.0
  %2472 = vmatpush.msra.mxu0 0.0
  %2473 = vmatpush.msra.mxu0 0.0
  %2474 = vmatpush.msra.mxu0 0.0
  %2475 = vmatpush.msra.mxu0 0.0
  %2476 = vmatpush.msra.mxu0 0.0
  %2477 = vmatpush.msra.mxu0 0.0
  %2478 = vmatpush.msra.mxu0 0.0
  %2479 = vmatpush.msra.mxu0 %v2459
  %2480 = vmatmul.f32.gmra.mxu0 %v2462
  %v2481 = vpop.f32.mrf.mxu0
  %v2482 = vadd.f32 0.0, %v2481
  %2483 = vdwg.mxu0
  %2484 = vrot.lane.b32.xlu0 %v449, 40
  %v2485 = vpop.permute.xlu0 %2484
  %v2488 = vsel %vm460, %v2351, 0
  %2490 = vmatpush.msra.mxu0 0.0
  %2491 = vmatpush.msra.mxu0 0.0
  %2492 = vmatpush.msra.mxu0 0.0
  %2493 = vmatpush.msra.mxu0 0.0
  %2494 = vmatpush.msra.mxu0 0.0
  %2495 = vmatpush.msra.mxu0 0.0
  %2496 = vmatpush.msra.mxu0 0.0
  %2497 = vmatpush.msra.mxu0 0.0
  %2498 = vmatpush.msra.mxu0 0.0
  %2499 = vmatpush.msra.mxu0 0.0
  %2500 = vmatpush.msra.mxu0 0.0
  %2501 = vmatpush.msra.mxu0 0.0
  %2502 = vmatpush.msra.mxu0 0.0
  %2503 = vmatpush.msra.mxu0 0.0
  %2504 = vmatpush.msra.mxu0 0.0
  %2505 = vmatpush.msra.mxu0 %v2485
  %2506 = vmatmul.f32.gmra.mxu0 %v2488
  %v2507 = vpop.f32.mrf.mxu0
  %v2508 = vadd.f32 0.0, %v2507
  %2509 = vdwg.mxu0
  %2510 = vrot.lane.b32.xlu0 %v452, 40
  %v2511 = vpop.permute.xlu0 %2510
  %v2514 = vsel %vm460, %v2352, 0
  %2516 = vmatpush.msra.mxu0 0.0
  %2517 = vmatpush.msra.mxu0 0.0
  %2518 = vmatpush.msra.mxu0 0.0
  %2519 = vmatpush.msra.mxu0 0.0
  %2520 = vmatpush.msra.mxu0 0.0
  %2521 = vmatpush.msra.mxu0 0.0
  %2522 = vmatpush.msra.mxu0 0.0
  %2523 = vmatpush.msra.mxu0 0.0
  %2524 = vmatpush.msra.mxu0 0.0
  %2525 = vmatpush.msra.mxu0 0.0
  %2526 = vmatpush.msra.mxu0 0.0
  %2527 = vmatpush.msra.mxu0 0.0
  %2528 = vmatpush.msra.mxu0 0.0
  %2529 = vmatpush.msra.mxu0 0.0
  %2530 = vmatpush.msra.mxu0 0.0
  %2531 = vmatpush.msra.mxu0 %v2511
  %2532 = vmatmul.f32.gmra.mxu0 %v2514
  %v2533 = vpop.f32.mrf.mxu0
  %v2534 = vadd.f32 0.0, %v2533
  %2535 = vdwg.mxu0
  %2536 = vrot.lane.b32.xlu0 %v455, 40
  %v2537 = vpop.permute.xlu0 %2536
  %v2540 = vsel %vm460, %v2353, 0
  %2542 = vmatpush.msra.mxu0 0.0
  %2543 = vmatpush.msra.mxu0 0.0
  %2544 = vmatpush.msra.mxu0 0.0
  %2545 = vmatpush.msra.mxu0 0.0
  %2546 = vmatpush.msra.mxu0 0.0
  %2547 = vmatpush.msra.mxu0 0.0
  %2548 = vmatpush.msra.mxu0 0.0
  %2549 = vmatpush.msra.mxu0 0.0
  %2550 = vmatpush.msra.mxu0 0.0
  %2551 = vmatpush.msra.mxu0 0.0
  %2552 = vmatpush.msra.mxu0 0.0
  %2553 = vmatpush.msra.mxu0 0.0
  %2554 = vmatpush.msra.mxu0 0.0
  %2555 = vmatpush.msra.mxu0 0.0
  %2556 = vmatpush.msra.mxu0 0.0
  %2557 = vmatpush.msra.mxu0 %v2537
  %2558 = vmatmul.f32.gmra.mxu0 %v2540
  %v2559 = vpop.f32.mrf.mxu0
  %v2560 = vadd.f32 0.0, %v2559
  %2561 = vdwg.mxu0
  %2570 = vrot.lane.b32.xlu0 %v1322, 8
  %v2571 = vpop.permute.xlu0 %2570
  %2572 = vrot.lane.b32.xlu0 %v1348, 8
  %v2573 = vpop.permute.xlu0 %2572
  %2574 = vrot.lane.b32.xlu0 %v1374, 8
  %v2575 = vpop.permute.xlu0 %2574
  %2576 = vrot.lane.b32.xlu0 %v1400, 8
  %v2577 = vpop.permute.xlu0 %2576
  %2578 = vrot.lane.b32.xlu0 %v1426, 8
  %v2579 = vpop.permute.xlu0 %2578
  %2580 = vrot.lane.b32.xlu0 %v1452, 8
  %v2581 = vpop.permute.xlu0 %2580
  %2582 = vrot.lane.b32.xlu0 %v1478, 8
  %v2583 = vpop.permute.xlu0 %2582
  %2584 = vrot.lane.b32.xlu0 %v1504, 8
  %v2585 = vpop.permute.xlu0 %2584
  %2602 = vrot.lane.b32.xlu0 %v1850, 16
  %v2603 = vpop.permute.xlu0 %2602
  %2604 = vrot.lane.b32.xlu0 %v1876, 16
  %v2605 = vpop.permute.xlu0 %2604
  %2606 = vrot.lane.b32.xlu0 %v1902, 16
  %v2607 = vpop.permute.xlu0 %2606
  %2608 = vrot.lane.b32.xlu0 %v1928, 16
  %v2609 = vpop.permute.xlu0 %2608
  %2610 = vrot.lane.b32.xlu0 %v1954, 16
  %v2611 = vpop.permute.xlu0 %2610
  %2612 = vrot.lane.b32.xlu0 %v1980, 16
  %v2613 = vpop.permute.xlu0 %2612
  %2614 = vrot.lane.b32.xlu0 %v2006, 16
  %v2615 = vpop.permute.xlu0 %2614
  %2616 = vrot.lane.b32.xlu0 %v2032, 16
  %v2617 = vpop.permute.xlu0 %2616
  %2634 = vrot.lane.b32.xlu0 %v2378, 24
  %v2635 = vpop.permute.xlu0 %2634
  %2636 = vrot.lane.b32.xlu0 %v2404, 24
  %v2637 = vpop.permute.xlu0 %2636
  %2638 = vrot.lane.b32.xlu0 %v2430, 24
  %v2639 = vpop.permute.xlu0 %2638
  %2640 = vrot.lane.b32.xlu0 %v2456, 24
  %v2641 = vpop.permute.xlu0 %2640
  %2642 = vrot.lane.b32.xlu0 %v2482, 24
  %v2643 = vpop.permute.xlu0 %2642
  %2644 = vrot.lane.b32.xlu0 %v2508, 24
  %v2645 = vpop.permute.xlu0 %2644
  %2646 = vrot.lane.b32.xlu0 %v2534, 24
  %v2647 = vpop.permute.xlu0 %2646
  %2648 = vrot.lane.b32.xlu0 %v2560, 24
  %v2649 = vpop.permute.xlu0 %2648
  %v2658 = vsel %vm460, %v794, %v2571
  %v2659 = vsel %vm460, %v820, %v2573
  %v2660 = vsel %vm460, %v846, %v2575
  %v2661 = vsel %vm460, %v872, %v2577
  %v2662 = vsel %vm460, %v898, %v2579
  %v2663 = vsel %vm460, %v924, %v2581
  %v2664 = vsel %vm460, %v950, %v2583
  %v2665 = vsel %vm460, %v976, %v2585
  %vm2666 = vcmask 130048
  %v2667 = vsel %vm2666, %v2658, %v2603
  %v2668 = vsel %vm2666, %v2659, %v2605
  %v2669 = vsel %vm2666, %v2660, %v2607
  %v2670 = vsel %vm2666, %v2661, %v2609
  %v2671 = vsel %vm2666, %v2662, %v2611
  %v2672 = vsel %vm2666, %v2663, %v2613
  %v2673 = vsel %vm2666, %v2664, %v2615
  %v2674 = vsel %vm2666, %v2665, %v2617
  %vm2675 = vcmask 195584
  %v2676 = vsel %vm2675, %v2667, %v2635
  %v2677 = vsel %vm2675, %v2668, %v2637
  %v2678 = vsel %vm2675, %v2669, %v2639
  %v2679 = vsel %vm2675, %v2670, %v2641
  %v2680 = vsel %vm2675, %v2671, %v2643
  %v2681 = vsel %vm2675, %v2672, %v2645
  %v2682 = vsel %vm2675, %v2673, %v2647
  %v2683 = vsel %vm2675, %v2674, %v2649
  %v2684 = vld [vmem:[%s7] sm:$0xff]
  %v2685 = vld [vmem:[%s7 + $0x8] sm:$0xff]
  %v2686 = vld [vmem:[%s7 + $0x10] sm:$0xff]
  %v2687 = vld [vmem:[%s7 + $0x18] sm:$0xff]
  %v2688 = vld [vmem:[%s9] sm:$0x1]
  %v2690 = vperm.slane %v2688, 0
  %v2693 = vsel %vm391, %v2676, 0
  %v2696 = vsel %vm391, %v2677, 0
  %v2699 = vsel %vm391, %v2678, 0
  %v2702 = vsel %vm391, %v2679, 0
  %v2705 = vsel %vm391, %v2680, 0
  %v2708 = vsel %vm391, %v2681, 0
  %v2711 = vsel %vm391, %v2682, 0
  %v2714 = vsel %vm391, %v2683, 0
  %2716 = vmatpush.msra.mxu0 0.0
  %2717 = vmatpush.msra.mxu0 0.0
  %2718 = vmatpush.msra.mxu0 0.0
  %2719 = vmatpush.msra.mxu0 0.0
  %2720 = vmatpush.msra.mxu0 0.0
  %2721 = vmatpush.msra.mxu0 0.0
  %2722 = vmatpush.msra.mxu0 0.0
  %2723 = vmatpush.msra.mxu0 0.0
  %2724 = vmatpush.msra.mxu0 0.0
  %2725 = vmatpush.msra.mxu0 0.0
  %2726 = vmatpush.msra.mxu0 0.0
  %2727 = vmatpush.msra.mxu0 0.0
  %2728 = vmatpush.msra.mxu0 %v2687
  %2729 = vmatpush.msra.mxu0 %v2686
  %2730 = vmatpush.msra.mxu0 %v2685
  %2731 = vmatpush.msra.mxu0 %v2684
  %2732 = vmatmul.f32.gmra.mxu0 %v2693
  %v2733 = vpop.f32.mrf.mxu0
  %v2734 = vadd.f32 %v2690, %v2733
  %2735 = vmatmul.f32.gmra.mxu0 %v2696
  %v2736 = vpop.f32.mrf.mxu0
  %v2737 = vadd.f32 %v2690, %v2736
  %2738 = vmatmul.f32.gmra.mxu0 %v2699
  %v2739 = vpop.f32.mrf.mxu0
  %v2740 = vadd.f32 %v2690, %v2739
  %2741 = vmatmul.f32.gmra.mxu0 %v2702
  %v2742 = vpop.f32.mrf.mxu0
  %v2743 = vadd.f32 %v2690, %v2742
  %2744 = vmatmul.f32.gmra.mxu0 %v2705
  %v2745 = vpop.f32.mrf.mxu0
  %v2746 = vadd.f32 %v2690, %v2745
  %2747 = vmatmul.f32.gmra.mxu0 %v2708
  %v2748 = vpop.f32.mrf.mxu0
  %v2749 = vadd.f32 %v2690, %v2748
  %2750 = vmatmul.f32.gmra.mxu0 %v2711
  %v2751 = vpop.f32.mrf.mxu0
  %v2752 = vadd.f32 %v2690, %v2751
  %2753 = vmatmul.f32.gmra.mxu0 %v2714
  %v2754 = vpop.f32.mrf.mxu0
  %v2755 = vadd.f32 %v2690, %v2754
  %2756 = vdwg.mxu0
  %v2757 = vadd.f32 %v2734, %v379
  %v2758 = vadd.f32 %v2737, %v380
  %v2759 = vadd.f32 %v2740, %v381
  %v2760 = vadd.f32 %v2743, %v382
  %v2761 = vadd.f32 %v2746, %v383
  %v2762 = vadd.f32 %v2749, %v384
  %v2763 = vadd.f32 %v2752, %v385
  %v2764 = vadd.f32 %v2755, %v386
  %v2765 = vld [vmem:[%s11] sm:$0x1]
  %v2766 = vld [vmem:[%s13] sm:$0x1]
  %v2767 = vsel %vm391, %v2757, 0.0
  %2768 = vadd.xlane.f32.xlu0 %v2767
  %v2769 = vpop.xlane.xlu0 %2768
  %v2770 = vsel %vm391, %v2758, 0.0
  %2771 = vadd.xlane.f32.xlu0 %v2770
  %v2772 = vpop.xlane.xlu0 %2771
  %v2773 = vsel %vm391, %v2759, 0.0
  %2774 = vadd.xlane.f32.xlu0 %v2773
  %v2775 = vpop.xlane.xlu0 %2774
  %v2776 = vsel %vm391, %v2760, 0.0
  %2777 = vadd.xlane.f32.xlu0 %v2776
  %v2778 = vpop.xlane.xlu0 %2777
  %v2779 = vsel %vm391, %v2761, 0.0
  %2780 = vadd.xlane.f32.xlu0 %v2779
  %v2781 = vpop.xlane.xlu0 %2780
  %v2782 = vsel %vm391, %v2762, 0.0
  %2783 = vadd.xlane.f32.xlu0 %v2782
  %v2784 = vpop.xlane.xlu0 %2783
  %v2785 = vsel %vm391, %v2763, 0.0
  %2786 = vadd.xlane.f32.xlu0 %v2785
  %v2787 = vpop.xlane.xlu0 %2786
  %v2788 = vsel %vm391, %v2764, 0.0
  %2789 = vadd.xlane.f32.xlu0 %v2788
  %v2790 = vpop.xlane.xlu0 %2789
  %v2791 = vrcp.pop 32.0
  %v2792 = vmul.f32 32.0, %v2791
  %v2793 = vsub.f32 1.0, %v2792
  %v2794 = vmul.f32 %v2791, %v2793
  %v2795 = vadd.f32 %v2791, %v2794
  %vm2796 = vweird.f32 %v2791
  %v2797 = vsel %vm2796, %v2791, %v2795
  %v2798 = vmul.f32 %v2769, %v2797
  %v2799 = vmul.f32 %v2772, %v2797
  %v2800 = vmul.f32 %v2775, %v2797
  %v2801 = vmul.f32 %v2778, %v2797
  %v2802 = vmul.f32 %v2781, %v2797
  %v2803 = vmul.f32 %v2784, %v2797
  %v2804 = vmul.f32 %v2787, %v2797
  %v2805 = vmul.f32 %v2790, %v2797
  %v2806 = vsub.f32 %v2757, %v2798
  %v2807 = vsub.f32 %v2758, %v2799
  %v2808 = vsub.f32 %v2759, %v2800
  %v2809 = vsub.f32 %v2760, %v2801
  %v2810 = vsub.f32 %v2761, %v2802
  %v2811 = vsub.f32 %v2762, %v2803
  %v2812 = vsub.f32 %v2763, %v2804
  %v2813 = vsub.f32 %v2764, %v2805
  %v2814 = vmul.f32 %v2806, %v2806
  %v2815 = vmul.f32 %v2807, %v2807
  %v2816 = vmul.f32 %v2808, %v2808
  %v2817 = vmul.f32 %v2809, %v2809
  %v2818 = vmul.f32 %v2810, %v2810
  %v2819 = vmul.f32 %v2811, %v2811
  %v2820 = vmul.f32 %v2812, %v2812
  %v2821 = vmul.f32 %v2813, %v2813
  %v2822 = vsel %vm391, %v2814, 0.0
  %2823 = vadd.xlane.f32.xlu0 %v2822
  %v2824 = vpop.xlane.xlu0 %2823
  %v2825 = vsel %vm391, %v2815, 0.0
  %2826 = vadd.xlane.f32.xlu0 %v2825
  %v2827 = vpop.xlane.xlu0 %2826
  %v2828 = vsel %vm391, %v2816, 0.0
  %2829 = vadd.xlane.f32.xlu0 %v2828
  %v2830 = vpop.xlane.xlu0 %2829
  %v2831 = vsel %vm391, %v2817, 0.0
  %2832 = vadd.xlane.f32.xlu0 %v2831
  %v2833 = vpop.xlane.xlu0 %2832
  %v2834 = vsel %vm391, %v2818, 0.0
  %2835 = vadd.xlane.f32.xlu0 %v2834
  %v2836 = vpop.xlane.xlu0 %2835
  %v2837 = vsel %vm391, %v2819, 0.0
  %2838 = vadd.xlane.f32.xlu0 %v2837
  %v2839 = vpop.xlane.xlu0 %2838
  %v2840 = vsel %vm391, %v2820, 0.0
  %2841 = vadd.xlane.f32.xlu0 %v2840
  %v2842 = vpop.xlane.xlu0 %2841
  %v2843 = vsel %vm391, %v2821, 0.0
  %2844 = vadd.xlane.f32.xlu0 %v2843
  %v2845 = vpop.xlane.xlu0 %2844
  %v2846 = vmul.f32 %v2824, %v2797
  %v2847 = vmul.f32 %v2827, %v2797
  %v2848 = vmul.f32 %v2830, %v2797
  %v2849 = vmul.f32 %v2833, %v2797
  %v2850 = vmul.f32 %v2836, %v2797
  %v2851 = vmul.f32 %v2839, %v2797
  %v2852 = vmul.f32 %v2842, %v2797
  %v2853 = vmul.f32 %v2845, %v2797
  %v2854 = vadd.f32 %v2846, 1e-05
  %v2855 = vadd.f32 %v2847, 1e-05
  %v2856 = vadd.f32 %v2848, 1e-05
  %v2857 = vadd.f32 %v2849, 1e-05
  %v2858 = vadd.f32 %v2850, 1e-05
  %v2859 = vadd.f32 %v2851, 1e-05
  %v2860 = vadd.f32 %v2852, 1e-05
  %v2861 = vadd.f32 %v2853, 1e-05
  %v2862 = vrsqrt.pop %v2854
  %v2863 = vmul.f32 %v2862, %v2854
  %v2864 = vmul.f32 %v2863, %v2862
  %v2865 = vmul.f32 0.5, %v2864
  %v2866 = vsub.f32 1.5, %v2865
  %v2867 = vmul.f32 %v2862, %v2866
  %vm2868 = vweird.f32 %v2854
  %vm2869 = vweird.f32 %v2862
  %vm2870 = vmor %vm2868, %vm2869
  %v2871 = vsel %vm2870, %v2862, %v2867
  %v2872 = vrsqrt.pop %v2855
  %v2873 = vmul.f32 %v2872, %v2855
  %v2874 = vmul.f32 %v2873, %v2872
  %v2875 = vmul.f32 0.5, %v2874
  %v2876 = vsub.f32 1.5, %v2875
  %v2877 = vmul.f32 %v2872, %v2876
  %vm2878 = vweird.f32 %v2855
  %vm2879 = vweird.f32 %v2872
  %vm2880 = vmor %vm2878, %vm2879
  %v2881 = vsel %vm2880, %v2872, %v2877
  %v2882 = vrsqrt.pop %v2856
  %v2883 = vmul.f32 %v2882, %v2856
  %v2884 = vmul.f32 %v2883, %v2882
  %v2885 = vmul.f32 0.5, %v2884
  %v2886 = vsub.f32 1.5, %v2885
  %v2887 = vmul.f32 %v2882, %v2886
  %vm2888 = vweird.f32 %v2856
  %vm2889 = vweird.f32 %v2882
  %vm2890 = vmor %vm2888, %vm2889
  %v2891 = vsel %vm2890, %v2882, %v2887
  %v2892 = vrsqrt.pop %v2857
  %v2893 = vmul.f32 %v2892, %v2857
  %v2894 = vmul.f32 %v2893, %v2892
  %v2895 = vmul.f32 0.5, %v2894
  %v2896 = vsub.f32 1.5, %v2895
  %v2897 = vmul.f32 %v2892, %v2896
  %vm2898 = vweird.f32 %v2857
  %vm2899 = vweird.f32 %v2892
  %vm2900 = vmor %vm2898, %vm2899
  %v2901 = vsel %vm2900, %v2892, %v2897
  %v2902 = vrsqrt.pop %v2858
  %v2903 = vmul.f32 %v2902, %v2858
  %v2904 = vmul.f32 %v2903, %v2902
  %v2905 = vmul.f32 0.5, %v2904
  %v2906 = vsub.f32 1.5, %v2905
  %v2907 = vmul.f32 %v2902, %v2906
  %vm2908 = vweird.f32 %v2858
  %vm2909 = vweird.f32 %v2902
  %vm2910 = vmor %vm2908, %vm2909
  %v2911 = vsel %vm2910, %v2902, %v2907
  %v2912 = vrsqrt.pop %v2859
  %v2913 = vmul.f32 %v2912, %v2859
  %v2914 = vmul.f32 %v2913, %v2912
  %v2915 = vmul.f32 0.5, %v2914
  %v2916 = vsub.f32 1.5, %v2915
  %v2917 = vmul.f32 %v2912, %v2916
  %vm2918 = vweird.f32 %v2859
  %vm2919 = vweird.f32 %v2912
  %vm2920 = vmor %vm2918, %vm2919
  %v2921 = vsel %vm2920, %v2912, %v2917
  %v2922 = vrsqrt.pop %v2860
  %v2923 = vmul.f32 %v2922, %v2860
  %v2924 = vmul.f32 %v2923, %v2922
  %v2925 = vmul.f32 0.5, %v2924
  %v2926 = vsub.f32 1.5, %v2925
  %v2927 = vmul.f32 %v2922, %v2926
  %vm2928 = vweird.f32 %v2860
  %vm2929 = vweird.f32 %v2922
  %vm2930 = vmor %vm2928, %vm2929
  %v2931 = vsel %vm2930, %v2922, %v2927
  %v2932 = vrsqrt.pop %v2861
  %v2933 = vmul.f32 %v2932, %v2861
  %v2934 = vmul.f32 %v2933, %v2932
  %v2935 = vmul.f32 0.5, %v2934
  %v2936 = vsub.f32 1.5, %v2935
  %v2937 = vmul.f32 %v2932, %v2936
  %vm2938 = vweird.f32 %v2861
  %vm2939 = vweird.f32 %v2932
  %vm2940 = vmor %vm2938, %vm2939
  %v2941 = vsel %vm2940, %v2932, %v2937
  %v2942 = vmul.f32 %v2806, %v2871
  %v2943 = vmul.f32 %v2807, %v2881
  %v2944 = vmul.f32 %v2808, %v2891
  %v2945 = vmul.f32 %v2809, %v2901
  %v2946 = vmul.f32 %v2810, %v2911
  %v2947 = vmul.f32 %v2811, %v2921
  %v2948 = vmul.f32 %v2812, %v2931
  %v2949 = vmul.f32 %v2813, %v2941
  %v2951 = vperm.slane %v2765, 0
  %v2953 = vmul.f32 %v2942, %v2951
  %v2954 = vmul.f32 %v2943, %v2951
  %v2955 = vmul.f32 %v2944, %v2951
  %v2956 = vmul.f32 %v2945, %v2951
  %v2957 = vmul.f32 %v2946, %v2951
  %v2958 = vmul.f32 %v2947, %v2951
  %v2959 = vmul.f32 %v2948, %v2951
  %v2960 = vmul.f32 %v2949, %v2951
  %v2962 = vperm.slane %v2766, 0
  %v2964 = vadd.f32 %v2953, %v2962
  %v2965 = vadd.f32 %v2954, %v2962
  %v2966 = vadd.f32 %v2955, %v2962
  %v2967 = vadd.f32 %v2956, %v2962
  %v2968 = vadd.f32 %v2957, %v2962
  %v2969 = vadd.f32 %v2958, %v2962
  %v2970 = vadd.f32 %v2959, %v2962
  %v2971 = vadd.f32 %v2960, %v2962
  %v2972 = vld [vmem:[%s17] sm:$0x1]
  %v2973 = vld [vmem:[%s15] sm:$0xff]
  %v2974 = vld [vmem:[%s15 + $0x8] sm:$0xff]
  %v2975 = vld [vmem:[%s15 + $0x10] sm:$0xff]
  %v2976 = vld [vmem:[%s15 + $0x18] sm:$0xff]
  %v2978 = vperm.slane %v2972, 0
  %v2981 = vsel %vm391, %v2964, 0
  %v2984 = vsel %vm391, %v2965, 0
  %v2987 = vsel %vm391, %v2966, 0
  %v2990 = vsel %vm391, %v2967, 0
  %v2993 = vsel %vm391, %v2968, 0
  %v2996 = vsel %vm391, %v2969, 0
  %v2999 = vsel %vm391, %v2970, 0
  %v3002 = vsel %vm391, %v2971, 0
  %3004 = vmatpush.msra.mxu0 0.0
  %3005 = vmatpush.msra.mxu0 0.0
  %3006 = vmatpush.msra.mxu0 0.0
  %3007 = vmatpush.msra.mxu0 0.0
  %3008 = vmatpush.msra.mxu0 0.0
  %3009 = vmatpush.msra.mxu0 0.0
  %3010 = vmatpush.msra.mxu0 0.0
  %3011 = vmatpush.msra.mxu0 0.0
  %3012 = vmatpush.msra.mxu0 0.0
  %3013 = vmatpush.msra.mxu0 0.0
  %3014 = vmatpush.msra.mxu0 0.0
  %3015 = vmatpush.msra.mxu0 0.0
  %3016 = vmatpush.msra.mxu0 %v2976
  %3017 = vmatpush.msra.mxu0 %v2975
  %3018 = vmatpush.msra.mxu0 %v2974
  %3019 = vmatpush.msra.mxu0 %v2973
  %3020 = vmatmul.f32.gmra.mxu0 %v2981
  %v3021 = vpop.f32.mrf.mxu0
  %v3022 = vadd.f32 %v2978, %v3021
  %3023 = vmatmul.f32.gmra.mxu0 %v2984
  %v3024 = vpop.f32.mrf.mxu0
  %v3025 = vadd.f32 %v2978, %v3024
  %3026 = vmatmul.f32.gmra.mxu0 %v2987
  %v3027 = vpop.f32.mrf.mxu0
  %v3028 = vadd.f32 %v2978, %v3027
  %3029 = vmatmul.f32.gmra.mxu0 %v2990
  %v3030 = vpop.f32.mrf.mxu0
  %v3031 = vadd.f32 %v2978, %v3030
  %3032 = vmatmul.f32.gmra.mxu0 %v2993
  %v3033 = vpop.f32.mrf.mxu0
  %v3034 = vadd.f32 %v2978, %v3033
  %3035 = vmatmul.f32.gmra.mxu0 %v2996
  %v3036 = vpop.f32.mrf.mxu0
  %v3037 = vadd.f32 %v2978, %v3036
  %3038 = vmatmul.f32.gmra.mxu0 %v2999
  %v3039 = vpop.f32.mrf.mxu0
  %v3040 = vadd.f32 %v2978, %v3039
  %3041 = vmatmul.f32.gmra.mxu0 %v3002
  %v3042 = vpop.f32.mrf.mxu0
  %v3043 = vadd.f32 %v2978, %v3042
  %3044 = vdwg.mxu0
  %v3045 = vmax.f32 %v3022, 0.0
  %v3046 = vmax.f32 %v3025, 0.0
  %v3047 = vmax.f32 %v3028, 0.0
  %v3048 = vmax.f32 %v3031, 0.0
  %v3049 = vmax.f32 %v3034, 0.0
  %v3050 = vmax.f32 %v3037, 0.0
  %v3051 = vmax.f32 %v3040, 0.0
  %v3052 = vmax.f32 %v3043, 0.0
  %v3053 = vld [vmem:[%s19] sm:$0xff]
  %v3054 = vld [vmem:[%s19 + $0x8] sm:$0xff]
  %v3055 = vld [vmem:[%s19 + $0x10] sm:$0xff]
  %v3056 = vld [vmem:[%s19 + $0x18] sm:$0xff]
  %v3057 = vld [vmem:[%s19 + $0x20] sm:$0xff]
  %v3058 = vld [vmem:[%s19 + $0x28] sm:$0xff]
  %v3059 = vld [vmem:[%s19 + $0x30] sm:$0xff]
  %v3060 = vld [vmem:[%s19 + $0x38] sm:$0xff]
  %v3061 = vld [vmem:[%s19 + $0x40] sm:$0xff]
  %v3062 = vld [vmem:[%s19 + $0x48] sm:$0xff]
  %v3063 = vld [vmem:[%s19 + $0x50] sm:$0xff]
  %v3064 = vld [vmem:[%s19 + $0x58] sm:$0xff]
  %v3065 = vld [vmem:[%s19 + $0x60] sm:$0xff]
  %v3066 = vld [vmem:[%s19 + $0x68] sm:$0xff]
  %v3067 = vld [vmem:[%s19 + $0x70] sm:$0xff]
  %v3068 = vld [vmem:[%s19 + $0x78] sm:$0xff]
  %v3069 = vld [vmem:[%s21] sm:$0x1]
  %v3071 = vperm.slane %v3069, 0
  %3073 = vmatpush.msra.mxu0 %v3068
  %3074 = vmatpush.msra.mxu0 %v3067
  %3075 = vmatpush.msra.mxu0 %v3066
  %3076 = vmatpush.msra.mxu0 %v3065
  %3077 = vmatpush.msra.mxu0 %v3064
  %3078 = vmatpush.msra.mxu0 %v3063
  %3079 = vmatpush.msra.mxu0 %v3062
  %3080 = vmatpush.msra.mxu0 %v3061
  %3081 = vmatpush.msra.mxu0 %v3060
  %3082 = vmatpush.msra.mxu0 %v3059
  %3083 = vmatpush.msra.mxu0 %v3058
  %3084 = vmatpush.msra.mxu0 %v3057
  %3085 = vmatpush.msra.mxu0 %v3056
  %3086 = vmatpush.msra.mxu0 %v3055
  %3087 = vmatpush.msra.mxu0 %v3054
  %3088 = vmatpush.msra.mxu0 %v3053
  %3089 = vmatmul.f32.gmra.mxu0 %v3045
  %v3090 = vpop.f32.mrf.mxu0
  %v3091 = vadd.f32 %v3071, %v3090
  %3092 = vmatmul.f32.gmra.mxu0 %v3046
  %v3093 = vpop.f32.mrf.mxu0
  %v3094 = vadd.f32 %v3071, %v3093
  %3095 = vmatmul.f32.gmra.mxu0 %v3047
  %v3096 = vpop.f32.mrf.mxu0
  %v3097 = vadd.f32 %v3071, %v3096
  %3098 = vmatmul.f32.gmra.mxu0 %v3048
  %v3099 = vpop.f32.mrf.mxu0
  %v3100 = vadd.f32 %v3071, %v3099
  %3101 = vmatmul.f32.gmra.mxu0 %v3049
  %v3102 = vpop.f32.mrf.mxu0
  %v3103 = vadd.f32 %v3071, %v3102
  %3104 = vmatmul.f32.gmra.mxu0 %v3050
  %v3105 = vpop.f32.mrf.mxu0
  %v3106 = vadd.f32 %v3071, %v3105
  %3107 = vmatmul.f32.gmra.mxu0 %v3051
  %v3108 = vpop.f32.mrf.mxu0
  %v3109 = vadd.f32 %v3071, %v3108
  %3110 = vmatmul.f32.gmra.mxu0 %v3052
  %v3111 = vpop.f32.mrf.mxu0
  %v3112 = vadd.f32 %v3071, %v3111
  %3113 = vdwg.mxu0
  %v3114 = vadd.f32 %v3091, %v2964
  %v3115 = vadd.f32 %v3094, %v2965
  %v3116 = vadd.f32 %v3097, %v2966
  %v3117 = vadd.f32 %v3100, %v2967
  %v3118 = vadd.f32 %v3103, %v2968
  %v3119 = vadd.f32 %v3106, %v2969
  %v3120 = vadd.f32 %v3109, %v2970
  %v3121 = vadd.f32 %v3112, %v2971
  %v3122 = vld [vmem:[%s23] sm:$0x1]
  %v3123 = vld [vmem:[%s25] sm:$0x1]
  %v3124 = vsel %vm391, %v3114, 0.0
  %3125 = vadd.xlane.f32.xlu0 %v3124
  %v3126 = vpop.xlane.xlu0 %3125
  %v3127 = vsel %vm391, %v3115, 0.0
  %3128 = vadd.xlane.f32.xlu0 %v3127
  %v3129 = vpop.xlane.xlu0 %3128
  %v3130 = vsel %vm391, %v3116, 0.0
  %3131 = vadd.xlane.f32.xlu0 %v3130
  %v3132 = vpop.xlane.xlu0 %3131
  %v3133 = vsel %vm391, %v3117, 0.0
  %3134 = vadd.xlane.f32.xlu0 %v3133
  %v3135 = vpop.xlane.xlu0 %3134
  %v3136 = vsel %vm391, %v3118, 0.0
  %3137 = vadd.xlane.f32.xlu0 %v3136
  %v3138 = vpop.xlane.xlu0 %3137
  %v3139 = vsel %vm391, %v3119, 0.0
  %3140 = vadd.xlane.f32.xlu0 %v3139
  %v3141 = vpop.xlane.xlu0 %3140
  %v3142 = vsel %vm391, %v3120, 0.0
  %3143 = vadd.xlane.f32.xlu0 %v3142
  %v3144 = vpop.xlane.xlu0 %3143
  %v3145 = vsel %vm391, %v3121, 0.0
  %3146 = vadd.xlane.f32.xlu0 %v3145
  %v3147 = vpop.xlane.xlu0 %3146
  %v3148 = vmul.f32 %v3126, %v2797
  %v3149 = vmul.f32 %v3129, %v2797
  %v3150 = vmul.f32 %v3132, %v2797
  %v3151 = vmul.f32 %v3135, %v2797
  %v3152 = vmul.f32 %v3138, %v2797
  %v3153 = vmul.f32 %v3141, %v2797
  %v3154 = vmul.f32 %v3144, %v2797
  %v3155 = vmul.f32 %v3147, %v2797
  %v3156 = vsub.f32 %v3114, %v3148
  %v3157 = vsub.f32 %v3115, %v3149
  %v3158 = vsub.f32 %v3116, %v3150
  %v3159 = vsub.f32 %v3117, %v3151
  %v3160 = vsub.f32 %v3118, %v3152
  %v3161 = vsub.f32 %v3119, %v3153
  %v3162 = vsub.f32 %v3120, %v3154
  %v3163 = vsub.f32 %v3121, %v3155
  %v3164 = vmul.f32 %v3156, %v3156
  %v3165 = vmul.f32 %v3157, %v3157
  %v3166 = vmul.f32 %v3158, %v3158
  %v3167 = vmul.f32 %v3159, %v3159
  %v3168 = vmul.f32 %v3160, %v3160
  %v3169 = vmul.f32 %v3161, %v3161
  %v3170 = vmul.f32 %v3162, %v3162
  %v3171 = vmul.f32 %v3163, %v3163
  %v3172 = vsel %vm391, %v3164, 0.0
  %3173 = vadd.xlane.f32.xlu0 %v3172
  %v3174 = vpop.xlane.xlu0 %3173
  %v3175 = vsel %vm391, %v3165, 0.0
  %3176 = vadd.xlane.f32.xlu0 %v3175
  %v3177 = vpop.xlane.xlu0 %3176
  %v3178 = vsel %vm391, %v3166, 0.0
  %3179 = vadd.xlane.f32.xlu0 %v3178
  %v3180 = vpop.xlane.xlu0 %3179
  %v3181 = vsel %vm391, %v3167, 0.0
  %3182 = vadd.xlane.f32.xlu0 %v3181
  %v3183 = vpop.xlane.xlu0 %3182
  %v3184 = vsel %vm391, %v3168, 0.0
  %3185 = vadd.xlane.f32.xlu0 %v3184
  %v3186 = vpop.xlane.xlu0 %3185
  %v3187 = vsel %vm391, %v3169, 0.0
  %3188 = vadd.xlane.f32.xlu0 %v3187
  %v3189 = vpop.xlane.xlu0 %3188
  %v3190 = vsel %vm391, %v3170, 0.0
  %3191 = vadd.xlane.f32.xlu0 %v3190
  %v3192 = vpop.xlane.xlu0 %3191
  %v3193 = vsel %vm391, %v3171, 0.0
  %3194 = vadd.xlane.f32.xlu0 %v3193
  %v3195 = vpop.xlane.xlu0 %3194
  %v3196 = vmul.f32 %v3174, %v2797
  %v3197 = vmul.f32 %v3177, %v2797
  %v3198 = vmul.f32 %v3180, %v2797
  %v3199 = vmul.f32 %v3183, %v2797
  %v3200 = vmul.f32 %v3186, %v2797
  %v3201 = vmul.f32 %v3189, %v2797
  %v3202 = vmul.f32 %v3192, %v2797
  %v3203 = vmul.f32 %v3195, %v2797
  %v3204 = vadd.f32 %v3196, 1e-05
  %v3205 = vadd.f32 %v3197, 1e-05
  %v3206 = vadd.f32 %v3198, 1e-05
  %v3207 = vadd.f32 %v3199, 1e-05
  %v3208 = vadd.f32 %v3200, 1e-05
  %v3209 = vadd.f32 %v3201, 1e-05
  %v3210 = vadd.f32 %v3202, 1e-05
  %v3211 = vadd.f32 %v3203, 1e-05
  %v3212 = vrsqrt.pop %v3204
  %v3213 = vmul.f32 %v3212, %v3204
  %v3214 = vmul.f32 %v3213, %v3212
  %v3215 = vmul.f32 0.5, %v3214
  %v3216 = vsub.f32 1.5, %v3215
  %v3217 = vmul.f32 %v3212, %v3216
  %vm3218 = vweird.f32 %v3204
  %vm3219 = vweird.f32 %v3212
  %vm3220 = vmor %vm3218, %vm3219
  %v3221 = vsel %vm3220, %v3212, %v3217
  %v3222 = vrsqrt.pop %v3205
  %v3223 = vmul.f32 %v3222, %v3205
  %v3224 = vmul.f32 %v3223, %v3222
  %v3225 = vmul.f32 0.5, %v3224
  %v3226 = vsub.f32 1.5, %v3225
  %v3227 = vmul.f32 %v3222, %v3226
  %vm3228 = vweird.f32 %v3205
  %vm3229 = vweird.f32 %v3222
  %vm3230 = vmor %vm3228, %vm3229
  %v3231 = vsel %vm3230, %v3222, %v3227
  %v3232 = vrsqrt.pop %v3206
  %v3233 = vmul.f32 %v3232, %v3206
  %v3234 = vmul.f32 %v3233, %v3232
  %v3235 = vmul.f32 0.5, %v3234
  %v3236 = vsub.f32 1.5, %v3235
  %v3237 = vmul.f32 %v3232, %v3236
  %vm3238 = vweird.f32 %v3206
  %vm3239 = vweird.f32 %v3232
  %vm3240 = vmor %vm3238, %vm3239
  %v3241 = vsel %vm3240, %v3232, %v3237
  %v3242 = vrsqrt.pop %v3207
  %v3243 = vmul.f32 %v3242, %v3207
  %v3244 = vmul.f32 %v3243, %v3242
  %v3245 = vmul.f32 0.5, %v3244
  %v3246 = vsub.f32 1.5, %v3245
  %v3247 = vmul.f32 %v3242, %v3246
  %vm3248 = vweird.f32 %v3207
  %vm3249 = vweird.f32 %v3242
  %vm3250 = vmor %vm3248, %vm3249
  %v3251 = vsel %vm3250, %v3242, %v3247
  %v3252 = vrsqrt.pop %v3208
  %v3253 = vmul.f32 %v3252, %v3208
  %v3254 = vmul.f32 %v3253, %v3252
  %v3255 = vmul.f32 0.5, %v3254
  %v3256 = vsub.f32 1.5, %v3255
  %v3257 = vmul.f32 %v3252, %v3256
  %vm3258 = vweird.f32 %v3208
  %vm3259 = vweird.f32 %v3252
  %vm3260 = vmor %vm3258, %vm3259
  %v3261 = vsel %vm3260, %v3252, %v3257
  %v3262 = vrsqrt.pop %v3209
  %v3263 = vmul.f32 %v3262, %v3209
  %v3264 = vmul.f32 %v3263, %v3262
  %v3265 = vmul.f32 0.5, %v3264
  %v3266 = vsub.f32 1.5, %v3265
  %v3267 = vmul.f32 %v3262, %v3266
  %vm3268 = vweird.f32 %v3209
  %vm3269 = vweird.f32 %v3262
  %vm3270 = vmor %vm3268, %vm3269
  %v3271 = vsel %vm3270, %v3262, %v3267
  %v3272 = vrsqrt.pop %v3210
  %v3273 = vmul.f32 %v3272, %v3210
  %v3274 = vmul.f32 %v3273, %v3272
  %v3275 = vmul.f32 0.5, %v3274
  %v3276 = vsub.f32 1.5, %v3275
  %v3277 = vmul.f32 %v3272, %v3276
  %vm3278 = vweird.f32 %v3210
  %vm3279 = vweird.f32 %v3272
  %vm3280 = vmor %vm3278, %vm3279
  %v3281 = vsel %vm3280, %v3272, %v3277
  %v3282 = vrsqrt.pop %v3211
  %v3283 = vmul.f32 %v3282, %v3211
  %v3284 = vmul.f32 %v3283, %v3282
  %v3285 = vmul.f32 0.5, %v3284
  %v3286 = vsub.f32 1.5, %v3285
  %v3287 = vmul.f32 %v3282, %v3286
  %vm3288 = vweird.f32 %v3211
  %vm3289 = vweird.f32 %v3282
  %vm3290 = vmor %vm3288, %vm3289
  %v3291 = vsel %vm3290, %v3282, %v3287
  %v3292 = vmul.f32 %v3156, %v3221
  %v3293 = vmul.f32 %v3157, %v3231
  %v3294 = vmul.f32 %v3158, %v3241
  %v3295 = vmul.f32 %v3159, %v3251
  %v3296 = vmul.f32 %v3160, %v3261
  %v3297 = vmul.f32 %v3161, %v3271
  %v3298 = vmul.f32 %v3162, %v3281
  %v3299 = vmul.f32 %v3163, %v3291
  %v3301 = vperm.slane %v3122, 0
  %v3303 = vmul.f32 %v3292, %v3301
  %v3304 = vmul.f32 %v3293, %v3301
  %v3305 = vmul.f32 %v3294, %v3301
  %v3306 = vmul.f32 %v3295, %v3301
  %v3307 = vmul.f32 %v3296, %v3301
  %v3308 = vmul.f32 %v3297, %v3301
  %v3309 = vmul.f32 %v3298, %v3301
  %v3310 = vmul.f32 %v3299, %v3301
  %v3312 = vperm.slane %v3123, 0
  %v3314 = vadd.f32 %v3303, %v3312
  %v3315 = vadd.f32 %v3304, %v3312
  %v3316 = vadd.f32 %v3305, %v3312
  %v3317 = vadd.f32 %v3306, %v3312
  %v3318 = vadd.f32 %v3307, %v3312
  %v3319 = vadd.f32 %v3308, %v3312
  %v3320 = vadd.f32 %v3309, %v3312
  %v3321 = vadd.f32 %v3310, %v3312
  %v3322 = vadd.f32 %v3314, %v370
  %v3323 = vadd.f32 %v3315, %v371
  %v3324 = vadd.f32 %v3316, %v372
  %v3325 = vadd.f32 %v3317, %v373
  %v3326 = vadd.f32 %v3318, %v374
  %v3327 = vadd.f32 %v3319, %v375
  %v3328 = vadd.f32 %v3320, %v376
  %v3329 = vadd.f32 %v3321, %v377
  %v3330 = vld [vmem:[%s27] sm:$0x1]
  %v3331 = vld [vmem:[%s29] sm:$0x1]
  %v3332 = vsel %vm391, %v3322, 0.0
  %3333 = vadd.xlane.f32.xlu0 %v3332
  %v3334 = vpop.xlane.xlu0 %3333
  %v3335 = vsel %vm391, %v3323, 0.0
  %3336 = vadd.xlane.f32.xlu0 %v3335
  %v3337 = vpop.xlane.xlu0 %3336
  %v3338 = vsel %vm391, %v3324, 0.0
  %3339 = vadd.xlane.f32.xlu0 %v3338
  %v3340 = vpop.xlane.xlu0 %3339
  %v3341 = vsel %vm391, %v3325, 0.0
  %3342 = vadd.xlane.f32.xlu0 %v3341
  %v3343 = vpop.xlane.xlu0 %3342
  %v3344 = vsel %vm391, %v3326, 0.0
  %3345 = vadd.xlane.f32.xlu0 %v3344
  %v3346 = vpop.xlane.xlu0 %3345
  %v3347 = vsel %vm391, %v3327, 0.0
  %3348 = vadd.xlane.f32.xlu0 %v3347
  %v3349 = vpop.xlane.xlu0 %3348
  %v3350 = vsel %vm391, %v3328, 0.0
  %3351 = vadd.xlane.f32.xlu0 %v3350
  %v3352 = vpop.xlane.xlu0 %3351
  %v3353 = vsel %vm391, %v3329, 0.0
  %3354 = vadd.xlane.f32.xlu0 %v3353
  %v3355 = vpop.xlane.xlu0 %3354
  %v3356 = vmul.f32 %v3334, %v2797
  %v3357 = vmul.f32 %v3337, %v2797
  %v3358 = vmul.f32 %v3340, %v2797
  %v3359 = vmul.f32 %v3343, %v2797
  %v3360 = vmul.f32 %v3346, %v2797
  %v3361 = vmul.f32 %v3349, %v2797
  %v3362 = vmul.f32 %v3352, %v2797
  %v3363 = vmul.f32 %v3355, %v2797
  %v3364 = vsub.f32 %v3322, %v3356
  %v3365 = vsub.f32 %v3323, %v3357
  %v3366 = vsub.f32 %v3324, %v3358
  %v3367 = vsub.f32 %v3325, %v3359
  %v3368 = vsub.f32 %v3326, %v3360
  %v3369 = vsub.f32 %v3327, %v3361
  %v3370 = vsub.f32 %v3328, %v3362
  %v3371 = vsub.f32 %v3329, %v3363
  %v3372 = vmul.f32 %v3364, %v3364
  %v3373 = vmul.f32 %v3365, %v3365
  %v3374 = vmul.f32 %v3366, %v3366
  %v3375 = vmul.f32 %v3367, %v3367
  %v3376 = vmul.f32 %v3368, %v3368
  %v3377 = vmul.f32 %v3369, %v3369
  %v3378 = vmul.f32 %v3370, %v3370
  %v3379 = vmul.f32 %v3371, %v3371
  %v3380 = vsel %vm391, %v3372, 0.0
  %3381 = vadd.xlane.f32.xlu0 %v3380
  %v3382 = vpop.xlane.xlu0 %3381
  %v3383 = vsel %vm391, %v3373, 0.0
  %3384 = vadd.xlane.f32.xlu0 %v3383
  %v3385 = vpop.xlane.xlu0 %3384
  %v3386 = vsel %vm391, %v3374, 0.0
  %3387 = vadd.xlane.f32.xlu0 %v3386
  %v3388 = vpop.xlane.xlu0 %3387
  %v3389 = vsel %vm391, %v3375, 0.0
  %3390 = vadd.xlane.f32.xlu0 %v3389
  %v3391 = vpop.xlane.xlu0 %3390
  %v3392 = vsel %vm391, %v3376, 0.0
  %3393 = vadd.xlane.f32.xlu0 %v3392
  %v3394 = vpop.xlane.xlu0 %3393
  %v3395 = vsel %vm391, %v3377, 0.0
  %3396 = vadd.xlane.f32.xlu0 %v3395
  %v3397 = vpop.xlane.xlu0 %3396
  %v3398 = vsel %vm391, %v3378, 0.0
  %3399 = vadd.xlane.f32.xlu0 %v3398
  %v3400 = vpop.xlane.xlu0 %3399
  %v3401 = vsel %vm391, %v3379, 0.0
  %3402 = vadd.xlane.f32.xlu0 %v3401
  %v3403 = vpop.xlane.xlu0 %3402
  %v3404 = vmul.f32 %v3382, %v2797
  %v3405 = vmul.f32 %v3385, %v2797
  %v3406 = vmul.f32 %v3388, %v2797
  %v3407 = vmul.f32 %v3391, %v2797
  %v3408 = vmul.f32 %v3394, %v2797
  %v3409 = vmul.f32 %v3397, %v2797
  %v3410 = vmul.f32 %v3400, %v2797
  %v3411 = vmul.f32 %v3403, %v2797
  %v3412 = vadd.f32 %v3404, 1e-05
  %v3413 = vadd.f32 %v3405, 1e-05
  %v3414 = vadd.f32 %v3406, 1e-05
  %v3415 = vadd.f32 %v3407, 1e-05
  %v3416 = vadd.f32 %v3408, 1e-05
  %v3417 = vadd.f32 %v3409, 1e-05
  %v3418 = vadd.f32 %v3410, 1e-05
  %v3419 = vadd.f32 %v3411, 1e-05
  %v3420 = vrsqrt.pop %v3412
  %v3421 = vmul.f32 %v3420, %v3412
  %v3422 = vmul.f32 %v3421, %v3420
  %v3423 = vmul.f32 0.5, %v3422
  %v3424 = vsub.f32 1.5, %v3423
  %v3425 = vmul.f32 %v3420, %v3424
  %vm3426 = vweird.f32 %v3412
  %vm3427 = vweird.f32 %v3420
  %vm3428 = vmor %vm3426, %vm3427
  %v3429 = vsel %vm3428, %v3420, %v3425
  %v3430 = vrsqrt.pop %v3413
  %v3431 = vmul.f32 %v3430, %v3413
  %v3432 = vmul.f32 %v3431, %v3430
  %v3433 = vmul.f32 0.5, %v3432
  %v3434 = vsub.f32 1.5, %v3433
  %v3435 = vmul.f32 %v3430, %v3434
  %vm3436 = vweird.f32 %v3413
  %vm3437 = vweird.f32 %v3430
  %vm3438 = vmor %vm3436, %vm3437
  %v3439 = vsel %vm3438, %v3430, %v3435
  %v3440 = vrsqrt.pop %v3414
  %v3441 = vmul.f32 %v3440, %v3414
  %v3442 = vmul.f32 %v3441, %v3440
  %v3443 = vmul.f32 0.5, %v3442
  %v3444 = vsub.f32 1.5, %v3443
  %v3445 = vmul.f32 %v3440, %v3444
  %vm3446 = vweird.f32 %v3414
  %vm3447 = vweird.f32 %v3440
  %vm3448 = vmor %vm3446, %vm3447
  %v3449 = vsel %vm3448, %v3440, %v3445
  %v3450 = vrsqrt.pop %v3415
  %v3451 = vmul.f32 %v3450, %v3415
  %v3452 = vmul.f32 %v3451, %v3450
  %v3453 = vmul.f32 0.5, %v3452
  %v3454 = vsub.f32 1.5, %v3453
  %v3455 = vmul.f32 %v3450, %v3454
  %vm3456 = vweird.f32 %v3415
  %vm3457 = vweird.f32 %v3450
  %vm3458 = vmor %vm3456, %vm3457
  %v3459 = vsel %vm3458, %v3450, %v3455
  %v3460 = vrsqrt.pop %v3416
  %v3461 = vmul.f32 %v3460, %v3416
  %v3462 = vmul.f32 %v3461, %v3460
  %v3463 = vmul.f32 0.5, %v3462
  %v3464 = vsub.f32 1.5, %v3463
  %v3465 = vmul.f32 %v3460, %v3464
  %vm3466 = vweird.f32 %v3416
  %vm3467 = vweird.f32 %v3460
  %vm3468 = vmor %vm3466, %vm3467
  %v3469 = vsel %vm3468, %v3460, %v3465
  %v3470 = vrsqrt.pop %v3417
  %v3471 = vmul.f32 %v3470, %v3417
  %v3472 = vmul.f32 %v3471, %v3470
  %v3473 = vmul.f32 0.5, %v3472
  %v3474 = vsub.f32 1.5, %v3473
  %v3475 = vmul.f32 %v3470, %v3474
  %vm3476 = vweird.f32 %v3417
  %vm3477 = vweird.f32 %v3470
  %vm3478 = vmor %vm3476, %vm3477
  %v3479 = vsel %vm3478, %v3470, %v3475
  %v3480 = vrsqrt.pop %v3418
  %v3481 = vmul.f32 %v3480, %v3418
  %v3482 = vmul.f32 %v3481, %v3480
  %v3483 = vmul.f32 0.5, %v3482
  %v3484 = vsub.f32 1.5, %v3483
  %v3485 = vmul.f32 %v3480, %v3484
  %vm3486 = vweird.f32 %v3418
  %vm3487 = vweird.f32 %v3480
  %vm3488 = vmor %vm3486, %vm3487
  %v3489 = vsel %vm3488, %v3480, %v3485
  %v3490 = vrsqrt.pop %v3419
  %v3491 = vmul.f32 %v3490, %v3419
  %v3492 = vmul.f32 %v3491, %v3490
  %v3493 = vmul.f32 0.5, %v3492
  %v3494 = vsub.f32 1.5, %v3493
  %v3495 = vmul.f32 %v3490, %v3494
  %vm3496 = vweird.f32 %v3419
  %vm3497 = vweird.f32 %v3490
  %vm3498 = vmor %vm3496, %vm3497
  %v3499 = vsel %vm3498, %v3490, %v3495
  %v3500 = vmul.f32 %v3364, %v3429
  %v3501 = vmul.f32 %v3365, %v3439
  %v3502 = vmul.f32 %v3366, %v3449
  %v3503 = vmul.f32 %v3367, %v3459
  %v3504 = vmul.f32 %v3368, %v3469
  %v3505 = vmul.f32 %v3369, %v3479
  %v3506 = vmul.f32 %v3370, %v3489
  %v3507 = vmul.f32 %v3371, %v3499
  %v3509 = vperm.slane %v3330, 0
  %v3511 = vmul.f32 %v3500, %v3509
  %v3512 = vmul.f32 %v3501, %v3509
  %v3513 = vmul.f32 %v3502, %v3509
  %v3514 = vmul.f32 %v3503, %v3509
  %v3515 = vmul.f32 %v3504, %v3509
  %v3516 = vmul.f32 %v3505, %v3509
  %v3517 = vmul.f32 %v3506, %v3509
  %v3518 = vmul.f32 %v3507, %v3509
  %v3520 = vperm.slane %v3331, 0
  %v3522 = vadd.f32 %v3511, %v3520
  %v3523 = vadd.f32 %v3512, %v3520
  %v3524 = vadd.f32 %v3513, %v3520
  %v3525 = vadd.f32 %v3514, %v3520
  %v3526 = vadd.f32 %v3515, %v3520
  %v3527 = vadd.f32 %v3516, %v3520
  %v3528 = vadd.f32 %v3517, %v3520
  %v3529 = vadd.f32 %v3518, %v3520
  %v3530 = vld [vmem:[%s31] sm:$0xff]
  %v3531 = vadd.f32 %v3522, %v3530
  %v3532 = vadd.f32 %v3523, %v3530
  %v3533 = vadd.f32 %v3524, %v3530
  %v3534 = vadd.f32 %v3525, %v3530
  %v3535 = vadd.f32 %v3526, %v3530
  %v3536 = vadd.f32 %v3527, %v3530
  %v3537 = vadd.f32 %v3528, %v3530
  %v3538 = vadd.f32 %v3529, %v3530
  %v3539 = vld [vmem:[%s33] sm:$0xff]
  %v3540 = vld [vmem:[%s33 + $0x8] sm:$0xff]
  %v3541 = vld [vmem:[%s33 + $0x10] sm:$0xff]
  %v3542 = vld [vmem:[%s33 + $0x18] sm:$0xff]
  %v3544 = vsel %vm391, %v3531, 0
  %v3547 = vsel %vm391, %v3532, 0
  %v3550 = vsel %vm391, %v3533, 0
  %v3553 = vsel %vm391, %v3534, 0
  %v3556 = vsel %vm391, %v3535, 0
  %v3559 = vsel %vm391, %v3536, 0
  %v3562 = vsel %vm391, %v3537, 0
  %v3565 = vsel %vm391, %v3538, 0
  %3567 = vmatpush.msra.mxu0 0.0
  %3568 = vmatpush.msra.mxu0 0.0
  %3569 = vmatpush.msra.mxu0 0.0
  %3570 = vmatpush.msra.mxu0 0.0
  %3571 = vmatpush.msra.mxu0 0.0
  %3572 = vmatpush.msra.mxu0 0.0
  %3573 = vmatpush.msra.mxu0 0.0
  %3574 = vmatpush.msra.mxu0 0.0
  %3575 = vmatpush.msra.mxu0 0.0
  %3576 = vmatpush.msra.mxu0 0.0
  %3577 = vmatpush.msra.mxu0 0.0
  %3578 = vmatpush.msra.mxu0 0.0
  %3579 = vmatpush.msra.mxu0 %v3542
  %3580 = vmatpush.msra.mxu0 %v3541
  %3581 = vmatpush.msra.mxu0 %v3540
  %3582 = vmatpush.msra.mxu0 %v3539
  %3583 = vmatmul.f32.gmra.mxu0 %v3544
  %v3584 = vpop.f32.mrf.mxu0
  %v3585 = vadd.f32 0.0, %v3584
  %3586 = vmatmul.f32.gmra.mxu0 %v3547
  %v3587 = vpop.f32.mrf.mxu0
  %v3588 = vadd.f32 0.0, %v3587
  %3589 = vmatmul.f32.gmra.mxu0 %v3550
  %v3590 = vpop.f32.mrf.mxu0
  %v3591 = vadd.f32 0.0, %v3590
  %3592 = vmatmul.f32.gmra.mxu0 %v3553
  %v3593 = vpop.f32.mrf.mxu0
  %v3594 = vadd.f32 0.0, %v3593
  %3595 = vmatmul.f32.gmra.mxu0 %v3556
  %v3596 = vpop.f32.mrf.mxu0
  %v3597 = vadd.f32 0.0, %v3596
  %3598 = vmatmul.f32.gmra.mxu0 %v3559
  %v3599 = vpop.f32.mrf.mxu0
  %v3600 = vadd.f32 0.0, %v3599
  %3601 = vmatmul.f32.gmra.mxu0 %v3562
  %v3602 = vpop.f32.mrf.mxu0
  %v3603 = vadd.f32 0.0, %v3602
  %3604 = vmatmul.f32.gmra.mxu0 %v3565
  %v3605 = vpop.f32.mrf.mxu0
  %v3606 = vadd.f32 0.0, %v3605
  %3607 = vdwg.mxu0
  %3609 = vrot.lane.b32.xlu0 %v3585, 96
  %v3610 = vpop.permute.xlu0 %3609
  %v3611 = vsel %vm460, %v3585, 0
  %v3613 = vsel %vm460, %v3610, 0
  %3615 = vmatpush.xpose.msra.mxu0 0.0
  %3616 = vmatpush.xpose.msra.mxu0 0.0
  %3617 = vmatpush.xpose.msra.mxu0 0.0
  %3618 = vmatpush.xpose.msra.mxu0 0.0
  %3619 = vmatpush.xpose.msra.mxu0 0.0
  %3620 = vmatpush.xpose.msra.mxu0 0.0
  %3621 = vmatpush.xpose.msra.mxu0 0.0
  %3622 = vmatpush.xpose.msra.mxu0 0.0
  %3623 = vmatpush.xpose.msra.mxu0 0.0
  %3624 = vmatpush.xpose.msra.mxu0 0.0
  %3625 = vmatpush.xpose.msra.mxu0 0.0
  %3626 = vmatpush.xpose.msra.mxu0 0.0
  %3627 = vmatpush.xpose.msra.mxu0 0.0
  %3628 = vmatpush.xpose.msra.mxu0 0.0
  %3629 = vmatpush.xpose.msra.mxu0 0.0
  %3630 = vmatpush.xpose.msra.mxu0 %v3613
  %3631 = vmatmul.f32.gmra.mxu0 %v3611
  %v3632 = vpop.f32.mrf.mxu0
  %v3633 = vadd.f32 0.0, %v3632
  %3634 = vdwg.mxu0
  %3636 = vrot.lane.b32.xlu0 %v3588, 96
  %v3637 = vpop.permute.xlu0 %3636
  %v3638 = vsel %vm460, %v3588, 0
  %v3640 = vsel %vm460, %v3637, 0
  %3642 = vmatpush.xpose.msra.mxu0 0.0
  %3643 = vmatpush.xpose.msra.mxu0 0.0
  %3644 = vmatpush.xpose.msra.mxu0 0.0
  %3645 = vmatpush.xpose.msra.mxu0 0.0
  %3646 = vmatpush.xpose.msra.mxu0 0.0
  %3647 = vmatpush.xpose.msra.mxu0 0.0
  %3648 = vmatpush.xpose.msra.mxu0 0.0
  %3649 = vmatpush.xpose.msra.mxu0 0.0
  %3650 = vmatpush.xpose.msra.mxu0 0.0
  %3651 = vmatpush.xpose.msra.mxu0 0.0
  %3652 = vmatpush.xpose.msra.mxu0 0.0
  %3653 = vmatpush.xpose.msra.mxu0 0.0
  %3654 = vmatpush.xpose.msra.mxu0 0.0
  %3655 = vmatpush.xpose.msra.mxu0 0.0
  %3656 = vmatpush.xpose.msra.mxu0 0.0
  %3657 = vmatpush.xpose.msra.mxu0 %v3640
  %3658 = vmatmul.f32.gmra.mxu0 %v3638
  %v3659 = vpop.f32.mrf.mxu0
  %v3660 = vadd.f32 0.0, %v3659
  %3661 = vdwg.mxu0
  %3663 = vrot.lane.b32.xlu0 %v3591, 96
  %v3664 = vpop.permute.xlu0 %3663
  %v3665 = vsel %vm460, %v3591, 0
  %v3667 = vsel %vm460, %v3664, 0
  %3669 = vmatpush.xpose.msra.mxu0 0.0
  %3670 = vmatpush.xpose.msra.mxu0 0.0
  %3671 = vmatpush.xpose.msra.mxu0 0.0
  %3672 = vmatpush.xpose.msra.mxu0 0.0
  %3673 = vmatpush.xpose.msra.mxu0 0.0
  %3674 = vmatpush.xpose.msra.mxu0 0.0
  %3675 = vmatpush.xpose.msra.mxu0 0.0
  %3676 = vmatpush.xpose.msra.mxu0 0.0
  %3677 = vmatpush.xpose.msra.mxu0 0.0
  %3678 = vmatpush.xpose.msra.mxu0 0.0
  %3679 = vmatpush.xpose.msra.mxu0 0.0
  %3680 = vmatpush.xpose.msra.mxu0 0.0
  %3681 = vmatpush.xpose.msra.mxu0 0.0
  %3682 = vmatpush.xpose.msra.mxu0 0.0
  %3683 = vmatpush.xpose.msra.mxu0 0.0
  %3684 = vmatpush.xpose.msra.mxu0 %v3667
  %3685 = vmatmul.f32.gmra.mxu0 %v3665
  %v3686 = vpop.f32.mrf.mxu0
  %v3687 = vadd.f32 0.0, %v3686
  %3688 = vdwg.mxu0
  %3690 = vrot.lane.b32.xlu0 %v3594, 96
  %v3691 = vpop.permute.xlu0 %3690
  %v3692 = vsel %vm460, %v3594, 0
  %v3694 = vsel %vm460, %v3691, 0
  %3696 = vmatpush.xpose.msra.mxu0 0.0
  %3697 = vmatpush.xpose.msra.mxu0 0.0
  %3698 = vmatpush.xpose.msra.mxu0 0.0
  %3699 = vmatpush.xpose.msra.mxu0 0.0
  %3700 = vmatpush.xpose.msra.mxu0 0.0
  %3701 = vmatpush.xpose.msra.mxu0 0.0
  %3702 = vmatpush.xpose.msra.mxu0 0.0
  %3703 = vmatpush.xpose.msra.mxu0 0.0
  %3704 = vmatpush.xpose.msra.mxu0 0.0
  %3705 = vmatpush.xpose.msra.mxu0 0.0
  %3706 = vmatpush.xpose.msra.mxu0 0.0
  %3707 = vmatpush.xpose.msra.mxu0 0.0
  %3708 = vmatpush.xpose.msra.mxu0 0.0
  %3709 = vmatpush.xpose.msra.mxu0 0.0
  %3710 = vmatpush.xpose.msra.mxu0 0.0
  %3711 = vmatpush.xpose.msra.mxu0 %v3694
  %3712 = vmatmul.f32.gmra.mxu0 %v3692
  %v3713 = vpop.f32.mrf.mxu0
  %v3714 = vadd.f32 0.0, %v3713
  %3715 = vdwg.mxu0
  %3717 = vrot.lane.b32.xlu0 %v3597, 96
  %v3718 = vpop.permute.xlu0 %3717
  %v3719 = vsel %vm460, %v3597, 0
  %v3721 = vsel %vm460, %v3718, 0
  %3723 = vmatpush.xpose.msra.mxu0 0.0
  %3724 = vmatpush.xpose.msra.mxu0 0.0
  %3725 = vmatpush.xpose.msra.mxu0 0.0
  %3726 = vmatpush.xpose.msra.mxu0 0.0
  %3727 = vmatpush.xpose.msra.mxu0 0.0
  %3728 = vmatpush.xpose.msra.mxu0 0.0
  %3729 = vmatpush.xpose.msra.mxu0 0.0
  %3730 = vmatpush.xpose.msra.mxu0 0.0
  %3731 = vmatpush.xpose.msra.mxu0 0.0
  %3732 = vmatpush.xpose.msra.mxu0 0.0
  %3733 = vmatpush.xpose.msra.mxu0 0.0
  %3734 = vmatpush.xpose.msra.mxu0 0.0
  %3735 = vmatpush.xpose.msra.mxu0 0.0
  %3736 = vmatpush.xpose.msra.mxu0 0.0
  %3737 = vmatpush.xpose.msra.mxu0 0.0
  %3738 = vmatpush.xpose.msra.mxu0 %v3721
  %3739 = vmatmul.f32.gmra.mxu0 %v3719
  %v3740 = vpop.f32.mrf.mxu0
  %v3741 = vadd.f32 0.0, %v3740
  %3742 = vdwg.mxu0
  %3744 = vrot.lane.b32.xlu0 %v3600, 96
  %v3745 = vpop.permute.xlu0 %3744
  %v3746 = vsel %vm460, %v3600, 0
  %v3748 = vsel %vm460, %v3745, 0
  %3750 = vmatpush.xpose.msra.mxu0 0.0
  %3751 = vmatpush.xpose.msra.mxu0 0.0
  %3752 = vmatpush.xpose.msra.mxu0 0.0
  %3753 = vmatpush.xpose.msra.mxu0 0.0
  %3754 = vmatpush.xpose.msra.mxu0 0.0
  %3755 = vmatpush.xpose.msra.mxu0 0.0
  %3756 = vmatpush.xpose.msra.mxu0 0.0
  %3757 = vmatpush.xpose.msra.mxu0 0.0
  %3758 = vmatpush.xpose.msra.mxu0 0.0
  %3759 = vmatpush.xpose.msra.mxu0 0.0
  %3760 = vmatpush.xpose.msra.mxu0 0.0
  %3761 = vmatpush.xpose.msra.mxu0 0.0
  %3762 = vmatpush.xpose.msra.mxu0 0.0
  %3763 = vmatpush.xpose.msra.mxu0 0.0
  %3764 = vmatpush.xpose.msra.mxu0 0.0
  %3765 = vmatpush.xpose.msra.mxu0 %v3748
  %3766 = vmatmul.f32.gmra.mxu0 %v3746
  %v3767 = vpop.f32.mrf.mxu0
  %v3768 = vadd.f32 0.0, %v3767
  %3769 = vdwg.mxu0
  %3771 = vrot.lane.b32.xlu0 %v3603, 96
  %v3772 = vpop.permute.xlu0 %3771
  %v3773 = vsel %vm460, %v3603, 0
  %v3775 = vsel %vm460, %v3772, 0
  %3777 = vmatpush.xpose.msra.mxu0 0.0
  %3778 = vmatpush.xpose.msra.mxu0 0.0
  %3779 = vmatpush.xpose.msra.mxu0 0.0
  %3780 = vmatpush.xpose.msra.mxu0 0.0
  %3781 = vmatpush.xpose.msra.mxu0 0.0
  %3782 = vmatpush.xpose.msra.mxu0 0.0
  %3783 = vmatpush.xpose.msra.mxu0 0.0
  %3784 = vmatpush.xpose.msra.mxu0 0.0
  %3785 = vmatpush.xpose.msra.mxu0 0.0
  %3786 = vmatpush.xpose.msra.mxu0 0.0
  %3787 = vmatpush.xpose.msra.mxu0 0.0
  %3788 = vmatpush.xpose.msra.mxu0 0.0
  %3789 = vmatpush.xpose.msra.mxu0 0.0
  %3790 = vmatpush.xpose.msra.mxu0 0.0
  %3791 = vmatpush.xpose.msra.mxu0 0.0
  %3792 = vmatpush.xpose.msra.mxu0 %v3775
  %3793 = vmatmul.f32.gmra.mxu0 %v3773
  %v3794 = vpop.f32.mrf.mxu0
  %v3795 = vadd.f32 0.0, %v3794
  %3796 = vdwg.mxu0
  %3798 = vrot.lane.b32.xlu0 %v3606, 96
  %v3799 = vpop.permute.xlu0 %3798
  %v3800 = vsel %vm460, %v3606, 0
  %v3802 = vsel %vm460, %v3799, 0
  %3804 = vmatpush.xpose.msra.mxu0 0.0
  %3805 = vmatpush.xpose.msra.mxu0 0.0
  %3806 = vmatpush.xpose.msra.mxu0 0.0
  %3807 = vmatpush.xpose.msra.mxu0 0.0
  %3808 = vmatpush.xpose.msra.mxu0 0.0
  %3809 = vmatpush.xpose.msra.mxu0 0.0
  %3810 = vmatpush.xpose.msra.mxu0 0.0
  %3811 = vmatpush.xpose.msra.mxu0 0.0
  %3812 = vmatpush.xpose.msra.mxu0 0.0
  %3813 = vmatpush.xpose.msra.mxu0 0.0
  %3814 = vmatpush.xpose.msra.mxu0 0.0
  %3815 = vmatpush.xpose.msra.mxu0 0.0
  %3816 = vmatpush.xpose.msra.mxu0 0.0
  %3817 = vmatpush.xpose.msra.mxu0 0.0
  %3818 = vmatpush.xpose.msra.mxu0 0.0
  %3819 = vmatpush.xpose.msra.mxu0 %v3802
  %3820 = vmatmul.f32.gmra.mxu0 %v3800
  %v3821 = vpop.f32.mrf.mxu0
  %v3822 = vadd.f32 0.0, %v3821
  %3823 = vdwg.mxu0
  %v3824 = vmul.f32 %v3633, 0.35355338
  %v3825 = vmul.f32 %v3660, 0.35355338
  %v3826 = vmul.f32 %v3687, 0.35355338
  %v3827 = vmul.f32 %v3714, 0.35355338
  %v3828 = vmul.f32 %v3741, 0.35355338
  %v3829 = vmul.f32 %v3768, 0.35355338
  %v3830 = vmul.f32 %v3795, 0.35355338
  %v3831 = vmul.f32 %v3822, 0.35355338
  %v3832 = vsel %vm460, %v3824, -inf
  %3833 = vmax.xlane.f32.xlu0 %v3832
  %v3834 = vpop.xlane.xlu0 %3833
  %v3835 = vsel %vm460, %v3825, -inf
  %3836 = vmax.xlane.f32.xlu0 %v3835
  %v3837 = vpop.xlane.xlu0 %3836
  %v3838 = vsel %vm460, %v3826, -inf
  %3839 = vmax.xlane.f32.xlu0 %v3838
  %v3840 = vpop.xlane.xlu0 %3839
  %v3841 = vsel %vm460, %v3827, -inf
  %3842 = vmax.xlane.f32.xlu0 %v3841
  %v3843 = vpop.xlane.xlu0 %3842
  %v3844 = vsel %vm460, %v3828, -inf
  %3845 = vmax.xlane.f32.xlu0 %v3844
  %v3846 = vpop.xlane.xlu0 %3845
  %v3847 = vsel %vm460, %v3829, -inf
  %3848 = vmax.xlane.f32.xlu0 %v3847
  %v3849 = vpop.xlane.xlu0 %3848
  %v3850 = vsel %vm460, %v3830, -inf
  %3851 = vmax.xlane.f32.xlu0 %v3850
  %v3852 = vpop.xlane.xlu0 %3851
  %v3853 = vsel %vm460, %v3831, -inf
  %3854 = vmax.xlane.f32.xlu0 %v3853
  %v3855 = vpop.xlane.xlu0 %3854
  %v3856 = vsub.f32 %v3824, %v3834
  %v3857 = vsub.f32 %v3825, %v3837
  %v3858 = vsub.f32 %v3826, %v3840
  %v3859 = vsub.f32 %v3827, %v3843
  %v3860 = vsub.f32 %v3828, %v3846
  %v3861 = vsub.f32 %v3829, %v3849
  %v3862 = vsub.f32 %v3830, %v3852
  %v3863 = vsub.f32 %v3831, %v3855
  %v3864 = vmul.f32 %v3856, 1.442695
  %v3865 = vpow.pop %v3864
  %v3866 = vmul.f32 %v3857, 1.442695
  %v3867 = vpow.pop %v3866
  %v3868 = vmul.f32 %v3858, 1.442695
  %v3869 = vpow.pop %v3868
  %v3870 = vmul.f32 %v3859, 1.442695
  %v3871 = vpow.pop %v3870
  %v3872 = vmul.f32 %v3860, 1.442695
  %v3873 = vpow.pop %v3872
  %v3874 = vmul.f32 %v3861, 1.442695
  %v3875 = vpow.pop %v3874
  %v3876 = vmul.f32 %v3862, 1.442695
  %v3877 = vpow.pop %v3876
  %v3878 = vmul.f32 %v3863, 1.442695
  %v3879 = vpow.pop %v3878
  %v3880 = vsel %vm460, %v3865, 0.0
  %3881 = vadd.xlane.f32.xlu0 %v3880
  %v3882 = vpop.xlane.xlu0 %3881
  %v3883 = vsel %vm460, %v3867, 0.0
  %3884 = vadd.xlane.f32.xlu0 %v3883
  %v3885 = vpop.xlane.xlu0 %3884
  %v3886 = vsel %vm460, %v3869, 0.0
  %3887 = vadd.xlane.f32.xlu0 %v3886
  %v3888 = vpop.xlane.xlu0 %3887
  %v3889 = vsel %vm460, %v3871, 0.0
  %3890 = vadd.xlane.f32.xlu0 %v3889
  %v3891 = vpop.xlane.xlu0 %3890
  %v3892 = vsel %vm460, %v3873, 0.0
  %3893 = vadd.xlane.f32.xlu0 %v3892
  %v3894 = vpop.xlane.xlu0 %3893
  %v3895 = vsel %vm460, %v3875, 0.0
  %3896 = vadd.xlane.f32.xlu0 %v3895
  %v3897 = vpop.xlane.xlu0 %3896
  %v3898 = vsel %vm460, %v3877, 0.0
  %3899 = vadd.xlane.f32.xlu0 %v3898
  %v3900 = vpop.xlane.xlu0 %3899
  %v3901 = vsel %vm460, %v3879, 0.0
  %3902 = vadd.xlane.f32.xlu0 %v3901
  %v3903 = vpop.xlane.xlu0 %3902
  %v3904 = vrcp.pop %v3882
  %v3905 = vrcp.pop %v3885
  %v3906 = vrcp.pop %v3888
  %v3907 = vrcp.pop %v3891
  %v3908 = vrcp.pop %v3894
  %v3909 = vrcp.pop %v3897
  %v3910 = vrcp.pop %v3900
  %v3911 = vrcp.pop %v3903
  %v3912 = vmul.f32 %v3865, %v3904
  %v3913 = vmul.f32 %v3867, %v3905
  %v3914 = vmul.f32 %v3869, %v3906
  %v3915 = vmul.f32 %v3871, %v3907
  %v3916 = vmul.f32 %v3873, %v3908
  %v3917 = vmul.f32 %v3875, %v3909
  %v3918 = vmul.f32 %v3877, %v3910
  %v3919 = vmul.f32 %v3879, %v3911
  %3920 = vrot.lane.b32.xlu0 %v3585, 64
  %v3921 = vpop.permute.xlu0 %3920
  %v3924 = vsel %vm460, %v3912, 0
  %3926 = vmatpush.msra.mxu0 0.0
  %3927 = vmatpush.msra.mxu0 0.0
  %3928 = vmatpush.msra.mxu0 0.0
  %3929 = vmatpush.msra.mxu0 0.0
  %3930 = vmatpush.msra.mxu0 0.0
  %3931 = vmatpush.msra.mxu0 0.0
  %3932 = vmatpush.msra.mxu0 0.0
  %3933 = vmatpush.msra.mxu0 0.0
  %3934 = vmatpush.msra.mxu0 0.0
  %3935 = vmatpush.msra.mxu0 0.0
  %3936 = vmatpush.msra.mxu0 0.0
  %3937 = vmatpush.msra.mxu0 0.0
  %3938 = vmatpush.msra.mxu0 0.0
  %3939 = vmatpush.msra.mxu0 0.0
  %3940 = vmatpush.msra.mxu0 0.0
  %3941 = vmatpush.msra.mxu0 %v3921
  %3942 = vmatmul.f32.gmra.mxu0 %v3924
  %v3943 = vpop.f32.mrf.mxu0
  %v3944 = vadd.f32 0.0, %v3943
  %3945 = vdwg.mxu0
  %3946 = vrot.lane.b32.xlu0 %v3588, 64
  %v3947 = vpop.permute.xlu0 %3946
  %v3950 = vsel %vm460, %v3913, 0
  %3952 = vmatpush.msra.mxu0 0.0
  %3953 = vmatpush.msra.mxu0 0.0
  %3954 = vmatpush.msra.mxu0 0.0
  %3955 = vmatpush.msra.mxu0 0.0
  %3956 = vmatpush.msra.mxu0 0.0
  %3957 = vmatpush.msra.mxu0 0.0
  %3958 = vmatpush.msra.mxu0 0.0
  %3959 = vmatpush.msra.mxu0 0.0
  %3960 = vmatpush.msra.mxu0 0.0
  %3961 = vmatpush.msra.mxu0 0.0
  %3962 = vmatpush.msra.mxu0 0.0
  %3963 = vmatpush.msra.mxu0 0.0
  %3964 = vmatpush.msra.mxu0 0.0
  %3965 = vmatpush.msra.mxu0 0.0
  %3966 = vmatpush.msra.mxu0 0.0
  %3967 = vmatpush.msra.mxu0 %v3947
  %3968 = vmatmul.f32.gmra.mxu0 %v3950
  %v3969 = vpop.f32.mrf.mxu0
  %v3970 = vadd.f32 0.0, %v3969
  %3971 = vdwg.mxu0
  %3972 = vrot.lane.b32.xlu0 %v3591, 64
  %v3973 = vpop.permute.xlu0 %3972
  %v3976 = vsel %vm460, %v3914, 0
  %3978 = vmatpush.msra.mxu0 0.0
  %3979 = vmatpush.msra.mxu0 0.0
  %3980 = vmatpush.msra.mxu0 0.0
  %3981 = vmatpush.msra.mxu0 0.0
  %3982 = vmatpush.msra.mxu0 0.0
  %3983 = vmatpush.msra.mxu0 0.0
  %3984 = vmatpush.msra.mxu0 0.0
  %3985 = vmatpush.msra.mxu0 0.0
  %3986 = vmatpush.msra.mxu0 0.0
  %3987 = vmatpush.msra.mxu0 0.0
  %3988 = vmatpush.msra.mxu0 0.0
  %3989 = vmatpush.msra.mxu0 0.0
  %3990 = vmatpush.msra.mxu0 0.0
  %3991 = vmatpush.msra.mxu0 0.0
  %3992 = vmatpush.msra.mxu0 0.0
  %3993 = vmatpush.msra.mxu0 %v3973
  %3994 = vmatmul.f32.gmra.mxu0 %v3976
  %v3995 = vpop.f32.mrf.mxu0
  %v3996 = vadd.f32 0.0, %v3995
  %3997 = vdwg.mxu0
  %3998 = vrot.lane.b32.xlu0 %v3594, 64
  %v3999 = vpop.permute.xlu0 %3998
  %v4002 = vsel %vm460, %v3915, 0
  %4004 = vmatpush.msra.mxu0 0.0
  %4005 = vmatpush.msra.mxu0 0.0
  %4006 = vmatpush.msra.mxu0 0.0
  %4007 = vmatpush.msra.mxu0 0.0
  %4008 = vmatpush.msra.mxu0 0.0
  %4009 = vmatpush.msra.mxu0 0.0
  %4010 = vmatpush.msra.mxu0 0.0
  %4011 = vmatpush.msra.mxu0 0.0
  %4012 = vmatpush.msra.mxu0 0.0
  %4013 = vmatpush.msra.mxu0 0.0
  %4014 = vmatpush.msra.mxu0 0.0
  %4015 = vmatpush.msra.mxu0 0.0
  %4016 = vmatpush.msra.mxu0 0.0
  %4017 = vmatpush.msra.mxu0 0.0
  %4018 = vmatpush.msra.mxu0 0.0
  %4019 = vmatpush.msra.mxu0 %v3999
  %4020 = vmatmul.f32.gmra.mxu0 %v4002
  %v4021 = vpop.f32.mrf.mxu0
  %v4022 = vadd.f32 0.0, %v4021
  %4023 = vdwg.mxu0
  %4024 = vrot.lane.b32.xlu0 %v3597, 64
  %v4025 = vpop.permute.xlu0 %4024
  %v4028 = vsel %vm460, %v3916, 0
  %4030 = vmatpush.msra.mxu0 0.0
  %4031 = vmatpush.msra.mxu0 0.0
  %4032 = vmatpush.msra.mxu0 0.0
  %4033 = vmatpush.msra.mxu0 0.0
  %4034 = vmatpush.msra.mxu0 0.0
  %4035 = vmatpush.msra.mxu0 0.0
  %4036 = vmatpush.msra.mxu0 0.0
  %4037 = vmatpush.msra.mxu0 0.0
  %4038 = vmatpush.msra.mxu0 0.0
  %4039 = vmatpush.msra.mxu0 0.0
  %4040 = vmatpush.msra.mxu0 0.0
  %4041 = vmatpush.msra.mxu0 0.0
  %4042 = vmatpush.msra.mxu0 0.0
  %4043 = vmatpush.msra.mxu0 0.0
  %4044 = vmatpush.msra.mxu0 0.0
  %4045 = vmatpush.msra.mxu0 %v4025
  %4046 = vmatmul.f32.gmra.mxu0 %v4028
  %v4047 = vpop.f32.mrf.mxu0
  %v4048 = vadd.f32 0.0, %v4047
  %4049 = vdwg.mxu0
  %4050 = vrot.lane.b32.xlu0 %v3600, 64
  %v4051 = vpop.permute.xlu0 %4050
  %v4054 = vsel %vm460, %v3917, 0
  %4056 = vmatpush.msra.mxu0 0.0
  %4057 = vmatpush.msra.mxu0 0.0
  %4058 = vmatpush.msra.mxu0 0.0
  %4059 = vmatpush.msra.mxu0 0.0
  %4060 = vmatpush.msra.mxu0 0.0
  %4061 = vmatpush.msra.mxu0 0.0
  %4062 = vmatpush.msra.mxu0 0.0
  %4063 = vmatpush.msra.mxu0 0.0
  %4064 = vmatpush.msra.mxu0 0.0
  %4065 = vmatpush.msra.mxu0 0.0
  %4066 = vmatpush.msra.mxu0 0.0
  %4067 = vmatpush.msra.mxu0 0.0
  %4068 = vmatpush.msra.mxu0 0.0
  %4069 = vmatpush.msra.mxu0 0.0
  %4070 = vmatpush.msra.mxu0 0.0
  %4071 = vmatpush.msra.mxu0 %v4051
  %4072 = vmatmul.f32.gmra.mxu0 %v4054
  %v4073 = vpop.f32.mrf.mxu0
  %v4074 = vadd.f32 0.0, %v4073
  %4075 = vdwg.mxu0
  %4076 = vrot.lane.b32.xlu0 %v3603, 64
  %v4077 = vpop.permute.xlu0 %4076
  %v4080 = vsel %vm460, %v3918, 0
  %4082 = vmatpush.msra.mxu0 0.0
  %4083 = vmatpush.msra.mxu0 0.0
  %4084 = vmatpush.msra.mxu0 0.0
  %4085 = vmatpush.msra.mxu0 0.0
  %4086 = vmatpush.msra.mxu0 0.0
  %4087 = vmatpush.msra.mxu0 0.0
  %4088 = vmatpush.msra.mxu0 0.0
  %4089 = vmatpush.msra.mxu0 0.0
  %4090 = vmatpush.msra.mxu0 0.0
  %4091 = vmatpush.msra.mxu0 0.0
  %4092 = vmatpush.msra.mxu0 0.0
  %4093 = vmatpush.msra.mxu0 0.0
  %4094 = vmatpush.msra.mxu0 0.0
  %4095 = vmatpush.msra.mxu0 0.0
  %4096 = vmatpush.msra.mxu0 0.0
  %4097 = vmatpush.msra.mxu0 %v4077
  %4098 = vmatmul.f32.gmra.mxu0 %v4080
  %v4099 = vpop.f32.mrf.mxu0
  %v4100 = vadd.f32 0.0, %v4099
  %4101 = vdwg.mxu0
  %4102 = vrot.lane.b32.xlu0 %v3606, 64
  %v4103 = vpop.permute.xlu0 %4102
  %v4106 = vsel %vm460, %v3919, 0
  %4108 = vmatpush.msra.mxu0 0.0
  %4109 = vmatpush.msra.mxu0 0.0
  %4110 = vmatpush.msra.mxu0 0.0
  %4111 = vmatpush.msra.mxu0 0.0
  %4112 = vmatpush.msra.mxu0 0.0
  %4113 = vmatpush.msra.mxu0 0.0
  %4114 = vmatpush.msra.mxu0 0.0
  %4115 = vmatpush.msra.mxu0 0.0
  %4116 = vmatpush.msra.mxu0 0.0
  %4117 = vmatpush.msra.mxu0 0.0
  %4118 = vmatpush.msra.mxu0 0.0
  %4119 = vmatpush.msra.mxu0 0.0
  %4120 = vmatpush.msra.mxu0 0.0
  %4121 = vmatpush.msra.mxu0 0.0
  %4122 = vmatpush.msra.mxu0 0.0
  %4123 = vmatpush.msra.mxu0 %v4103
  %4124 = vmatmul.f32.gmra.mxu0 %v4106
  %v4125 = vpop.f32.mrf.mxu0
  %v4126 = vadd.f32 0.0, %v4125
  %4127 = vdwg.mxu0
  %4128 = vrot.lane.b32.xlu0 %v3585, 120
  %v4129 = vpop.permute.xlu0 %4128
  %4130 = vrot.lane.b32.xlu0 %v3585, 88
  %v4131 = vpop.permute.xlu0 %4130
  %v4132 = vsel %vm460, %v4129, 0
  %v4134 = vsel %vm460, %v4131, 0
  %4136 = vmatpush.xpose.msra.mxu0 0.0
  %4137 = vmatpush.xpose.msra.mxu0 0.0
  %4138 = vmatpush.xpose.msra.mxu0 0.0
  %4139 = vmatpush.xpose.msra.mxu0 0.0
  %4140 = vmatpush.xpose.msra.mxu0 0.0
  %4141 = vmatpush.xpose.msra.mxu0 0.0
  %4142 = vmatpush.xpose.msra.mxu0 0.0
  %4143 = vmatpush.xpose.msra.mxu0 0.0
  %4144 = vmatpush.xpose.msra.mxu0 0.0
  %4145 = vmatpush.xpose.msra.mxu0 0.0
  %4146 = vmatpush.xpose.msra.mxu0 0.0
  %4147 = vmatpush.xpose.msra.mxu0 0.0
  %4148 = vmatpush.xpose.msra.mxu0 0.0
  %4149 = vmatpush.xpose.msra.mxu0 0.0
  %4150 = vmatpush.xpose.msra.mxu0 0.0
  %4151 = vmatpush.xpose.msra.mxu0 %v4134
  %4152 = vmatmul.f32.gmra.mxu0 %v4132
  %v4153 = vpop.f32.mrf.mxu0
  %v4154 = vadd.f32 0.0, %v4153
  %4155 = vdwg.mxu0
  %4156 = vrot.lane.b32.xlu0 %v3588, 120
  %v4157 = vpop.permute.xlu0 %4156
  %4158 = vrot.lane.b32.xlu0 %v3588, 88
  %v4159 = vpop.permute.xlu0 %4158
  %v4160 = vsel %vm460, %v4157, 0
  %v4162 = vsel %vm460, %v4159, 0
  %4164 = vmatpush.xpose.msra.mxu0 0.0
  %4165 = vmatpush.xpose.msra.mxu0 0.0
  %4166 = vmatpush.xpose.msra.mxu0 0.0
  %4167 = vmatpush.xpose.msra.mxu0 0.0
  %4168 = vmatpush.xpose.msra.mxu0 0.0
  %4169 = vmatpush.xpose.msra.mxu0 0.0
  %4170 = vmatpush.xpose.msra.mxu0 0.0
  %4171 = vmatpush.xpose.msra.mxu0 0.0
  %4172 = vmatpush.xpose.msra.mxu0 0.0
  %4173 = vmatpush.xpose.msra.mxu0 0.0
  %4174 = vmatpush.xpose.msra.mxu0 0.0
  %4175 = vmatpush.xpose.msra.mxu0 0.0
  %4176 = vmatpush.xpose.msra.mxu0 0.0
  %4177 = vmatpush.xpose.msra.mxu0 0.0
  %4178 = vmatpush.xpose.msra.mxu0 0.0
  %4179 = vmatpush.xpose.msra.mxu0 %v4162
  %4180 = vmatmul.f32.gmra.mxu0 %v4160
  %v4181 = vpop.f32.mrf.mxu0
  %v4182 = vadd.f32 0.0, %v4181
  %4183 = vdwg.mxu0
  %4184 = vrot.lane.b32.xlu0 %v3591, 120
  %v4185 = vpop.permute.xlu0 %4184
  %4186 = vrot.lane.b32.xlu0 %v3591, 88
  %v4187 = vpop.permute.xlu0 %4186
  %v4188 = vsel %vm460, %v4185, 0
  %v4190 = vsel %vm460, %v4187, 0
  %4192 = vmatpush.xpose.msra.mxu0 0.0
  %4193 = vmatpush.xpose.msra.mxu0 0.0
  %4194 = vmatpush.xpose.msra.mxu0 0.0
  %4195 = vmatpush.xpose.msra.mxu0 0.0
  %4196 = vmatpush.xpose.msra.mxu0 0.0
  %4197 = vmatpush.xpose.msra.mxu0 0.0
  %4198 = vmatpush.xpose.msra.mxu0 0.0
  %4199 = vmatpush.xpose.msra.mxu0 0.0
  %4200 = vmatpush.xpose.msra.mxu0 0.0
  %4201 = vmatpush.xpose.msra.mxu0 0.0
  %4202 = vmatpush.xpose.msra.mxu0 0.0
  %4203 = vmatpush.xpose.msra.mxu0 0.0
  %4204 = vmatpush.xpose.msra.mxu0 0.0
  %4205 = vmatpush.xpose.msra.mxu0 0.0
  %4206 = vmatpush.xpose.msra.mxu0 0.0
  %4207 = vmatpush.xpose.msra.mxu0 %v4190
  %4208 = vmatmul.f32.gmra.mxu0 %v4188
  %v4209 = vpop.f32.mrf.mxu0
  %v4210 = vadd.f32 0.0, %v4209
  %4211 = vdwg.mxu0
  %4212 = vrot.lane.b32.xlu0 %v3594, 120
  %v4213 = vpop.permute.xlu0 %4212
  %4214 = vrot.lane.b32.xlu0 %v3594, 88
  %v4215 = vpop.permute.xlu0 %4214
  %v4216 = vsel %vm460, %v4213, 0
  %v4218 = vsel %vm460, %v4215, 0
  %4220 = vmatpush.xpose.msra.mxu0 0.0
  %4221 = vmatpush.xpose.msra.mxu0 0.0
  %4222 = vmatpush.xpose.msra.mxu0 0.0
  %4223 = vmatpush.xpose.msra.mxu0 0.0
  %4224 = vmatpush.xpose.msra.mxu0 0.0
  %4225 = vmatpush.xpose.msra.mxu0 0.0
  %4226 = vmatpush.xpose.msra.mxu0 0.0
  %4227 = vmatpush.xpose.msra.mxu0 0.0
  %4228 = vmatpush.xpose.msra.mxu0 0.0
  %4229 = vmatpush.xpose.msra.mxu0 0.0
  %4230 = vmatpush.xpose.msra.mxu0 0.0
  %4231 = vmatpush.xpose.msra.mxu0 0.0
  %4232 = vmatpush.xpose.msra.mxu0 0.0
  %4233 = vmatpush.xpose.msra.mxu0 0.0
  %4234 = vmatpush.xpose.msra.mxu0 0.0
  %4235 = vmatpush.xpose.msra.mxu0 %v4218
  %4236 = vmatmul.f32.gmra.mxu0 %v4216
  %v4237 = vpop.f32.mrf.mxu0
  %v4238 = vadd.f32 0.0, %v4237
  %4239 = vdwg.mxu0
  %4240 = vrot.lane.b32.xlu0 %v3597, 120
  %v4241 = vpop.permute.xlu0 %4240
  %4242 = vrot.lane.b32.xlu0 %v3597, 88
  %v4243 = vpop.permute.xlu0 %4242
  %v4244 = vsel %vm460, %v4241, 0
  %v4246 = vsel %vm460, %v4243, 0
  %4248 = vmatpush.xpose.msra.mxu0 0.0
  %4249 = vmatpush.xpose.msra.mxu0 0.0
  %4250 = vmatpush.xpose.msra.mxu0 0.0
  %4251 = vmatpush.xpose.msra.mxu0 0.0
  %4252 = vmatpush.xpose.msra.mxu0 0.0
  %4253 = vmatpush.xpose.msra.mxu0 0.0
  %4254 = vmatpush.xpose.msra.mxu0 0.0
  %4255 = vmatpush.xpose.msra.mxu0 0.0
  %4256 = vmatpush.xpose.msra.mxu0 0.0
  %4257 = vmatpush.xpose.msra.mxu0 0.0
  %4258 = vmatpush.xpose.msra.mxu0 0.0
  %4259 = vmatpush.xpose.msra.mxu0 0.0
  %4260 = vmatpush.xpose.msra.mxu0 0.0
  %4261 = vmatpush.xpose.msra.mxu0 0.0
  %4262 = vmatpush.xpose.msra.mxu0 0.0
  %4263 = vmatpush.xpose.msra.mxu0 %v4246
  %4264 = vmatmul.f32.gmra.mxu0 %v4244
  %v4265 = vpop.f32.mrf.mxu0
  %v4266 = vadd.f32 0.0, %v4265
  %4267 = vdwg.mxu0
  %4268 = vrot.lane.b32.xlu0 %v3600, 120
  %v4269 = vpop.permute.xlu0 %4268
  %4270 = vrot.lane.b32.xlu0 %v3600, 88
  %v4271 = vpop.permute.xlu0 %4270
  %v4272 = vsel %vm460, %v4269, 0
  %v4274 = vsel %vm460, %v4271, 0
  %4276 = vmatpush.xpose.msra.mxu0 0.0
  %4277 = vmatpush.xpose.msra.mxu0 0.0
  %4278 = vmatpush.xpose.msra.mxu0 0.0
  %4279 = vmatpush.xpose.msra.mxu0 0.0
  %4280 = vmatpush.xpose.msra.mxu0 0.0
  %4281 = vmatpush.xpose.msra.mxu0 0.0
  %4282 = vmatpush.xpose.msra.mxu0 0.0
  %4283 = vmatpush.xpose.msra.mxu0 0.0
  %4284 = vmatpush.xpose.msra.mxu0 0.0
  %4285 = vmatpush.xpose.msra.mxu0 0.0
  %4286 = vmatpush.xpose.msra.mxu0 0.0
  %4287 = vmatpush.xpose.msra.mxu0 0.0
  %4288 = vmatpush.xpose.msra.mxu0 0.0
  %4289 = vmatpush.xpose.msra.mxu0 0.0
  %4290 = vmatpush.xpose.msra.mxu0 0.0
  %4291 = vmatpush.xpose.msra.mxu0 %v4274
  %4292 = vmatmul.f32.gmra.mxu0 %v4272
  %v4293 = vpop.f32.mrf.mxu0
  %v4294 = vadd.f32 0.0, %v4293
  %4295 = vdwg.mxu0
  %4296 = vrot.lane.b32.xlu0 %v3603, 120
  %v4297 = vpop.permute.xlu0 %4296
  %4298 = vrot.lane.b32.xlu0 %v3603, 88
  %v4299 = vpop.permute.xlu0 %4298
  %v4300 = vsel %vm460, %v4297, 0
  %v4302 = vsel %vm460, %v4299, 0
  %4304 = vmatpush.xpose.msra.mxu0 0.0
  %4305 = vmatpush.xpose.msra.mxu0 0.0
  %4306 = vmatpush.xpose.msra.mxu0 0.0
  %4307 = vmatpush.xpose.msra.mxu0 0.0
  %4308 = vmatpush.xpose.msra.mxu0 0.0
  %4309 = vmatpush.xpose.msra.mxu0 0.0
  %4310 = vmatpush.xpose.msra.mxu0 0.0
  %4311 = vmatpush.xpose.msra.mxu0 0.0
  %4312 = vmatpush.xpose.msra.mxu0 0.0
  %4313 = vmatpush.xpose.msra.mxu0 0.0
  %4314 = vmatpush.xpose.msra.mxu0 0.0
  %4315 = vmatpush.xpose.msra.mxu0 0.0
  %4316 = vmatpush.xpose.msra.mxu0 0.0
  %4317 = vmatpush.xpose.msra.mxu0 0.0
  %4318 = vmatpush.xpose.msra.mxu0 0.0
  %4319 = vmatpush.xpose.msra.mxu0 %v4302
  %4320 = vmatmul.f32.gmra.mxu0 %v4300
  %v4321 = vpop.f32.mrf.mxu0
  %v4322 = vadd.f32 0.0, %v4321
  %4323 = vdwg.mxu0
  %4324 = vrot.lane.b32.xlu0 %v3606, 120
  %v4325 = vpop.permute.xlu0 %4324
  %4326 = vrot.lane.b32.xlu0 %v3606, 88
  %v4327 = vpop.permute.xlu0 %4326
  %v4328 = vsel %vm460, %v4325, 0
  %v4330 = vsel %vm460, %v4327, 0
  %4332 = vmatpush.xpose.msra.mxu0 0.0
  %4333 = vmatpush.xpose.msra.mxu0 0.0
  %4334 = vmatpush.xpose.msra.mxu0 0.0
  %4335 = vmatpush.xpose.msra.mxu0 0.0
  %4336 = vmatpush.xpose.msra.mxu0 0.0
  %4337 = vmatpush.xpose.msra.mxu0 0.0
  %4338 = vmatpush.xpose.msra.mxu0 0.0
  %4339 = vmatpush.xpose.msra.mxu0 0.0
  %4340 = vmatpush.xpose.msra.mxu0 0.0
  %4341 = vmatpush.xpose.msra.mxu0 0.0
  %4342 = vmatpush.xpose.msra.mxu0 0.0
  %4343 = vmatpush.xpose.msra.mxu0 0.0
  %4344 = vmatpush.xpose.msra.mxu0 0.0
  %4345 = vmatpush.xpose.msra.mxu0 0.0
  %4346 = vmatpush.xpose.msra.mxu0 0.0
  %4347 = vmatpush.xpose.msra.mxu0 %v4330
  %4348 = vmatmul.f32.gmra.mxu0 %v4328
  %v4349 = vpop.f32.mrf.mxu0
  %v4350 = vadd.f32 0.0, %v4349
  %4351 = vdwg.mxu0
  %v4352 = vmul.f32 %v4154, 0.35355338
  %v4353 = vmul.f32 %v4182, 0.35355338
  %v4354 = vmul.f32 %v4210, 0.35355338
  %v4355 = vmul.f32 %v4238, 0.35355338
  %v4356 = vmul.f32 %v4266, 0.35355338
  %v4357 = vmul.f32 %v4294, 0.35355338
  %v4358 = vmul.f32 %v4322, 0.35355338
  %v4359 = vmul.f32 %v4350, 0.35355338
  %v4360 = vsel %vm460, %v4352, -inf
  %4361 = vmax.xlane.f32.xlu0 %v4360
  %v4362 = vpop.xlane.xlu0 %4361
  %v4363 = vsel %vm460, %v4353, -inf
  %4364 = vmax.xlane.f32.xlu0 %v4363
  %v4365 = vpop.xlane.xlu0 %4364
  %v4366 = vsel %vm460, %v4354, -inf
  %4367 = vmax.xlane.f32.xlu0 %v4366
  %v4368 = vpop.xlane.xlu0 %4367
  %v4369 = vsel %vm460, %v4355, -inf
  %4370 = vmax.xlane.f32.xlu0 %v4369
  %v4371 = vpop.xlane.xlu0 %4370
  %v4372 = vsel %vm460, %v4356, -inf
  %4373 = vmax.xlane.f32.xlu0 %v4372
  %v4374 = vpop.xlane.xlu0 %4373
  %v4375 = vsel %vm460, %v4357, -inf
  %4376 = vmax.xlane.f32.xlu0 %v4375
  %v4377 = vpop.xlane.xlu0 %4376
  %v4378 = vsel %vm460, %v4358, -inf
  %4379 = vmax.xlane.f32.xlu0 %v4378
  %v4380 = vpop.xlane.xlu0 %4379
  %v4381 = vsel %vm460, %v4359, -inf
  %4382 = vmax.xlane.f32.xlu0 %v4381
  %v4383 = vpop.xlane.xlu0 %4382
  %v4384 = vsub.f32 %v4352, %v4362
  %v4385 = vsub.f32 %v4353, %v4365
  %v4386 = vsub.f32 %v4354, %v4368
  %v4387 = vsub.f32 %v4355, %v4371
  %v4388 = vsub.f32 %v4356, %v4374
  %v4389 = vsub.f32 %v4357, %v4377
  %v4390 = vsub.f32 %v4358, %v4380
  %v4391 = vsub.f32 %v4359, %v4383
  %v4392 = vmul.f32 %v4384, 1.442695
  %v4393 = vpow.pop %v4392
  %v4394 = vmul.f32 %v4385, 1.442695
  %v4395 = vpow.pop %v4394
  %v4396 = vmul.f32 %v4386, 1.442695
  %v4397 = vpow.pop %v4396
  %v4398 = vmul.f32 %v4387, 1.442695
  %v4399 = vpow.pop %v4398
  %v4400 = vmul.f32 %v4388, 1.442695
  %v4401 = vpow.pop %v4400
  %v4402 = vmul.f32 %v4389, 1.442695
  %v4403 = vpow.pop %v4402
  %v4404 = vmul.f32 %v4390, 1.442695
  %v4405 = vpow.pop %v4404
  %v4406 = vmul.f32 %v4391, 1.442695
  %v4407 = vpow.pop %v4406
  %v4408 = vsel %vm460, %v4393, 0.0
  %4409 = vadd.xlane.f32.xlu0 %v4408
  %v4410 = vpop.xlane.xlu0 %4409
  %v4411 = vsel %vm460, %v4395, 0.0
  %4412 = vadd.xlane.f32.xlu0 %v4411
  %v4413 = vpop.xlane.xlu0 %4412
  %v4414 = vsel %vm460, %v4397, 0.0
  %4415 = vadd.xlane.f32.xlu0 %v4414
  %v4416 = vpop.xlane.xlu0 %4415
  %v4417 = vsel %vm460, %v4399, 0.0
  %4418 = vadd.xlane.f32.xlu0 %v4417
  %v4419 = vpop.xlane.xlu0 %4418
  %v4420 = vsel %vm460, %v4401, 0.0
  %4421 = vadd.xlane.f32.xlu0 %v4420
  %v4422 = vpop.xlane.xlu0 %4421
  %v4423 = vsel %vm460, %v4403, 0.0
  %4424 = vadd.xlane.f32.xlu0 %v4423
  %v4425 = vpop.xlane.xlu0 %4424
  %v4426 = vsel %vm460, %v4405, 0.0
  %4427 = vadd.xlane.f32.xlu0 %v4426
  %v4428 = vpop.xlane.xlu0 %4427
  %v4429 = vsel %vm460, %v4407, 0.0
  %4430 = vadd.xlane.f32.xlu0 %v4429
  %v4431 = vpop.xlane.xlu0 %4430
  %v4432 = vrcp.pop %v4410
  %v4433 = vrcp.pop %v4413
  %v4434 = vrcp.pop %v4416
  %v4435 = vrcp.pop %v4419
  %v4436 = vrcp.pop %v4422
  %v4437 = vrcp.pop %v4425
  %v4438 = vrcp.pop %v4428
  %v4439 = vrcp.pop %v4431
  %v4440 = vmul.f32 %v4393, %v4432
  %v4441 = vmul.f32 %v4395, %v4433
  %v4442 = vmul.f32 %v4397, %v4434
  %v4443 = vmul.f32 %v4399, %v4435
  %v4444 = vmul.f32 %v4401, %v4436
  %v4445 = vmul.f32 %v4403, %v4437
  %v4446 = vmul.f32 %v4405, %v4438
  %v4447 = vmul.f32 %v4407, %v4439
  %4448 = vrot.lane.b32.xlu0 %v3585, 56
  %v4449 = vpop.permute.xlu0 %4448
  %v4452 = vsel %vm460, %v4440, 0
  %4454 = vmatpush.msra.mxu0 0.0
  %4455 = vmatpush.msra.mxu0 0.0
  %4456 = vmatpush.msra.mxu0 0.0
  %4457 = vmatpush.msra.mxu0 0.0
  %4458 = vmatpush.msra.mxu0 0.0
  %4459 = vmatpush.msra.mxu0 0.0
  %4460 = vmatpush.msra.mxu0 0.0
  %4461 = vmatpush.msra.mxu0 0.0
  %4462 = vmatpush.msra.mxu0 0.0
  %4463 = vmatpush.msra.mxu0 0.0
  %4464 = vmatpush.msra.mxu0 0.0
  %4465 = vmatpush.msra.mxu0 0.0
  %4466 = vmatpush.msra.mxu0 0.0
  %4467 = vmatpush.msra.mxu0 0.0
  %4468 = vmatpush.msra.mxu0 0.0
  %4469 = vmatpush.msra.mxu0 %v4449
  %4470 = vmatmul.f32.gmra.mxu0 %v4452
  %v4471 = vpop.f32.mrf.mxu0
  %v4472 = vadd.f32 0.0, %v4471
  %4473 = vdwg.mxu0
  %4474 = vrot.lane.b32.xlu0 %v3588, 56
  %v4475 = vpop.permute.xlu0 %4474
  %v4478 = vsel %vm460, %v4441, 0
  %4480 = vmatpush.msra.mxu0 0.0
  %4481 = vmatpush.msra.mxu0 0.0
  %4482 = vmatpush.msra.mxu0 0.0
  %4483 = vmatpush.msra.mxu0 0.0
  %4484 = vmatpush.msra.mxu0 0.0
  %4485 = vmatpush.msra.mxu0 0.0
  %4486 = vmatpush.msra.mxu0 0.0
  %4487 = vmatpush.msra.mxu0 0.0
  %4488 = vmatpush.msra.mxu0 0.0
  %4489 = vmatpush.msra.mxu0 0.0
  %4490 = vmatpush.msra.mxu0 0.0
  %4491 = vmatpush.msra.mxu0 0.0
  %4492 = vmatpush.msra.mxu0 0.0
  %4493 = vmatpush.msra.mxu0 0.0
  %4494 = vmatpush.msra.mxu0 0.0
  %4495 = vmatpush.msra.mxu0 %v4475
  %4496 = vmatmul.f32.gmra.mxu0 %v4478
  %v4497 = vpop.f32.mrf.mxu0
  %v4498 = vadd.f32 0.0, %v4497
  %4499 = vdwg.mxu0
  %4500 = vrot.lane.b32.xlu0 %v3591, 56
  %v4501 = vpop.permute.xlu0 %4500
  %v4504 = vsel %vm460, %v4442, 0
  %4506 = vmatpush.msra.mxu0 0.0
  %4507 = vmatpush.msra.mxu0 0.0
  %4508 = vmatpush.msra.mxu0 0.0
  %4509 = vmatpush.msra.mxu0 0.0
  %4510 = vmatpush.msra.mxu0 0.0
  %4511 = vmatpush.msra.mxu0 0.0
  %4512 = vmatpush.msra.mxu0 0.0
  %4513 = vmatpush.msra.mxu0 0.0
  %4514 = vmatpush.msra.mxu0 0.0
  %4515 = vmatpush.msra.mxu0 0.0
  %4516 = vmatpush.msra.mxu0 0.0
  %4517 = vmatpush.msra.mxu0 0.0
  %4518 = vmatpush.msra.mxu0 0.0
  %4519 = vmatpush.msra.mxu0 0.0
  %4520 = vmatpush.msra.mxu0 0.0
  %4521 = vmatpush.msra.mxu0 %v4501
  %4522 = vmatmul.f32.gmra.mxu0 %v4504
  %v4523 = vpop.f32.mrf.mxu0
  %v4524 = vadd.f32 0.0, %v4523
  %4525 = vdwg.mxu0
  %4526 = vrot.lane.b32.xlu0 %v3594, 56
  %v4527 = vpop.permute.xlu0 %4526
  %v4530 = vsel %vm460, %v4443, 0
  %4532 = vmatpush.msra.mxu0 0.0
  %4533 = vmatpush.msra.mxu0 0.0
  %4534 = vmatpush.msra.mxu0 0.0
  %4535 = vmatpush.msra.mxu0 0.0
  %4536 = vmatpush.msra.mxu0 0.0
  %4537 = vmatpush.msra.mxu0 0.0
  %4538 = vmatpush.msra.mxu0 0.0
  %4539 = vmatpush.msra.mxu0 0.0
  %4540 = vmatpush.msra.mxu0 0.0
  %4541 = vmatpush.msra.mxu0 0.0
  %4542 = vmatpush.msra.mxu0 0.0
  %4543 = vmatpush.msra.mxu0 0.0
  %4544 = vmatpush.msra.mxu0 0.0
  %4545 = vmatpush.msra.mxu0 0.0
  %4546 = vmatpush.msra.mxu0 0.0
  %4547 = vmatpush.msra.mxu0 %v4527
  %4548 = vmatmul.f32.gmra.mxu0 %v4530
  %v4549 = vpop.f32.mrf.mxu0
  %v4550 = vadd.f32 0.0, %v4549
  %4551 = vdwg.mxu0
  %4552 = vrot.lane.b32.xlu0 %v3597, 56
  %v4553 = vpop.permute.xlu0 %4552
  %v4556 = vsel %vm460, %v4444, 0
  %4558 = vmatpush.msra.mxu0 0.0
  %4559 = vmatpush.msra.mxu0 0.0
  %4560 = vmatpush.msra.mxu0 0.0
  %4561 = vmatpush.msra.mxu0 0.0
  %4562 = vmatpush.msra.mxu0 0.0
  %4563 = vmatpush.msra.mxu0 0.0
  %4564 = vmatpush.msra.mxu0 0.0
  %4565 = vmatpush.msra.mxu0 0.0
  %4566 = vmatpush.msra.mxu0 0.0
  %4567 = vmatpush.msra.mxu0 0.0
  %4568 = vmatpush.msra.mxu0 0.0
  %4569 = vmatpush.msra.mxu0 0.0
  %4570 = vmatpush.msra.mxu0 0.0
  %4571 = vmatpush.msra.mxu0 0.0
  %4572 = vmatpush.msra.mxu0 0.0
  %4573 = vmatpush.msra.mxu0 %v4553
  %4574 = vmatmul.f32.gmra.mxu0 %v4556
  %v4575 = vpop.f32.mrf.mxu0
  %v4576 = vadd.f32 0.0, %v4575
  %4577 = vdwg.mxu0
  %4578 = vrot.lane.b32.xlu0 %v3600, 56
  %v4579 = vpop.permute.xlu0 %4578
  %v4582 = vsel %vm460, %v4445, 0
  %4584 = vmatpush.msra.mxu0 0.0
  %4585 = vmatpush.msra.mxu0 0.0
  %4586 = vmatpush.msra.mxu0 0.0
  %4587 = vmatpush.msra.mxu0 0.0
  %4588 = vmatpush.msra.mxu0 0.0
  %4589 = vmatpush.msra.mxu0 0.0
  %4590 = vmatpush.msra.mxu0 0.0
  %4591 = vmatpush.msra.mxu0 0.0
  %4592 = vmatpush.msra.mxu0 0.0
  %4593 = vmatpush.msra.mxu0 0.0
  %4594 = vmatpush.msra.mxu0 0.0
  %4595 = vmatpush.msra.mxu0 0.0
  %4596 = vmatpush.msra.mxu0 0.0
  %4597 = vmatpush.msra.mxu0 0.0
  %4598 = vmatpush.msra.mxu0 0.0
  %4599 = vmatpush.msra.mxu0 %v4579
  %4600 = vmatmul.f32.gmra.mxu0 %v4582
  %v4601 = vpop.f32.mrf.mxu0
  %v4602 = vadd.f32 0.0, %v4601
  %4603 = vdwg.mxu0
  %4604 = vrot.lane.b32.xlu0 %v3603, 56
  %v4605 = vpop.permute.xlu0 %4604
  %v4608 = vsel %vm460, %v4446, 0
  %4610 = vmatpush.msra.mxu0 0.0
  %4611 = vmatpush.msra.mxu0 0.0
  %4612 = vmatpush.msra.mxu0 0.0
  %4613 = vmatpush.msra.mxu0 0.0
  %4614 = vmatpush.msra.mxu0 0.0
  %4615 = vmatpush.msra.mxu0 0.0
  %4616 = vmatpush.msra.mxu0 0.0
  %4617 = vmatpush.msra.mxu0 0.0
  %4618 = vmatpush.msra.mxu0 0.0
  %4619 = vmatpush.msra.mxu0 0.0
  %4620 = vmatpush.msra.mxu0 0.0
  %4621 = vmatpush.msra.mxu0 0.0
  %4622 = vmatpush.msra.mxu0 0.0
  %4623 = vmatpush.msra.mxu0 0.0
  %4624 = vmatpush.msra.mxu0 0.0
  %4625 = vmatpush.msra.mxu0 %v4605
  %4626 = vmatmul.f32.gmra.mxu0 %v4608
  %v4627 = vpop.f32.mrf.mxu0
  %v4628 = vadd.f32 0.0, %v4627
  %4629 = vdwg.mxu0
  %4630 = vrot.lane.b32.xlu0 %v3606, 56
  %v4631 = vpop.permute.xlu0 %4630
  %v4634 = vsel %vm460, %v4447, 0
  %4636 = vmatpush.msra.mxu0 0.0
  %4637 = vmatpush.msra.mxu0 0.0
  %4638 = vmatpush.msra.mxu0 0.0
  %4639 = vmatpush.msra.mxu0 0.0
  %4640 = vmatpush.msra.mxu0 0.0
  %4641 = vmatpush.msra.mxu0 0.0
  %4642 = vmatpush.msra.mxu0 0.0
  %4643 = vmatpush.msra.mxu0 0.0
  %4644 = vmatpush.msra.mxu0 0.0
  %4645 = vmatpush.msra.mxu0 0.0
  %4646 = vmatpush.msra.mxu0 0.0
  %4647 = vmatpush.msra.mxu0 0.0
  %4648 = vmatpush.msra.mxu0 0.0
  %4649 = vmatpush.msra.mxu0 0.0
  %4650 = vmatpush.msra.mxu0 0.0
  %4651 = vmatpush.msra.mxu0 %v4631
  %4652 = vmatmul.f32.gmra.mxu0 %v4634
  %v4653 = vpop.f32.mrf.mxu0
  %v4654 = vadd.f32 0.0, %v4653
  %4655 = vdwg.mxu0
  %4656 = vrot.lane.b32.xlu0 %v3585, 112
  %v4657 = vpop.permute.xlu0 %4656
  %4658 = vrot.lane.b32.xlu0 %v3585, 80
  %v4659 = vpop.permute.xlu0 %4658
  %v4660 = vsel %vm460, %v4657, 0
  %v4662 = vsel %vm460, %v4659, 0
  %4664 = vmatpush.xpose.msra.mxu0 0.0
  %4665 = vmatpush.xpose.msra.mxu0 0.0
  %4666 = vmatpush.xpose.msra.mxu0 0.0
  %4667 = vmatpush.xpose.msra.mxu0 0.0
  %4668 = vmatpush.xpose.msra.mxu0 0.0
  %4669 = vmatpush.xpose.msra.mxu0 0.0
  %4670 = vmatpush.xpose.msra.mxu0 0.0
  %4671 = vmatpush.xpose.msra.mxu0 0.0
  %4672 = vmatpush.xpose.msra.mxu0 0.0
  %4673 = vmatpush.xpose.msra.mxu0 0.0
  %4674 = vmatpush.xpose.msra.mxu0 0.0
  %4675 = vmatpush.xpose.msra.mxu0 0.0
  %4676 = vmatpush.xpose.msra.mxu0 0.0
  %4677 = vmatpush.xpose.msra.mxu0 0.0
  %4678 = vmatpush.xpose.msra.mxu0 0.0
  %4679 = vmatpush.xpose.msra.mxu0 %v4662
  %4680 = vmatmul.f32.gmra.mxu0 %v4660
  %v4681 = vpop.f32.mrf.mxu0
  %v4682 = vadd.f32 0.0, %v4681
  %4683 = vdwg.mxu0
  %4684 = vrot.lane.b32.xlu0 %v3588, 112
  %v4685 = vpop.permute.xlu0 %4684
  %4686 = vrot.lane.b32.xlu0 %v3588, 80
  %v4687 = vpop.permute.xlu0 %4686
  %v4688 = vsel %vm460, %v4685, 0
  %v4690 = vsel %vm460, %v4687, 0
  %4692 = vmatpush.xpose.msra.mxu0 0.0
  %4693 = vmatpush.xpose.msra.mxu0 0.0
  %4694 = vmatpush.xpose.msra.mxu0 0.0
  %4695 = vmatpush.xpose.msra.mxu0 0.0
  %4696 = vmatpush.xpose.msra.mxu0 0.0
  %4697 = vmatpush.xpose.msra.mxu0 0.0
  %4698 = vmatpush.xpose.msra.mxu0 0.0
  %4699 = vmatpush.xpose.msra.mxu0 0.0
  %4700 = vmatpush.xpose.msra.mxu0 0.0
  %4701 = vmatpush.xpose.msra.mxu0 0.0
  %4702 = vmatpush.xpose.msra.mxu0 0.0
  %4703 = vmatpush.xpose.msra.mxu0 0.0
  %4704 = vmatpush.xpose.msra.mxu0 0.0
  %4705 = vmatpush.xpose.msra.mxu0 0.0
  %4706 = vmatpush.xpose.msra.mxu0 0.0
  %4707 = vmatpush.xpose.msra.mxu0 %v4690
  %4708 = vmatmul.f32.gmra.mxu0 %v4688
  %v4709 = vpop.f32.mrf.mxu0
  %v4710 = vadd.f32 0.0, %v4709
  %4711 = vdwg.mxu0
  %4712 = vrot.lane.b32.xlu0 %v3591, 112
  %v4713 = vpop.permute.xlu0 %4712
  %4714 = vrot.lane.b32.xlu0 %v3591, 80
  %v4715 = vpop.permute.xlu0 %4714
  %v4716 = vsel %vm460, %v4713, 0
  %v4718 = vsel %vm460, %v4715, 0
  %4720 = vmatpush.xpose.msra.mxu0 0.0
  %4721 = vmatpush.xpose.msra.mxu0 0.0
  %4722 = vmatpush.xpose.msra.mxu0 0.0
  %4723 = vmatpush.xpose.msra.mxu0 0.0
  %4724 = vmatpush.xpose.msra.mxu0 0.0
  %4725 = vmatpush.xpose.msra.mxu0 0.0
  %4726 = vmatpush.xpose.msra.mxu0 0.0
  %4727 = vmatpush.xpose.msra.mxu0 0.0
  %4728 = vmatpush.xpose.msra.mxu0 0.0
  %4729 = vmatpush.xpose.msra.mxu0 0.0
  %4730 = vmatpush.xpose.msra.mxu0 0.0
  %4731 = vmatpush.xpose.msra.mxu0 0.0
  %4732 = vmatpush.xpose.msra.mxu0 0.0
  %4733 = vmatpush.xpose.msra.mxu0 0.0
  %4734 = vmatpush.xpose.msra.mxu0 0.0
  %4735 = vmatpush.xpose.msra.mxu0 %v4718
  %4736 = vmatmul.f32.gmra.mxu0 %v4716
  %v4737 = vpop.f32.mrf.mxu0
  %v4738 = vadd.f32 0.0, %v4737
  %4739 = vdwg.mxu0
  %4740 = vrot.lane.b32.xlu0 %v3594, 112
  %v4741 = vpop.permute.xlu0 %4740
  %4742 = vrot.lane.b32.xlu0 %v3594, 80
  %v4743 = vpop.permute.xlu0 %4742
  %v4744 = vsel %vm460, %v4741, 0
  %v4746 = vsel %vm460, %v4743, 0
  %4748 = vmatpush.xpose.msra.mxu0 0.0
  %4749 = vmatpush.xpose.msra.mxu0 0.0
  %4750 = vmatpush.xpose.msra.mxu0 0.0
  %4751 = vmatpush.xpose.msra.mxu0 0.0
  %4752 = vmatpush.xpose.msra.mxu0 0.0
  %4753 = vmatpush.xpose.msra.mxu0 0.0
  %4754 = vmatpush.xpose.msra.mxu0 0.0
  %4755 = vmatpush.xpose.msra.mxu0 0.0
  %4756 = vmatpush.xpose.msra.mxu0 0.0
  %4757 = vmatpush.xpose.msra.mxu0 0.0
  %4758 = vmatpush.xpose.msra.mxu0 0.0
  %4759 = vmatpush.xpose.msra.mxu0 0.0
  %4760 = vmatpush.xpose.msra.mxu0 0.0
  %4761 = vmatpush.xpose.msra.mxu0 0.0
  %4762 = vmatpush.xpose.msra.mxu0 0.0
  %4763 = vmatpush.xpose.msra.mxu0 %v4746
  %4764 = vmatmul.f32.gmra.mxu0 %v4744
  %v4765 = vpop.f32.mrf.mxu0
  %v4766 = vadd.f32 0.0, %v4765
  %4767 = vdwg.mxu0
  %4768 = vrot.lane.b32.xlu0 %v3597, 112
  %v4769 = vpop.permute.xlu0 %4768
  %4770 = vrot.lane.b32.xlu0 %v3597, 80
  %v4771 = vpop.permute.xlu0 %4770
  %v4772 = vsel %vm460, %v4769, 0
  %v4774 = vsel %vm460, %v4771, 0
  %4776 = vmatpush.xpose.msra.mxu0 0.0
  %4777 = vmatpush.xpose.msra.mxu0 0.0
  %4778 = vmatpush.xpose.msra.mxu0 0.0
  %4779 = vmatpush.xpose.msra.mxu0 0.0
  %4780 = vmatpush.xpose.msra.mxu0 0.0
  %4781 = vmatpush.xpose.msra.mxu0 0.0
  %4782 = vmatpush.xpose.msra.mxu0 0.0
  %4783 = vmatpush.xpose.msra.mxu0 0.0
  %4784 = vmatpush.xpose.msra.mxu0 0.0
  %4785 = vmatpush.xpose.msra.mxu0 0.0
  %4786 = vmatpush.xpose.msra.mxu0 0.0
  %4787 = vmatpush.xpose.msra.mxu0 0.0
  %4788 = vmatpush.xpose.msra.mxu0 0.0
  %4789 = vmatpush.xpose.msra.mxu0 0.0
  %4790 = vmatpush.xpose.msra.mxu0 0.0
  %4791 = vmatpush.xpose.msra.mxu0 %v4774
  %4792 = vmatmul.f32.gmra.mxu0 %v4772
  %v4793 = vpop.f32.mrf.mxu0
  %v4794 = vadd.f32 0.0, %v4793
  %4795 = vdwg.mxu0
  %4796 = vrot.lane.b32.xlu0 %v3600, 112
  %v4797 = vpop.permute.xlu0 %4796
  %4798 = vrot.lane.b32.xlu0 %v3600, 80
  %v4799 = vpop.permute.xlu0 %4798
  %v4800 = vsel %vm460, %v4797, 0
  %v4802 = vsel %vm460, %v4799, 0
  %4804 = vmatpush.xpose.msra.mxu0 0.0
  %4805 = vmatpush.xpose.msra.mxu0 0.0
  %4806 = vmatpush.xpose.msra.mxu0 0.0
  %4807 = vmatpush.xpose.msra.mxu0 0.0
  %4808 = vmatpush.xpose.msra.mxu0 0.0
  %4809 = vmatpush.xpose.msra.mxu0 0.0
  %4810 = vmatpush.xpose.msra.mxu0 0.0
  %4811 = vmatpush.xpose.msra.mxu0 0.0
  %4812 = vmatpush.xpose.msra.mxu0 0.0
  %4813 = vmatpush.xpose.msra.mxu0 0.0
  %4814 = vmatpush.xpose.msra.mxu0 0.0
  %4815 = vmatpush.xpose.msra.mxu0 0.0
  %4816 = vmatpush.xpose.msra.mxu0 0.0
  %4817 = vmatpush.xpose.msra.mxu0 0.0
  %4818 = vmatpush.xpose.msra.mxu0 0.0
  %4819 = vmatpush.xpose.msra.mxu0 %v4802
  %4820 = vmatmul.f32.gmra.mxu0 %v4800
  %v4821 = vpop.f32.mrf.mxu0
  %v4822 = vadd.f32 0.0, %v4821
  %4823 = vdwg.mxu0
  %4824 = vrot.lane.b32.xlu0 %v3603, 112
  %v4825 = vpop.permute.xlu0 %4824
  %4826 = vrot.lane.b32.xlu0 %v3603, 80
  %v4827 = vpop.permute.xlu0 %4826
  %v4828 = vsel %vm460, %v4825, 0
  %v4830 = vsel %vm460, %v4827, 0
  %4832 = vmatpush.xpose.msra.mxu0 0.0
  %4833 = vmatpush.xpose.msra.mxu0 0.0
  %4834 = vmatpush.xpose.msra.mxu0 0.0
  %4835 = vmatpush.xpose.msra.mxu0 0.0
  %4836 = vmatpush.xpose.msra.mxu0 0.0
  %4837 = vmatpush.xpose.msra.mxu0 0.0
  %4838 = vmatpush.xpose.msra.mxu0 0.0
  %4839 = vmatpush.xpose.msra.mxu0 0.0
  %4840 = vmatpush.xpose.msra.mxu0 0.0
  %4841 = vmatpush.xpose.msra.mxu0 0.0
  %4842 = vmatpush.xpose.msra.mxu0 0.0
  %4843 = vmatpush.xpose.msra.mxu0 0.0
  %4844 = vmatpush.xpose.msra.mxu0 0.0
  %4845 = vmatpush.xpose.msra.mxu0 0.0
  %4846 = vmatpush.xpose.msra.mxu0 0.0
  %4847 = vmatpush.xpose.msra.mxu0 %v4830
  %4848 = vmatmul.f32.gmra.mxu0 %v4828
  %v4849 = vpop.f32.mrf.mxu0
  %v4850 = vadd.f32 0.0, %v4849
  %4851 = vdwg.mxu0
  %4852 = vrot.lane.b32.xlu0 %v3606, 112
  %v4853 = vpop.permute.xlu0 %4852
  %4854 = vrot.lane.b32.xlu0 %v3606, 80
  %v4855 = vpop.permute.xlu0 %4854
  %v4856 = vsel %vm460, %v4853, 0
  %v4858 = vsel %vm460, %v4855, 0
  %4860 = vmatpush.xpose.msra.mxu0 0.0
  %4861 = vmatpush.xpose.msra.mxu0 0.0
  %4862 = vmatpush.xpose.msra.mxu0 0.0
  %4863 = vmatpush.xpose.msra.mxu0 0.0
  %4864 = vmatpush.xpose.msra.mxu0 0.0
  %4865 = vmatpush.xpose.msra.mxu0 0.0
  %4866 = vmatpush.xpose.msra.mxu0 0.0
  %4867 = vmatpush.xpose.msra.mxu0 0.0
  %4868 = vmatpush.xpose.msra.mxu0 0.0
  %4869 = vmatpush.xpose.msra.mxu0 0.0
  %4870 = vmatpush.xpose.msra.mxu0 0.0
  %4871 = vmatpush.xpose.msra.mxu0 0.0
  %4872 = vmatpush.xpose.msra.mxu0 0.0
  %4873 = vmatpush.xpose.msra.mxu0 0.0
  %4874 = vmatpush.xpose.msra.mxu0 0.0
  %4875 = vmatpush.xpose.msra.mxu0 %v4858
  %4876 = vmatmul.f32.gmra.mxu0 %v4856
  %v4877 = vpop.f32.mrf.mxu0
  %v4878 = vadd.f32 0.0, %v4877
  %4879 = vdwg.mxu0
  %v4880 = vmul.f32 %v4682, 0.35355338
  %v4881 = vmul.f32 %v4710, 0.35355338
  %v4882 = vmul.f32 %v4738, 0.35355338
  %v4883 = vmul.f32 %v4766, 0.35355338
  %v4884 = vmul.f32 %v4794, 0.35355338
  %v4885 = vmul.f32 %v4822, 0.35355338
  %v4886 = vmul.f32 %v4850, 0.35355338
  %v4887 = vmul.f32 %v4878, 0.35355338
  %v4888 = vsel %vm460, %v4880, -inf
  %4889 = vmax.xlane.f32.xlu0 %v4888
  %v4890 = vpop.xlane.xlu0 %4889
  %v4891 = vsel %vm460, %v4881, -inf
  %4892 = vmax.xlane.f32.xlu0 %v4891
  %v4893 = vpop.xlane.xlu0 %4892
  %v4894 = vsel %vm460, %v4882, -inf
  %4895 = vmax.xlane.f32.xlu0 %v4894
  %v4896 = vpop.xlane.xlu0 %4895
  %v4897 = vsel %vm460, %v4883, -inf
  %4898 = vmax.xlane.f32.xlu0 %v4897
  %v4899 = vpop.xlane.xlu0 %4898
  %v4900 = vsel %vm460, %v4884, -inf
  %4901 = vmax.xlane.f32.xlu0 %v4900
  %v4902 = vpop.xlane.xlu0 %4901
  %v4903 = vsel %vm460, %v4885, -inf
  %4904 = vmax.xlane.f32.xlu0 %v4903
  %v4905 = vpop.xlane.xlu0 %4904
  %v4906 = vsel %vm460, %v4886, -inf
  %4907 = vmax.xlane.f32.xlu0 %v4906
  %v4908 = vpop.xlane.xlu0 %4907
  %v4909 = vsel %vm460, %v4887, -inf
  %4910 = vmax.xlane.f32.xlu0 %v4909
  %v4911 = vpop.xlane.xlu0 %4910
  %v4912 = vsub.f32 %v4880, %v4890
  %v4913 = vsub.f32 %v4881, %v4893
  %v4914 = vsub.f32 %v4882, %v4896
  %v4915 = vsub.f32 %v4883, %v4899
  %v4916 = vsub.f32 %v4884, %v4902
  %v4917 = vsub.f32 %v4885, %v4905
  %v4918 = vsub.f32 %v4886, %v4908
  %v4919 = vsub.f32 %v4887, %v4911
  %v4920 = vmul.f32 %v4912, 1.442695
  %v4921 = vpow.pop %v4920
  %v4922 = vmul.f32 %v4913, 1.442695
  %v4923 = vpow.pop %v4922
  %v4924 = vmul.f32 %v4914, 1.442695
  %v4925 = vpow.pop %v4924
  %v4926 = vmul.f32 %v4915, 1.442695
  %v4927 = vpow.pop %v4926
  %v4928 = vmul.f32 %v4916, 1.442695
  %v4929 = vpow.pop %v4928
  %v4930 = vmul.f32 %v4917, 1.442695
  %v4931 = vpow.pop %v4930
  %v4932 = vmul.f32 %v4918, 1.442695
  %v4933 = vpow.pop %v4932
  %v4934 = vmul.f32 %v4919, 1.442695
  %v4935 = vpow.pop %v4934
  %v4936 = vsel %vm460, %v4921, 0.0
  %4937 = vadd.xlane.f32.xlu0 %v4936
  %v4938 = vpop.xlane.xlu0 %4937
  %v4939 = vsel %vm460, %v4923, 0.0
  %4940 = vadd.xlane.f32.xlu0 %v4939
  %v4941 = vpop.xlane.xlu0 %4940
  %v4942 = vsel %vm460, %v4925, 0.0
  %4943 = vadd.xlane.f32.xlu0 %v4942
  %v4944 = vpop.xlane.xlu0 %4943
  %v4945 = vsel %vm460, %v4927, 0.0
  %4946 = vadd.xlane.f32.xlu0 %v4945
  %v4947 = vpop.xlane.xlu0 %4946
  %v4948 = vsel %vm460, %v4929, 0.0
  %4949 = vadd.xlane.f32.xlu0 %v4948
  %v4950 = vpop.xlane.xlu0 %4949
  %v4951 = vsel %vm460, %v4931, 0.0
  %4952 = vadd.xlane.f32.xlu0 %v4951
  %v4953 = vpop.xlane.xlu0 %4952
  %v4954 = vsel %vm460, %v4933, 0.0
  %4955 = vadd.xlane.f32.xlu0 %v4954
  %v4956 = vpop.xlane.xlu0 %4955
  %v4957 = vsel %vm460, %v4935, 0.0
  %4958 = vadd.xlane.f32.xlu0 %v4957
  %v4959 = vpop.xlane.xlu0 %4958
  %v4960 = vrcp.pop %v4938
  %v4961 = vrcp.pop %v4941
  %v4962 = vrcp.pop %v4944
  %v4963 = vrcp.pop %v4947
  %v4964 = vrcp.pop %v4950
  %v4965 = vrcp.pop %v4953
  %v4966 = vrcp.pop %v4956
  %v4967 = vrcp.pop %v4959
  %v4968 = vmul.f32 %v4921, %v4960
  %v4969 = vmul.f32 %v4923, %v4961
  %v4970 = vmul.f32 %v4925, %v4962
  %v4971 = vmul.f32 %v4927, %v4963
  %v4972 = vmul.f32 %v4929, %v4964
  %v4973 = vmul.f32 %v4931, %v4965
  %v4974 = vmul.f32 %v4933, %v4966
  %v4975 = vmul.f32 %v4935, %v4967
  %4976 = vrot.lane.b32.xlu0 %v3585, 48
  %v4977 = vpop.permute.xlu0 %4976
  %v4980 = vsel %vm460, %v4968, 0
  %4982 = vmatpush.msra.mxu0 0.0
  %4983 = vmatpush.msra.mxu0 0.0
  %4984 = vmatpush.msra.mxu0 0.0
  %4985 = vmatpush.msra.mxu0 0.0
  %4986 = vmatpush.msra.mxu0 0.0
  %4987 = vmatpush.msra.mxu0 0.0
  %4988 = vmatpush.msra.mxu0 0.0
  %4989 = vmatpush.msra.mxu0 0.0
  %4990 = vmatpush.msra.mxu0 0.0
  %4991 = vmatpush.msra.mxu0 0.0
  %4992 = vmatpush.msra.mxu0 0.0
  %4993 = vmatpush.msra.mxu0 0.0
  %4994 = vmatpush.msra.mxu0 0.0
  %4995 = vmatpush.msra.mxu0 0.0
  %4996 = vmatpush.msra.mxu0 0.0
  %4997 = vmatpush.msra.mxu0 %v4977
  %4998 = vmatmul.f32.gmra.mxu0 %v4980
  %v4999 = vpop.f32.mrf.mxu0
  %v5000 = vadd.f32 0.0, %v4999
  %5001 = vdwg.mxu0
  %5002 = vrot.lane.b32.xlu0 %v3588, 48
  %v5003 = vpop.permute.xlu0 %5002
  %v5006 = vsel %vm460, %v4969, 0
  %5008 = vmatpush.msra.mxu0 0.0
  %5009 = vmatpush.msra.mxu0 0.0
  %5010 = vmatpush.msra.mxu0 0.0
  %5011 = vmatpush.msra.mxu0 0.0
  %5012 = vmatpush.msra.mxu0 0.0
  %5013 = vmatpush.msra.mxu0 0.0
  %5014 = vmatpush.msra.mxu0 0.0
  %5015 = vmatpush.msra.mxu0 0.0
  %5016 = vmatpush.msra.mxu0 0.0
  %5017 = vmatpush.msra.mxu0 0.0
  %5018 = vmatpush.msra.mxu0 0.0
  %5019 = vmatpush.msra.mxu0 0.0
  %5020 = vmatpush.msra.mxu0 0.0
  %5021 = vmatpush.msra.mxu0 0.0
  %5022 = vmatpush.msra.mxu0 0.0
  %5023 = vmatpush.msra.mxu0 %v5003
  %5024 = vmatmul.f32.gmra.mxu0 %v5006
  %v5025 = vpop.f32.mrf.mxu0
  %v5026 = vadd.f32 0.0, %v5025
  %5027 = vdwg.mxu0
  %5028 = vrot.lane.b32.xlu0 %v3591, 48
  %v5029 = vpop.permute.xlu0 %5028
  %v5032 = vsel %vm460, %v4970, 0
  %5034 = vmatpush.msra.mxu0 0.0
  %5035 = vmatpush.msra.mxu0 0.0
  %5036 = vmatpush.msra.mxu0 0.0
  %5037 = vmatpush.msra.mxu0 0.0
  %5038 = vmatpush.msra.mxu0 0.0
  %5039 = vmatpush.msra.mxu0 0.0
  %5040 = vmatpush.msra.mxu0 0.0
  %5041 = vmatpush.msra.mxu0 0.0
  %5042 = vmatpush.msra.mxu0 0.0
  %5043 = vmatpush.msra.mxu0 0.0
  %5044 = vmatpush.msra.mxu0 0.0
  %5045 = vmatpush.msra.mxu0 0.0
  %5046 = vmatpush.msra.mxu0 0.0
  %5047 = vmatpush.msra.mxu0 0.0
  %5048 = vmatpush.msra.mxu0 0.0
  %5049 = vmatpush.msra.mxu0 %v5029
  %5050 = vmatmul.f32.gmra.mxu0 %v5032
  %v5051 = vpop.f32.mrf.mxu0
  %v5052 = vadd.f32 0.0, %v5051
  %5053 = vdwg.mxu0
  %5054 = vrot.lane.b32.xlu0 %v3594, 48
  %v5055 = vpop.permute.xlu0 %5054
  %v5058 = vsel %vm460, %v4971, 0
  %5060 = vmatpush.msra.mxu0 0.0
  %5061 = vmatpush.msra.mxu0 0.0
  %5062 = vmatpush.msra.mxu0 0.0
  %5063 = vmatpush.msra.mxu0 0.0
  %5064 = vmatpush.msra.mxu0 0.0
  %5065 = vmatpush.msra.mxu0 0.0
  %5066 = vmatpush.msra.mxu0 0.0
  %5067 = vmatpush.msra.mxu0 0.0
  %5068 = vmatpush.msra.mxu0 0.0
  %5069 = vmatpush.msra.mxu0 0.0
  %5070 = vmatpush.msra.mxu0 0.0
  %5071 = vmatpush.msra.mxu0 0.0
  %5072 = vmatpush.msra.mxu0 0.0
  %5073 = vmatpush.msra.mxu0 0.0
  %5074 = vmatpush.msra.mxu0 0.0
  %5075 = vmatpush.msra.mxu0 %v5055
  %5076 = vmatmul.f32.gmra.mxu0 %v5058
  %v5077 = vpop.f32.mrf.mxu0
  %v5078 = vadd.f32 0.0, %v5077
  %5079 = vdwg.mxu0
  %5080 = vrot.lane.b32.xlu0 %v3597, 48
  %v5081 = vpop.permute.xlu0 %5080
  %v5084 = vsel %vm460, %v4972, 0
  %5086 = vmatpush.msra.mxu0 0.0
  %5087 = vmatpush.msra.mxu0 0.0
  %5088 = vmatpush.msra.mxu0 0.0
  %5089 = vmatpush.msra.mxu0 0.0
  %5090 = vmatpush.msra.mxu0 0.0
  %5091 = vmatpush.msra.mxu0 0.0
  %5092 = vmatpush.msra.mxu0 0.0
  %5093 = vmatpush.msra.mxu0 0.0
  %5094 = vmatpush.msra.mxu0 0.0
  %5095 = vmatpush.msra.mxu0 0.0
  %5096 = vmatpush.msra.mxu0 0.0
  %5097 = vmatpush.msra.mxu0 0.0
  %5098 = vmatpush.msra.mxu0 0.0
  %5099 = vmatpush.msra.mxu0 0.0
  %5100 = vmatpush.msra.mxu0 0.0
  %5101 = vmatpush.msra.mxu0 %v5081
  %5102 = vmatmul.f32.gmra.mxu0 %v5084
  %v5103 = vpop.f32.mrf.mxu0
  %v5104 = vadd.f32 0.0, %v5103
  %5105 = vdwg.mxu0
  %5106 = vrot.lane.b32.xlu0 %v3600, 48
  %v5107 = vpop.permute.xlu0 %5106
  %v5110 = vsel %vm460, %v4973, 0
  %5112 = vmatpush.msra.mxu0 0.0
  %5113 = vmatpush.msra.mxu0 0.0
  %5114 = vmatpush.msra.mxu0 0.0
  %5115 = vmatpush.msra.mxu0 0.0
  %5116 = vmatpush.msra.mxu0 0.0
  %5117 = vmatpush.msra.mxu0 0.0
  %5118 = vmatpush.msra.mxu0 0.0
  %5119 = vmatpush.msra.mxu0 0.0
  %5120 = vmatpush.msra.mxu0 0.0
  %5121 = vmatpush.msra.mxu0 0.0
  %5122 = vmatpush.msra.mxu0 0.0
  %5123 = vmatpush.msra.mxu0 0.0
  %5124 = vmatpush.msra.mxu0 0.0
  %5125 = vmatpush.msra.mxu0 0.0
  %5126 = vmatpush.msra.mxu0 0.0
  %5127 = vmatpush.msra.mxu0 %v5107
  %5128 = vmatmul.f32.gmra.mxu0 %v5110
  %v5129 = vpop.f32.mrf.mxu0
  %v5130 = vadd.f32 0.0, %v5129
  %5131 = vdwg.mxu0
  %5132 = vrot.lane.b32.xlu0 %v3603, 48
  %v5133 = vpop.permute.xlu0 %5132
  %v5136 = vsel %vm460, %v4974, 0
  %5138 = vmatpush.msra.mxu0 0.0
  %5139 = vmatpush.msra.mxu0 0.0
  %5140 = vmatpush.msra.mxu0 0.0
  %5141 = vmatpush.msra.mxu0 0.0
  %5142 = vmatpush.msra.mxu0 0.0
  %5143 = vmatpush.msra.mxu0 0.0
  %5144 = vmatpush.msra.mxu0 0.0
  %5145 = vmatpush.msra.mxu0 0.0
  %5146 = vmatpush.msra.mxu0 0.0
  %5147 = vmatpush.msra.mxu0 0.0
  %5148 = vmatpush.msra.mxu0 0.0
  %5149 = vmatpush.msra.mxu0 0.0
  %5150 = vmatpush.msra.mxu0 0.0
  %5151 = vmatpush.msra.mxu0 0.0
  %5152 = vmatpush.msra.mxu0 0.0
  %5153 = vmatpush.msra.mxu0 %v5133
  %5154 = vmatmul.f32.gmra.mxu0 %v5136
  %v5155 = vpop.f32.mrf.mxu0
  %v5156 = vadd.f32 0.0, %v5155
  %5157 = vdwg.mxu0
  %5158 = vrot.lane.b32.xlu0 %v3606, 48
  %v5159 = vpop.permute.xlu0 %5158
  %v5162 = vsel %vm460, %v4975, 0
  %5164 = vmatpush.msra.mxu0 0.0
  %5165 = vmatpush.msra.mxu0 0.0
  %5166 = vmatpush.msra.mxu0 0.0
  %5167 = vmatpush.msra.mxu0 0.0
  %5168 = vmatpush.msra.mxu0 0.0
  %5169 = vmatpush.msra.mxu0 0.0
  %5170 = vmatpush.msra.mxu0 0.0
  %5171 = vmatpush.msra.mxu0 0.0
  %5172 = vmatpush.msra.mxu0 0.0
  %5173 = vmatpush.msra.mxu0 0.0
  %5174 = vmatpush.msra.mxu0 0.0
  %5175 = vmatpush.msra.mxu0 0.0
  %5176 = vmatpush.msra.mxu0 0.0
  %5177 = vmatpush.msra.mxu0 0.0
  %5178 = vmatpush.msra.mxu0 0.0
  %5179 = vmatpush.msra.mxu0 %v5159
  %5180 = vmatmul.f32.gmra.mxu0 %v5162
  %v5181 = vpop.f32.mrf.mxu0
  %v5182 = vadd.f32 0.0, %v5181
  %5183 = vdwg.mxu0
  %5184 = vrot.lane.b32.xlu0 %v3585, 104
  %v5185 = vpop.permute.xlu0 %5184
  %5186 = vrot.lane.b32.xlu0 %v3585, 72
  %v5187 = vpop.permute.xlu0 %5186
  %v5188 = vsel %vm460, %v5185, 0
  %v5190 = vsel %vm460, %v5187, 0
  %5192 = vmatpush.xpose.msra.mxu0 0.0
  %5193 = vmatpush.xpose.msra.mxu0 0.0
  %5194 = vmatpush.xpose.msra.mxu0 0.0
  %5195 = vmatpush.xpose.msra.mxu0 0.0
  %5196 = vmatpush.xpose.msra.mxu0 0.0
  %5197 = vmatpush.xpose.msra.mxu0 0.0
  %5198 = vmatpush.xpose.msra.mxu0 0.0
  %5199 = vmatpush.xpose.msra.mxu0 0.0
  %5200 = vmatpush.xpose.msra.mxu0 0.0
  %5201 = vmatpush.xpose.msra.mxu0 0.0
  %5202 = vmatpush.xpose.msra.mxu0 0.0
  %5203 = vmatpush.xpose.msra.mxu0 0.0
  %5204 = vmatpush.xpose.msra.mxu0 0.0
  %5205 = vmatpush.xpose.msra.mxu0 0.0
  %5206 = vmatpush.xpose.msra.mxu0 0.0
  %5207 = vmatpush.xpose.msra.mxu0 %v5190
  %5208 = vmatmul.f32.gmra.mxu0 %v5188
  %v5209 = vpop.f32.mrf.mxu0
  %v5210 = vadd.f32 0.0, %v5209
  %5211 = vdwg.mxu0
  %5212 = vrot.lane.b32.xlu0 %v3588, 104
  %v5213 = vpop.permute.xlu0 %5212
  %5214 = vrot.lane.b32.xlu0 %v3588, 72
  %v5215 = vpop.permute.xlu0 %5214
  %v5216 = vsel %vm460, %v5213, 0
  %v5218 = vsel %vm460, %v5215, 0
  %5220 = vmatpush.xpose.msra.mxu0 0.0
  %5221 = vmatpush.xpose.msra.mxu0 0.0
  %5222 = vmatpush.xpose.msra.mxu0 0.0
  %5223 = vmatpush.xpose.msra.mxu0 0.0
  %5224 = vmatpush.xpose.msra.mxu0 0.0
  %5225 = vmatpush.xpose.msra.mxu0 0.0
  %5226 = vmatpush.xpose.msra.mxu0 0.0
  %5227 = vmatpush.xpose.msra.mxu0 0.0
  %5228 = vmatpush.xpose.msra.mxu0 0.0
  %5229 = vmatpush.xpose.msra.mxu0 0.0
  %5230 = vmatpush.xpose.msra.mxu0 0.0
  %5231 = vmatpush.xpose.msra.mxu0 0.0
  %5232 = vmatpush.xpose.msra.mxu0 0.0
  %5233 = vmatpush.xpose.msra.mxu0 0.0
  %5234 = vmatpush.xpose.msra.mxu0 0.0
  %5235 = vmatpush.xpose.msra.mxu0 %v5218
  %5236 = vmatmul.f32.gmra.mxu0 %v5216
  %v5237 = vpop.f32.mrf.mxu0
  %v5238 = vadd.f32 0.0, %v5237
  %5239 = vdwg.mxu0
  %5240 = vrot.lane.b32.xlu0 %v3591, 104
  %v5241 = vpop.permute.xlu0 %5240
  %5242 = vrot.lane.b32.xlu0 %v3591, 72
  %v5243 = vpop.permute.xlu0 %5242
  %v5244 = vsel %vm460, %v5241, 0
  %v5246 = vsel %vm460, %v5243, 0
  %5248 = vmatpush.xpose.msra.mxu0 0.0
  %5249 = vmatpush.xpose.msra.mxu0 0.0
  %5250 = vmatpush.xpose.msra.mxu0 0.0
  %5251 = vmatpush.xpose.msra.mxu0 0.0
  %5252 = vmatpush.xpose.msra.mxu0 0.0
  %5253 = vmatpush.xpose.msra.mxu0 0.0
  %5254 = vmatpush.xpose.msra.mxu0 0.0
  %5255 = vmatpush.xpose.msra.mxu0 0.0
  %5256 = vmatpush.xpose.msra.mxu0 0.0
  %5257 = vmatpush.xpose.msra.mxu0 0.0
  %5258 = vmatpush.xpose.msra.mxu0 0.0
  %5259 = vmatpush.xpose.msra.mxu0 0.0
  %5260 = vmatpush.xpose.msra.mxu0 0.0
  %5261 = vmatpush.xpose.msra.mxu0 0.0
  %5262 = vmatpush.xpose.msra.mxu0 0.0
  %5263 = vmatpush.xpose.msra.mxu0 %v5246
  %5264 = vmatmul.f32.gmra.mxu0 %v5244
  %v5265 = vpop.f32.mrf.mxu0
  %v5266 = vadd.f32 0.0, %v5265
  %5267 = vdwg.mxu0
  %5268 = vrot.lane.b32.xlu0 %v3594, 104
  %v5269 = vpop.permute.xlu0 %5268
  %5270 = vrot.lane.b32.xlu0 %v3594, 72
  %v5271 = vpop.permute.xlu0 %5270
  %v5272 = vsel %vm460, %v5269, 0
  %v5274 = vsel %vm460, %v5271, 0
  %5276 = vmatpush.xpose.msra.mxu0 0.0
  %5277 = vmatpush.xpose.msra.mxu0 0.0
  %5278 = vmatpush.xpose.msra.mxu0 0.0
  %5279 = vmatpush.xpose.msra.mxu0 0.0
  %5280 = vmatpush.xpose.msra.mxu0 0.0
  %5281 = vmatpush.xpose.msra.mxu0 0.0
  %5282 = vmatpush.xpose.msra.mxu0 0.0
  %5283 = vmatpush.xpose.msra.mxu0 0.0
  %5284 = vmatpush.xpose.msra.mxu0 0.0
  %5285 = vmatpush.xpose.msra.mxu0 0.0
  %5286 = vmatpush.xpose.msra.mxu0 0.0
  %5287 = vmatpush.xpose.msra.mxu0 0.0
  %5288 = vmatpush.xpose.msra.mxu0 0.0
  %5289 = vmatpush.xpose.msra.mxu0 0.0
  %5290 = vmatpush.xpose.msra.mxu0 0.0
  %5291 = vmatpush.xpose.msra.mxu0 %v5274
  %5292 = vmatmul.f32.gmra.mxu0 %v5272
  %v5293 = vpop.f32.mrf.mxu0
  %v5294 = vadd.f32 0.0, %v5293
  %5295 = vdwg.mxu0
  %5296 = vrot.lane.b32.xlu0 %v3597, 104
  %v5297 = vpop.permute.xlu0 %5296
  %5298 = vrot.lane.b32.xlu0 %v3597, 72
  %v5299 = vpop.permute.xlu0 %5298
  %v5300 = vsel %vm460, %v5297, 0
  %v5302 = vsel %vm460, %v5299, 0
  %5304 = vmatpush.xpose.msra.mxu0 0.0
  %5305 = vmatpush.xpose.msra.mxu0 0.0
  %5306 = vmatpush.xpose.msra.mxu0 0.0
  %5307 = vmatpush.xpose.msra.mxu0 0.0
  %5308 = vmatpush.xpose.msra.mxu0 0.0
  %5309 = vmatpush.xpose.msra.mxu0 0.0
  %5310 = vmatpush.xpose.msra.mxu0 0.0
  %5311 = vmatpush.xpose.msra.mxu0 0.0
  %5312 = vmatpush.xpose.msra.mxu0 0.0
  %5313 = vmatpush.xpose.msra.mxu0 0.0
  %5314 = vmatpush.xpose.msra.mxu0 0.0
  %5315 = vmatpush.xpose.msra.mxu0 0.0
  %5316 = vmatpush.xpose.msra.mxu0 0.0
  %5317 = vmatpush.xpose.msra.mxu0 0.0
  %5318 = vmatpush.xpose.msra.mxu0 0.0
  %5319 = vmatpush.xpose.msra.mxu0 %v5302
  %5320 = vmatmul.f32.gmra.mxu0 %v5300
  %v5321 = vpop.f32.mrf.mxu0
  %v5322 = vadd.f32 0.0, %v5321
  %5323 = vdwg.mxu0
  %5324 = vrot.lane.b32.xlu0 %v3600, 104
  %v5325 = vpop.permute.xlu0 %5324
  %5326 = vrot.lane.b32.xlu0 %v3600, 72
  %v5327 = vpop.permute.xlu0 %5326
  %v5328 = vsel %vm460, %v5325, 0
  %v5330 = vsel %vm460, %v5327, 0
  %5332 = vmatpush.xpose.msra.mxu0 0.0
  %5333 = vmatpush.xpose.msra.mxu0 0.0
  %5334 = vmatpush.xpose.msra.mxu0 0.0
  %5335 = vmatpush.xpose.msra.mxu0 0.0
  %5336 = vmatpush.xpose.msra.mxu0 0.0
  %5337 = vmatpush.xpose.msra.mxu0 0.0
  %5338 = vmatpush.xpose.msra.mxu0 0.0
  %5339 = vmatpush.xpose.msra.mxu0 0.0
  %5340 = vmatpush.xpose.msra.mxu0 0.0
  %5341 = vmatpush.xpose.msra.mxu0 0.0
  %5342 = vmatpush.xpose.msra.mxu0 0.0
  %5343 = vmatpush.xpose.msra.mxu0 0.0
  %5344 = vmatpush.xpose.msra.mxu0 0.0
  %5345 = vmatpush.xpose.msra.mxu0 0.0
  %5346 = vmatpush.xpose.msra.mxu0 0.0
  %5347 = vmatpush.xpose.msra.mxu0 %v5330
  %5348 = vmatmul.f32.gmra.mxu0 %v5328
  %v5349 = vpop.f32.mrf.mxu0
  %v5350 = vadd.f32 0.0, %v5349
  %5351 = vdwg.mxu0
  %5352 = vrot.lane.b32.xlu0 %v3603, 104
  %v5353 = vpop.permute.xlu0 %5352
  %5354 = vrot.lane.b32.xlu0 %v3603, 72
  %v5355 = vpop.permute.xlu0 %5354
  %v5356 = vsel %vm460, %v5353, 0
  %v5358 = vsel %vm460, %v5355, 0
  %5360 = vmatpush.xpose.msra.mxu0 0.0
  %5361 = vmatpush.xpose.msra.mxu0 0.0
  %5362 = vmatpush.xpose.msra.mxu0 0.0
  %5363 = vmatpush.xpose.msra.mxu0 0.0
  %5364 = vmatpush.xpose.msra.mxu0 0.0
  %5365 = vmatpush.xpose.msra.mxu0 0.0
  %5366 = vmatpush.xpose.msra.mxu0 0.0
  %5367 = vmatpush.xpose.msra.mxu0 0.0
  %5368 = vmatpush.xpose.msra.mxu0 0.0
  %5369 = vmatpush.xpose.msra.mxu0 0.0
  %5370 = vmatpush.xpose.msra.mxu0 0.0
  %5371 = vmatpush.xpose.msra.mxu0 0.0
  %5372 = vmatpush.xpose.msra.mxu0 0.0
  %5373 = vmatpush.xpose.msra.mxu0 0.0
  %5374 = vmatpush.xpose.msra.mxu0 0.0
  %5375 = vmatpush.xpose.msra.mxu0 %v5358
  %5376 = vmatmul.f32.gmra.mxu0 %v5356
  %v5377 = vpop.f32.mrf.mxu0
  %v5378 = vadd.f32 0.0, %v5377
  %5379 = vdwg.mxu0
  %5380 = vrot.lane.b32.xlu0 %v3606, 104
  %v5381 = vpop.permute.xlu0 %5380
  %5382 = vrot.lane.b32.xlu0 %v3606, 72
  %v5383 = vpop.permute.xlu0 %5382
  %v5384 = vsel %vm460, %v5381, 0
  %v5386 = vsel %vm460, %v5383, 0
  %5388 = vmatpush.xpose.msra.mxu0 0.0
  %5389 = vmatpush.xpose.msra.mxu0 0.0
  %5390 = vmatpush.xpose.msra.mxu0 0.0
  %5391 = vmatpush.xpose.msra.mxu0 0.0
  %5392 = vmatpush.xpose.msra.mxu0 0.0
  %5393 = vmatpush.xpose.msra.mxu0 0.0
  %5394 = vmatpush.xpose.msra.mxu0 0.0
  %5395 = vmatpush.xpose.msra.mxu0 0.0
  %5396 = vmatpush.xpose.msra.mxu0 0.0
  %5397 = vmatpush.xpose.msra.mxu0 0.0
  %5398 = vmatpush.xpose.msra.mxu0 0.0
  %5399 = vmatpush.xpose.msra.mxu0 0.0
  %5400 = vmatpush.xpose.msra.mxu0 0.0
  %5401 = vmatpush.xpose.msra.mxu0 0.0
  %5402 = vmatpush.xpose.msra.mxu0 0.0
  %5403 = vmatpush.xpose.msra.mxu0 %v5386
  %5404 = vmatmul.f32.gmra.mxu0 %v5384
  %v5405 = vpop.f32.mrf.mxu0
  %v5406 = vadd.f32 0.0, %v5405
  %5407 = vdwg.mxu0
  %v5408 = vmul.f32 %v5210, 0.35355338
  %v5409 = vmul.f32 %v5238, 0.35355338
  %v5410 = vmul.f32 %v5266, 0.35355338
  %v5411 = vmul.f32 %v5294, 0.35355338
  %v5412 = vmul.f32 %v5322, 0.35355338
  %v5413 = vmul.f32 %v5350, 0.35355338
  %v5414 = vmul.f32 %v5378, 0.35355338
  %v5415 = vmul.f32 %v5406, 0.35355338
  %v5416 = vsel %vm460, %v5408, -inf
  %5417 = vmax.xlane.f32.xlu0 %v5416
  %v5418 = vpop.xlane.xlu0 %5417
  %v5419 = vsel %vm460, %v5409, -inf
  %5420 = vmax.xlane.f32.xlu0 %v5419
  %v5421 = vpop.xlane.xlu0 %5420
  %v5422 = vsel %vm460, %v5410, -inf
  %5423 = vmax.xlane.f32.xlu0 %v5422
  %v5424 = vpop.xlane.xlu0 %5423
  %v5425 = vsel %vm460, %v5411, -inf
  %5426 = vmax.xlane.f32.xlu0 %v5425
  %v5427 = vpop.xlane.xlu0 %5426
  %v5428 = vsel %vm460, %v5412, -inf
  %5429 = vmax.xlane.f32.xlu0 %v5428
  %v5430 = vpop.xlane.xlu0 %5429
  %v5431 = vsel %vm460, %v5413, -inf
  %5432 = vmax.xlane.f32.xlu0 %v5431
  %v5433 = vpop.xlane.xlu0 %5432
  %v5434 = vsel %vm460, %v5414, -inf
  %5435 = vmax.xlane.f32.xlu0 %v5434
  %v5436 = vpop.xlane.xlu0 %5435
  %v5437 = vsel %vm460, %v5415, -inf
  %5438 = vmax.xlane.f32.xlu0 %v5437
  %v5439 = vpop.xlane.xlu0 %5438
  %v5440 = vsub.f32 %v5408, %v5418
  %v5441 = vsub.f32 %v5409, %v5421
  %v5442 = vsub.f32 %v5410, %v5424
  %v5443 = vsub.f32 %v5411, %v5427
  %v5444 = vsub.f32 %v5412, %v5430
  %v5445 = vsub.f32 %v5413, %v5433
  %v5446 = vsub.f32 %v5414, %v5436
  %v5447 = vsub.f32 %v5415, %v5439
  %v5448 = vmul.f32 %v5440, 1.442695
  %v5449 = vpow.pop %v5448
  %v5450 = vmul.f32 %v5441, 1.442695
  %v5451 = vpow.pop %v5450
  %v5452 = vmul.f32 %v5442, 1.442695
  %v5453 = vpow.pop %v5452
  %v5454 = vmul.f32 %v5443, 1.442695
  %v5455 = vpow.pop %v5454
  %v5456 = vmul.f32 %v5444, 1.442695
  %v5457 = vpow.pop %v5456
  %v5458 = vmul.f32 %v5445, 1.442695
  %v5459 = vpow.pop %v5458
  %v5460 = vmul.f32 %v5446, 1.442695
  %v5461 = vpow.pop %v5460
  %v5462 = vmul.f32 %v5447, 1.442695
  %v5463 = vpow.pop %v5462
  %v5464 = vsel %vm460, %v5449, 0.0
  %5465 = vadd.xlane.f32.xlu0 %v5464
  %v5466 = vpop.xlane.xlu0 %5465
  %v5467 = vsel %vm460, %v5451, 0.0
  %5468 = vadd.xlane.f32.xlu0 %v5467
  %v5469 = vpop.xlane.xlu0 %5468
  %v5470 = vsel %vm460, %v5453, 0.0
  %5471 = vadd.xlane.f32.xlu0 %v5470
  %v5472 = vpop.xlane.xlu0 %5471
  %v5473 = vsel %vm460, %v5455, 0.0
  %5474 = vadd.xlane.f32.xlu0 %v5473
  %v5475 = vpop.xlane.xlu0 %5474
  %v5476 = vsel %vm460, %v5457, 0.0
  %5477 = vadd.xlane.f32.xlu0 %v5476
  %v5478 = vpop.xlane.xlu0 %5477
  %v5479 = vsel %vm460, %v5459, 0.0
  %5480 = vadd.xlane.f32.xlu0 %v5479
  %v5481 = vpop.xlane.xlu0 %5480
  %v5482 = vsel %vm460, %v5461, 0.0
  %5483 = vadd.xlane.f32.xlu0 %v5482
  %v5484 = vpop.xlane.xlu0 %5483
  %v5485 = vsel %vm460, %v5463, 0.0
  %5486 = vadd.xlane.f32.xlu0 %v5485
  %v5487 = vpop.xlane.xlu0 %5486
  %v5488 = vrcp.pop %v5466
  %v5489 = vrcp.pop %v5469
  %v5490 = vrcp.pop %v5472
  %v5491 = vrcp.pop %v5475
  %v5492 = vrcp.pop %v5478
  %v5493 = vrcp.pop %v5481
  %v5494 = vrcp.pop %v5484
  %v5495 = vrcp.pop %v5487
  %v5496 = vmul.f32 %v5449, %v5488
  %v5497 = vmul.f32 %v5451, %v5489
  %v5498 = vmul.f32 %v5453, %v5490
  %v5499 = vmul.f32 %v5455, %v5491
  %v5500 = vmul.f32 %v5457, %v5492
  %v5501 = vmul.f32 %v5459, %v5493
  %v5502 = vmul.f32 %v5461, %v5494
  %v5503 = vmul.f32 %v5463, %v5495
  %5504 = vrot.lane.b32.xlu0 %v3585, 40
  %v5505 = vpop.permute.xlu0 %5504
  %v5508 = vsel %vm460, %v5496, 0
  %5510 = vmatpush.msra.mxu0 0.0
  %5511 = vmatpush.msra.mxu0 0.0
  %5512 = vmatpush.msra.mxu0 0.0
  %5513 = vmatpush.msra.mxu0 0.0
  %5514 = vmatpush.msra.mxu0 0.0
  %5515 = vmatpush.msra.mxu0 0.0
  %5516 = vmatpush.msra.mxu0 0.0
  %5517 = vmatpush.msra.mxu0 0.0
  %5518 = vmatpush.msra.mxu0 0.0
  %5519 = vmatpush.msra.mxu0 0.0
  %5520 = vmatpush.msra.mxu0 0.0
  %5521 = vmatpush.msra.mxu0 0.0
  %5522 = vmatpush.msra.mxu0 0.0
  %5523 = vmatpush.msra.mxu0 0.0
  %5524 = vmatpush.msra.mxu0 0.0
  %5525 = vmatpush.msra.mxu0 %v5505
  %5526 = vmatmul.f32.gmra.mxu0 %v5508
  %v5527 = vpop.f32.mrf.mxu0
  %v5528 = vadd.f32 0.0, %v5527
  %5529 = vdwg.mxu0
  %5530 = vrot.lane.b32.xlu0 %v3588, 40
  %v5531 = vpop.permute.xlu0 %5530
  %v5534 = vsel %vm460, %v5497, 0
  %5536 = vmatpush.msra.mxu0 0.0
  %5537 = vmatpush.msra.mxu0 0.0
  %5538 = vmatpush.msra.mxu0 0.0
  %5539 = vmatpush.msra.mxu0 0.0
  %5540 = vmatpush.msra.mxu0 0.0
  %5541 = vmatpush.msra.mxu0 0.0
  %5542 = vmatpush.msra.mxu0 0.0
  %5543 = vmatpush.msra.mxu0 0.0
  %5544 = vmatpush.msra.mxu0 0.0
  %5545 = vmatpush.msra.mxu0 0.0
  %5546 = vmatpush.msra.mxu0 0.0
  %5547 = vmatpush.msra.mxu0 0.0
  %5548 = vmatpush.msra.mxu0 0.0
  %5549 = vmatpush.msra.mxu0 0.0
  %5550 = vmatpush.msra.mxu0 0.0
  %5551 = vmatpush.msra.mxu0 %v5531
  %5552 = vmatmul.f32.gmra.mxu0 %v5534
  %v5553 = vpop.f32.mrf.mxu0
  %v5554 = vadd.f32 0.0, %v5553
  %5555 = vdwg.mxu0
  %5556 = vrot.lane.b32.xlu0 %v3591, 40
  %v5557 = vpop.permute.xlu0 %5556
  %v5560 = vsel %vm460, %v5498, 0
  %5562 = vmatpush.msra.mxu0 0.0
  %5563 = vmatpush.msra.mxu0 0.0
  %5564 = vmatpush.msra.mxu0 0.0
  %5565 = vmatpush.msra.mxu0 0.0
  %5566 = vmatpush.msra.mxu0 0.0
  %5567 = vmatpush.msra.mxu0 0.0
  %5568 = vmatpush.msra.mxu0 0.0
  %5569 = vmatpush.msra.mxu0 0.0
  %5570 = vmatpush.msra.mxu0 0.0
  %5571 = vmatpush.msra.mxu0 0.0
  %5572 = vmatpush.msra.mxu0 0.0
  %5573 = vmatpush.msra.mxu0 0.0
  %5574 = vmatpush.msra.mxu0 0.0
  %5575 = vmatpush.msra.mxu0 0.0
  %5576 = vmatpush.msra.mxu0 0.0
  %5577 = vmatpush.msra.mxu0 %v5557
  %5578 = vmatmul.f32.gmra.mxu0 %v5560
  %v5579 = vpop.f32.mrf.mxu0
  %v5580 = vadd.f32 0.0, %v5579
  %5581 = vdwg.mxu0
  %5582 = vrot.lane.b32.xlu0 %v3594, 40
  %v5583 = vpop.permute.xlu0 %5582
  %v5586 = vsel %vm460, %v5499, 0
  %5588 = vmatpush.msra.mxu0 0.0
  %5589 = vmatpush.msra.mxu0 0.0
  %5590 = vmatpush.msra.mxu0 0.0
  %5591 = vmatpush.msra.mxu0 0.0
  %5592 = vmatpush.msra.mxu0 0.0
  %5593 = vmatpush.msra.mxu0 0.0
  %5594 = vmatpush.msra.mxu0 0.0
  %5595 = vmatpush.msra.mxu0 0.0
  %5596 = vmatpush.msra.mxu0 0.0
  %5597 = vmatpush.msra.mxu0 0.0
  %5598 = vmatpush.msra.mxu0 0.0
  %5599 = vmatpush.msra.mxu0 0.0
  %5600 = vmatpush.msra.mxu0 0.0
  %5601 = vmatpush.msra.mxu0 0.0
  %5602 = vmatpush.msra.mxu0 0.0
  %5603 = vmatpush.msra.mxu0 %v5583
  %5604 = vmatmul.f32.gmra.mxu0 %v5586
  %v5605 = vpop.f32.mrf.mxu0
  %v5606 = vadd.f32 0.0, %v5605
  %5607 = vdwg.mxu0
  %5608 = vrot.lane.b32.xlu0 %v3597, 40
  %v5609 = vpop.permute.xlu0 %5608
  %v5612 = vsel %vm460, %v5500, 0
  %5614 = vmatpush.msra.mxu0 0.0
  %5615 = vmatpush.msra.mxu0 0.0
  %5616 = vmatpush.msra.mxu0 0.0
  %5617 = vmatpush.msra.mxu0 0.0
  %5618 = vmatpush.msra.mxu0 0.0
  %5619 = vmatpush.msra.mxu0 0.0
  %5620 = vmatpush.msra.mxu0 0.0
  %5621 = vmatpush.msra.mxu0 0.0
  %5622 = vmatpush.msra.mxu0 0.0
  %5623 = vmatpush.msra.mxu0 0.0
  %5624 = vmatpush.msra.mxu0 0.0
  %5625 = vmatpush.msra.mxu0 0.0
  %5626 = vmatpush.msra.mxu0 0.0
  %5627 = vmatpush.msra.mxu0 0.0
  %5628 = vmatpush.msra.mxu0 0.0
  %5629 = vmatpush.msra.mxu0 %v5609
  %5630 = vmatmul.f32.gmra.mxu0 %v5612
  %v5631 = vpop.f32.mrf.mxu0
  %v5632 = vadd.f32 0.0, %v5631
  %5633 = vdwg.mxu0
  %5634 = vrot.lane.b32.xlu0 %v3600, 40
  %v5635 = vpop.permute.xlu0 %5634
  %v5638 = vsel %vm460, %v5501, 0
  %5640 = vmatpush.msra.mxu0 0.0
  %5641 = vmatpush.msra.mxu0 0.0
  %5642 = vmatpush.msra.mxu0 0.0
  %5643 = vmatpush.msra.mxu0 0.0
  %5644 = vmatpush.msra.mxu0 0.0
  %5645 = vmatpush.msra.mxu0 0.0
  %5646 = vmatpush.msra.mxu0 0.0
  %5647 = vmatpush.msra.mxu0 0.0
  %5648 = vmatpush.msra.mxu0 0.0
  %5649 = vmatpush.msra.mxu0 0.0
  %5650 = vmatpush.msra.mxu0 0.0
  %5651 = vmatpush.msra.mxu0 0.0
  %5652 = vmatpush.msra.mxu0 0.0
  %5653 = vmatpush.msra.mxu0 0.0
  %5654 = vmatpush.msra.mxu0 0.0
  %5655 = vmatpush.msra.mxu0 %v5635
  %5656 = vmatmul.f32.gmra.mxu0 %v5638
  %v5657 = vpop.f32.mrf.mxu0
  %v5658 = vadd.f32 0.0, %v5657
  %5659 = vdwg.mxu0
  %5660 = vrot.lane.b32.xlu0 %v3603, 40
  %v5661 = vpop.permute.xlu0 %5660
  %v5664 = vsel %vm460, %v5502, 0
  %5666 = vmatpush.msra.mxu0 0.0
  %5667 = vmatpush.msra.mxu0 0.0
  %5668 = vmatpush.msra.mxu0 0.0
  %5669 = vmatpush.msra.mxu0 0.0
  %5670 = vmatpush.msra.mxu0 0.0
  %5671 = vmatpush.msra.mxu0 0.0
  %5672 = vmatpush.msra.mxu0 0.0
  %5673 = vmatpush.msra.mxu0 0.0
  %5674 = vmatpush.msra.mxu0 0.0
  %5675 = vmatpush.msra.mxu0 0.0
  %5676 = vmatpush.msra.mxu0 0.0
  %5677 = vmatpush.msra.mxu0 0.0
  %5678 = vmatpush.msra.mxu0 0.0
  %5679 = vmatpush.msra.mxu0 0.0
  %5680 = vmatpush.msra.mxu0 0.0
  %5681 = vmatpush.msra.mxu0 %v5661
  %5682 = vmatmul.f32.gmra.mxu0 %v5664
  %v5683 = vpop.f32.mrf.mxu0
  %v5684 = vadd.f32 0.0, %v5683
  %5685 = vdwg.mxu0
  %5686 = vrot.lane.b32.xlu0 %v3606, 40
  %v5687 = vpop.permute.xlu0 %5686
  %v5690 = vsel %vm460, %v5503, 0
  %5692 = vmatpush.msra.mxu0 0.0
  %5693 = vmatpush.msra.mxu0 0.0
  %5694 = vmatpush.msra.mxu0 0.0
  %5695 = vmatpush.msra.mxu0 0.0
  %5696 = vmatpush.msra.mxu0 0.0
  %5697 = vmatpush.msra.mxu0 0.0
  %5698 = vmatpush.msra.mxu0 0.0
  %5699 = vmatpush.msra.mxu0 0.0
  %5700 = vmatpush.msra.mxu0 0.0
  %5701 = vmatpush.msra.mxu0 0.0
  %5702 = vmatpush.msra.mxu0 0.0
  %5703 = vmatpush.msra.mxu0 0.0
  %5704 = vmatpush.msra.mxu0 0.0
  %5705 = vmatpush.msra.mxu0 0.0
  %5706 = vmatpush.msra.mxu0 0.0
  %5707 = vmatpush.msra.mxu0 %v5687
  %5708 = vmatmul.f32.gmra.mxu0 %v5690
  %v5709 = vpop.f32.mrf.mxu0
  %v5710 = vadd.f32 0.0, %v5709
  %5711 = vdwg.mxu0
  %5720 = vrot.lane.b32.xlu0 %v4472, 8
  %v5721 = vpop.permute.xlu0 %5720
  %5722 = vrot.lane.b32.xlu0 %v4498, 8
  %v5723 = vpop.permute.xlu0 %5722
  %5724 = vrot.lane.b32.xlu0 %v4524, 8
  %v5725 = vpop.permute.xlu0 %5724
  %5726 = vrot.lane.b32.xlu0 %v4550, 8
  %v5727 = vpop.permute.xlu0 %5726
  %5728 = vrot.lane.b32.xlu0 %v4576, 8
  %v5729 = vpop.permute.xlu0 %5728
  %5730 = vrot.lane.b32.xlu0 %v4602, 8
  %v5731 = vpop.permute.xlu0 %5730
  %5732 = vrot.lane.b32.xlu0 %v4628, 8
  %v5733 = vpop.permute.xlu0 %5732
  %5734 = vrot.lane.b32.xlu0 %v4654, 8
  %v5735 = vpop.permute.xlu0 %5734
  %5752 = vrot.lane.b32.xlu0 %v5000, 16
  %v5753 = vpop.permute.xlu0 %5752
  %5754 = vrot.lane.b32.xlu0 %v5026, 16
  %v5755 = vpop.permute.xlu0 %5754
  %5756 = vrot.lane.b32.xlu0 %v5052, 16
  %v5757 = vpop.permute.xlu0 %5756
  %5758 = vrot.lane.b32.xlu0 %v5078, 16
  %v5759 = vpop.permute.xlu0 %5758
  %5760 = vrot.lane.b32.xlu0 %v5104, 16
  %v5761 = vpop.permute.xlu0 %5760
  %5762 = vrot.lane.b32.xlu0 %v5130, 16
  %v5763 = vpop.permute.xlu0 %5762
  %5764 = vrot.lane.b32.xlu0 %v5156, 16
  %v5765 = vpop.permute.xlu0 %5764
  %5766 = vrot.lane.b32.xlu0 %v5182, 16
  %v5767 = vpop.permute.xlu0 %5766
  %5784 = vrot.lane.b32.xlu0 %v5528, 24
  %v5785 = vpop.permute.xlu0 %5784
  %5786 = vrot.lane.b32.xlu0 %v5554, 24
  %v5787 = vpop.permute.xlu0 %5786
  %5788 = vrot.lane.b32.xlu0 %v5580, 24
  %v5789 = vpop.permute.xlu0 %5788
  %5790 = vrot.lane.b32.xlu0 %v5606, 24
  %v5791 = vpop.permute.xlu0 %5790
  %5792 = vrot.lane.b32.xlu0 %v5632, 24
  %v5793 = vpop.permute.xlu0 %5792
  %5794 = vrot.lane.b32.xlu0 %v5658, 24
  %v5795 = vpop.permute.xlu0 %5794
  %5796 = vrot.lane.b32.xlu0 %v5684, 24
  %v5797 = vpop.permute.xlu0 %5796
  %5798 = vrot.lane.b32.xlu0 %v5710, 24
  %v5799 = vpop.permute.xlu0 %5798
  %v5808 = vsel %vm460, %v3944, %v5721
  %v5809 = vsel %vm460, %v3970, %v5723
  %v5810 = vsel %vm460, %v3996, %v5725
  %v5811 = vsel %vm460, %v4022, %v5727
  %v5812 = vsel %vm460, %v4048, %v5729
  %v5813 = vsel %vm460, %v4074, %v5731
  %v5814 = vsel %vm460, %v4100, %v5733
  %v5815 = vsel %vm460, %v4126, %v5735
  %v5816 = vsel %vm2666, %v5808, %v5753
  %v5817 = vsel %vm2666, %v5809, %v5755
  %v5818 = vsel %vm2666, %v5810, %v5757
  %v5819 = vsel %vm2666, %v5811, %v5759
  %v5820 = vsel %vm2666, %v5812, %v5761
  %v5821 = vsel %vm2666, %v5813, %v5763
  %v5822 = vsel %vm2666, %v5814, %v5765
  %v5823 = vsel %vm2666, %v5815, %v5767
  %v5824 = vsel %vm2675, %v5816, %v5785
  %v5825 = vsel %vm2675, %v5817, %v5787
  %v5826 = vsel %vm2675, %v5818, %v5789
  %v5827 = vsel %vm2675, %v5819, %v5791
  %v5828 = vsel %vm2675, %v5820, %v5793
  %v5829 = vsel %vm2675, %v5821, %v5795
  %v5830 = vsel %vm2675, %v5822, %v5797
  %v5831 = vsel %vm2675, %v5823, %v5799
  %v5832 = vld [vmem:[%s35] sm:$0xff]
  %v5833 = vld [vmem:[%s35 + $0x8] sm:$0xff]
  %v5834 = vld [vmem:[%s35 + $0x10] sm:$0xff]
  %v5835 = vld [vmem:[%s35 + $0x18] sm:$0xff]
  %v5836 = vld [vmem:[%s37] sm:$0x1]
  %v5838 = vperm.slane %v5836, 0
  %v5841 = vsel %vm391, %v5824, 0
  %v5844 = vsel %vm391, %v5825, 0
  %v5847 = vsel %vm391, %v5826, 0
  %v5850 = vsel %vm391, %v5827, 0
  %v5853 = vsel %vm391, %v5828, 0
  %v5856 = vsel %vm391, %v5829, 0
  %v5859 = vsel %vm391, %v5830, 0
  %v5862 = vsel %vm391, %v5831, 0
  %5864 = vmatpush.msra.mxu0 0.0
  %5865 = vmatpush.msra.mxu0 0.0
  %5866 = vmatpush.msra.mxu0 0.0
  %5867 = vmatpush.msra.mxu0 0.0
  %5868 = vmatpush.msra.mxu0 0.0
  %5869 = vmatpush.msra.mxu0 0.0
  %5870 = vmatpush.msra.mxu0 0.0
  %5871 = vmatpush.msra.mxu0 0.0
  %5872 = vmatpush.msra.mxu0 0.0
  %5873 = vmatpush.msra.mxu0 0.0
  %5874 = vmatpush.msra.mxu0 0.0
  %5875 = vmatpush.msra.mxu0 0.0
  %5876 = vmatpush.msra.mxu0 %v5835
  %5877 = vmatpush.msra.mxu0 %v5834
  %5878 = vmatpush.msra.mxu0 %v5833
  %5879 = vmatpush.msra.mxu0 %v5832
  %5880 = vmatmul.f32.gmra.mxu0 %v5841
  %v5881 = vpop.f32.mrf.mxu0
  %v5882 = vadd.f32 %v5838, %v5881
  %5883 = vmatmul.f32.gmra.mxu0 %v5844
  %v5884 = vpop.f32.mrf.mxu0
  %v5885 = vadd.f32 %v5838, %v5884
  %5886 = vmatmul.f32.gmra.mxu0 %v5847
  %v5887 = vpop.f32.mrf.mxu0
  %v5888 = vadd.f32 %v5838, %v5887
  %5889 = vmatmul.f32.gmra.mxu0 %v5850
  %v5890 = vpop.f32.mrf.mxu0
  %v5891 = vadd.f32 %v5838, %v5890
  %5892 = vmatmul.f32.gmra.mxu0 %v5853
  %v5893 = vpop.f32.mrf.mxu0
  %v5894 = vadd.f32 %v5838, %v5893
  %5895 = vmatmul.f32.gmra.mxu0 %v5856
  %v5896 = vpop.f32.mrf.mxu0
  %v5897 = vadd.f32 %v5838, %v5896
  %5898 = vmatmul.f32.gmra.mxu0 %v5859
  %v5899 = vpop.f32.mrf.mxu0
  %v5900 = vadd.f32 %v5838, %v5899
  %5901 = vmatmul.f32.gmra.mxu0 %v5862
  %v5902 = vpop.f32.mrf.mxu0
  %v5903 = vadd.f32 %v5838, %v5902
  %5904 = vdwg.mxu0
  %v5905 = vadd.f32 %v5882, %v3531
  %v5906 = vadd.f32 %v5885, %v3532
  %v5907 = vadd.f32 %v5888, %v3533
  %v5908 = vadd.f32 %v5891, %v3534
  %v5909 = vadd.f32 %v5894, %v3535
  %v5910 = vadd.f32 %v5897, %v3536
  %v5911 = vadd.f32 %v5900, %v3537
  %v5912 = vadd.f32 %v5903, %v3538
  %v5913 = vld [vmem:[%s39] sm:$0x1]
  %v5914 = vld [vmem:[%s41] sm:$0x1]
  %v5915 = vsel %vm391, %v5905, 0.0
  %5916 = vadd.xlane.f32.xlu0 %v5915
  %v5917 = vpop.xlane.xlu0 %5916
  %v5918 = vsel %vm391, %v5906, 0.0
  %5919 = vadd.xlane.f32.xlu0 %v5918
  %v5920 = vpop.xlane.xlu0 %5919
  %v5921 = vsel %vm391, %v5907, 0.0
  %5922 = vadd.xlane.f32.xlu0 %v5921
  %v5923 = vpop.xlane.xlu0 %5922
  %v5924 = vsel %vm391, %v5908, 0.0
  %5925 = vadd.xlane.f32.xlu0 %v5924
  %v5926 = vpop.xlane.xlu0 %5925
  %v5927 = vsel %vm391, %v5909, 0.0
  %5928 = vadd.xlane.f32.xlu0 %v5927
  %v5929 = vpop.xlane.xlu0 %5928
  %v5930 = vsel %vm391, %v5910, 0.0
  %5931 = vadd.xlane.f32.xlu0 %v5930
  %v5932 = vpop.xlane.xlu0 %5931
  %v5933 = vsel %vm391, %v5911, 0.0
  %5934 = vadd.xlane.f32.xlu0 %v5933
  %v5935 = vpop.xlane.xlu0 %5934
  %v5936 = vsel %vm391, %v5912, 0.0
  %5937 = vadd.xlane.f32.xlu0 %v5936
  %v5938 = vpop.xlane.xlu0 %5937
  %v5939 = vmul.f32 %v5917, %v2797
  %v5940 = vmul.f32 %v5920, %v2797
  %v5941 = vmul.f32 %v5923, %v2797
  %v5942 = vmul.f32 %v5926, %v2797
  %v5943 = vmul.f32 %v5929, %v2797
  %v5944 = vmul.f32 %v5932, %v2797
  %v5945 = vmul.f32 %v5935, %v2797
  %v5946 = vmul.f32 %v5938, %v2797
  %v5947 = vsub.f32 %v5905, %v5939
  %v5948 = vsub.f32 %v5906, %v5940
  %v5949 = vsub.f32 %v5907, %v5941
  %v5950 = vsub.f32 %v5908, %v5942
  %v5951 = vsub.f32 %v5909, %v5943
  %v5952 = vsub.f32 %v5910, %v5944
  %v5953 = vsub.f32 %v5911, %v5945
  %v5954 = vsub.f32 %v5912, %v5946
  %v5955 = vmul.f32 %v5947, %v5947
  %v5956 = vmul.f32 %v5948, %v5948
  %v5957 = vmul.f32 %v5949, %v5949
  %v5958 = vmul.f32 %v5950, %v5950
  %v5959 = vmul.f32 %v5951, %v5951
  %v5960 = vmul.f32 %v5952, %v5952
  %v5961 = vmul.f32 %v5953, %v5953
  %v5962 = vmul.f32 %v5954, %v5954
  %v5963 = vsel %vm391, %v5955, 0.0
  %5964 = vadd.xlane.f32.xlu0 %v5963
  %v5965 = vpop.xlane.xlu0 %5964
  %v5966 = vsel %vm391, %v5956, 0.0
  %5967 = vadd.xlane.f32.xlu0 %v5966
  %v5968 = vpop.xlane.xlu0 %5967
  %v5969 = vsel %vm391, %v5957, 0.0
  %5970 = vadd.xlane.f32.xlu0 %v5969
  %v5971 = vpop.xlane.xlu0 %5970
  %v5972 = vsel %vm391, %v5958, 0.0
  %5973 = vadd.xlane.f32.xlu0 %v5972
  %v5974 = vpop.xlane.xlu0 %5973
  %v5975 = vsel %vm391, %v5959, 0.0
  %5976 = vadd.xlane.f32.xlu0 %v5975
  %v5977 = vpop.xlane.xlu0 %5976
  %v5978 = vsel %vm391, %v5960, 0.0
  %5979 = vadd.xlane.f32.xlu0 %v5978
  %v5980 = vpop.xlane.xlu0 %5979
  %v5981 = vsel %vm391, %v5961, 0.0
  %5982 = vadd.xlane.f32.xlu0 %v5981
  %v5983 = vpop.xlane.xlu0 %5982
  %v5984 = vsel %vm391, %v5962, 0.0
  %5985 = vadd.xlane.f32.xlu0 %v5984
  %v5986 = vpop.xlane.xlu0 %5985
  %v5987 = vmul.f32 %v5965, %v2797
  %v5988 = vmul.f32 %v5968, %v2797
  %v5989 = vmul.f32 %v5971, %v2797
  %v5990 = vmul.f32 %v5974, %v2797
  %v5991 = vmul.f32 %v5977, %v2797
  %v5992 = vmul.f32 %v5980, %v2797
  %v5993 = vmul.f32 %v5983, %v2797
  %v5994 = vmul.f32 %v5986, %v2797
  %v5995 = vadd.f32 %v5987, 1e-05
  %v5996 = vadd.f32 %v5988, 1e-05
  %v5997 = vadd.f32 %v5989, 1e-05
  %v5998 = vadd.f32 %v5990, 1e-05
  %v5999 = vadd.f32 %v5991, 1e-05
  %v6000 = vadd.f32 %v5992, 1e-05
  %v6001 = vadd.f32 %v5993, 1e-05
  %v6002 = vadd.f32 %v5994, 1e-05
  %v6003 = vrsqrt.pop %v5995
  %v6004 = vmul.f32 %v6003, %v5995
  %v6005 = vmul.f32 %v6004, %v6003
  %v6006 = vmul.f32 0.5, %v6005
  %v6007 = vsub.f32 1.5, %v6006
  %v6008 = vmul.f32 %v6003, %v6007
  %vm6009 = vweird.f32 %v5995
  %vm6010 = vweird.f32 %v6003
  %vm6011 = vmor %vm6009, %vm6010
  %v6012 = vsel %vm6011, %v6003, %v6008
  %v6013 = vrsqrt.pop %v5996
  %v6014 = vmul.f32 %v6013, %v5996
  %v6015 = vmul.f32 %v6014, %v6013
  %v6016 = vmul.f32 0.5, %v6015
  %v6017 = vsub.f32 1.5, %v6016
  %v6018 = vmul.f32 %v6013, %v6017
  %vm6019 = vweird.f32 %v5996
  %vm6020 = vweird.f32 %v6013
  %vm6021 = vmor %vm6019, %vm6020
  %v6022 = vsel %vm6021, %v6013, %v6018
  %v6023 = vrsqrt.pop %v5997
  %v6024 = vmul.f32 %v6023, %v5997
  %v6025 = vmul.f32 %v6024, %v6023
  %v6026 = vmul.f32 0.5, %v6025
  %v6027 = vsub.f32 1.5, %v6026
  %v6028 = vmul.f32 %v6023, %v6027
  %vm6029 = vweird.f32 %v5997
  %vm6030 = vweird.f32 %v6023
  %vm6031 = vmor %vm6029, %vm6030
  %v6032 = vsel %vm6031, %v6023, %v6028
  %v6033 = vrsqrt.pop %v5998
  %v6034 = vmul.f32 %v6033, %v5998
  %v6035 = vmul.f32 %v6034, %v6033
  %v6036 = vmul.f32 0.5, %v6035
  %v6037 = vsub.f32 1.5, %v6036
  %v6038 = vmul.f32 %v6033, %v6037
  %vm6039 = vweird.f32 %v5998
  %vm6040 = vweird.f32 %v6033
  %vm6041 = vmor %vm6039, %vm6040
  %v6042 = vsel %vm6041, %v6033, %v6038
  %v6043 = vrsqrt.pop %v5999
  %v6044 = vmul.f32 %v6043, %v5999
  %v6045 = vmul.f32 %v6044, %v6043
  %v6046 = vmul.f32 0.5, %v6045
  %v6047 = vsub.f32 1.5, %v6046
  %v6048 = vmul.f32 %v6043, %v6047
  %vm6049 = vweird.f32 %v5999
  %vm6050 = vweird.f32 %v6043
  %vm6051 = vmor %vm6049, %vm6050
  %v6052 = vsel %vm6051, %v6043, %v6048
  %v6053 = vrsqrt.pop %v6000
  %v6054 = vmul.f32 %v6053, %v6000
  %v6055 = vmul.f32 %v6054, %v6053
  %v6056 = vmul.f32 0.5, %v6055
  %v6057 = vsub.f32 1.5, %v6056
  %v6058 = vmul.f32 %v6053, %v6057
  %vm6059 = vweird.f32 %v6000
  %vm6060 = vweird.f32 %v6053
  %vm6061 = vmor %vm6059, %vm6060
  %v6062 = vsel %vm6061, %v6053, %v6058
  %v6063 = vrsqrt.pop %v6001
  %v6064 = vmul.f32 %v6063, %v6001
  %v6065 = vmul.f32 %v6064, %v6063
  %v6066 = vmul.f32 0.5, %v6065
  %v6067 = vsub.f32 1.5, %v6066
  %v6068 = vmul.f32 %v6063, %v6067
  %vm6069 = vweird.f32 %v6001
  %vm6070 = vweird.f32 %v6063
  %vm6071 = vmor %vm6069, %vm6070
  %v6072 = vsel %vm6071, %v6063, %v6068
  %v6073 = vrsqrt.pop %v6002
  %v6074 = vmul.f32 %v6073, %v6002
  %v6075 = vmul.f32 %v6074, %v6073
  %v6076 = vmul.f32 0.5, %v6075
  %v6077 = vsub.f32 1.5, %v6076
  %v6078 = vmul.f32 %v6073, %v6077
  %vm6079 = vweird.f32 %v6002
  %vm6080 = vweird.f32 %v6073
  %vm6081 = vmor %vm6079, %vm6080
  %v6082 = vsel %vm6081, %v6073, %v6078
  %v6083 = vmul.f32 %v5947, %v6012
  %v6084 = vmul.f32 %v5948, %v6022
  %v6085 = vmul.f32 %v5949, %v6032
  %v6086 = vmul.f32 %v5950, %v6042
  %v6087 = vmul.f32 %v5951, %v6052
  %v6088 = vmul.f32 %v5952, %v6062
  %v6089 = vmul.f32 %v5953, %v6072
  %v6090 = vmul.f32 %v5954, %v6082
  %v6092 = vperm.slane %v5913, 0
  %v6094 = vmul.f32 %v6083, %v6092
  %v6095 = vmul.f32 %v6084, %v6092
  %v6096 = vmul.f32 %v6085, %v6092
  %v6097 = vmul.f32 %v6086, %v6092
  %v6098 = vmul.f32 %v6087, %v6092
  %v6099 = vmul.f32 %v6088, %v6092
  %v6100 = vmul.f32 %v6089, %v6092
  %v6101 = vmul.f32 %v6090, %v6092
  %v6103 = vperm.slane %v5914, 0
  %v6105 = vadd.f32 %v6094, %v6103
  %v6106 = vadd.f32 %v6095, %v6103
  %v6107 = vadd.f32 %v6096, %v6103
  %v6108 = vadd.f32 %v6097, %v6103
  %v6109 = vadd.f32 %v6098, %v6103
  %v6110 = vadd.f32 %v6099, %v6103
  %v6111 = vadd.f32 %v6100, %v6103
  %v6112 = vadd.f32 %v6101, %v6103
  %v6113 = vld [vmem:[%s45] sm:$0x1]
  %v6114 = vld [vmem:[%s43] sm:$0xff]
  %v6115 = vld [vmem:[%s43 + $0x8] sm:$0xff]
  %v6116 = vld [vmem:[%s43 + $0x10] sm:$0xff]
  %v6117 = vld [vmem:[%s43 + $0x18] sm:$0xff]
  %v6119 = vperm.slane %v6113, 0
  %v6122 = vsel %vm391, %v6105, 0
  %v6125 = vsel %vm391, %v6106, 0
  %v6128 = vsel %vm391, %v6107, 0
  %v6131 = vsel %vm391, %v6108, 0
  %v6134 = vsel %vm391, %v6109, 0
  %v6137 = vsel %vm391, %v6110, 0
  %v6140 = vsel %vm391, %v6111, 0
  %v6143 = vsel %vm391, %v6112, 0
  %6145 = vmatpush.msra.mxu0 0.0
  %6146 = vmatpush.msra.mxu0 0.0
  %6147 = vmatpush.msra.mxu0 0.0
  %6148 = vmatpush.msra.mxu0 0.0
  %6149 = vmatpush.msra.mxu0 0.0
  %6150 = vmatpush.msra.mxu0 0.0
  %6151 = vmatpush.msra.mxu0 0.0
  %6152 = vmatpush.msra.mxu0 0.0
  %6153 = vmatpush.msra.mxu0 0.0
  %6154 = vmatpush.msra.mxu0 0.0
  %6155 = vmatpush.msra.mxu0 0.0
  %6156 = vmatpush.msra.mxu0 0.0
  %6157 = vmatpush.msra.mxu0 %v6117
  %6158 = vmatpush.msra.mxu0 %v6116
  %6159 = vmatpush.msra.mxu0 %v6115
  %6160 = vmatpush.msra.mxu0 %v6114
  %6161 = vmatmul.f32.gmra.mxu0 %v6122
  %v6162 = vpop.f32.mrf.mxu0
  %v6163 = vadd.f32 %v6119, %v6162
  %6164 = vmatmul.f32.gmra.mxu0 %v6125
  %v6165 = vpop.f32.mrf.mxu0
  %v6166 = vadd.f32 %v6119, %v6165
  %6167 = vmatmul.f32.gmra.mxu0 %v6128
  %v6168 = vpop.f32.mrf.mxu0
  %v6169 = vadd.f32 %v6119, %v6168
  %6170 = vmatmul.f32.gmra.mxu0 %v6131
  %v6171 = vpop.f32.mrf.mxu0
  %v6172 = vadd.f32 %v6119, %v6171
  %6173 = vmatmul.f32.gmra.mxu0 %v6134
  %v6174 = vpop.f32.mrf.mxu0
  %v6175 = vadd.f32 %v6119, %v6174
  %6176 = vmatmul.f32.gmra.mxu0 %v6137
  %v6177 = vpop.f32.mrf.mxu0
  %v6178 = vadd.f32 %v6119, %v6177
  %6179 = vmatmul.f32.gmra.mxu0 %v6140
  %v6180 = vpop.f32.mrf.mxu0
  %v6181 = vadd.f32 %v6119, %v6180
  %6182 = vmatmul.f32.gmra.mxu0 %v6143
  %v6183 = vpop.f32.mrf.mxu0
  %v6184 = vadd.f32 %v6119, %v6183
  %6185 = vdwg.mxu0
  %v6186 = vmax.f32 %v6163, 0.0
  %v6187 = vmax.f32 %v6166, 0.0
  %v6188 = vmax.f32 %v6169, 0.0
  %v6189 = vmax.f32 %v6172, 0.0
  %v6190 = vmax.f32 %v6175, 0.0
  %v6191 = vmax.f32 %v6178, 0.0
  %v6192 = vmax.f32 %v6181, 0.0
  %v6193 = vmax.f32 %v6184, 0.0
  %v6194 = vld [vmem:[%s47] sm:$0xff]
  %v6195 = vld [vmem:[%s47 + $0x8] sm:$0xff]
  %v6196 = vld [vmem:[%s47 + $0x10] sm:$0xff]
  %v6197 = vld [vmem:[%s47 + $0x18] sm:$0xff]
  %v6198 = vld [vmem:[%s47 + $0x20] sm:$0xff]
  %v6199 = vld [vmem:[%s47 + $0x28] sm:$0xff]
  %v6200 = vld [vmem:[%s47 + $0x30] sm:$0xff]
  %v6201 = vld [vmem:[%s47 + $0x38] sm:$0xff]
  %v6202 = vld [vmem:[%s47 + $0x40] sm:$0xff]
  %v6203 = vld [vmem:[%s47 + $0x48] sm:$0xff]
  %v6204 = vld [vmem:[%s47 + $0x50] sm:$0xff]
  %v6205 = vld [vmem:[%s47 + $0x58] sm:$0xff]
  %v6206 = vld [vmem:[%s47 + $0x60] sm:$0xff]
  %v6207 = vld [vmem:[%s47 + $0x68] sm:$0xff]
  %v6208 = vld [vmem:[%s47 + $0x70] sm:$0xff]
  %v6209 = vld [vmem:[%s47 + $0x78] sm:$0xff]
  %v6210 = vld [vmem:[%s49] sm:$0x1]
  %v6212 = vperm.slane %v6210, 0
  %6214 = vmatpush.msra.mxu0 %v6209
  %6215 = vmatpush.msra.mxu0 %v6208
  %6216 = vmatpush.msra.mxu0 %v6207
  %6217 = vmatpush.msra.mxu0 %v6206
  %6218 = vmatpush.msra.mxu0 %v6205
  %6219 = vmatpush.msra.mxu0 %v6204
  %6220 = vmatpush.msra.mxu0 %v6203
  %6221 = vmatpush.msra.mxu0 %v6202
  %6222 = vmatpush.msra.mxu0 %v6201
  %6223 = vmatpush.msra.mxu0 %v6200
  %6224 = vmatpush.msra.mxu0 %v6199
  %6225 = vmatpush.msra.mxu0 %v6198
  %6226 = vmatpush.msra.mxu0 %v6197
  %6227 = vmatpush.msra.mxu0 %v6196
  %6228 = vmatpush.msra.mxu0 %v6195
  %6229 = vmatpush.msra.mxu0 %v6194
  %6230 = vmatmul.f32.gmra.mxu0 %v6186
  %v6231 = vpop.f32.mrf.mxu0
  %v6232 = vadd.f32 %v6212, %v6231
  %6233 = vmatmul.f32.gmra.mxu0 %v6187
  %v6234 = vpop.f32.mrf.mxu0
  %v6235 = vadd.f32 %v6212, %v6234
  %6236 = vmatmul.f32.gmra.mxu0 %v6188
  %v6237 = vpop.f32.mrf.mxu0
  %v6238 = vadd.f32 %v6212, %v6237
  %6239 = vmatmul.f32.gmra.mxu0 %v6189
  %v6240 = vpop.f32.mrf.mxu0
  %v6241 = vadd.f32 %v6212, %v6240
  %6242 = vmatmul.f32.gmra.mxu0 %v6190
  %v6243 = vpop.f32.mrf.mxu0
  %v6244 = vadd.f32 %v6212, %v6243
  %6245 = vmatmul.f32.gmra.mxu0 %v6191
  %v6246 = vpop.f32.mrf.mxu0
  %v6247 = vadd.f32 %v6212, %v6246
  %6248 = vmatmul.f32.gmra.mxu0 %v6192
  %v6249 = vpop.f32.mrf.mxu0
  %v6250 = vadd.f32 %v6212, %v6249
  %6251 = vmatmul.f32.gmra.mxu0 %v6193
  %v6252 = vpop.f32.mrf.mxu0
  %v6253 = vadd.f32 %v6212, %v6252
  %6254 = vdwg.mxu0
  %v6255 = vadd.f32 %v6232, %v6105
  %v6256 = vadd.f32 %v6235, %v6106
  %v6257 = vadd.f32 %v6238, %v6107
  %v6258 = vadd.f32 %v6241, %v6108
  %v6259 = vadd.f32 %v6244, %v6109
  %v6260 = vadd.f32 %v6247, %v6110
  %v6261 = vadd.f32 %v6250, %v6111
  %v6262 = vadd.f32 %v6253, %v6112
  %v6263 = vld [vmem:[%s51] sm:$0x1]
  %v6264 = vld [vmem:[%s53] sm:$0x1]
  %v6265 = vsel %vm391, %v6255, 0.0
  %6266 = vadd.xlane.f32.xlu0 %v6265
  %v6267 = vpop.xlane.xlu0 %6266
  %v6268 = vsel %vm391, %v6256, 0.0
  %6269 = vadd.xlane.f32.xlu0 %v6268
  %v6270 = vpop.xlane.xlu0 %6269
  %v6271 = vsel %vm391, %v6257, 0.0
  %6272 = vadd.xlane.f32.xlu0 %v6271
  %v6273 = vpop.xlane.xlu0 %6272
  %v6274 = vsel %vm391, %v6258, 0.0
  %6275 = vadd.xlane.f32.xlu0 %v6274
  %v6276 = vpop.xlane.xlu0 %6275
  %v6277 = vsel %vm391, %v6259, 0.0
  %6278 = vadd.xlane.f32.xlu0 %v6277
  %v6279 = vpop.xlane.xlu0 %6278
  %v6280 = vsel %vm391, %v6260, 0.0
  %6281 = vadd.xlane.f32.xlu0 %v6280
  %v6282 = vpop.xlane.xlu0 %6281
  %v6283 = vsel %vm391, %v6261, 0.0
  %6284 = vadd.xlane.f32.xlu0 %v6283
  %v6285 = vpop.xlane.xlu0 %6284
  %v6286 = vsel %vm391, %v6262, 0.0
  %6287 = vadd.xlane.f32.xlu0 %v6286
  %v6288 = vpop.xlane.xlu0 %6287
  %v6289 = vmul.f32 %v6267, %v2797
  %v6290 = vmul.f32 %v6270, %v2797
  %v6291 = vmul.f32 %v6273, %v2797
  %v6292 = vmul.f32 %v6276, %v2797
  %v6293 = vmul.f32 %v6279, %v2797
  %v6294 = vmul.f32 %v6282, %v2797
  %v6295 = vmul.f32 %v6285, %v2797
  %v6296 = vmul.f32 %v6288, %v2797
  %v6297 = vsub.f32 %v6255, %v6289
  %v6298 = vsub.f32 %v6256, %v6290
  %v6299 = vsub.f32 %v6257, %v6291
  %v6300 = vsub.f32 %v6258, %v6292
  %v6301 = vsub.f32 %v6259, %v6293
  %v6302 = vsub.f32 %v6260, %v6294
  %v6303 = vsub.f32 %v6261, %v6295
  %v6304 = vsub.f32 %v6262, %v6296
  %v6305 = vmul.f32 %v6297, %v6297
  %v6306 = vmul.f32 %v6298, %v6298
  %v6307 = vmul.f32 %v6299, %v6299
  %v6308 = vmul.f32 %v6300, %v6300
  %v6309 = vmul.f32 %v6301, %v6301
  %v6310 = vmul.f32 %v6302, %v6302
  %v6311 = vmul.f32 %v6303, %v6303
  %v6312 = vmul.f32 %v6304, %v6304
  %v6313 = vsel %vm391, %v6305, 0.0
  %6314 = vadd.xlane.f32.xlu0 %v6313
  %v6315 = vpop.xlane.xlu0 %6314
  %v6316 = vsel %vm391, %v6306, 0.0
  %6317 = vadd.xlane.f32.xlu0 %v6316
  %v6318 = vpop.xlane.xlu0 %6317
  %v6319 = vsel %vm391, %v6307, 0.0
  %6320 = vadd.xlane.f32.xlu0 %v6319
  %v6321 = vpop.xlane.xlu0 %6320
  %v6322 = vsel %vm391, %v6308, 0.0
  %6323 = vadd.xlane.f32.xlu0 %v6322
  %v6324 = vpop.xlane.xlu0 %6323
  %v6325 = vsel %vm391, %v6309, 0.0
  %6326 = vadd.xlane.f32.xlu0 %v6325
  %v6327 = vpop.xlane.xlu0 %6326
  %v6328 = vsel %vm391, %v6310, 0.0
  %6329 = vadd.xlane.f32.xlu0 %v6328
  %v6330 = vpop.xlane.xlu0 %6329
  %v6331 = vsel %vm391, %v6311, 0.0
  %6332 = vadd.xlane.f32.xlu0 %v6331
  %v6333 = vpop.xlane.xlu0 %6332
  %v6334 = vsel %vm391, %v6312, 0.0
  %6335 = vadd.xlane.f32.xlu0 %v6334
  %v6336 = vpop.xlane.xlu0 %6335
  %v6337 = vmul.f32 %v6315, %v2797
  %v6338 = vmul.f32 %v6318, %v2797
  %v6339 = vmul.f32 %v6321, %v2797
  %v6340 = vmul.f32 %v6324, %v2797
  %v6341 = vmul.f32 %v6327, %v2797
  %v6342 = vmul.f32 %v6330, %v2797
  %v6343 = vmul.f32 %v6333, %v2797
  %v6344 = vmul.f32 %v6336, %v2797
  %v6345 = vadd.f32 %v6337, 1e-05
  %v6346 = vadd.f32 %v6338, 1e-05
  %v6347 = vadd.f32 %v6339, 1e-05
  %v6348 = vadd.f32 %v6340, 1e-05
  %v6349 = vadd.f32 %v6341, 1e-05
  %v6350 = vadd.f32 %v6342, 1e-05
  %v6351 = vadd.f32 %v6343, 1e-05
  %v6352 = vadd.f32 %v6344, 1e-05
  %v6353 = vrsqrt.pop %v6345
  %v6354 = vmul.f32 %v6353, %v6345
  %v6355 = vmul.f32 %v6354, %v6353
  %v6356 = vmul.f32 0.5, %v6355
  %v6357 = vsub.f32 1.5, %v6356
  %v6358 = vmul.f32 %v6353, %v6357
  %vm6359 = vweird.f32 %v6345
  %vm6360 = vweird.f32 %v6353
  %vm6361 = vmor %vm6359, %vm6360
  %v6362 = vsel %vm6361, %v6353, %v6358
  %v6363 = vrsqrt.pop %v6346
  %v6364 = vmul.f32 %v6363, %v6346
  %v6365 = vmul.f32 %v6364, %v6363
  %v6366 = vmul.f32 0.5, %v6365
  %v6367 = vsub.f32 1.5, %v6366
  %v6368 = vmul.f32 %v6363, %v6367
  %vm6369 = vweird.f32 %v6346
  %vm6370 = vweird.f32 %v6363
  %vm6371 = vmor %vm6369, %vm6370
  %v6372 = vsel %vm6371, %v6363, %v6368
  %v6373 = vrsqrt.pop %v6347
  %v6374 = vmul.f32 %v6373, %v6347
  %v6375 = vmul.f32 %v6374, %v6373
  %v6376 = vmul.f32 0.5, %v6375
  %v6377 = vsub.f32 1.5, %v6376
  %v6378 = vmul.f32 %v6373, %v6377
  %vm6379 = vweird.f32 %v6347
  %vm6380 = vweird.f32 %v6373
  %vm6381 = vmor %vm6379, %vm6380
  %v6382 = vsel %vm6381, %v6373, %v6378
  %v6383 = vrsqrt.pop %v6348
  %v6384 = vmul.f32 %v6383, %v6348
  %v6385 = vmul.f32 %v6384, %v6383
  %v6386 = vmul.f32 0.5, %v6385
  %v6387 = vsub.f32 1.5, %v6386
  %v6388 = vmul.f32 %v6383, %v6387
  %vm6389 = vweird.f32 %v6348
  %vm6390 = vweird.f32 %v6383
  %vm6391 = vmor %vm6389, %vm6390
  %v6392 = vsel %vm6391, %v6383, %v6388
  %v6393 = vrsqrt.pop %v6349
  %v6394 = vmul.f32 %v6393, %v6349
  %v6395 = vmul.f32 %v6394, %v6393
  %v6396 = vmul.f32 0.5, %v6395
  %v6397 = vsub.f32 1.5, %v6396
  %v6398 = vmul.f32 %v6393, %v6397
  %vm6399 = vweird.f32 %v6349
  %vm6400 = vweird.f32 %v6393
  %vm6401 = vmor %vm6399, %vm6400
  %v6402 = vsel %vm6401, %v6393, %v6398
  %v6403 = vrsqrt.pop %v6350
  %v6404 = vmul.f32 %v6403, %v6350
  %v6405 = vmul.f32 %v6404, %v6403
  %v6406 = vmul.f32 0.5, %v6405
  %v6407 = vsub.f32 1.5, %v6406
  %v6408 = vmul.f32 %v6403, %v6407
  %vm6409 = vweird.f32 %v6350
  %vm6410 = vweird.f32 %v6403
  %vm6411 = vmor %vm6409, %vm6410
  %v6412 = vsel %vm6411, %v6403, %v6408
  %v6413 = vrsqrt.pop %v6351
  %v6414 = vmul.f32 %v6413, %v6351
  %v6415 = vmul.f32 %v6414, %v6413
  %v6416 = vmul.f32 0.5, %v6415
  %v6417 = vsub.f32 1.5, %v6416
  %v6418 = vmul.f32 %v6413, %v6417
  %vm6419 = vweird.f32 %v6351
  %vm6420 = vweird.f32 %v6413
  %vm6421 = vmor %vm6419, %vm6420
  %v6422 = vsel %vm6421, %v6413, %v6418
  %v6423 = vrsqrt.pop %v6352
  %v6424 = vmul.f32 %v6423, %v6352
  %v6425 = vmul.f32 %v6424, %v6423
  %v6426 = vmul.f32 0.5, %v6425
  %v6427 = vsub.f32 1.5, %v6426
  %v6428 = vmul.f32 %v6423, %v6427
  %vm6429 = vweird.f32 %v6352
  %vm6430 = vweird.f32 %v6423
  %vm6431 = vmor %vm6429, %vm6430
  %v6432 = vsel %vm6431, %v6423, %v6428
  %v6433 = vmul.f32 %v6297, %v6362
  %v6434 = vmul.f32 %v6298, %v6372
  %v6435 = vmul.f32 %v6299, %v6382
  %v6436 = vmul.f32 %v6300, %v6392
  %v6437 = vmul.f32 %v6301, %v6402
  %v6438 = vmul.f32 %v6302, %v6412
  %v6439 = vmul.f32 %v6303, %v6422
  %v6440 = vmul.f32 %v6304, %v6432
  %v6442 = vperm.slane %v6263, 0
  %v6444 = vmul.f32 %v6433, %v6442
  %v6445 = vmul.f32 %v6434, %v6442
  %v6446 = vmul.f32 %v6435, %v6442
  %v6447 = vmul.f32 %v6436, %v6442
  %v6448 = vmul.f32 %v6437, %v6442
  %v6449 = vmul.f32 %v6438, %v6442
  %v6450 = vmul.f32 %v6439, %v6442
  %v6451 = vmul.f32 %v6440, %v6442
  %v6453 = vperm.slane %v6264, 0
  %v6455 = vadd.f32 %v6444, %v6453
  %v6456 = vadd.f32 %v6445, %v6453
  %v6457 = vadd.f32 %v6446, %v6453
  %v6458 = vadd.f32 %v6447, %v6453
  %v6459 = vadd.f32 %v6448, %v6453
  %v6460 = vadd.f32 %v6449, %v6453
  %v6461 = vadd.f32 %v6450, %v6453
  %v6462 = vadd.f32 %v6451, %v6453
  %v6463 = vadd.f32 %v6455, %v3522
  %v6464 = vadd.f32 %v6456, %v3523
  %v6465 = vadd.f32 %v6457, %v3524
  %v6466 = vadd.f32 %v6458, %v3525
  %v6467 = vadd.f32 %v6459, %v3526
  %v6468 = vadd.f32 %v6460, %v3527
  %v6469 = vadd.f32 %v6461, %v3528
  %v6470 = vadd.f32 %v6462, %v3529
  %v6471 = vld [vmem:[%s55] sm:$0x1]
  %v6472 = vld [vmem:[%s57] sm:$0x1]
  %v6473 = vsel %vm391, %v6463, 0.0
  %6474 = vadd.xlane.f32.xlu0 %v6473
  %v6475 = vpop.xlane.xlu0 %6474
  %v6476 = vsel %vm391, %v6464, 0.0
  %6477 = vadd.xlane.f32.xlu0 %v6476
  %v6478 = vpop.xlane.xlu0 %6477
  %v6479 = vsel %vm391, %v6465, 0.0
  %6480 = vadd.xlane.f32.xlu0 %v6479
  %v6481 = vpop.xlane.xlu0 %6480
  %v6482 = vsel %vm391, %v6466, 0.0
  %6483 = vadd.xlane.f32.xlu0 %v6482
  %v6484 = vpop.xlane.xlu0 %6483
  %v6485 = vsel %vm391, %v6467, 0.0
  %6486 = vadd.xlane.f32.xlu0 %v6485
  %v6487 = vpop.xlane.xlu0 %6486
  %v6488 = vsel %vm391, %v6468, 0.0
  %6489 = vadd.xlane.f32.xlu0 %v6488
  %v6490 = vpop.xlane.xlu0 %6489
  %v6491 = vsel %vm391, %v6469, 0.0
  %6492 = vadd.xlane.f32.xlu0 %v6491
  %v6493 = vpop.xlane.xlu0 %6492
  %v6494 = vsel %vm391, %v6470, 0.0
  %6495 = vadd.xlane.f32.xlu0 %v6494
  %v6496 = vpop.xlane.xlu0 %6495
  %v6497 = vmul.f32 %v6475, %v2797
  %v6498 = vmul.f32 %v6478, %v2797
  %v6499 = vmul.f32 %v6481, %v2797
  %v6500 = vmul.f32 %v6484, %v2797
  %v6501 = vmul.f32 %v6487, %v2797
  %v6502 = vmul.f32 %v6490, %v2797
  %v6503 = vmul.f32 %v6493, %v2797
  %v6504 = vmul.f32 %v6496, %v2797
  %v6505 = vsub.f32 %v6463, %v6497
  %v6506 = vsub.f32 %v6464, %v6498
  %v6507 = vsub.f32 %v6465, %v6499
  %v6508 = vsub.f32 %v6466, %v6500
  %v6509 = vsub.f32 %v6467, %v6501
  %v6510 = vsub.f32 %v6468, %v6502
  %v6511 = vsub.f32 %v6469, %v6503
  %v6512 = vsub.f32 %v6470, %v6504
  %v6513 = vmul.f32 %v6505, %v6505
  %v6514 = vmul.f32 %v6506, %v6506
  %v6515 = vmul.f32 %v6507, %v6507
  %v6516 = vmul.f32 %v6508, %v6508
  %v6517 = vmul.f32 %v6509, %v6509
  %v6518 = vmul.f32 %v6510, %v6510
  %v6519 = vmul.f32 %v6511, %v6511
  %v6520 = vmul.f32 %v6512, %v6512
  %v6521 = vsel %vm391, %v6513, 0.0
  %6522 = vadd.xlane.f32.xlu0 %v6521
  %v6523 = vpop.xlane.xlu0 %6522
  %v6524 = vsel %vm391, %v6514, 0.0
  %6525 = vadd.xlane.f32.xlu0 %v6524
  %v6526 = vpop.xlane.xlu0 %6525
  %v6527 = vsel %vm391, %v6515, 0.0
  %6528 = vadd.xlane.f32.xlu0 %v6527
  %v6529 = vpop.xlane.xlu0 %6528
  %v6530 = vsel %vm391, %v6516, 0.0
  %6531 = vadd.xlane.f32.xlu0 %v6530
  %v6532 = vpop.xlane.xlu0 %6531
  %v6533 = vsel %vm391, %v6517, 0.0
  %6534 = vadd.xlane.f32.xlu0 %v6533
  %v6535 = vpop.xlane.xlu0 %6534
  %v6536 = vsel %vm391, %v6518, 0.0
  %6537 = vadd.xlane.f32.xlu0 %v6536
  %v6538 = vpop.xlane.xlu0 %6537
  %v6539 = vsel %vm391, %v6519, 0.0
  %6540 = vadd.xlane.f32.xlu0 %v6539
  %v6541 = vpop.xlane.xlu0 %6540
  %v6542 = vsel %vm391, %v6520, 0.0
  %6543 = vadd.xlane.f32.xlu0 %v6542
  %v6544 = vpop.xlane.xlu0 %6543
  %v6545 = vmul.f32 %v6523, %v2797
  %v6546 = vmul.f32 %v6526, %v2797
  %v6547 = vmul.f32 %v6529, %v2797
  %v6548 = vmul.f32 %v6532, %v2797
  %v6549 = vmul.f32 %v6535, %v2797
  %v6550 = vmul.f32 %v6538, %v2797
  %v6551 = vmul.f32 %v6541, %v2797
  %v6552 = vmul.f32 %v6544, %v2797
  %v6553 = vadd.f32 %v6545, 1e-05
  %v6554 = vadd.f32 %v6546, 1e-05
  %v6555 = vadd.f32 %v6547, 1e-05
  %v6556 = vadd.f32 %v6548, 1e-05
  %v6557 = vadd.f32 %v6549, 1e-05
  %v6558 = vadd.f32 %v6550, 1e-05
  %v6559 = vadd.f32 %v6551, 1e-05
  %v6560 = vadd.f32 %v6552, 1e-05
  %v6561 = vrsqrt.pop %v6553
  %v6562 = vmul.f32 %v6561, %v6553
  %v6563 = vmul.f32 %v6562, %v6561
  %v6564 = vmul.f32 0.5, %v6563
  %v6565 = vsub.f32 1.5, %v6564
  %v6566 = vmul.f32 %v6561, %v6565
  %vm6567 = vweird.f32 %v6553
  %vm6568 = vweird.f32 %v6561
  %vm6569 = vmor %vm6567, %vm6568
  %v6570 = vsel %vm6569, %v6561, %v6566
  %v6571 = vrsqrt.pop %v6554
  %v6572 = vmul.f32 %v6571, %v6554
  %v6573 = vmul.f32 %v6572, %v6571
  %v6574 = vmul.f32 0.5, %v6573
  %v6575 = vsub.f32 1.5, %v6574
  %v6576 = vmul.f32 %v6571, %v6575
  %vm6577 = vweird.f32 %v6554
  %vm6578 = vweird.f32 %v6571
  %vm6579 = vmor %vm6577, %vm6578
  %v6580 = vsel %vm6579, %v6571, %v6576
  %v6581 = vrsqrt.pop %v6555
  %v6582 = vmul.f32 %v6581, %v6555
  %v6583 = vmul.f32 %v6582, %v6581
  %v6584 = vmul.f32 0.5, %v6583
  %v6585 = vsub.f32 1.5, %v6584
  %v6586 = vmul.f32 %v6581, %v6585
  %vm6587 = vweird.f32 %v6555
  %vm6588 = vweird.f32 %v6581
  %vm6589 = vmor %vm6587, %vm6588
  %v6590 = vsel %vm6589, %v6581, %v6586
  %v6591 = vrsqrt.pop %v6556
  %v6592 = vmul.f32 %v6591, %v6556
  %v6593 = vmul.f32 %v6592, %v6591
  %v6594 = vmul.f32 0.5, %v6593
  %v6595 = vsub.f32 1.5, %v6594
  %v6596 = vmul.f32 %v6591, %v6595
  %vm6597 = vweird.f32 %v6556
  %vm6598 = vweird.f32 %v6591
  %vm6599 = vmor %vm6597, %vm6598
  %v6600 = vsel %vm6599, %v6591, %v6596
  %v6601 = vrsqrt.pop %v6557
  %v6602 = vmul.f32 %v6601, %v6557
  %v6603 = vmul.f32 %v6602, %v6601
  %v6604 = vmul.f32 0.5, %v6603
  %v6605 = vsub.f32 1.5, %v6604
  %v6606 = vmul.f32 %v6601, %v6605
  %vm6607 = vweird.f32 %v6557
  %vm6608 = vweird.f32 %v6601
  %vm6609 = vmor %vm6607, %vm6608
  %v6610 = vsel %vm6609, %v6601, %v6606
  %v6611 = vrsqrt.pop %v6558
  %v6612 = vmul.f32 %v6611, %v6558
  %v6613 = vmul.f32 %v6612, %v6611
  %v6614 = vmul.f32 0.5, %v6613
  %v6615 = vsub.f32 1.5, %v6614
  %v6616 = vmul.f32 %v6611, %v6615
  %vm6617 = vweird.f32 %v6558
  %vm6618 = vweird.f32 %v6611
  %vm6619 = vmor %vm6617, %vm6618
  %v6620 = vsel %vm6619, %v6611, %v6616
  %v6621 = vrsqrt.pop %v6559
  %v6622 = vmul.f32 %v6621, %v6559
  %v6623 = vmul.f32 %v6622, %v6621
  %v6624 = vmul.f32 0.5, %v6623
  %v6625 = vsub.f32 1.5, %v6624
  %v6626 = vmul.f32 %v6621, %v6625
  %vm6627 = vweird.f32 %v6559
  %vm6628 = vweird.f32 %v6621
  %vm6629 = vmor %vm6627, %vm6628
  %v6630 = vsel %vm6629, %v6621, %v6626
  %v6631 = vrsqrt.pop %v6560
  %v6632 = vmul.f32 %v6631, %v6560
  %v6633 = vmul.f32 %v6632, %v6631
  %v6634 = vmul.f32 0.5, %v6633
  %v6635 = vsub.f32 1.5, %v6634
  %v6636 = vmul.f32 %v6631, %v6635
  %vm6637 = vweird.f32 %v6560
  %vm6638 = vweird.f32 %v6631
  %vm6639 = vmor %vm6637, %vm6638
  %v6640 = vsel %vm6639, %v6631, %v6636
  %v6641 = vmul.f32 %v6505, %v6570
  %v6642 = vmul.f32 %v6506, %v6580
  %v6643 = vmul.f32 %v6507, %v6590
  %v6644 = vmul.f32 %v6508, %v6600
  %v6645 = vmul.f32 %v6509, %v6610
  %v6646 = vmul.f32 %v6510, %v6620
  %v6647 = vmul.f32 %v6511, %v6630
  %v6648 = vmul.f32 %v6512, %v6640
  %v6650 = vperm.slane %v6471, 0
  %v6652 = vmul.f32 %v6641, %v6650
  %v6653 = vmul.f32 %v6642, %v6650
  %v6654 = vmul.f32 %v6643, %v6650
  %v6655 = vmul.f32 %v6644, %v6650
  %v6656 = vmul.f32 %v6645, %v6650
  %v6657 = vmul.f32 %v6646, %v6650
  %v6658 = vmul.f32 %v6647, %v6650
  %v6659 = vmul.f32 %v6648, %v6650
  %v6661 = vperm.slane %v6472, 0
  %v6663 = vadd.f32 %v6652, %v6661
  %v6664 = vadd.f32 %v6653, %v6661
  %v6665 = vadd.f32 %v6654, %v6661
  %v6666 = vadd.f32 %v6655, %v6661
  %v6667 = vadd.f32 %v6656, %v6661
  %v6668 = vadd.f32 %v6657, %v6661
  %v6669 = vadd.f32 %v6658, %v6661
  %v6670 = vadd.f32 %v6659, %v6661
  %v6679 = vrot.slane %v6664, 7
  %vm6680 = vcmask 1041409
  %v6681 = vsel %vm6680, %v6679, %v6663
  %v6682 = vrot.slane %v6665, 6
  %vm6683 = vcmask 1042434
  %v6684 = vsel %vm6683, %v6682, %v6681
  %v6685 = vrot.slane %v6666, 5
  %vm6686 = vcmask 1043459
  %v6687 = vsel %vm6686, %v6685, %v6684
  %v6688 = vrot.slane %v6667, 4
  %vm6689 = vcmask 1044484
  %v6690 = vsel %vm6689, %v6688, %v6687
  %v6691 = vrot.slane %v6668, 3
  %vm6692 = vcmask 1045509
  %v6693 = vsel %vm6692, %v6691, %v6690
  %v6694 = vrot.slane %v6669, 2
  %vm6695 = vcmask 1046534
  %v6696 = vsel %vm6695, %v6694, %v6693
  %v6697 = vrot.slane %v6670, 1
  %vm6698 = vcmask 1047559
  %v6699 = vsel %vm6698, %v6697, %v6696
  %v6701 = vrot.slane %v6663, 1
  %v6702 = vsel %vm6680, %v6664, %v6701
  %v6703 = vrot.slane %v6665, 7
  %v6704 = vsel %vm6683, %v6703, %v6702
  %v6705 = vrot.slane %v6666, 6
  %v6706 = vsel %vm6686, %v6705, %v6704
  %v6707 = vrot.slane %v6667, 5
  %v6708 = vsel %vm6689, %v6707, %v6706
  %v6709 = vrot.slane %v6668, 4
  %v6710 = vsel %vm6692, %v6709, %v6708
  %v6711 = vrot.slane %v6669, 3
  %v6712 = vsel %vm6695, %v6711, %v6710
  %v6713 = vrot.slane %v6670, 2
  %v6714 = vsel %vm6698, %v6713, %v6712
  %6715 = vrot.lane.b32.xlu0 %v6714, 32
  %v6716 = vpop.permute.xlu0 %6715
  %v6718 = vrot.slane %v6663, 2
  %v6719 = vrot.slane %v6664, 1
  %v6720 = vsel %vm6680, %v6719, %v6718
  %v6721 = vsel %vm6683, %v6665, %v6720
  %v6722 = vrot.slane %v6666, 7
  %v6723 = vsel %vm6686, %v6722, %v6721
  %v6724 = vrot.slane %v6667, 6
  %v6725 = vsel %vm6689, %v6724, %v6723
  %v6726 = vrot.slane %v6668, 5
  %v6727 = vsel %vm6692, %v6726, %v6725
  %v6728 = vrot.slane %v6669, 4
  %v6729 = vsel %vm6695, %v6728, %v6727
  %v6730 = vrot.slane %v6670, 3
  %v6731 = vsel %vm6698, %v6730, %v6729
  %6732 = vrot.lane.b32.xlu0 %v6731, 64
  %v6733 = vpop.permute.xlu0 %6732
  %v6735 = vrot.slane %v6663, 3
  %v6736 = vrot.slane %v6664, 2
  %v6737 = vsel %vm6680, %v6736, %v6735
  %v6738 = vrot.slane %v6665, 1
  %v6739 = vsel %vm6683, %v6738, %v6737
  %v6740 = vsel %vm6686, %v6666, %v6739
  %v6741 = vrot.slane %v6667, 7
  %v6742 = vsel %vm6689, %v6741, %v6740
  %v6743 = vrot.slane %v6668, 6
  %v6744 = vsel %vm6692, %v6743, %v6742
  %v6745 = vrot.slane %v6669, 5
  %v6746 = vsel %vm6695, %v6745, %v6744
  %v6747 = vrot.slane %v6670, 4
  %v6748 = vsel %vm6698, %v6747, %v6746
  %6749 = vrot.lane.b32.xlu0 %v6748, 96
  %v6750 = vpop.permute.xlu0 %6749
  %v6752 = vrot.slane %v6663, 4
  %v6753 = vrot.slane %v6664, 3
  %v6754 = vsel %vm6680, %v6753, %v6752
  %v6755 = vrot.slane %v6665, 2
  %v6756 = vsel %vm6683, %v6755, %v6754
  %v6757 = vrot.slane %v6666, 1
  %v6758 = vsel %vm6686, %v6757, %v6756
  %v6759 = vsel %vm6689, %v6667, %v6758
  %v6760 = vrot.slane %v6668, 7
  %v6761 = vsel %vm6692, %v6760, %v6759
  %v6762 = vrot.slane %v6669, 6
  %v6763 = vsel %vm6695, %v6762, %v6761
  %v6764 = vrot.slane %v6670, 5
  %v6765 = vsel %vm6698, %v6764, %v6763
  %v6767 = vrot.slane %v6663, 5
  %v6768 = vrot.slane %v6664, 4
  %v6769 = vsel %vm6680, %v6768, %v6767
  %v6770 = vrot.slane %v6665, 3
  %v6771 = vsel %vm6683, %v6770, %v6769
  %v6772 = vrot.slane %v6666, 2
  %v6773 = vsel %vm6686, %v6772, %v6771
  %v6774 = vrot.slane %v6667, 1
  %v6775 = vsel %vm6689, %v6774, %v6773
  %v6776 = vsel %vm6692, %v6668, %v6775
  %v6777 = vrot.slane %v6669, 7
  %v6778 = vsel %vm6695, %v6777, %v6776
  %v6779 = vrot.slane %v6670, 6
  %v6780 = vsel %vm6698, %v6779, %v6778
  %6781 = vrot.lane.b32.xlu0 %v6780, 32
  %v6782 = vpop.permute.xlu0 %6781
  %v6784 = vrot.slane %v6663, 6
  %v6785 = vrot.slane %v6664, 5
  %v6786 = vsel %vm6680, %v6785, %v6784
  %v6787 = vrot.slane %v6665, 4
  %v6788 = vsel %vm6683, %v6787, %v6786
  %v6789 = vrot.slane %v6666, 3
  %v6790 = vsel %vm6686, %v6789, %v6788
  %v6791 = vrot.slane %v6667, 2
  %v6792 = vsel %vm6689, %v6791, %v6790
  %v6793 = vrot.slane %v6668, 1
  %v6794 = vsel %vm6692, %v6793, %v6792
  %v6795 = vsel %vm6695, %v6669, %v6794
  %v6796 = vrot.slane %v6670, 7
  %v6797 = vsel %vm6698, %v6796, %v6795
  %6798 = vrot.lane.b32.xlu0 %v6797, 64
  %v6799 = vpop.permute.xlu0 %6798
  %v6801 = vrot.slane %v6663, 7
  %v6802 = vrot.slane %v6664, 6
  %v6803 = vsel %vm6680, %v6802, %v6801
  %v6804 = vrot.slane %v6665, 5
  %v6805 = vsel %vm6683, %v6804, %v6803
  %v6806 = vrot.slane %v6666, 4
  %v6807 = vsel %vm6686, %v6806, %v6805
  %v6808 = vrot.slane %v6667, 3
  %v6809 = vsel %vm6689, %v6808, %v6807
  %v6810 = vrot.slane %v6668, 2
  %v6811 = vsel %vm6692, %v6810, %v6809
  %v6812 = vrot.slane %v6669, 1
  %v6813 = vsel %vm6695, %v6812, %v6811
  %v6814 = vsel %vm6698, %v6670, %v6813
  %6815 = vrot.lane.b32.xlu0 %v6814, 96
  %v6816 = vpop.permute.xlu0 %6815
  %v6818 = vsel %vm391, %v6699, %v6716
  %vm6819 = vcmask 523264
  %v6820 = vsel %vm6819, %v6818, %v6733
  %vm6821 = vcmask 785408
  %v6822 = vsel %vm6821, %v6820, %v6750
  %v6823 = vsel %vm391, %v6765, %v6782
  %v6824 = vsel %vm6819, %v6823, %v6799
  %v6825 = vsel %vm6821, %v6824, %v6816
  %6826 = vst [vmem:[%s59] sm:$0xff] %v6822
  %6827 = vst [vmem:[%s59 + $0x8] sm:$0xff] %v6825
  // Predicated region
  $region118: #{_lambda_.1} parent=0 // pred_check
    _
  $region119: #{_lambda_.1} parent=0 // pred_check_branch
    %6829 = sbr.rel (0) target = $region121
  $region120: #{_lambda_.1} parent=0 // pred_region
    _
  $region121: #{_lambda_.1} parent=0 // pred_fallthru
    _
  // Predicated region
  $region122: #{_lambda_.1} parent=0 // pred_check
    _
  $region123: #{_lambda_.1} parent=0 // pred_check_branch
    %6831 = sbr.rel (0) target = $region125
  $region124: #{_lambda_.1} parent=0 // pred_region
    _
  $region125: #{_lambda_.1} parent=0 // pred_fallthru
    _

</llo_original>
